<compile_context>
chip_gen: v7x
topology: tpu7x:2x2x1
jax: 0.10.0
libtpu: 0.0.40
codegen_flags: <defaults>
</compile_context>

<pallas_src>
import functools

import jax
import jax.numpy as jnp
from jax.experimental import pallas as pl
from jax.experimental.pallas import tpu as pltpu


# MXU operand dtype (accumulation is always f32 via preferred_element_type).  bf16 is
# native on v5e/v6e/v7x MXUs: ~2-4x matmul throughput vs f32 and half the VMEM footprint
# for the activation slabs.  Flip to jnp.float32 for bit-tighter numerics.
CDT = jnp.bfloat16

_NEG = -1e30      # finite "-inf" used only for the max-pool halo (never enters the MXU)
_LANE = 128       # TPU lane width; final output channels are padded to a multiple of this


def _round_up(x, m):
    return (x + m - 1) // m * m


# ---------------------------------------------------------------------------
# Fused inception kernel (one grid step == one image)
# ---------------------------------------------------------------------------
def _inception_kernel(x_ref, wcat_ref, bcat_ref, w2b_ref, b2b_ref,
                      w3b_ref, b3b_ref, w4_ref, b4_ref, out_ref,
                      xslab_ref, h2_ref, h3_ref,
                      *, H, W, Wp, c1, c2a, c3a):
    # Wide-row layout: output position (h, w) <-> row q = h*Wp + w; rows with w >= W are
    # "garbage" columns that never reach HBM (the final store only picks w < W).
    Lx = H * Wp

    # ---- Build the padded x slab in VMEM (no padded HBM copy of x). ---------------
    # Image pixel (h, w) lives at slab row (h+1)*Wp + (w+1); halo / alignment columns
    # stay at _NEG so the 3x3 max-pool sees "-inf" padding.
    xslab_ref[...] = jnp.full(xslab_ref.shape, _NEG, xslab_ref.dtype)
    for h in range(H):
        xslab_ref[pl.ds((h + 1) * Wp + 1, W), :] = x_ref[h]

    # Column-validity mask over wide rows (valid iff w < W).
    col = jax.lax.broadcasted_iota(jnp.int32, (Lx, 1), 0) % Wp
    valid = col < W

    # ---- Stage 1: the three 1x1 convs sharing x, fused into one MXU matmul. -------
    center = xslab_ref[pl.ds(Wp + 1, Lx), :]
    xc = jnp.where(valid, center, 0.0).astype(CDT)          # mask _NEG before the MXU
    ycat = jnp.dot(xc, wcat_ref[...], preferred_element_type=jnp.float32)
    ycat = jnp.maximum(ycat + bcat_ref[...], 0.0)            # (Lx, c1+c2a+c3a), f32
    o1 = ycat[:, :c1]

    # ---- Branch 4: 3x3/s1/p1 max-pool (VPU) + 1x1 conv (MXU) + ReLU. ---------------
    pooled = xslab_ref[pl.ds(0, Lx), :]
    for t in range(1, 9):
        ky, kx = divmod(t, 3)
        pooled = jnp.maximum(pooled, xslab_ref[pl.ds(ky * Wp + kx, Lx), :])
    pooled = jnp.where(valid, pooled, 0.0).astype(CDT)        # mask _NEG before the MXU
    o4 = jnp.maximum(
        jnp.dot(pooled, w4_ref[...], preferred_element_type=jnp.float32)
        + b4_ref[...], 0.0)

    # ---- Reduce activations -> zero-halo bf16 slabs kept entirely in VMEM. ---------
    # h2a pixel (h, w) at slab row (h+2)*Wp + w; h3a pixel at (h+3)*Wp + w.  Garbage
    # columns are zeroed so they act as the horizontal zero padding of the convs.
    h2a = jnp.where(valid, ycat[:, c1:c1 + c2a], 0.0).astype(CDT)
    h3a = jnp.where(valid, ycat[:, c1 + c2a:], 0.0).astype(CDT)
    h2_ref[...] = jnp.zeros(h2_ref.shape, h2_ref.dtype)
    h2_ref[pl.ds(2 * Wp, Lx), :] = h2a                        # 8-aligned store offset
    h3_ref[...] = jnp.zeros(h3_ref.shape, h3_ref.dtype)
    h3_ref[pl.ds(3 * Wp, Lx), :] = h3a                        # 8-aligned store offset

    # ---- Branch 2: 3x3 conv.  Per-ky packed taps -> contraction depth 3*c2a. -------
    c2b = w2b_ref.shape[-1]
    acc2 = jnp.zeros((Lx, c2b), jnp.float32)
    for ky in range(3):
        lhs = jnp.concatenate(
            [h2_ref[pl.ds((ky + 1) * Wp + kx - 1, Lx), :] for kx in range(3)],
            axis=-1)
        acc2 = acc2 + jnp.dot(lhs, w2b_ref[ky],
                              preferred_element_type=jnp.float32)
    o2 = jnp.maximum(acc2 + b2b_ref[...], 0.0)

    # ---- Branch 3: 5x5 conv.  Per-ky packed taps -> contraction depth 5*c3a. -------
    c3b = w3b_ref.shape[-1]
    acc3 = jnp.zeros((Lx, c3b), jnp.float32)
    for ky in range(5):
        lhs = jnp.concatenate(
            [h3_ref[pl.ds((ky + 1) * Wp + kx - 2, Lx), :] for kx in range(5)],
            axis=-1)
        acc3 = acc3 + jnp.dot(lhs, w3b_ref[ky],
                              preferred_element_type=jnp.float32)
    o3 = jnp.maximum(acc3 + b3b_ref[...], 0.0)

    # ---- Final: one lane-dense (multiple-of-128 channels) slab, stored packed. -----
    Cpad = out_ref.shape[-1]
    Ctot = c1 + c2b + c3b + o4.shape[-1]
    pieces = [o1, o2, o3, o4]
    if Cpad > Ctot:
        pieces.append(jnp.zeros((Lx, Cpad - Ctot), jnp.float32))
    res = jnp.concatenate(pieces, axis=-1).astype(out_ref.dtype)   # (Lx, Cpad)
    for h in range(H):                                              # drop garbage columns
        out_ref[h] = res[h * Wp:h * Wp + W, :]


# ---------------------------------------------------------------------------
# Wrapper
# ---------------------------------------------------------------------------
def inceptionv1_block_nhwc(x_nhwc, p):
    """NHWC forward of the inception block; returns (N, H, W, c1+c2b+c3b+c4)."""
    N, H, W, Cin = x_nhwc.shape
    c1, c2a, c3a, c4 = (p["w1"].shape[1], p["w2a"].shape[1],
                        p["w3a"].shape[1], p["w4"].shape[1])
    c2b, c3b = p["w2b"].shape[-1], p["w3b"].shape[-1]
    Ccat = c1 + c2a + c3a
    Ctot = c1 + c2b + c3b + c4
    Cpad = _round_up(Ctot, _LANE)
    Wp = _round_up(W + 2, 8)           # >= 1-col halo on each side, sublane aligned
    f32 = jnp.float32

    # Fuse the three 1x1 convs that share x into one wide matmul; pack KxK weights per ky.
    wcat = jnp.concatenate([p["w1"], p["w2a"], p["w3a"]], axis=1).astype(CDT)
    bcat = jnp.concatenate([p["b1"], p["b2a"], p["b3a"]]).reshape(1, Ccat).astype(f32)
    w2b = p["w2b"].reshape(3, 3 * c2a, c2b).astype(CDT)
    w3b = p["w3b"].reshape(5, 5 * c3a, c3b).astype(CDT)
    w4 = p["w4"].astype(CDT)
    b2b = p["b2b"].reshape(1, c2b).astype(f32)
    b3b = p["b3b"].reshape(1, c3b).astype(f32)
    b4 = p["b4"].reshape(1, c4).astype(f32)

    kern = functools.partial(_inception_kernel, H=H, W=W, Wp=Wp,
                             c1=c1, c2a=c2a, c3a=c3a)

    itemsize = jnp.dtype(x_nhwc.dtype).itemsize
    flops = 2 * N * H * W * (Cin * (Ccat + c4) + 9 * c2a * c2b + 25 * c3a * c3b)
    bytes_acc = ((x_nhwc.size + N * H * W * Cpad) * itemsize
                 + 2 * (wcat.size + w2b.size + w3b.size + w4.size))

    out = pl.pallas_call(
        kern,
        grid=(N,),
        out_shape=jax.ShapeDtypeStruct((N, H, W, Cpad), x_nhwc.dtype),
        in_specs=[
            pl.BlockSpec((None, H, W, Cin), lambda n: (n, 0, 0, 0)),
            pl.BlockSpec((Cin, Ccat), lambda n: (0, 0)),
            pl.BlockSpec((1, Ccat), lambda n: (0, 0)),
            pl.BlockSpec((3, 3 * c2a, c2b), lambda n: (0, 0, 0)),
            pl.BlockSpec((1, c2b), lambda n: (0, 0)),
            pl.BlockSpec((5, 5 * c3a, c3b), lambda n: (0, 0, 0)),
            pl.BlockSpec((1, c3b), lambda n: (0, 0)),
            pl.BlockSpec((Cin, c4), lambda n: (0, 0)),
            pl.BlockSpec((1, c4), lambda n: (0, 0)),
        ],
        out_specs=pl.BlockSpec((None, H, W, Cpad), lambda n: (n, 0, 0, 0)),
        scratch_shapes=[
            pltpu.VMEM(((H + 3) * Wp, Cin), x_nhwc.dtype),   # -inf padded x slab
            pltpu.VMEM(((H + 4) * Wp, c2a), CDT),            # zero-halo h2a slab
            pltpu.VMEM(((H + 6) * Wp, c3a), CDT),            # zero-halo h3a slab
        ],
        compiler_params=pltpu.CompilerParams(
            dimension_semantics=("parallel",),               # batch across TensorCores
            vmem_limit_bytes=48 * 1024 * 1024,               # inside v7x's 64 MiB VMEM
        ),
        cost_estimate=pl.CostEstimate(flops=flops, transcendentals=0,
                                      bytes_accessed=bytes_acc),
    )(x_nhwc, wcat, bcat, w2b, b2b, w3b, b3b, w4, b4)

    return out if Cpad == Ctot else out[..., :Ctot]


def inceptionv1_block(x_nchw, p):
    """Forward pass matching the PyTorch module; input/output are NCHW."""
    x = jnp.transpose(x_nchw, (0, 2, 3, 1))
    out = inceptionv1_block_nhwc(x, p)
    return jnp.transpose(out, (0, 3, 1, 2))


# ---------------------------------------------------------------------------
# Deterministic synthetic parameters
# ---------------------------------------------------------------------------
def init_params(key, cin, c1, c2a, c2b, c3a, c3b, c4):
    ks = jax.random.split(key, 12)

    def w1x1(k, ci, co):
        return 0.1 * jax.random.normal(k, (ci, co), jnp.float32)

    def wkxk(k, K, ci, co):
        return 0.1 * jax.random.normal(k, (K * K, ci, co), jnp.float32)

    def bias(k, co):
        return 0.05 * jax.random.normal(k, (co,), jnp.float32)

    return {
        "w1": w1x1(ks[0], cin, c1),        "b1": bias(ks[1], c1),
        "w2a": w1x1(ks[2], cin, c2a),      "b2a": bias(ks[3], c2a),
        "w2b": wkxk(ks[4], 3, c2a, c2b),   "b2b": bias(ks[5], c2b),
        "w3a": w1x1(ks[6], cin, c3a),      "b3a": bias(ks[7], c3a),
        "w3b": wkxk(ks[8], 5, c3a, c3b),   "b3b": bias(ks[9], c3b),
        "w4": w1x1(ks[10], cin, c4),       "b4": bias(ks[11], c4),
    }


# ---------------------------------------------------------------------------
# Pure-JAX f32 reference (for correctness check)
# ---------------------------------------------------------------------------
def _ref_block(x_nchw, p):
    x = jnp.transpose(x_nchw, (0, 2, 3, 1))

    def c1x1(xx, w, b):
        return jnp.maximum(jnp.einsum("nhwc,co->nhwo", xx, w) + b, 0.0)

    def ckxk(xx, w, b, K):
        w4 = w.reshape(K, K, w.shape[1], w.shape[2])  # HWIO
        y = jax.lax.conv_general_dilated(
            xx, w4, (1, 1), "SAME",
            dimension_numbers=("NHWC", "HWIO", "NHWC"))
        return jnp.maximum(y + b, 0.0)

    def mp3(xx):
        return jax.lax.reduce_window(xx, -jnp.inf, jax.lax.max,
                                     (1, 3, 3, 1), (1, 1, 1, 1), "SAME")

    o1 = c1x1(x, p["w1"], p["b1"])
    o2 = ckxk(c1x1(x, p["w2a"], p["b2a"]), p["w2b"], p["b2b"], 3)
    o3 = ckxk(c1x1(x, p["w3a"], p["b3a"]), p["w3b"], p["b3b"], 5)
    o4 = c1x1(mp3(x), p["w4"], p["b4"])
    out = jnp.concatenate([o1, o2, o3, o4], axis=-1)
    return jnp.transpose(out, (0, 3, 1, 2))


# ---------------------------------------------------------------------------
if __name__ == "__main__":
    key = jax.random.PRNGKey(0)
    k_x, k_p = jax.random.split(key)

    # Small shapes consistent with the module; NCHW input like PyTorch.
    N, Cin, H, W = 2, 4, 16, 16
    c1, c2a, c2b, c3a, c3b, c4 = 8, 8, 16, 4, 8, 8

    x = jax.random.normal(k_x, (N, Cin, H, W), jnp.float32)
    params = init_params(k_p, Cin, c1, c2a, c2b, c3a, c3b, c4)

    fwd = jax.jit(inceptionv1_block)
    out = jax.block_until_ready(fwd(x, params))

    expected_shape = (N, c1 + c2b + c3b + c4, H, W)
    assert out.shape == expected_shape, (out.shape, expected_shape)
    assert bool(jnp.all(jnp.isfinite(out)))

    ref = _ref_block(x, params)
    max_err = float(jnp.max(jnp.abs(out - ref)))
    # bf16 MXU operands vs f32 reference -> relaxed (but still tight) tolerance.
    assert bool(jnp.allclose(out, ref, atol=2e-2, rtol=2e-2)), max_err

    print("KERNEL_OK")
</pallas_src>

<mosaic_0001>
module attributes {stable_mosaic.version = 11 : i64} {
  func.func @_inception_kernel(%arg0: i32, %arg1: memref<1x16x16x4xf32, #tpu.memory_space<vmem>>, %arg2: memref<4x20xbf16, #tpu.memory_space<vmem>>, %arg3: memref<1x20xf32, #tpu.memory_space<vmem>>, %arg4: memref<3x24x16xbf16, #tpu.memory_space<vmem>>, %arg5: memref<1x16xf32, #tpu.memory_space<vmem>>, %arg6: memref<5x20x8xbf16, #tpu.memory_space<vmem>>, %arg7: memref<1x8xf32, #tpu.memory_space<vmem>>, %arg8: memref<4x8xbf16, #tpu.memory_space<vmem>>, %arg9: memref<1x8xf32, #tpu.memory_space<vmem>>, %arg10: memref<1x16x16x128xf32, #tpu.memory_space<vmem>>, %arg11: memref<456x4xf32, #tpu.memory_space<vmem>>, %arg12: memref<480x8xbf16, #tpu.memory_space<vmem>>, %arg13: memref<528x4xbf16, #tpu.memory_space<vmem>>) attributes {dimension_semantics = [#tpu.dimension_semantics<parallel>], iteration_bounds = array<i64: 2>, scalar_prefetch = 0 : i64, scratch_operands = 3 : i64, tpu.core_type = #tpu.core_type<tc>, window_params = [{transform_indices = @transform_0, window_bounds = array<i64: 1, 16, 16, 4>}, {pipeline_mode = #tpu.pipeline_mode<synchronous>, transform_indices = @transform_1, window_bounds = array<i64: 4, 20>}, {pipeline_mode = #tpu.pipeline_mode<synchronous>, transform_indices = @transform_2, window_bounds = array<i64: 1, 20>}, {pipeline_mode = #tpu.pipeline_mode<synchronous>, transform_indices = @transform_3, window_bounds = array<i64: 3, 24, 16>}, {pipeline_mode = #tpu.pipeline_mode<synchronous>, transform_indices = @transform_4, window_bounds = array<i64: 1, 16>}, {pipeline_mode = #tpu.pipeline_mode<synchronous>, transform_indices = @transform_5, window_bounds = array<i64: 5, 20, 8>}, {pipeline_mode = #tpu.pipeline_mode<synchronous>, transform_indices = @transform_6, window_bounds = array<i64: 1, 8>}, {pipeline_mode = #tpu.pipeline_mode<synchronous>, transform_indices = @transform_7, window_bounds = array<i64: 4, 8>}, {pipeline_mode = #tpu.pipeline_mode<synchronous>, transform_indices = @transform_8, window_bounds = array<i64: 1, 8>}, {transform_indices = @transform_9, window_bounds = array<i64: 1, 16, 16, 128>}]} {
    %cst = arith.constant -1.000000e+30 : f32
    %0 = vector.broadcast %cst : f32 to vector<456x4xf32>
    %c0 = arith.constant 0 : index
    %c0_0 = arith.constant 0 : index
    %1 = vector.load %arg11[%c0, %c0_0] : memref<456x4xf32, #tpu.memory_space<vmem>>, vector<456x4xf32>
    tpu.vector_store %arg11[%c0, %c0_0], %0 {strides = array<i32>} : memref<456x4xf32, #tpu.memory_space<vmem>>, vector<456x4xf32>,
    %c0_1 = arith.constant 0 : index
    %c0_2 = arith.constant 0 : index
    %c0_3 = arith.constant 0 : index
    %c0_4 = arith.constant 0 : index
    %2 = vector.load %arg1[%c0_1, %c0_2, %c0_3, %c0_4] : memref<1x16x16x4xf32, #tpu.memory_space<vmem>>, vector<1x1x16x4xf32>
    %3 = vector.shape_cast %2 : vector<1x1x16x4xf32> to vector<16x4xf32>
    %c25 = arith.constant 25 : index
    %c0_5 = arith.constant 0 : index
    %4 = vector.load %arg11[%c25, %c0_5] : memref<456x4xf32, #tpu.memory_space<vmem>>, vector<16x4xf32>
    tpu.vector_store %arg11[%c25, %c0_5], %3 {strides = array<i32>} : memref<456x4xf32, #tpu.memory_space<vmem>>, vector<16x4xf32>,
    %c0_6 = arith.constant 0 : index
    %c1 = arith.constant 1 : index
    %c0_7 = arith.constant 0 : index
    %c0_8 = arith.constant 0 : index
    %5 = vector.load %arg1[%c0_6, %c1, %c0_7, %c0_8] : memref<1x16x16x4xf32, #tpu.memory_space<vmem>>, vector<1x1x16x4xf32>
    %6 = vector.shape_cast %5 : vector<1x1x16x4xf32> to vector<16x4xf32>
    %c49 = arith.constant 49 : index
    %c0_9 = arith.constant 0 : index
    %7 = vector.load %arg11[%c49, %c0_9] : memref<456x4xf32, #tpu.memory_space<vmem>>, vector<16x4xf32>
    tpu.vector_store %arg11[%c49, %c0_9], %6 {strides = array<i32>} : memref<456x4xf32, #tpu.memory_space<vmem>>, vector<16x4xf32>,
    %c0_10 = arith.constant 0 : index
    %c2 = arith.constant 2 : index
    %c0_11 = arith.constant 0 : index
    %c0_12 = arith.constant 0 : index
    %8 = vector.load %arg1[%c0_10, %c2, %c0_11, %c0_12] : memref<1x16x16x4xf32, #tpu.memory_space<vmem>>, vector<1x1x16x4xf32>
    %9 = vector.shape_cast %8 : vector<1x1x16x4xf32> to vector<16x4xf32>
    %c73 = arith.constant 73 : index
    %c0_13 = arith.constant 0 : index
    %10 = vector.load %arg11[%c73, %c0_13] : memref<456x4xf32, #tpu.memory_space<vmem>>, vector<16x4xf32>
    tpu.vector_store %arg11[%c73, %c0_13], %9 {strides = array<i32>} : memref<456x4xf32, #tpu.memory_space<vmem>>, vector<16x4xf32>,
    %c0_14 = arith.constant 0 : index
    %c3 = arith.constant 3 : index
    %c0_15 = arith.constant 0 : index
    %c0_16 = arith.constant 0 : index
    %11 = vector.load %arg1[%c0_14, %c3, %c0_15, %c0_16] : memref<1x16x16x4xf32, #tpu.memory_space<vmem>>, vector<1x1x16x4xf32>
    %12 = vector.shape_cast %11 : vector<1x1x16x4xf32> to vector<16x4xf32>
    %c97 = arith.constant 97 : index
    %c0_17 = arith.constant 0 : index
    %13 = vector.load %arg11[%c97, %c0_17] : memref<456x4xf32, #tpu.memory_space<vmem>>, vector<16x4xf32>
    tpu.vector_store %arg11[%c97, %c0_17], %12 {strides = array<i32>} : memref<456x4xf32, #tpu.memory_space<vmem>>, vector<16x4xf32>,
    %c0_18 = arith.constant 0 : index
    %c4 = arith.constant 4 : index
    %c0_19 = arith.constant 0 : index
    %c0_20 = arith.constant 0 : index
    %14 = vector.load %arg1[%c0_18, %c4, %c0_19, %c0_20] : memref<1x16x16x4xf32, #tpu.memory_space<vmem>>, vector<1x1x16x4xf32>
    %15 = vector.shape_cast %14 : vector<1x1x16x4xf32> to vector<16x4xf32>
    %c121 = arith.constant 121 : index
    %c0_21 = arith.constant 0 : index
    %16 = vector.load %arg11[%c121, %c0_21] : memref<456x4xf32, #tpu.memory_space<vmem>>, vector<16x4xf32>
    tpu.vector_store %arg11[%c121, %c0_21], %15 {strides = array<i32>} : memref<456x4xf32, #tpu.memory_space<vmem>>, vector<16x4xf32>,
    %c0_22 = arith.constant 0 : index
    %c5 = arith.constant 5 : index
    %c0_23 = arith.constant 0 : index
    %c0_24 = arith.constant 0 : index
    %17 = vector.load %arg1[%c0_22, %c5, %c0_23, %c0_24] : memref<1x16x16x4xf32, #tpu.memory_space<vmem>>, vector<1x1x16x4xf32>
    %18 = vector.shape_cast %17 : vector<1x1x16x4xf32> to vector<16x4xf32>
    %c145 = arith.constant 145 : index
    %c0_25 = arith.constant 0 : index
    %19 = vector.load %arg11[%c145, %c0_25] : memref<456x4xf32, #tpu.memory_space<vmem>>, vector<16x4xf32>
    tpu.vector_store %arg11[%c145, %c0_25], %18 {strides = array<i32>} : memref<456x4xf32, #tpu.memory_space<vmem>>, vector<16x4xf32>,
    %c0_26 = arith.constant 0 : index
    %c6 = arith.constant 6 : index
    %c0_27 = arith.constant 0 : index
    %c0_28 = arith.constant 0 : index
    %20 = vector.load %arg1[%c0_26, %c6, %c0_27, %c0_28] : memref<1x16x16x4xf32, #tpu.memory_space<vmem>>, vector<1x1x16x4xf32>
    %21 = vector.shape_cast %20 : vector<1x1x16x4xf32> to vector<16x4xf32>
    %c169 = arith.constant 169 : index
    %c0_29 = arith.constant 0 : index
    %22 = vector.load %arg11[%c169, %c0_29] : memref<456x4xf32, #tpu.memory_space<vmem>>, vector<16x4xf32>
    tpu.vector_store %arg11[%c169, %c0_29], %21 {strides = array<i32>} : memref<456x4xf32, #tpu.memory_space<vmem>>, vector<16x4xf32>,
    %c0_30 = arith.constant 0 : index
    %c7 = arith.constant 7 : index
    %c0_31 = arith.constant 0 : index
    %c0_32 = arith.constant 0 : index
    %23 = vector.load %arg1[%c0_30, %c7, %c0_31, %c0_32] : memref<1x16x16x4xf32, #tpu.memory_space<vmem>>, vector<1x1x16x4xf32>
    %24 = vector.shape_cast %23 : vector<1x1x16x4xf32> to vector<16x4xf32>
    %c193 = arith.constant 193 : index
    %c0_33 = arith.constant 0 : index
    %25 = vector.load %arg11[%c193, %c0_33] : memref<456x4xf32, #tpu.memory_space<vmem>>, vector<16x4xf32>
    tpu.vector_store %arg11[%c193, %c0_33], %24 {strides = array<i32>} : memref<456x4xf32, #tpu.memory_space<vmem>>, vector<16x4xf32>,
    %c0_34 = arith.constant 0 : index
    %c8 = arith.constant 8 : index
    %c0_35 = arith.constant 0 : index
    %c0_36 = arith.constant 0 : index
    %26 = vector.load %arg1[%c0_34, %c8, %c0_35, %c0_36] : memref<1x16x16x4xf32, #tpu.memory_space<vmem>>, vector<1x1x16x4xf32>
    %27 = vector.shape_cast %26 : vector<1x1x16x4xf32> to vector<16x4xf32>
    %c217 = arith.constant 217 : index
    %c0_37 = arith.constant 0 : index
    %28 = vector.load %arg11[%c217, %c0_37] : memref<456x4xf32, #tpu.memory_space<vmem>>, vector<16x4xf32>
    tpu.vector_store %arg11[%c217, %c0_37], %27 {strides = array<i32>} : memref<456x4xf32, #tpu.memory_space<vmem>>, vector<16x4xf32>,
    %c0_38 = arith.constant 0 : index
    %c9 = arith.constant 9 : index
    %c0_39 = arith.constant 0 : index
    %c0_40 = arith.constant 0 : index
    %29 = vector.load %arg1[%c0_38, %c9, %c0_39, %c0_40] : memref<1x16x16x4xf32, #tpu.memory_space<vmem>>, vector<1x1x16x4xf32>
    %30 = vector.shape_cast %29 : vector<1x1x16x4xf32> to vector<16x4xf32>
    %c241 = arith.constant 241 : index
    %c0_41 = arith.constant 0 : index
    %31 = vector.load %arg11[%c241, %c0_41] : memref<456x4xf32, #tpu.memory_space<vmem>>, vector<16x4xf32>
    tpu.vector_store %arg11[%c241, %c0_41], %30 {strides = array<i32>} : memref<456x4xf32, #tpu.memory_space<vmem>>, vector<16x4xf32>,
    %c0_42 = arith.constant 0 : index
    %c10 = arith.constant 10 : index
    %c0_43 = arith.constant 0 : index
    %c0_44 = arith.constant 0 : index
    %32 = vector.load %arg1[%c0_42, %c10, %c0_43, %c0_44] : memref<1x16x16x4xf32, #tpu.memory_space<vmem>>, vector<1x1x16x4xf32>
    %33 = vector.shape_cast %32 : vector<1x1x16x4xf32> to vector<16x4xf32>
    %c265 = arith.constant 265 : index
    %c0_45 = arith.constant 0 : index
    %34 = vector.load %arg11[%c265, %c0_45] : memref<456x4xf32, #tpu.memory_space<vmem>>, vector<16x4xf32>
    tpu.vector_store %arg11[%c265, %c0_45], %33 {strides = array<i32>} : memref<456x4xf32, #tpu.memory_space<vmem>>, vector<16x4xf32>,
    %c0_46 = arith.constant 0 : index
    %c11 = arith.constant 11 : index
    %c0_47 = arith.constant 0 : index
    %c0_48 = arith.constant 0 : index
    %35 = vector.load %arg1[%c0_46, %c11, %c0_47, %c0_48] : memref<1x16x16x4xf32, #tpu.memory_space<vmem>>, vector<1x1x16x4xf32>
    %36 = vector.shape_cast %35 : vector<1x1x16x4xf32> to vector<16x4xf32>
    %c289 = arith.constant 289 : index
    %c0_49 = arith.constant 0 : index
    %37 = vector.load %arg11[%c289, %c0_49] : memref<456x4xf32, #tpu.memory_space<vmem>>, vector<16x4xf32>
    tpu.vector_store %arg11[%c289, %c0_49], %36 {strides = array<i32>} : memref<456x4xf32, #tpu.memory_space<vmem>>, vector<16x4xf32>,
    %c0_50 = arith.constant 0 : index
    %c12 = arith.constant 12 : index
    %c0_51 = arith.constant 0 : index
    %c0_52 = arith.constant 0 : index
    %38 = vector.load %arg1[%c0_50, %c12, %c0_51, %c0_52] : memref<1x16x16x4xf32, #tpu.memory_space<vmem>>, vector<1x1x16x4xf32>
    %39 = vector.shape_cast %38 : vector<1x1x16x4xf32> to vector<16x4xf32>
    %c313 = arith.constant 313 : index
    %c0_53 = arith.constant 0 : index
    %40 = vector.load %arg11[%c313, %c0_53] : memref<456x4xf32, #tpu.memory_space<vmem>>, vector<16x4xf32>
    tpu.vector_store %arg11[%c313, %c0_53], %39 {strides = array<i32>} : memref<456x4xf32, #tpu.memory_space<vmem>>, vector<16x4xf32>,
    %c0_54 = arith.constant 0 : index
    %c13 = arith.constant 13 : index
    %c0_55 = arith.constant 0 : index
    %c0_56 = arith.constant 0 : index
    %41 = vector.load %arg1[%c0_54, %c13, %c0_55, %c0_56] : memref<1x16x16x4xf32, #tpu.memory_space<vmem>>, vector<1x1x16x4xf32>
    %42 = vector.shape_cast %41 : vector<1x1x16x4xf32> to vector<16x4xf32>
    %c337 = arith.constant 337 : index
    %c0_57 = arith.constant 0 : index
    %43 = vector.load %arg11[%c337, %c0_57] : memref<456x4xf32, #tpu.memory_space<vmem>>, vector<16x4xf32>
    tpu.vector_store %arg11[%c337, %c0_57], %42 {strides = array<i32>} : memref<456x4xf32, #tpu.memory_space<vmem>>, vector<16x4xf32>,
    %c0_58 = arith.constant 0 : index
    %c14 = arith.constant 14 : index
    %c0_59 = arith.constant 0 : index
    %c0_60 = arith.constant 0 : index
    %44 = vector.load %arg1[%c0_58, %c14, %c0_59, %c0_60] : memref<1x16x16x4xf32, #tpu.memory_space<vmem>>, vector<1x1x16x4xf32>
    %45 = vector.shape_cast %44 : vector<1x1x16x4xf32> to vector<16x4xf32>
    %c361 = arith.constant 361 : index
    %c0_61 = arith.constant 0 : index
    %46 = vector.load %arg11[%c361, %c0_61] : memref<456x4xf32, #tpu.memory_space<vmem>>, vector<16x4xf32>
    tpu.vector_store %arg11[%c361, %c0_61], %45 {strides = array<i32>} : memref<456x4xf32, #tpu.memory_space<vmem>>, vector<16x4xf32>,
    %c0_62 = arith.constant 0 : index
    %c15 = arith.constant 15 : index
    %c0_63 = arith.constant 0 : index
    %c0_64 = arith.constant 0 : index
    %47 = vector.load %arg1[%c0_62, %c15, %c0_63, %c0_64] : memref<1x16x16x4xf32, #tpu.memory_space<vmem>>, vector<1x1x16x4xf32>
    %48 = vector.shape_cast %47 : vector<1x1x16x4xf32> to vector<16x4xf32>
    %c385 = arith.constant 385 : index
    %c0_65 = arith.constant 0 : index
    %49 = vector.load %arg11[%c385, %c0_65] : memref<456x4xf32, #tpu.memory_space<vmem>>, vector<16x4xf32>
    tpu.vector_store %arg11[%c385, %c0_65], %48 {strides = array<i32>} : memref<456x4xf32, #tpu.memory_space<vmem>>, vector<16x4xf32>,
    %50 = tpu.iota {dimensions = array<i32: 0>} : vector<384x1xi32>
    %c24_i32 = arith.constant 24 : i32
    %c0_i32 = arith.constant 0 : i32
    %51 = arith.cmpi eq, %c24_i32, %c0_i32 : i32
    %c1_i32 = arith.constant 1 : i32
    %52 = arith.select %51, %c1_i32, %c24_i32 : i32
    %53 = vector.broadcast %52 : i32 to vector<384x1xi32>
    %54 = arith.remsi %50, %53 : vector<384x1xi32>
    %c0_i32_66 = arith.constant 0 : i32
    %55 = vector.broadcast %c0_i32_66 : i32 to vector<384x1xi32>
    %56 = arith.cmpi ne, %54, %55 : vector<384x1xi32>
    %c0_i32_67 = arith.constant 0 : i32
    %57 = vector.broadcast %c0_i32_67 : i32 to vector<384x1xi32>
    %58 = arith.cmpi slt, %54, %57 : vector<384x1xi32>
    %c0_i32_68 = arith.constant 0 : i32
    %59 = arith.cmpi slt, %52, %c0_i32_68 : i32
    %60 = vector.broadcast %59 : i1 to vector<384x1xi1>
    %61 = vector.broadcast %60 : vector<384x1xi1> to vector<384x1xi1>
    %62 = arith.xori %58, %61 : vector<384x1xi1>
    %63 = arith.andi %62, %56 : vector<384x1xi1>
    %64 = vector.broadcast %52 : i32 to vector<384x1xi32>
    %65 = arith.addi %54, %64 : vector<384x1xi32>
    %66 = arith.select %63, %65, %54 : vector<384x1xi1>, vector<384x1xi32>
    %c16_i32 = arith.constant 16 : i32
    %67 = vector.broadcast %c16_i32 : i32 to vector<384x1xi32>
    %68 = arith.cmpi slt, %66, %67 : vector<384x1xi32>
    %c25_69 = arith.constant 25 : index
    %c0_70 = arith.constant 0 : index
    %69 = vector.load %arg11[%c25_69, %c0_70] : memref<456x4xf32, #tpu.memory_space<vmem>>, vector<384x4xf32>
    %cst_71 = arith.constant 0.000000e+00 : f32
    %70 = vector.shape_cast %68 : vector<384x1xi1> to vector<384x1xi1>
    %71 = vector.broadcast %70 : vector<384x1xi1> to vector<384x4xi1>
    %72 = vector.broadcast %cst_71 : f32 to vector<384x4xf32>
    %73 = arith.select %71, %69, %72 : vector<384x4xi1>, vector<384x4xf32>
    %74 = arith.truncf %73 : vector<384x4xf32> to vector<384x4xbf16>
    %c0_72 = arith.constant 0 : index
    %c0_73 = arith.constant 0 : index
    %75 = vector.load %arg2[%c0_72, %c0_73] : memref<4x20xbf16, #tpu.memory_space<vmem>>, vector<4x20xbf16>
    %cst_74 = arith.constant dense<0.000000e+00> : vector<384x20xf32>
    %76 = tpu.matmul %74, %75, %cst_74 {dimension_numbers = #tpu.dot_dimension_numbers<[1], [0], [0], [1], [0, 0, 1, 1], [], []>} : vector<384x4xbf16>, vector<4x20xbf16>, vector<384x20xf32> -> vector<384x20xf32>
    %c0_75 = arith.constant 0 : index
    %c0_76 = arith.constant 0 : index
    %77 = vector.load %arg3[%c0_75, %c0_76] : memref<1x20xf32, #tpu.memory_space<vmem>>, vector<1x20xf32>
    %78 = vector.broadcast %77 : vector<1x20xf32> to vector<384x20xf32>
    %79 = arith.addf %76, %78 : vector<384x20xf32>
    %cst_77 = arith.constant 0.000000e+00 : f32
    %80 = vector.broadcast %cst_77 : f32 to vector<384x20xf32>
    %81 = arith.maximumf %79, %80 : vector<384x20xf32>
    %82 = vector.extract_strided_slice %81 {offsets = [0, 0], sizes = [384, 8], strides = [1, 1]} : vector<384x20xf32> to vector<384x8xf32>
    %c0_78 = arith.constant 0 : index
    %c0_79 = arith.constant 0 : index
    %83 = vector.load %arg11[%c0_78, %c0_79] : memref<456x4xf32, #tpu.memory_space<vmem>>, vector<384x4xf32>
    %c1_80 = arith.constant 1 : index
    %c0_81 = arith.constant 0 : index
    %84 = vector.load %arg11[%c1_80, %c0_81] : memref<456x4xf32, #tpu.memory_space<vmem>>, vector<384x4xf32>
    %85 = arith.maximumf %83, %84 : vector<384x4xf32>
    %c2_82 = arith.constant 2 : index
    %c0_83 = arith.constant 0 : index
    %86 = vector.load %arg11[%c2_82, %c0_83] : memref<456x4xf32, #tpu.memory_space<vmem>>, vector<384x4xf32>
    %87 = arith.maximumf %85, %86 : vector<384x4xf32>
    %c24 = arith.constant 24 : index
    %c0_84 = arith.constant 0 : index
    %88 = vector.load %arg11[%c24, %c0_84] : memref<456x4xf32, #tpu.memory_space<vmem>>, vector<384x4xf32>
    %89 = arith.maximumf %87, %88 : vector<384x4xf32>
    %c25_85 = arith.constant 25 : index
    %c0_86 = arith.constant 0 : index
    %90 = vector.load %arg11[%c25_85, %c0_86] : memref<456x4xf32, #tpu.memory_space<vmem>>, vector<384x4xf32>
    %91 = arith.maximumf %89, %90 : vector<384x4xf32>
    %c26 = arith.constant 26 : index
    %c0_87 = arith.constant 0 : index
    %92 = vector.load %arg11[%c26, %c0_87] : memref<456x4xf32, #tpu.memory_space<vmem>>, vector<384x4xf32>
    %93 = arith.maximumf %91, %92 : vector<384x4xf32>
    %c48 = arith.constant 48 : index
    %c0_88 = arith.constant 0 : index
    %94 = vector.load %arg11[%c48, %c0_88] : memref<456x4xf32, #tpu.memory_space<vmem>>, vector<384x4xf32>
    %95 = arith.maximumf %93, %94 : vector<384x4xf32>
    %c49_89 = arith.constant 49 : index
    %c0_90 = arith.constant 0 : index
    %96 = vector.load %arg11[%c49_89, %c0_90] : memref<456x4xf32, #tpu.memory_space<vmem>>, vector<384x4xf32>
    %97 = arith.maximumf %95, %96 : vector<384x4xf32>
    %c50 = arith.constant 50 : index
    %c0_91 = arith.constant 0 : index
    %98 = vector.load %arg11[%c50, %c0_91] : memref<456x4xf32, #tpu.memory_space<vmem>>, vector<384x4xf32>
    %99 = arith.maximumf %97, %98 : vector<384x4xf32>
    %cst_92 = arith.constant 0.000000e+00 : f32
    %100 = vector.shape_cast %68 : vector<384x1xi1> to vector<384x1xi1>
    %101 = vector.broadcast %100 : vector<384x1xi1> to vector<384x4xi1>
    %102 = vector.broadcast %cst_92 : f32 to vector<384x4xf32>
    %103 = arith.select %101, %99, %102 : vector<384x4xi1>, vector<384x4xf32>
    %104 = arith.truncf %103 : vector<384x4xf32> to vector<384x4xbf16>
    %c0_93 = arith.constant 0 : index
    %c0_94 = arith.constant 0 : index
    %105 = vector.load %arg8[%c0_93, %c0_94] : memref<4x8xbf16, #tpu.memory_space<vmem>>, vector<4x8xbf16>
    %cst_95 = arith.constant dense<0.000000e+00> : vector<384x8xf32>
    %106 = tpu.matmul %104, %105, %cst_95 {dimension_numbers = #tpu.dot_dimension_numbers<[1], [0], [0], [1], [0, 0, 1, 1], [], []>} : vector<384x4xbf16>, vector<4x8xbf16>, vector<384x8xf32> -> vector<384x8xf32>
    %c0_96 = arith.constant 0 : index
    %c0_97 = arith.constant 0 : index
    %107 = vector.load %arg9[%c0_96, %c0_97] : memref<1x8xf32, #tpu.memory_space<vmem>>, vector<1x8xf32>
    %108 = vector.broadcast %107 : vector<1x8xf32> to vector<384x8xf32>
    %109 = arith.addf %106, %108 : vector<384x8xf32>
    %cst_98 = arith.constant 0.000000e+00 : f32
    %110 = vector.broadcast %cst_98 : f32 to vector<384x8xf32>
    %111 = arith.maximumf %109, %110 : vector<384x8xf32>
    %112 = vector.extract_strided_slice %81 {offsets = [0, 8], sizes = [384, 8], strides = [1, 1]} : vector<384x20xf32> to vector<384x8xf32>
    %cst_99 = arith.constant 0.000000e+00 : f32
    %113 = vector.shape_cast %68 : vector<384x1xi1> to vector<384x1xi1>
    %114 = vector.broadcast %113 : vector<384x1xi1> to vector<384x8xi1>
    %115 = vector.broadcast %cst_99 : f32 to vector<384x8xf32>
    %116 = arith.select %114, %112, %115 : vector<384x8xi1>, vector<384x8xf32>
    %117 = arith.truncf %116 : vector<384x8xf32> to vector<384x8xbf16>
    %118 = vector.extract_strided_slice %81 {offsets = [0, 16], sizes = [384, 4], strides = [1, 1]} : vector<384x20xf32> to vector<384x4xf32>
    %cst_100 = arith.constant 0.000000e+00 : f32
    %119 = vector.shape_cast %68 : vector<384x1xi1> to vector<384x1xi1>
    %120 = vector.broadcast %119 : vector<384x1xi1> to vector<384x4xi1>
    %121 = vector.broadcast %cst_100 : f32 to vector<384x4xf32>
    %122 = arith.select %120, %118, %121 : vector<384x4xi1>, vector<384x4xf32>
    %123 = arith.truncf %122 : vector<384x4xf32> to vector<384x4xbf16>
    %cst_101 = arith.constant 0.000000e+00 : bf16
    %124 = vector.broadcast %cst_101 : bf16 to vector<480x8xbf16>
    %c0_102 = arith.constant 0 : index
    %c0_103 = arith.constant 0 : index
    %125 = vector.load %arg12[%c0_102, %c0_103] : memref<480x8xbf16, #tpu.memory_space<vmem>>, vector<480x8xbf16>
    tpu.vector_store %arg12[%c0_102, %c0_103], %124 {strides = array<i32>} : memref<480x8xbf16, #tpu.memory_space<vmem>>, vector<480x8xbf16>,
    %c48_104 = arith.constant 48 : index
    %c0_105 = arith.constant 0 : index
    %126 = vector.load %arg12[%c48_104, %c0_105] : memref<480x8xbf16, #tpu.memory_space<vmem>>, vector<384x8xbf16>
    tpu.vector_store %arg12[%c48_104, %c0_105], %117 {strides = array<i32>} : memref<480x8xbf16, #tpu.memory_space<vmem>>, vector<384x8xbf16>,
    %cst_106 = arith.constant 0.000000e+00 : bf16
    %127 = vector.broadcast %cst_106 : bf16 to vector<528x4xbf16>
    %c0_107 = arith.constant 0 : index
    %c0_108 = arith.constant 0 : index
    %128 = vector.load %arg13[%c0_107, %c0_108] : memref<528x4xbf16, #tpu.memory_space<vmem>>, vector<528x4xbf16>
    tpu.vector_store %arg13[%c0_107, %c0_108], %127 {strides = array<i32>} : memref<528x4xbf16, #tpu.memory_space<vmem>>, vector<528x4xbf16>,
    %c72 = arith.constant 72 : index
    %c0_109 = arith.constant 0 : index
    %129 = vector.load %arg13[%c72, %c0_109] : memref<528x4xbf16, #tpu.memory_space<vmem>>, vector<384x4xbf16>
    tpu.vector_store %arg13[%c72, %c0_109], %123 {strides = array<i32>} : memref<528x4xbf16, #tpu.memory_space<vmem>>, vector<384x4xbf16>,
    %cst_110 = arith.constant 0.000000e+00 : f32
    %130 = vector.broadcast %cst_110 : f32 to vector<384x16xf32>
    %c23 = arith.constant 23 : index
    %c0_111 = arith.constant 0 : index
    %131 = vector.load %arg12[%c23, %c0_111] : memref<480x8xbf16, #tpu.memory_space<vmem>>, vector<384x8xbf16>
    %c24_112 = arith.constant 24 : index
    %c0_113 = arith.constant 0 : index
    %132 = vector.load %arg12[%c24_112, %c0_113] : memref<480x8xbf16, #tpu.memory_space<vmem>>, vector<384x8xbf16>
    %c25_114 = arith.constant 25 : index
    %c0_115 = arith.constant 0 : index
    %133 = vector.load %arg12[%c25_114, %c0_115] : memref<480x8xbf16, #tpu.memory_space<vmem>>, vector<384x8xbf16>
    %134 = tpu.concatenate %131, %132, %133 in 1 : vector<384x8xbf16>, vector<384x8xbf16>, vector<384x8xbf16> -> vector<384x24xbf16>
    %c0_116 = arith.constant 0 : index
    %c0_117 = arith.constant 0 : index
    %c0_118 = arith.constant 0 : index
    %135 = vector.load %arg4[%c0_116, %c0_117, %c0_118] : memref<3x24x16xbf16, #tpu.memory_space<vmem>>, vector<1x24x16xbf16>
    %136 = vector.shape_cast %135 : vector<1x24x16xbf16> to vector<24x16xbf16>
    %cst_119 = arith.constant dense<0.000000e+00> : vector<384x16xf32>
    %137 = tpu.matmul %134, %136, %cst_119 {dimension_numbers = #tpu.dot_dimension_numbers<[1], [0], [0], [1], [0, 0, 1, 1], [], []>} : vector<384x24xbf16>, vector<24x16xbf16>, vector<384x16xf32> -> vector<384x16xf32>
    %138 = arith.addf %130, %137 : vector<384x16xf32>
    %c47 = arith.constant 47 : index
    %c0_120 = arith.constant 0 : index
    %139 = vector.load %arg12[%c47, %c0_120] : memref<480x8xbf16, #tpu.memory_space<vmem>>, vector<384x8xbf16>
    %c48_121 = arith.constant 48 : index
    %c0_122 = arith.constant 0 : index
    %140 = vector.load %arg12[%c48_121, %c0_122] : memref<480x8xbf16, #tpu.memory_space<vmem>>, vector<384x8xbf16>
    %c49_123 = arith.constant 49 : index
    %c0_124 = arith.constant 0 : index
    %141 = vector.load %arg12[%c49_123, %c0_124] : memref<480x8xbf16, #tpu.memory_space<vmem>>, vector<384x8xbf16>
    %142 = tpu.concatenate %139, %140, %141 in 1 : vector<384x8xbf16>, vector<384x8xbf16>, vector<384x8xbf16> -> vector<384x24xbf16>
    %c1_125 = arith.constant 1 : index
    %c0_126 = arith.constant 0 : index
    %c0_127 = arith.constant 0 : index
    %143 = vector.load %arg4[%c1_125, %c0_126, %c0_127] : memref<3x24x16xbf16, #tpu.memory_space<vmem>>, vector<1x24x16xbf16>
    %144 = vector.shape_cast %143 : vector<1x24x16xbf16> to vector<24x16xbf16>
    %cst_128 = arith.constant dense<0.000000e+00> : vector<384x16xf32>
    %145 = tpu.matmul %142, %144, %cst_128 {dimension_numbers = #tpu.dot_dimension_numbers<[1], [0], [0], [1], [0, 0, 1, 1], [], []>} : vector<384x24xbf16>, vector<24x16xbf16>, vector<384x16xf32> -> vector<384x16xf32>
    %146 = arith.addf %138, %145 : vector<384x16xf32>
    %c71 = arith.constant 71 : index
    %c0_129 = arith.constant 0 : index
    %147 = vector.load %arg12[%c71, %c0_129] : memref<480x8xbf16, #tpu.memory_space<vmem>>, vector<384x8xbf16>
    %c72_130 = arith.constant 72 : index
    %c0_131 = arith.constant 0 : index
    %148 = vector.load %arg12[%c72_130, %c0_131] : memref<480x8xbf16, #tpu.memory_space<vmem>>, vector<384x8xbf16>
    %c73_132 = arith.constant 73 : index
    %c0_133 = arith.constant 0 : index
    %149 = vector.load %arg12[%c73_132, %c0_133] : memref<480x8xbf16, #tpu.memory_space<vmem>>, vector<384x8xbf16>
    %150 = tpu.concatenate %147, %148, %149 in 1 : vector<384x8xbf16>, vector<384x8xbf16>, vector<384x8xbf16> -> vector<384x24xbf16>
    %c2_134 = arith.constant 2 : index
    %c0_135 = arith.constant 0 : index
    %c0_136 = arith.constant 0 : index
    %151 = vector.load %arg4[%c2_134, %c0_135, %c0_136] : memref<3x24x16xbf16, #tpu.memory_space<vmem>>, vector<1x24x16xbf16>
    %152 = vector.shape_cast %151 : vector<1x24x16xbf16> to vector<24x16xbf16>
    %cst_137 = arith.constant dense<0.000000e+00> : vector<384x16xf32>
    %153 = tpu.matmul %150, %152, %cst_137 {dimension_numbers = #tpu.dot_dimension_numbers<[1], [0], [0], [1], [0, 0, 1, 1], [], []>} : vector<384x24xbf16>, vector<24x16xbf16>, vector<384x16xf32> -> vector<384x16xf32>
    %154 = arith.addf %146, %153 : vector<384x16xf32>
    %c0_138 = arith.constant 0 : index
    %c0_139 = arith.constant 0 : index
    %155 = vector.load %arg5[%c0_138, %c0_139] : memref<1x16xf32, #tpu.memory_space<vmem>>, vector<1x16xf32>
    %156 = vector.broadcast %155 : vector<1x16xf32> to vector<384x16xf32>
    %157 = arith.addf %154, %156 : vector<384x16xf32>
    %cst_140 = arith.constant 0.000000e+00 : f32
    %158 = vector.broadcast %cst_140 : f32 to vector<384x16xf32>
    %159 = arith.maximumf %157, %158 : vector<384x16xf32>
    %cst_141 = arith.constant 0.000000e+00 : f32
    %160 = vector.broadcast %cst_141 : f32 to vector<384x8xf32>
    %c22 = arith.constant 22 : index
    %c0_142 = arith.constant 0 : index
    %161 = vector.load %arg13[%c22, %c0_142] : memref<528x4xbf16, #tpu.memory_space<vmem>>, vector<384x4xbf16>
    %c23_143 = arith.constant 23 : index
    %c0_144 = arith.constant 0 : index
    %162 = vector.load %arg13[%c23_143, %c0_144] : memref<528x4xbf16, #tpu.memory_space<vmem>>, vector<384x4xbf16>
    %c24_145 = arith.constant 24 : index
    %c0_146 = arith.constant 0 : index
    %163 = vector.load %arg13[%c24_145, %c0_146] : memref<528x4xbf16, #tpu.memory_space<vmem>>, vector<384x4xbf16>
    %c25_147 = arith.constant 25 : index
    %c0_148 = arith.constant 0 : index
    %164 = vector.load %arg13[%c25_147, %c0_148] : memref<528x4xbf16, #tpu.memory_space<vmem>>, vector<384x4xbf16>
    %c26_149 = arith.constant 26 : index
    %c0_150 = arith.constant 0 : index
    %165 = vector.load %arg13[%c26_149, %c0_150] : memref<528x4xbf16, #tpu.memory_space<vmem>>, vector<384x4xbf16>
    %166 = tpu.concatenate %161, %162, %163, %164, %165 in 1 : vector<384x4xbf16>, vector<384x4xbf16>, vector<384x4xbf16>, vector<384x4xbf16>, vector<384x4xbf16> -> vector<384x20xbf16>
    %c0_151 = arith.constant 0 : index
    %c0_152 = arith.constant 0 : index
    %c0_153 = arith.constant 0 : index
    %167 = vector.load %arg6[%c0_151, %c0_152, %c0_153] : memref<5x20x8xbf16, #tpu.memory_space<vmem>>, vector<1x20x8xbf16>
    %168 = vector.shape_cast %167 : vector<1x20x8xbf16> to vector<20x8xbf16>
    %cst_154 = arith.constant dense<0.000000e+00> : vector<384x8xf32>
    %169 = tpu.matmul %166, %168, %cst_154 {dimension_numbers = #tpu.dot_dimension_numbers<[1], [0], [0], [1], [0, 0, 1, 1], [], []>} : vector<384x20xbf16>, vector<20x8xbf16>, vector<384x8xf32> -> vector<384x8xf32>
    %170 = arith.addf %160, %169 : vector<384x8xf32>
    %c46 = arith.constant 46 : index
    %c0_155 = arith.constant 0 : index
    %171 = vector.load %arg13[%c46, %c0_155] : memref<528x4xbf16, #tpu.memory_space<vmem>>, vector<384x4xbf16>
    %c47_156 = arith.constant 47 : index
    %c0_157 = arith.constant 0 : index
    %172 = vector.load %arg13[%c47_156, %c0_157] : memref<528x4xbf16, #tpu.memory_space<vmem>>, vector<384x4xbf16>
    %c48_158 = arith.constant 48 : index
    %c0_159 = arith.constant 0 : index
    %173 = vector.load %arg13[%c48_158, %c0_159] : memref<528x4xbf16, #tpu.memory_space<vmem>>, vector<384x4xbf16>
    %c49_160 = arith.constant 49 : index
    %c0_161 = arith.constant 0 : index
    %174 = vector.load %arg13[%c49_160, %c0_161] : memref<528x4xbf16, #tpu.memory_space<vmem>>, vector<384x4xbf16>
    %c50_162 = arith.constant 50 : index
    %c0_163 = arith.constant 0 : index
    %175 = vector.load %arg13[%c50_162, %c0_163] : memref<528x4xbf16, #tpu.memory_space<vmem>>, vector<384x4xbf16>
    %176 = tpu.concatenate %171, %172, %173, %174, %175 in 1 : vector<384x4xbf16>, vector<384x4xbf16>, vector<384x4xbf16>, vector<384x4xbf16>, vector<384x4xbf16> -> vector<384x20xbf16>
    %c1_164 = arith.constant 1 : index
    %c0_165 = arith.constant 0 : index
    %c0_166 = arith.constant 0 : index
    %177 = vector.load %arg6[%c1_164, %c0_165, %c0_166] : memref<5x20x8xbf16, #tpu.memory_space<vmem>>, vector<1x20x8xbf16>
    %178 = vector.shape_cast %177 : vector<1x20x8xbf16> to vector<20x8xbf16>
    %cst_167 = arith.constant dense<0.000000e+00> : vector<384x8xf32>
    %179 = tpu.matmul %176, %178, %cst_167 {dimension_numbers = #tpu.dot_dimension_numbers<[1], [0], [0], [1], [0, 0, 1, 1], [], []>} : vector<384x20xbf16>, vector<20x8xbf16>, vector<384x8xf32> -> vector<384x8xf32>
    %180 = arith.addf %170, %179 : vector<384x8xf32>
    %c70 = arith.constant 70 : index
    %c0_168 = arith.constant 0 : index
    %181 = vector.load %arg13[%c70, %c0_168] : memref<528x4xbf16, #tpu.memory_space<vmem>>, vector<384x4xbf16>
    %c71_169 = arith.constant 71 : index
    %c0_170 = arith.constant 0 : index
    %182 = vector.load %arg13[%c71_169, %c0_170] : memref<528x4xbf16, #tpu.memory_space<vmem>>, vector<384x4xbf16>
    %c72_171 = arith.constant 72 : index
    %c0_172 = arith.constant 0 : index
    %183 = vector.load %arg13[%c72_171, %c0_172] : memref<528x4xbf16, #tpu.memory_space<vmem>>, vector<384x4xbf16>
    %c73_173 = arith.constant 73 : index
    %c0_174 = arith.constant 0 : index
    %184 = vector.load %arg13[%c73_173, %c0_174] : memref<528x4xbf16, #tpu.memory_space<vmem>>, vector<384x4xbf16>
    %c74 = arith.constant 74 : index
    %c0_175 = arith.constant 0 : index
    %185 = vector.load %arg13[%c74, %c0_175] : memref<528x4xbf16, #tpu.memory_space<vmem>>, vector<384x4xbf16>
    %186 = tpu.concatenate %181, %182, %183, %184, %185 in 1 : vector<384x4xbf16>, vector<384x4xbf16>, vector<384x4xbf16>, vector<384x4xbf16>, vector<384x4xbf16> -> vector<384x20xbf16>
    %c2_176 = arith.constant 2 : index
    %c0_177 = arith.constant 0 : index
    %c0_178 = arith.constant 0 : index
    %187 = vector.load %arg6[%c2_176, %c0_177, %c0_178] : memref<5x20x8xbf16, #tpu.memory_space<vmem>>, vector<1x20x8xbf16>
    %188 = vector.shape_cast %187 : vector<1x20x8xbf16> to vector<20x8xbf16>
    %cst_179 = arith.constant dense<0.000000e+00> : vector<384x8xf32>
    %189 = tpu.matmul %186, %188, %cst_179 {dimension_numbers = #tpu.dot_dimension_numbers<[1], [0], [0], [1], [0, 0, 1, 1], [], []>} : vector<384x20xbf16>, vector<20x8xbf16>, vector<384x8xf32> -> vector<384x8xf32>
    %190 = arith.addf %180, %189 : vector<384x8xf32>
    %c94 = arith.constant 94 : index
    %c0_180 = arith.constant 0 : index
    %191 = vector.load %arg13[%c94, %c0_180] : memref<528x4xbf16, #tpu.memory_space<vmem>>, vector<384x4xbf16>
    %c95 = arith.constant 95 : index
    %c0_181 = arith.constant 0 : index
    %192 = vector.load %arg13[%c95, %c0_181] : memref<528x4xbf16, #tpu.memory_space<vmem>>, vector<384x4xbf16>
    %c96 = arith.constant 96 : index
    %c0_182 = arith.constant 0 : index
    %193 = vector.load %arg13[%c96, %c0_182] : memref<528x4xbf16, #tpu.memory_space<vmem>>, vector<384x4xbf16>
    %c97_183 = arith.constant 97 : index
    %c0_184 = arith.constant 0 : index
    %194 = vector.load %arg13[%c97_183, %c0_184] : memref<528x4xbf16, #tpu.memory_space<vmem>>, vector<384x4xbf16>
    %c98 = arith.constant 98 : index
    %c0_185 = arith.constant 0 : index
    %195 = vector.load %arg13[%c98, %c0_185] : memref<528x4xbf16, #tpu.memory_space<vmem>>, vector<384x4xbf16>
    %196 = tpu.concatenate %191, %192, %193, %194, %195 in 1 : vector<384x4xbf16>, vector<384x4xbf16>, vector<384x4xbf16>, vector<384x4xbf16>, vector<384x4xbf16> -> vector<384x20xbf16>
    %c3_186 = arith.constant 3 : index
    %c0_187 = arith.constant 0 : index
    %c0_188 = arith.constant 0 : index
    %197 = vector.load %arg6[%c3_186, %c0_187, %c0_188] : memref<5x20x8xbf16, #tpu.memory_space<vmem>>, vector<1x20x8xbf16>
    %198 = vector.shape_cast %197 : vector<1x20x8xbf16> to vector<20x8xbf16>
    %cst_189 = arith.constant dense<0.000000e+00> : vector<384x8xf32>
    %199 = tpu.matmul %196, %198, %cst_189 {dimension_numbers = #tpu.dot_dimension_numbers<[1], [0], [0], [1], [0, 0, 1, 1], [], []>} : vector<384x20xbf16>, vector<20x8xbf16>, vector<384x8xf32> -> vector<384x8xf32>
    %200 = arith.addf %190, %199 : vector<384x8xf32>
    %c118 = arith.constant 118 : index
    %c0_190 = arith.constant 0 : index
    %201 = vector.load %arg13[%c118, %c0_190] : memref<528x4xbf16, #tpu.memory_space<vmem>>, vector<384x4xbf16>
    %c119 = arith.constant 119 : index
    %c0_191 = arith.constant 0 : index
    %202 = vector.load %arg13[%c119, %c0_191] : memref<528x4xbf16, #tpu.memory_space<vmem>>, vector<384x4xbf16>
    %c120 = arith.constant 120 : index
    %c0_192 = arith.constant 0 : index
    %203 = vector.load %arg13[%c120, %c0_192] : memref<528x4xbf16, #tpu.memory_space<vmem>>, vector<384x4xbf16>
    %c121_193 = arith.constant 121 : index
    %c0_194 = arith.constant 0 : index
    %204 = vector.load %arg13[%c121_193, %c0_194] : memref<528x4xbf16, #tpu.memory_space<vmem>>, vector<384x4xbf16>
    %c122 = arith.constant 122 : index
    %c0_195 = arith.constant 0 : index
    %205 = vector.load %arg13[%c122, %c0_195] : memref<528x4xbf16, #tpu.memory_space<vmem>>, vector<384x4xbf16>
    %206 = tpu.concatenate %201, %202, %203, %204, %205 in 1 : vector<384x4xbf16>, vector<384x4xbf16>, vector<384x4xbf16>, vector<384x4xbf16>, vector<384x4xbf16> -> vector<384x20xbf16>
    %c4_196 = arith.constant 4 : index
    %c0_197 = arith.constant 0 : index
    %c0_198 = arith.constant 0 : index
    %207 = vector.load %arg6[%c4_196, %c0_197, %c0_198] : memref<5x20x8xbf16, #tpu.memory_space<vmem>>, vector<1x20x8xbf16>
    %208 = vector.shape_cast %207 : vector<1x20x8xbf16> to vector<20x8xbf16>
    %cst_199 = arith.constant dense<0.000000e+00> : vector<384x8xf32>
    %209 = tpu.matmul %206, %208, %cst_199 {dimension_numbers = #tpu.dot_dimension_numbers<[1], [0], [0], [1], [0, 0, 1, 1], [], []>} : vector<384x20xbf16>, vector<20x8xbf16>, vector<384x8xf32> -> vector<384x8xf32>
    %210 = arith.addf %200, %209 : vector<384x8xf32>
    %c0_200 = arith.constant 0 : index
    %c0_201 = arith.constant 0 : index
    %211 = vector.load %arg7[%c0_200, %c0_201] : memref<1x8xf32, #tpu.memory_space<vmem>>, vector<1x8xf32>
    %212 = vector.broadcast %211 : vector<1x8xf32> to vector<384x8xf32>
    %213 = arith.addf %210, %212 : vector<384x8xf32>
    %cst_202 = arith.constant 0.000000e+00 : f32
    %214 = vector.broadcast %cst_202 : f32 to vector<384x8xf32>
    %215 = arith.maximumf %213, %214 : vector<384x8xf32>
    %cst_203 = arith.constant 0.000000e+00 : f32
    %216 = vector.broadcast %cst_203 : f32 to vector<384x88xf32>
    %217 = tpu.concatenate %82, %159, %215, %111, %216 in 1 : vector<384x8xf32>, vector<384x16xf32>, vector<384x8xf32>, vector<384x8xf32>, vector<384x88xf32> -> vector<384x128xf32>
    %218 = vector.extract_strided_slice %217 {offsets = [0, 0], sizes = [16, 128], strides = [1, 1]} : vector<384x128xf32> to vector<16x128xf32>
    %c0_204 = arith.constant 0 : index
    %c0_205 = arith.constant 0 : index
    %c0_206 = arith.constant 0 : index
    %c0_207 = arith.constant 0 : index
    %219 = vector.load %arg10[%c0_204, %c0_205, %c0_206, %c0_207] : memref<1x16x16x128xf32, #tpu.memory_space<vmem>>, vector<1x1x16x128xf32>
    %220 = vector.shape_cast %219 : vector<1x1x16x128xf32> to vector<16x128xf32>
    %221 = vector.shape_cast %218 : vector<16x128xf32> to vector<1x1x16x128xf32>
    tpu.vector_store %arg10[%c0_204, %c0_205, %c0_206, %c0_207], %221 {strides = array<i32>} : memref<1x16x16x128xf32, #tpu.memory_space<vmem>>, vector<1x1x16x128xf32>,
    %222 = vector.extract_strided_slice %217 {offsets = [24, 0], sizes = [16, 128], strides = [1, 1]} : vector<384x128xf32> to vector<16x128xf32>
    %c0_208 = arith.constant 0 : index
    %c1_209 = arith.constant 1 : index
    %c0_210 = arith.constant 0 : index
    %c0_211 = arith.constant 0 : index
    %223 = vector.load %arg10[%c0_208, %c1_209, %c0_210, %c0_211] : memref<1x16x16x128xf32, #tpu.memory_space<vmem>>, vector<1x1x16x128xf32>
    %224 = vector.shape_cast %223 : vector<1x1x16x128xf32> to vector<16x128xf32>
    %225 = vector.shape_cast %222 : vector<16x128xf32> to vector<1x1x16x128xf32>
    tpu.vector_store %arg10[%c0_208, %c1_209, %c0_210, %c0_211], %225 {strides = array<i32>} : memref<1x16x16x128xf32, #tpu.memory_space<vmem>>, vector<1x1x16x128xf32>,
    %226 = vector.extract_strided_slice %217 {offsets = [48, 0], sizes = [16, 128], strides = [1, 1]} : vector<384x128xf32> to vector<16x128xf32>
    %c0_212 = arith.constant 0 : index
    %c2_213 = arith.constant 2 : index
    %c0_214 = arith.constant 0 : index
    %c0_215 = arith.constant 0 : index
    %227 = vector.load %arg10[%c0_212, %c2_213, %c0_214, %c0_215] : memref<1x16x16x128xf32, #tpu.memory_space<vmem>>, vector<1x1x16x128xf32>
    %228 = vector.shape_cast %227 : vector<1x1x16x128xf32> to vector<16x128xf32>
    %229 = vector.shape_cast %226 : vector<16x128xf32> to vector<1x1x16x128xf32>
    tpu.vector_store %arg10[%c0_212, %c2_213, %c0_214, %c0_215], %229 {strides = array<i32>} : memref<1x16x16x128xf32, #tpu.memory_space<vmem>>, vector<1x1x16x128xf32>,
    %230 = vector.extract_strided_slice %217 {offsets = [72, 0], sizes = [16, 128], strides = [1, 1]} : vector<384x128xf32> to vector<16x128xf32>
    %c0_216 = arith.constant 0 : index
    %c3_217 = arith.constant 3 : index
    %c0_218 = arith.constant 0 : index
    %c0_219 = arith.constant 0 : index
    %231 = vector.load %arg10[%c0_216, %c3_217, %c0_218, %c0_219] : memref<1x16x16x128xf32, #tpu.memory_space<vmem>>, vector<1x1x16x128xf32>
    %232 = vector.shape_cast %231 : vector<1x1x16x128xf32> to vector<16x128xf32>
    %233 = vector.shape_cast %230 : vector<16x128xf32> to vector<1x1x16x128xf32>
    tpu.vector_store %arg10[%c0_216, %c3_217, %c0_218, %c0_219], %233 {strides = array<i32>} : memref<1x16x16x128xf32, #tpu.memory_space<vmem>>, vector<1x1x16x128xf32>,
    %234 = vector.extract_strided_slice %217 {offsets = [96, 0], sizes = [16, 128], strides = [1, 1]} : vector<384x128xf32> to vector<16x128xf32>
    %c0_220 = arith.constant 0 : index
    %c4_221 = arith.constant 4 : index
    %c0_222 = arith.constant 0 : index
    %c0_223 = arith.constant 0 : index
    %235 = vector.load %arg10[%c0_220, %c4_221, %c0_222, %c0_223] : memref<1x16x16x128xf32, #tpu.memory_space<vmem>>, vector<1x1x16x128xf32>
    %236 = vector.shape_cast %235 : vector<1x1x16x128xf32> to vector<16x128xf32>
    %237 = vector.shape_cast %234 : vector<16x128xf32> to vector<1x1x16x128xf32>
    tpu.vector_store %arg10[%c0_220, %c4_221, %c0_222, %c0_223], %237 {strides = array<i32>} : memref<1x16x16x128xf32, #tpu.memory_space<vmem>>, vector<1x1x16x128xf32>,
    %238 = vector.extract_strided_slice %217 {offsets = [120, 0], sizes = [16, 128], strides = [1, 1]} : vector<384x128xf32> to vector<16x128xf32>
    %c0_224 = arith.constant 0 : index
    %c5_225 = arith.constant 5 : index
    %c0_226 = arith.constant 0 : index
    %c0_227 = arith.constant 0 : index
    %239 = vector.load %arg10[%c0_224, %c5_225, %c0_226, %c0_227] : memref<1x16x16x128xf32, #tpu.memory_space<vmem>>, vector<1x1x16x128xf32>
    %240 = vector.shape_cast %239 : vector<1x1x16x128xf32> to vector<16x128xf32>
    %241 = vector.shape_cast %238 : vector<16x128xf32> to vector<1x1x16x128xf32>
    tpu.vector_store %arg10[%c0_224, %c5_225, %c0_226, %c0_227], %241 {strides = array<i32>} : memref<1x16x16x128xf32, #tpu.memory_space<vmem>>, vector<1x1x16x128xf32>,
    %242 = vector.extract_strided_slice %217 {offsets = [144, 0], sizes = [16, 128], strides = [1, 1]} : vector<384x128xf32> to vector<16x128xf32>
    %c0_228 = arith.constant 0 : index
    %c6_229 = arith.constant 6 : index
    %c0_230 = arith.constant 0 : index
    %c0_231 = arith.constant 0 : index
    %243 = vector.load %arg10[%c0_228, %c6_229, %c0_230, %c0_231] : memref<1x16x16x128xf32, #tpu.memory_space<vmem>>, vector<1x1x16x128xf32>
    %244 = vector.shape_cast %243 : vector<1x1x16x128xf32> to vector<16x128xf32>
    %245 = vector.shape_cast %242 : vector<16x128xf32> to vector<1x1x16x128xf32>
    tpu.vector_store %arg10[%c0_228, %c6_229, %c0_230, %c0_231], %245 {strides = array<i32>} : memref<1x16x16x128xf32, #tpu.memory_space<vmem>>, vector<1x1x16x128xf32>,
    %246 = vector.extract_strided_slice %217 {offsets = [168, 0], sizes = [16, 128], strides = [1, 1]} : vector<384x128xf32> to vector<16x128xf32>
    %c0_232 = arith.constant 0 : index
    %c7_233 = arith.constant 7 : index
    %c0_234 = arith.constant 0 : index
    %c0_235 = arith.constant 0 : index
    %247 = vector.load %arg10[%c0_232, %c7_233, %c0_234, %c0_235] : memref<1x16x16x128xf32, #tpu.memory_space<vmem>>, vector<1x1x16x128xf32>
    %248 = vector.shape_cast %247 : vector<1x1x16x128xf32> to vector<16x128xf32>
    %249 = vector.shape_cast %246 : vector<16x128xf32> to vector<1x1x16x128xf32>
    tpu.vector_store %arg10[%c0_232, %c7_233, %c0_234, %c0_235], %249 {strides = array<i32>} : memref<1x16x16x128xf32, #tpu.memory_space<vmem>>, vector<1x1x16x128xf32>,
    %250 = vector.extract_strided_slice %217 {offsets = [192, 0], sizes = [16, 128], strides = [1, 1]} : vector<384x128xf32> to vector<16x128xf32>
    %c0_236 = arith.constant 0 : index
    %c8_237 = arith.constant 8 : index
    %c0_238 = arith.constant 0 : index
    %c0_239 = arith.constant 0 : index
    %251 = vector.load %arg10[%c0_236, %c8_237, %c0_238, %c0_239] : memref<1x16x16x128xf32, #tpu.memory_space<vmem>>, vector<1x1x16x128xf32>
    %252 = vector.shape_cast %251 : vector<1x1x16x128xf32> to vector<16x128xf32>
    %253 = vector.shape_cast %250 : vector<16x128xf32> to vector<1x1x16x128xf32>
    tpu.vector_store %arg10[%c0_236, %c8_237, %c0_238, %c0_239], %253 {strides = array<i32>} : memref<1x16x16x128xf32, #tpu.memory_space<vmem>>, vector<1x1x16x128xf32>,
    %254 = vector.extract_strided_slice %217 {offsets = [216, 0], sizes = [16, 128], strides = [1, 1]} : vector<384x128xf32> to vector<16x128xf32>
    %c0_240 = arith.constant 0 : index
    %c9_241 = arith.constant 9 : index
    %c0_242 = arith.constant 0 : index
    %c0_243 = arith.constant 0 : index
    %255 = vector.load %arg10[%c0_240, %c9_241, %c0_242, %c0_243] : memref<1x16x16x128xf32, #tpu.memory_space<vmem>>, vector<1x1x16x128xf32>
    %256 = vector.shape_cast %255 : vector<1x1x16x128xf32> to vector<16x128xf32>
    %257 = vector.shape_cast %254 : vector<16x128xf32> to vector<1x1x16x128xf32>
    tpu.vector_store %arg10[%c0_240, %c9_241, %c0_242, %c0_243], %257 {strides = array<i32>} : memref<1x16x16x128xf32, #tpu.memory_space<vmem>>, vector<1x1x16x128xf32>,
    %258 = vector.extract_strided_slice %217 {offsets = [240, 0], sizes = [16, 128], strides = [1, 1]} : vector<384x128xf32> to vector<16x128xf32>
    %c0_244 = arith.constant 0 : index
    %c10_245 = arith.constant 10 : index
    %c0_246 = arith.constant 0 : index
    %c0_247 = arith.constant 0 : index
    %259 = vector.load %arg10[%c0_244, %c10_245, %c0_246, %c0_247] : memref<1x16x16x128xf32, #tpu.memory_space<vmem>>, vector<1x1x16x128xf32>
    %260 = vector.shape_cast %259 : vector<1x1x16x128xf32> to vector<16x128xf32>
    %261 = vector.shape_cast %258 : vector<16x128xf32> to vector<1x1x16x128xf32>
    tpu.vector_store %arg10[%c0_244, %c10_245, %c0_246, %c0_247], %261 {strides = array<i32>} : memref<1x16x16x128xf32, #tpu.memory_space<vmem>>, vector<1x1x16x128xf32>,
    %262 = vector.extract_strided_slice %217 {offsets = [264, 0], sizes = [16, 128], strides = [1, 1]} : vector<384x128xf32> to vector<16x128xf32>
    %c0_248 = arith.constant 0 : index
    %c11_249 = arith.constant 11 : index
    %c0_250 = arith.constant 0 : index
    %c0_251 = arith.constant 0 : index
    %263 = vector.load %arg10[%c0_248, %c11_249, %c0_250, %c0_251] : memref<1x16x16x128xf32, #tpu.memory_space<vmem>>, vector<1x1x16x128xf32>
    %264 = vector.shape_cast %263 : vector<1x1x16x128xf32> to vector<16x128xf32>
    %265 = vector.shape_cast %262 : vector<16x128xf32> to vector<1x1x16x128xf32>
    tpu.vector_store %arg10[%c0_248, %c11_249, %c0_250, %c0_251], %265 {strides = array<i32>} : memref<1x16x16x128xf32, #tpu.memory_space<vmem>>, vector<1x1x16x128xf32>,
    %266 = vector.extract_strided_slice %217 {offsets = [288, 0], sizes = [16, 128], strides = [1, 1]} : vector<384x128xf32> to vector<16x128xf32>
    %c0_252 = arith.constant 0 : index
    %c12_253 = arith.constant 12 : index
    %c0_254 = arith.constant 0 : index
    %c0_255 = arith.constant 0 : index
    %267 = vector.load %arg10[%c0_252, %c12_253, %c0_254, %c0_255] : memref<1x16x16x128xf32, #tpu.memory_space<vmem>>, vector<1x1x16x128xf32>
    %268 = vector.shape_cast %267 : vector<1x1x16x128xf32> to vector<16x128xf32>
    %269 = vector.shape_cast %266 : vector<16x128xf32> to vector<1x1x16x128xf32>
    tpu.vector_store %arg10[%c0_252, %c12_253, %c0_254, %c0_255], %269 {strides = array<i32>} : memref<1x16x16x128xf32, #tpu.memory_space<vmem>>, vector<1x1x16x128xf32>,
    %270 = vector.extract_strided_slice %217 {offsets = [312, 0], sizes = [16, 128], strides = [1, 1]} : vector<384x128xf32> to vector<16x128xf32>
    %c0_256 = arith.constant 0 : index
    %c13_257 = arith.constant 13 : index
    %c0_258 = arith.constant 0 : index
    %c0_259 = arith.constant 0 : index
    %271 = vector.load %arg10[%c0_256, %c13_257, %c0_258, %c0_259] : memref<1x16x16x128xf32, #tpu.memory_space<vmem>>, vector<1x1x16x128xf32>
    %272 = vector.shape_cast %271 : vector<1x1x16x128xf32> to vector<16x128xf32>
    %273 = vector.shape_cast %270 : vector<16x128xf32> to vector<1x1x16x128xf32>
    tpu.vector_store %arg10[%c0_256, %c13_257, %c0_258, %c0_259], %273 {strides = array<i32>} : memref<1x16x16x128xf32, #tpu.memory_space<vmem>>, vector<1x1x16x128xf32>,
    %274 = vector.extract_strided_slice %217 {offsets = [336, 0], sizes = [16, 128], strides = [1, 1]} : vector<384x128xf32> to vector<16x128xf32>
    %c0_260 = arith.constant 0 : index
    %c14_261 = arith.constant 14 : index
    %c0_262 = arith.constant 0 : index
    %c0_263 = arith.constant 0 : index
    %275 = vector.load %arg10[%c0_260, %c14_261, %c0_262, %c0_263] : memref<1x16x16x128xf32, #tpu.memory_space<vmem>>, vector<1x1x16x128xf32>
    %276 = vector.shape_cast %275 : vector<1x1x16x128xf32> to vector<16x128xf32>
    %277 = vector.shape_cast %274 : vector<16x128xf32> to vector<1x1x16x128xf32>
    tpu.vector_store %arg10[%c0_260, %c14_261, %c0_262, %c0_263], %277 {strides = array<i32>} : memref<1x16x16x128xf32, #tpu.memory_space<vmem>>, vector<1x1x16x128xf32>,
    %278 = vector.extract_strided_slice %217 {offsets = [360, 0], sizes = [16, 128], strides = [1, 1]} : vector<384x128xf32> to vector<16x128xf32>
    %c0_264 = arith.constant 0 : index
    %c15_265 = arith.constant 15 : index
    %c0_266 = arith.constant 0 : index
    %c0_267 = arith.constant 0 : index
    %279 = vector.load %arg10[%c0_264, %c15_265, %c0_266, %c0_267] : memref<1x16x16x128xf32, #tpu.memory_space<vmem>>, vector<1x1x16x128xf32>
    %280 = vector.shape_cast %279 : vector<1x1x16x128xf32> to vector<16x128xf32>
    %281 = vector.shape_cast %278 : vector<16x128xf32> to vector<1x1x16x128xf32>
    tpu.vector_store %arg10[%c0_264, %c15_265, %c0_266, %c0_267], %281 {strides = array<i32>} : memref<1x16x16x128xf32, #tpu.memory_space<vmem>>, vector<1x1x16x128xf32>,
    return
  }
  func.func @transform_0(%arg0: i32) -> (i32, i32, i32, i32) {
    %c0_i32 = arith.constant 0 : i32
    %c0_i32_0 = arith.constant 0 : i32
    %c0_i32_1 = arith.constant 0 : i32
    %c0_i32_2 = arith.constant 0 : i32
    return %arg0, %c0_i32, %c0_i32_0, %c0_i32_1 : i32, i32, i32, i32
  }
  func.func @transform_1(%arg0: i32) -> (i32, i32) {
    %c0_i32 = arith.constant 0 : i32
    %c0_i32_0 = arith.constant 0 : i32
    %c0_i32_1 = arith.constant 0 : i32
    return %c0_i32, %c0_i32_0 : i32, i32
  }
  func.func @transform_2(%arg0: i32) -> (i32, i32) {
    %c0_i32 = arith.constant 0 : i32
    %c0_i32_0 = arith.constant 0 : i32
    %c0_i32_1 = arith.constant 0 : i32
    return %c0_i32, %c0_i32_0 : i32, i32
  }
  func.func @transform_3(%arg0: i32) -> (i32, i32, i32) {
    %c0_i32 = arith.constant 0 : i32
    %c0_i32_0 = arith.constant 0 : i32
    %c0_i32_1 = arith.constant 0 : i32
    %c0_i32_2 = arith.constant 0 : i32
    return %c0_i32, %c0_i32_0, %c0_i32_1 : i32, i32, i32
  }
  func.func @transform_4(%arg0: i32) -> (i32, i32) {
    %c0_i32 = arith.constant 0 : i32
    %c0_i32_0 = arith.constant 0 : i32
    %c0_i32_1 = arith.constant 0 : i32
    return %c0_i32, %c0_i32_0 : i32, i32
  }
  func.func @transform_5(%arg0: i32) -> (i32, i32, i32) {
    %c0_i32 = arith.constant 0 : i32
    %c0_i32_0 = arith.constant 0 : i32
    %c0_i32_1 = arith.constant 0 : i32
    %c0_i32_2 = arith.constant 0 : i32
    return %c0_i32, %c0_i32_0, %c0_i32_1 : i32, i32, i32
  }
  func.func @transform_6(%arg0: i32) -> (i32, i32) {
    %c0_i32 = arith.constant 0 : i32
    %c0_i32_0 = arith.constant 0 : i32
    %c0_i32_1 = arith.constant 0 : i32
    return %c0_i32, %c0_i32_0 : i32, i32
  }
  func.func @transform_7(%arg0: i32) -> (i32, i32) {
    %c0_i32 = arith.constant 0 : i32
    %c0_i32_0 = arith.constant 0 : i32
    %c0_i32_1 = arith.constant 0 : i32
    return %c0_i32, %c0_i32_0 : i32, i32
  }
  func.func @transform_8(%arg0: i32) -> (i32, i32) {
    %c0_i32 = arith.constant 0 : i32
    %c0_i32_0 = arith.constant 0 : i32
    %c0_i32_1 = arith.constant 0 : i32
    return %c0_i32, %c0_i32_0 : i32, i32
  }
  func.func @transform_9(%arg0: i32) -> (i32, i32, i32, i32) {
    %c0_i32 = arith.constant 0 : i32
    %c0_i32_0 = arith.constant 0 : i32
    %c0_i32_1 = arith.constant 0 : i32
    %c0_i32_2 = arith.constant 0 : i32
    return %arg0, %c0_i32, %c0_i32_0, %c0_i32_1 : i32, i32, i32, i32
  }
}

</mosaic_0001>

<llo_original>
// kernel: inceptionv1_block.1
$region0: #{inceptionv1_block.1}
  #allocation0 [shape = 'u32[]', space=smem, size = 0x4, offset = 0x4, fixed_abs, tag = 'smem constant byte address 0x4 - core index']
  #allocation1 [shape = 'u32[144,128]{1,0:T(1,128)}', space=vmem, size = 0x12000, scoped, tag = 'internal scratch']
  #allocation2 [shape = 'f32[456,4]{1,0:T(8,128)}', space=vmem, size = 0x39000, scoped, tag = 'scratch operand']
  #allocation3 [shape = 'bf16[480,8]{1,0:T(16,128)(2,1)}', space=vmem, size = 0x1e000, scoped, tag = 'scratch operand']
  #allocation4 [shape = 'bf16[528,4]{1,0:T(16,128)(2,1)}', space=vmem, size = 0x21000, scoped, tag = 'scratch operand']
  %s0 = inlined_call_operand.vmem [shape: f32[2,16,16,4], index: 0, kind: input, shape index: {}]
  %s1 = inlined_call_operand.vmem [shape: bf16[4,20], index: 1, kind: input, shape index: {}]
  %s2 = inlined_call_operand.vmem [shape: f32[1,20], index: 2, kind: input, shape index: {}]
  %s3 = inlined_call_operand.vmem [shape: bf16[3,24,16], index: 3, kind: input, shape index: {}]
  %s4 = inlined_call_operand.vmem [shape: f32[1,16], index: 4, kind: input, shape index: {}]
  %s5 = inlined_call_operand.vmem [shape: bf16[5,20,8], index: 5, kind: input, shape index: {}]
  %s6 = inlined_call_operand.vmem [shape: f32[1,8], index: 6, kind: input, shape index: {}]
  %s7 = inlined_call_operand.vmem [shape: bf16[4,8], index: 7, kind: input, shape index: {}]
  %s8 = inlined_call_operand.vmem [shape: f32[1,8], index: 8, kind: input, shape index: {}]
  %s9 = inlined_call_operand.vmem [shape: f32[2,16,16,128], index: 9, kind: output, shape index: {}]
  %s10 = sld [smem:[#allocation0]]
  $region69: #{inceptionv1_block.1} parent=0
    _
  %s12 = ssub.s32 1, %s10
  %s13 = scalar_select 0, %s12, %s10
  loop: start=0, step=1, limit=4
  $region2: #{inceptionv1_block.1} parent=0 // loop_pre_header
    _
  $region3: #{inceptionv1_block.1} parent=0 // loop_header
    %s15 = sphi 0, %s19
    %p16 = scmp.ge.s32.totalorder %s15, 4
    %s25 = sphi 0, %s27
    %s28 = sphi 0, %s25
    %s29 = sphi 0, %s28
    %s45 = sphi 0, %s29
    %s49 = sphi 0, %s49
    %s51 = sphi 0, %s49
    %s52 = sphi 0, %s51
    %s66 = sphi 0, %s52
    %s70 = sphi 0, %s70
    %s72 = sphi 0, %s70
    %s73 = sphi 0, %s72
    %s87 = sphi 0, %s73
    %s91 = sphi 0, %s91
    %s93 = sphi 0, %s91
    %s94 = sphi 0, %s93
    %s108 = sphi 0, %s94
    %s112 = sphi 0, %s112
    %s114 = sphi 0, %s112
    %s115 = sphi 0, %s114
    %s129 = sphi 0, %s115
    %s133 = sphi 0, %s133
    %s135 = sphi 0, %s133
    %s136 = sphi 0, %s135
    %s150 = sphi 0, %s136
    %s154 = sphi 0, %s154
    %s156 = sphi 0, %s154
    %s157 = sphi 0, %s156
    %s171 = sphi 0, %s157
    %s175 = sphi 0, %s175
    %s177 = sphi 0, %s175
    %s178 = sphi 0, %s177
    %s192 = sphi 0, %s178
    %s196 = sphi 0, %s196
    %s198 = sphi 0, %s196
    %s199 = sphi 0, %s198
    %s213 = sphi 0, %s199
    %s219 = sphi 0, %s221
    %s222 = sphi 0, %s219
    %s223 = sphi 0, %s222
    %s239 = sphi 0, %s223
  $region4: #{inceptionv1_block.1} parent=0 // loop_header_branch
    %18 = sbr.rel (%p16) target = $region8
  $region5: #{inceptionv1_block.1} parent=0 // loop_body
    %s20 = ssub.s32 %s15, 1
    %s21 = ssub.s32 %s15, 2
    %s22 = sadd.s32 %s15, 1
    %s23 = ssub.s32 %s15, %s22
    %p24 = scmp.eq.s32.totalorder %s23, 0
    %s26 = sadd.s32 %s25, 1
    %s27 = scalar_select %p24, %s25, %s26
    %p30 = pneg %p24
    %p31 = scmp.eq.s32.totalorder %s15, 1
    %p32 = por %p30, %p31
    %p33 = scmp.ne.s32.totalorder %s25, %s28
    %p34 = scmp.eq.s32.totalorder %s15, 0
    %p35 = por %p33, %p34
    %p36 = scmp.ne.s32.totalorder %s25, %s28
    %p37 = scmp.eq.s32.totalorder %s20, 1
    %p38 = por %p36, %p37
    %p39 = scmp.ne.s32.totalorder %s28, %s29
    %p40 = scmp.eq.s32.totalorder %s20, 0
    %p41 = por %p39, %p40
    %p42 = scmp.ne.s32.totalorder %s28, %s29
    %p43 = scmp.eq.s32.totalorder %s21, 1
    %p44 = por %p42, %p43
    %p46 = scmp.ne.s32.totalorder %s29, %s45
    %p47 = scmp.eq.s32.totalorder %s21, 0
    %p48 = por %p46, %p47
    %s50 = sadd.s32 %s49, 1
    %p53 = scmp.eq.s32.totalorder %s15, 1
    %p54 = scmp.ne.s32.totalorder %s49, %s51
    %p55 = scmp.eq.s32.totalorder %s15, 0
    %p56 = por %p54, %p55
    %p57 = scmp.ne.s32.totalorder %s49, %s51
    %p58 = scmp.eq.s32.totalorder %s20, 1
    %p59 = por %p57, %p58
    %p60 = scmp.ne.s32.totalorder %s51, %s52
    %p61 = scmp.eq.s32.totalorder %s20, 0
    %p62 = por %p60, %p61
    %p63 = scmp.ne.s32.totalorder %s51, %s52
    %p64 = scmp.eq.s32.totalorder %s21, 1
    %p65 = por %p63, %p64
    %p67 = scmp.ne.s32.totalorder %s52, %s66
    %p68 = scmp.eq.s32.totalorder %s21, 0
    %p69 = por %p67, %p68
    %s71 = sadd.s32 %s70, 1
    %p74 = scmp.eq.s32.totalorder %s15, 1
    %p75 = scmp.ne.s32.totalorder %s70, %s72
    %p76 = scmp.eq.s32.totalorder %s15, 0
    %p77 = por %p75, %p76
    %p78 = scmp.ne.s32.totalorder %s70, %s72
    %p79 = scmp.eq.s32.totalorder %s20, 1
    %p80 = por %p78, %p79
    %p81 = scmp.ne.s32.totalorder %s72, %s73
    %p82 = scmp.eq.s32.totalorder %s20, 0
    %p83 = por %p81, %p82
    %p84 = scmp.ne.s32.totalorder %s72, %s73
    %p85 = scmp.eq.s32.totalorder %s21, 1
    %p86 = por %p84, %p85
    %p88 = scmp.ne.s32.totalorder %s73, %s87
    %p89 = scmp.eq.s32.totalorder %s21, 0
    %p90 = por %p88, %p89
    %s92 = sadd.s32 %s91, 1
    %p95 = scmp.eq.s32.totalorder %s15, 1
    %p96 = scmp.ne.s32.totalorder %s91, %s93
    %p97 = scmp.eq.s32.totalorder %s15, 0
    %p98 = por %p96, %p97
    %p99 = scmp.ne.s32.totalorder %s91, %s93
    %p100 = scmp.eq.s32.totalorder %s20, 1
    %p101 = por %p99, %p100
    %p102 = scmp.ne.s32.totalorder %s93, %s94
    %p103 = scmp.eq.s32.totalorder %s20, 0
    %p104 = por %p102, %p103
    %p105 = scmp.ne.s32.totalorder %s93, %s94
    %p106 = scmp.eq.s32.totalorder %s21, 1
    %p107 = por %p105, %p106
    %p109 = scmp.ne.s32.totalorder %s94, %s108
    %p110 = scmp.eq.s32.totalorder %s21, 0
    %p111 = por %p109, %p110
    %s113 = sadd.s32 %s112, 1
    %p116 = scmp.eq.s32.totalorder %s15, 1
    %p117 = scmp.ne.s32.totalorder %s112, %s114
    %p118 = scmp.eq.s32.totalorder %s15, 0
    %p119 = por %p117, %p118
    %p120 = scmp.ne.s32.totalorder %s112, %s114
    %p121 = scmp.eq.s32.totalorder %s20, 1
    %p122 = por %p120, %p121
    %p123 = scmp.ne.s32.totalorder %s114, %s115
    %p124 = scmp.eq.s32.totalorder %s20, 0
    %p125 = por %p123, %p124
    %p126 = scmp.ne.s32.totalorder %s114, %s115
    %p127 = scmp.eq.s32.totalorder %s21, 1
    %p128 = por %p126, %p127
    %p130 = scmp.ne.s32.totalorder %s115, %s129
    %p131 = scmp.eq.s32.totalorder %s21, 0
    %p132 = por %p130, %p131
    %s134 = sadd.s32 %s133, 1
    %p137 = scmp.eq.s32.totalorder %s15, 1
    %p138 = scmp.ne.s32.totalorder %s133, %s135
    %p139 = scmp.eq.s32.totalorder %s15, 0
    %p140 = por %p138, %p139
    %p141 = scmp.ne.s32.totalorder %s133, %s135
    %p142 = scmp.eq.s32.totalorder %s20, 1
    %p143 = por %p141, %p142
    %p144 = scmp.ne.s32.totalorder %s135, %s136
    %p145 = scmp.eq.s32.totalorder %s20, 0
    %p146 = por %p144, %p145
    %p147 = scmp.ne.s32.totalorder %s135, %s136
    %p148 = scmp.eq.s32.totalorder %s21, 1
    %p149 = por %p147, %p148
    %p151 = scmp.ne.s32.totalorder %s136, %s150
    %p152 = scmp.eq.s32.totalorder %s21, 0
    %p153 = por %p151, %p152
    %s155 = sadd.s32 %s154, 1
    %p158 = scmp.eq.s32.totalorder %s15, 1
    %p159 = scmp.ne.s32.totalorder %s154, %s156
    %p160 = scmp.eq.s32.totalorder %s15, 0
    %p161 = por %p159, %p160
    %p162 = scmp.ne.s32.totalorder %s154, %s156
    %p163 = scmp.eq.s32.totalorder %s20, 1
    %p164 = por %p162, %p163
    %p165 = scmp.ne.s32.totalorder %s156, %s157
    %p166 = scmp.eq.s32.totalorder %s20, 0
    %p167 = por %p165, %p166
    %p168 = scmp.ne.s32.totalorder %s156, %s157
    %p169 = scmp.eq.s32.totalorder %s21, 1
    %p170 = por %p168, %p169
    %p172 = scmp.ne.s32.totalorder %s157, %s171
    %p173 = scmp.eq.s32.totalorder %s21, 0
    %p174 = por %p172, %p173
    %s176 = sadd.s32 %s175, 1
    %p179 = scmp.eq.s32.totalorder %s15, 1
    %p180 = scmp.ne.s32.totalorder %s175, %s177
    %p181 = scmp.eq.s32.totalorder %s15, 0
    %p182 = por %p180, %p181
    %p183 = scmp.ne.s32.totalorder %s175, %s177
    %p184 = scmp.eq.s32.totalorder %s20, 1
    %p185 = por %p183, %p184
    %p186 = scmp.ne.s32.totalorder %s177, %s178
    %p187 = scmp.eq.s32.totalorder %s20, 0
    %p188 = por %p186, %p187
    %p189 = scmp.ne.s32.totalorder %s177, %s178
    %p190 = scmp.eq.s32.totalorder %s21, 1
    %p191 = por %p189, %p190
    %p193 = scmp.ne.s32.totalorder %s178, %s192
    %p194 = scmp.eq.s32.totalorder %s21, 0
    %p195 = por %p193, %p194
    %s197 = sadd.s32 %s196, 1
    %p200 = scmp.eq.s32.totalorder %s15, 1
    %p201 = scmp.ne.s32.totalorder %s196, %s198
    %p202 = scmp.eq.s32.totalorder %s15, 0
    %p203 = por %p201, %p202
    %p204 = scmp.ne.s32.totalorder %s196, %s198
    %p205 = scmp.eq.s32.totalorder %s20, 1
    %p206 = por %p204, %p205
    %p207 = scmp.ne.s32.totalorder %s198, %s199
    %p208 = scmp.eq.s32.totalorder %s20, 0
    %p209 = por %p207, %p208
    %p210 = scmp.ne.s32.totalorder %s198, %s199
    %p211 = scmp.eq.s32.totalorder %s21, 1
    %p212 = por %p210, %p211
    %p214 = scmp.ne.s32.totalorder %s199, %s213
    %p215 = scmp.eq.s32.totalorder %s21, 0
    %p216 = por %p214, %p215
    %s217 = ssub.s32 %s15, %s22
    %p218 = scmp.eq.s32.totalorder %s217, 0
    %s220 = sadd.s32 %s219, 1
    %s221 = scalar_select %p218, %s219, %s220
    %p224 = pneg %p218
    %p225 = scmp.eq.s32.totalorder %s15, 1
    %p226 = por %p224, %p225
    %p227 = scmp.ne.s32.totalorder %s219, %s222
    %p228 = scmp.eq.s32.totalorder %s15, 0
    %p229 = por %p227, %p228
    %p230 = scmp.ne.s32.totalorder %s219, %s222
    %p231 = scmp.eq.s32.totalorder %s20, 1
    %p232 = por %p230, %p231
    %p233 = scmp.ne.s32.totalorder %s222, %s223
    %p234 = scmp.eq.s32.totalorder %s20, 0
    %p235 = por %p233, %p234
    %p236 = scmp.ne.s32.totalorder %s222, %s223
    %p237 = scmp.eq.s32.totalorder %s21, 1
    %p238 = por %p236, %p237
    %p240 = scmp.ne.s32.totalorder %s223, %s239
    %p241 = scmp.eq.s32.totalorder %s21, 0
    %p242 = por %p240, %p241
    %p243 = scmp.le.s32.totalorder 1, %s15
    %p244 = scmp.lt.s32.totalorder %s15, 3
    %p245 = pnand %p243, %p244
    %p246 = pneg %p245
    // Predicated region
    $region9: #{inceptionv1_block.1} parent=5 // pred_check
      _
    $region10: #{inceptionv1_block.1} parent=5 // pred_check_branch
      %248 = sbr.rel (%p245) target = $region12
    $region11: #{inceptionv1_block.1} parent=5 // pred_region
      %s249 = ssub.s32 %s15, 1
      // Predicated region
      $region13: #{inceptionv1_block.1} parent=11 // pred_check
        %p250 = pneg %p62
      $region14: #{inceptionv1_block.1} parent=11 // pred_check_branch
        %252 = sbr.rel (%p250) target = $region16
      $region15: #{inceptionv1_block.1} parent=11 // pred_region
        _
      $region16: #{inceptionv1_block.1} parent=11 // pred_fallthru
        _
      // Predicated region
      $region17: #{inceptionv1_block.1} parent=11 // pred_check
        %p253 = pneg %p83
      $region18: #{inceptionv1_block.1} parent=11 // pred_check_branch
        %255 = sbr.rel (%p253) target = $region20
      $region19: #{inceptionv1_block.1} parent=11 // pred_region
        _
      $region20: #{inceptionv1_block.1} parent=11 // pred_fallthru
        _
      // Predicated region
      $region21: #{inceptionv1_block.1} parent=11 // pred_check
        %p256 = pneg %p104
      $region22: #{inceptionv1_block.1} parent=11 // pred_check_branch
        %258 = sbr.rel (%p256) target = $region24
      $region23: #{inceptionv1_block.1} parent=11 // pred_region
        _
      $region24: #{inceptionv1_block.1} parent=11 // pred_fallthru
        _
      // Predicated region
      $region25: #{inceptionv1_block.1} parent=11 // pred_check
        %p259 = pneg %p125
      $region26: #{inceptionv1_block.1} parent=11 // pred_check_branch
        %261 = sbr.rel (%p259) target = $region28
      $region27: #{inceptionv1_block.1} parent=11 // pred_region
        _
      $region28: #{inceptionv1_block.1} parent=11 // pred_fallthru
        _
      // Predicated region
      $region29: #{inceptionv1_block.1} parent=11 // pred_check
        %p262 = pneg %p146
      $region30: #{inceptionv1_block.1} parent=11 // pred_check_branch
        %264 = sbr.rel (%p262) target = $region32
      $region31: #{inceptionv1_block.1} parent=11 // pred_region
        _
      $region32: #{inceptionv1_block.1} parent=11 // pred_fallthru
        _
      // Predicated region
      $region33: #{inceptionv1_block.1} parent=11 // pred_check
        %p265 = pneg %p167
      $region34: #{inceptionv1_block.1} parent=11 // pred_check_branch
        %267 = sbr.rel (%p265) target = $region36
      $region35: #{inceptionv1_block.1} parent=11 // pred_region
        _
      $region36: #{inceptionv1_block.1} parent=11 // pred_fallthru
        _
      // Predicated region
      $region37: #{inceptionv1_block.1} parent=11 // pred_check
        %p268 = pneg %p188
      $region38: #{inceptionv1_block.1} parent=11 // pred_check_branch
        %270 = sbr.rel (%p268) target = $region40
      $region39: #{inceptionv1_block.1} parent=11 // pred_region
        _
      $region40: #{inceptionv1_block.1} parent=11 // pred_fallthru
        _
      // Predicated region
      $region41: #{inceptionv1_block.1} parent=11 // pred_check
        %p271 = pneg %p209
      $region42: #{inceptionv1_block.1} parent=11 // pred_check_branch
        %273 = sbr.rel (%p271) target = $region44
      $region43: #{inceptionv1_block.1} parent=11 // pred_region
        _
      $region44: #{inceptionv1_block.1} parent=11 // pred_fallthru
        _
    $region12: #{inceptionv1_block.1} parent=5 // pred_fallthru
      _
    %p274 = scmp.lt.s32.totalorder %s15, 2
    // Predicated region
    $region45: #{inceptionv1_block.1} parent=5 // pred_check
      %p275 = pneg %p274
    $region46: #{inceptionv1_block.1} parent=5 // pred_check_branch
      %277 = sbr.rel (%p275) target = $region48
    $region47: #{inceptionv1_block.1} parent=5 // pred_region
      // Predicated region
      $region49: #{inceptionv1_block.1} parent=47 // pred_check
        %p278 = pneg %p35
      $region50: #{inceptionv1_block.1} parent=47 // pred_check_branch
        %280 = sbr.rel (%p278) target = $region52
      $region51: #{inceptionv1_block.1} parent=47 // pred_region
        %p281 = scmp.lt.s32.totalorder %s15, 1
        %s282 = scalar_select %p281, %s15, 1
        %s283 = smul.addr %s282, 32
        %s284 = smul.addr %s283, 8
        %s285 = scalar_lea.vmem %s0, %s284
      $region52: #{inceptionv1_block.1} parent=47 // pred_fallthru
        _
    $region48: #{inceptionv1_block.1} parent=5 // pred_fallthru
      _
    %p286 = scmp.le.s32.totalorder 1, %s15
    %p287 = scmp.lt.s32.totalorder %s15, 3
    %p288 = pnand %p286, %p287
    %p289 = pneg %p288
    // Predicated region
    $region53: #{inceptionv1_block.1} parent=5 // pred_check
      _
    $region54: #{inceptionv1_block.1} parent=5 // pred_check_branch
      %291 = sbr.rel (%p288) target = $region56
    $region55: #{inceptionv1_block.1} parent=5 // pred_region
      %s292 = ssub.s32 %s15, 1
      %p293 = scmp.lt.s32.totalorder %s20, 1
      %s294 = scalar_select %p293, %s20, 1
      %s295 = smul.addr %s294, 32
      %s296 = smul.addr %s295, 8
      %s297 = scalar_lea.vmem %s0, %s296
      %p298 = pneg %p41
      %p299 = pneg %p38
      %p300 = pneg %p62
      %p301 = pneg %p59
      %p302 = pneg %p83
      %p303 = pneg %p80
      %p304 = pneg %p104
      %p305 = pneg %p101
      %p306 = pneg %p125
      %p307 = pneg %p122
      %p308 = pneg %p146
      %p309 = pneg %p143
      %p310 = pneg %p167
      %p311 = pneg %p164
      %p312 = pneg %p188
      %p313 = pneg %p185
      %p314 = pneg %p209
      %p315 = pneg %p206
      %p316 = pneg %p235
      %p317 = pneg %p232
      %p318 = scmp.lt.s32.totalorder %s20, 1
      %s319 = scalar_select %p318, %s20, 1
      %s320 = smul.addr %s319, 32
      %s321 = smul.addr %s320, 8
      %s322 = scalar_lea.vmem %s9, %s321
      %p323 = scmp.lt.s32.totalorder %s20, 1
      %s324 = scalar_select %p323, %s20, 1
      %s325 = smul.addr %s324, 32
      %s326 = smul.addr %s325, 8
      %s327 = scalar_lea.vmem %s0, %s326
      %p328 = scmp.lt.s32.totalorder %s20, 1
      %s329 = scalar_select %p328, %s20, 1
      %s330 = smul.addr %s329, 32
      %s331 = smul.addr %s330, 8
      %s332 = scalar_lea.vmem %s9, %s331
      %vm334 = vcmask 31744
      %335 = vst.msk [vmem:[#allocation2] sm:$0xff] %vm334, -1e+30
      %336 = vst.msk [vmem:[#allocation2 + $0x8] sm:$0xff] %vm334, -1e+30
      %337 = vst.msk [vmem:[#allocation2 + $0x10] sm:$0xff] %vm334, -1e+30
      %338 = vst.msk [vmem:[#allocation2 + $0x18] sm:$0xff] %vm334, -1e+30
      %339 = vst.msk [vmem:[#allocation2 + $0x20] sm:$0xff] %vm334, -1e+30
      %340 = vst.msk [vmem:[#allocation2 + $0x28] sm:$0xff] %vm334, -1e+30
      %341 = vst.msk [vmem:[#allocation2 + $0x30] sm:$0xff] %vm334, -1e+30
      %342 = vst.msk [vmem:[#allocation2 + $0x38] sm:$0xff] %vm334, -1e+30
      %343 = vst.msk [vmem:[#allocation2 + $0x40] sm:$0xff] %vm334, -1e+30
      %344 = vst.msk [vmem:[#allocation2 + $0x48] sm:$0xff] %vm334, -1e+30
      %345 = vst.msk [vmem:[#allocation2 + $0x50] sm:$0xff] %vm334, -1e+30
      %346 = vst.msk [vmem:[#allocation2 + $0x58] sm:$0xff] %vm334, -1e+30
      %347 = vst.msk [vmem:[#allocation2 + $0x60] sm:$0xff] %vm334, -1e+30
      %348 = vst.msk [vmem:[#allocation2 + $0x68] sm:$0xff] %vm334, -1e+30
      %349 = vst.msk [vmem:[#allocation2 + $0x70] sm:$0xff] %vm334, -1e+30
      %350 = vst.msk [vmem:[#allocation2 + $0x78] sm:$0xff] %vm334, -1e+30
      %351 = vst.msk [vmem:[#allocation2 + $0x80] sm:$0xff] %vm334, -1e+30
      %352 = vst.msk [vmem:[#allocation2 + $0x88] sm:$0xff] %vm334, -1e+30
      %353 = vst.msk [vmem:[#allocation2 + $0x90] sm:$0xff] %vm334, -1e+30
      %354 = vst.msk [vmem:[#allocation2 + $0x98] sm:$0xff] %vm334, -1e+30
      %355 = vst.msk [vmem:[#allocation2 + $0xa0] sm:$0xff] %vm334, -1e+30
      %356 = vst.msk [vmem:[#allocation2 + $0xa8] sm:$0xff] %vm334, -1e+30
      %357 = vst.msk [vmem:[#allocation2 + $0xb0] sm:$0xff] %vm334, -1e+30
      %358 = vst.msk [vmem:[#allocation2 + $0xb8] sm:$0xff] %vm334, -1e+30
      %359 = vst.msk [vmem:[#allocation2 + $0xc0] sm:$0xff] %vm334, -1e+30
      %360 = vst.msk [vmem:[#allocation2 + $0xc8] sm:$0xff] %vm334, -1e+30
      %361 = vst.msk [vmem:[#allocation2 + $0xd0] sm:$0xff] %vm334, -1e+30
      %362 = vst.msk [vmem:[#allocation2 + $0xd8] sm:$0xff] %vm334, -1e+30
      %363 = vst.msk [vmem:[#allocation2 + $0xe0] sm:$0xff] %vm334, -1e+30
      %364 = vst.msk [vmem:[#allocation2 + $0xe8] sm:$0xff] %vm334, -1e+30
      %365 = vst.msk [vmem:[#allocation2 + $0xf0] sm:$0xff] %vm334, -1e+30
      %366 = vst.msk [vmem:[#allocation2 + $0xf8] sm:$0xff] %vm334, -1e+30
      %367 = vst.msk [vmem:[#allocation2 + $0x100] sm:$0xff] %vm334, -1e+30
      %368 = vst.msk [vmem:[#allocation2 + $0x108] sm:$0xff] %vm334, -1e+30
      %369 = vst.msk [vmem:[#allocation2 + $0x110] sm:$0xff] %vm334, -1e+30
      %370 = vst.msk [vmem:[#allocation2 + $0x118] sm:$0xff] %vm334, -1e+30
      %371 = vst.msk [vmem:[#allocation2 + $0x120] sm:$0xff] %vm334, -1e+30
      %372 = vst.msk [vmem:[#allocation2 + $0x128] sm:$0xff] %vm334, -1e+30
      %373 = vst.msk [vmem:[#allocation2 + $0x130] sm:$0xff] %vm334, -1e+30
      %374 = vst.msk [vmem:[#allocation2 + $0x138] sm:$0xff] %vm334, -1e+30
      %375 = vst.msk [vmem:[#allocation2 + $0x140] sm:$0xff] %vm334, -1e+30
      %376 = vst.msk [vmem:[#allocation2 + $0x148] sm:$0xff] %vm334, -1e+30
      %377 = vst.msk [vmem:[#allocation2 + $0x150] sm:$0xff] %vm334, -1e+30
      %378 = vst.msk [vmem:[#allocation2 + $0x158] sm:$0xff] %vm334, -1e+30
      %379 = vst.msk [vmem:[#allocation2 + $0x160] sm:$0xff] %vm334, -1e+30
      %380 = vst.msk [vmem:[#allocation2 + $0x168] sm:$0xff] %vm334, -1e+30
      %381 = vst.msk [vmem:[#allocation2 + $0x170] sm:$0xff] %vm334, -1e+30
      %382 = vst.msk [vmem:[#allocation2 + $0x178] sm:$0xff] %vm334, -1e+30
      %383 = vst.msk [vmem:[#allocation2 + $0x180] sm:$0xff] %vm334, -1e+30
      %384 = vst.msk [vmem:[#allocation2 + $0x188] sm:$0xff] %vm334, -1e+30
      %385 = vst.msk [vmem:[#allocation2 + $0x190] sm:$0xff] %vm334, -1e+30
      %386 = vst.msk [vmem:[#allocation2 + $0x198] sm:$0xff] %vm334, -1e+30
      %387 = vst.msk [vmem:[#allocation2 + $0x1a0] sm:$0xff] %vm334, -1e+30
      %388 = vst.msk [vmem:[#allocation2 + $0x1a8] sm:$0xff] %vm334, -1e+30
      %389 = vst.msk [vmem:[#allocation2 + $0x1b0] sm:$0xff] %vm334, -1e+30
      %390 = vst.msk [vmem:[#allocation2 + $0x1b8] sm:$0xff] %vm334, -1e+30
      %391 = vst.msk [vmem:[#allocation2 + $0x1c0] sm:$0xff] %vm334, -1e+30
      %v392 = vld [vmem:[%s327] sm:$0xff]
      %v393 = vld [vmem:[%s327 + $0x8] sm:$0xff]
      %394 = vst.msk [vmem:[#allocation2 + $0x19] sm:$0xff] %vm334, %v392
      %395 = vst.msk [vmem:[#allocation2 + $0x21] sm:$0xff] %vm334, %v393
      %s396 = scalar_lea.vmem %s327, 16
      %v397 = vld [vmem:[%s396] sm:$0xff]
      %v398 = vld [vmem:[%s396 + $0x8] sm:$0xff]
      %399 = vst.msk [vmem:[#allocation2 + $0x31] sm:$0xff] %vm334, %v397
      %400 = vst.msk [vmem:[#allocation2 + $0x39] sm:$0xff] %vm334, %v398
      %s401 = scalar_lea.vmem %s327, 32
      %v402 = vld [vmem:[%s401] sm:$0xff]
      %v403 = vld [vmem:[%s401 + $0x8] sm:$0xff]
      %404 = vst.msk [vmem:[#allocation2 + $0x49] sm:$0xff] %vm334, %v402
      %405 = vst.msk [vmem:[#allocation2 + $0x51] sm:$0xff] %vm334, %v403
      %s406 = scalar_lea.vmem %s327, 48
      %v407 = vld [vmem:[%s406] sm:$0xff]
      %v408 = vld [vmem:[%s406 + $0x8] sm:$0xff]
      %409 = vst.msk [vmem:[#allocation2 + $0x61] sm:$0xff] %vm334, %v407
      %410 = vst.msk [vmem:[#allocation2 + $0x69] sm:$0xff] %vm334, %v408
      %s411 = scalar_lea.vmem %s327, 64
      %v412 = vld [vmem:[%s411] sm:$0xff]
      %v413 = vld [vmem:[%s411 + $0x8] sm:$0xff]
      %414 = vst.msk [vmem:[#allocation2 + $0x79] sm:$0xff] %vm334, %v412
      %415 = vst.msk [vmem:[#allocation2 + $0x81] sm:$0xff] %vm334, %v413
      %s416 = scalar_lea.vmem %s327, 80
      %v417 = vld [vmem:[%s416] sm:$0xff]
      %v418 = vld [vmem:[%s416 + $0x8] sm:$0xff]
      %419 = vst.msk [vmem:[#allocation2 + $0x91] sm:$0xff] %vm334, %v417
      %420 = vst.msk [vmem:[#allocation2 + $0x99] sm:$0xff] %vm334, %v418
      %s421 = scalar_lea.vmem %s327, 96
      %v422 = vld [vmem:[%s421] sm:$0xff]
      %v423 = vld [vmem:[%s421 + $0x8] sm:$0xff]
      %424 = vst.msk [vmem:[#allocation2 + $0xa9] sm:$0xff] %vm334, %v422
      %425 = vst.msk [vmem:[#allocation2 + $0xb1] sm:$0xff] %vm334, %v423
      %s426 = scalar_lea.vmem %s327, 112
      %v427 = vld [vmem:[%s426] sm:$0xff]
      %v428 = vld [vmem:[%s426 + $0x8] sm:$0xff]
      %429 = vst.msk [vmem:[#allocation2 + $0xc1] sm:$0xff] %vm334, %v427
      %430 = vst.msk [vmem:[#allocation2 + $0xc9] sm:$0xff] %vm334, %v428
      %s431 = scalar_lea.vmem %s327, 128
      %v432 = vld [vmem:[%s431] sm:$0xff]
      %v433 = vld [vmem:[%s431 + $0x8] sm:$0xff]
      %434 = vst.msk [vmem:[#allocation2 + $0xd9] sm:$0xff] %vm334, %v432
      %435 = vst.msk [vmem:[#allocation2 + $0xe1] sm:$0xff] %vm334, %v433
      %s436 = scalar_lea.vmem %s327, 144
      %v437 = vld [vmem:[%s436] sm:$0xff]
      %v438 = vld [vmem:[%s436 + $0x8] sm:$0xff]
      %439 = vst.msk [vmem:[#allocation2 + $0xf1] sm:$0xff] %vm334, %v437
      %440 = vst.msk [vmem:[#allocation2 + $0xf9] sm:$0xff] %vm334, %v438
      %s441 = scalar_lea.vmem %s327, 160
      %v442 = vld [vmem:[%s441] sm:$0xff]
      %v443 = vld [vmem:[%s441 + $0x8] sm:$0xff]
      %444 = vst.msk [vmem:[#allocation2 + $0x109] sm:$0xff] %vm334, %v442
      %445 = vst.msk [vmem:[#allocation2 + $0x111] sm:$0xff] %vm334, %v443
      %s446 = scalar_lea.vmem %s327, 176
      %v447 = vld [vmem:[%s446] sm:$0xff]
      %v448 = vld [vmem:[%s446 + $0x8] sm:$0xff]
      %449 = vst.msk [vmem:[#allocation2 + $0x121] sm:$0xff] %vm334, %v447
      %450 = vst.msk [vmem:[#allocation2 + $0x129] sm:$0xff] %vm334, %v448
      %s451 = scalar_lea.vmem %s327, 192
      %v452 = vld [vmem:[%s451] sm:$0xff]
      %v453 = vld [vmem:[%s451 + $0x8] sm:$0xff]
      %454 = vst.msk [vmem:[#allocation2 + $0x139] sm:$0xff] %vm334, %v452
      %455 = vst.msk [vmem:[#allocation2 + $0x141] sm:$0xff] %vm334, %v453
      %s456 = scalar_lea.vmem %s327, 208
      %v457 = vld [vmem:[%s456] sm:$0xff]
      %v458 = vld [vmem:[%s456 + $0x8] sm:$0xff]
      %459 = vst.msk [vmem:[#allocation2 + $0x151] sm:$0xff] %vm334, %v457
      %460 = vst.msk [vmem:[#allocation2 + $0x159] sm:$0xff] %vm334, %v458
      %s461 = scalar_lea.vmem %s327, 224
      %v462 = vld [vmem:[%s461] sm:$0xff]
      %v463 = vld [vmem:[%s461 + $0x8] sm:$0xff]
      %464 = vst.msk [vmem:[#allocation2 + $0x169] sm:$0xff] %vm334, %v462
      %465 = vst.msk [vmem:[#allocation2 + $0x171] sm:$0xff] %vm334, %v463
      %s466 = scalar_lea.vmem %s327, 240
      %v467 = vld [vmem:[%s466] sm:$0xff]
      %v468 = vld [vmem:[%s466 + $0x8] sm:$0xff]
      %469 = vst.msk [vmem:[#allocation2 + $0x181] sm:$0xff] %vm334, %v467
      %470 = vst.msk [vmem:[#allocation2 + $0x189] sm:$0xff] %vm334, %v468
      %v471 = vlaneseq
      %v472 = vshrl.u32 %v471, 7
      %v473 = vadd.s32 %v472, 8
      %v474 = vadd.s32 %v472, 16
      %v475 = vadd.s32 %v472, 24
      %v476 = vadd.s32 %v472, 32
      %v477 = vadd.s32 %v472, 40
      %v478 = vadd.s32 %v472, 48
      %v479 = vadd.s32 %v472, 56
      %v480 = vadd.s32 %v472, 64
      %v481 = vadd.s32 %v472, 72
      %v482 = vadd.s32 %v472, 80
      %v483 = vadd.s32 %v472, 88
      %v484 = vadd.s32 %v472, 96
      %v485 = vadd.s32 %v472, 104
      %v486 = vadd.s32 %v472, 112
      %v487 = vadd.s32 %v472, 120
      %v488 = vadd.s32 %v472, 128
      %v489 = vadd.s32 %v472, 136
      %v490 = vadd.s32 %v472, 144
      %v491 = vadd.s32 %v472, 152
      %v492 = vadd.s32 %v472, 160
      %v493 = vadd.s32 %v472, 168
      %v494 = vadd.s32 %v472, 176
      %v495 = vadd.s32 %v472, 184
      %v496 = vadd.s32 %v472, 192
      %v497 = vadd.s32 %v472, 200
      %v498 = vadd.s32 %v472, 208
      %v499 = vadd.s32 %v472, 216
      %v500 = vadd.s32 %v472, 224
      %v501 = vadd.s32 %v472, 232
      %v502 = vadd.s32 %v472, 240
      %v503 = vadd.s32 %v472, 248
      %v504 = vadd.s32 %v472, 256
      %v505 = vadd.s32 %v472, 264
      %v506 = vadd.s32 %v472, 272
      %v507 = vadd.s32 %v472, 280
      %v508 = vadd.s32 %v472, 288
      %v509 = vadd.s32 %v472, 296
      %v510 = vadd.s32 %v472, 304
      %v511 = vadd.s32 %v472, 312
      %v512 = vadd.s32 %v472, 320
      %v513 = vadd.s32 %v472, 328
      %v514 = vadd.s32 %v472, 336
      %v515 = vadd.s32 %v472, 344
      %v516 = vadd.s32 %v472, 352
      %v517 = vadd.s32 %v472, 360
      %v518 = vadd.s32 %v472, 368
      %v519 = vadd.s32 %v472, 376
      %vm520 = vcmp.lt.s32.totalorder %v472, 0
      %v521 = vsub.s32 0, %v472
      %v522 = vsel %vm520, %v521, %v472
      %v523 = vmul.u32.u64.compose %v522, 2863311531
      %v524 = vextract.low.u32 %v523
      %v525 = vextract.high.u32 %v523
      %v526 = vshrl.u32 %v525, 4
      %v527 = vmul.u32 %v526, 24
      %v528 = vsub.s32 %v522, %v527
      %v529 = vsub.s32 0, %v528
      %v530 = vsel %vm520, %v529, %v528
      %vm531 = vcmp.lt.s32.totalorder %v473, 0
      %v532 = vsub.s32 0, %v473
      %v533 = vsel %vm531, %v532, %v473
      %v534 = vmul.u32.u64.compose %v533, 2863311531
      %v535 = vextract.low.u32 %v534
      %v536 = vextract.high.u32 %v534
      %v537 = vshrl.u32 %v536, 4
      %v538 = vmul.u32 %v537, 24
      %v539 = vsub.s32 %v533, %v538
      %v540 = vsub.s32 0, %v539
      %v541 = vsel %vm531, %v540, %v539
      %vm542 = vcmp.lt.s32.totalorder %v474, 0
      %v543 = vsub.s32 0, %v474
      %v544 = vsel %vm542, %v543, %v474
      %v545 = vmul.u32.u64.compose %v544, 2863311531
      %v546 = vextract.low.u32 %v545
      %v547 = vextract.high.u32 %v545
      %v548 = vshrl.u32 %v547, 4
      %v549 = vmul.u32 %v548, 24
      %v550 = vsub.s32 %v544, %v549
      %v551 = vsub.s32 0, %v550
      %v552 = vsel %vm542, %v551, %v550
      %vm553 = vcmp.lt.s32.totalorder %v475, 0
      %v554 = vsub.s32 0, %v475
      %v555 = vsel %vm553, %v554, %v475
      %v556 = vmul.u32.u64.compose %v555, 2863311531
      %v557 = vextract.low.u32 %v556
      %v558 = vextract.high.u32 %v556
      %v559 = vshrl.u32 %v558, 4
      %v560 = vmul.u32 %v559, 24
      %v561 = vsub.s32 %v555, %v560
      %v562 = vsub.s32 0, %v561
      %v563 = vsel %vm553, %v562, %v561
      %vm564 = vcmp.lt.s32.totalorder %v476, 0
      %v565 = vsub.s32 0, %v476
      %v566 = vsel %vm564, %v565, %v476
      %v567 = vmul.u32.u64.compose %v566, 2863311531
      %v568 = vextract.low.u32 %v567
      %v569 = vextract.high.u32 %v567
      %v570 = vshrl.u32 %v569, 4
      %v571 = vmul.u32 %v570, 24
      %v572 = vsub.s32 %v566, %v571
      %v573 = vsub.s32 0, %v572
      %v574 = vsel %vm564, %v573, %v572
      %vm575 = vcmp.lt.s32.totalorder %v477, 0
      %v576 = vsub.s32 0, %v477
      %v577 = vsel %vm575, %v576, %v477
      %v578 = vmul.u32.u64.compose %v577, 2863311531
      %v579 = vextract.low.u32 %v578
      %v580 = vextract.high.u32 %v578
      %v581 = vshrl.u32 %v580, 4
      %v582 = vmul.u32 %v581, 24
      %v583 = vsub.s32 %v577, %v582
      %v584 = vsub.s32 0, %v583
      %v585 = vsel %vm575, %v584, %v583
      %vm586 = vcmp.lt.s32.totalorder %v478, 0
      %v587 = vsub.s32 0, %v478
      %v588 = vsel %vm586, %v587, %v478
      %v589 = vmul.u32.u64.compose %v588, 2863311531
      %v590 = vextract.low.u32 %v589
      %v591 = vextract.high.u32 %v589
      %v592 = vshrl.u32 %v591, 4
      %v593 = vmul.u32 %v592, 24
      %v594 = vsub.s32 %v588, %v593
      %v595 = vsub.s32 0, %v594
      %v596 = vsel %vm586, %v595, %v594
      %vm597 = vcmp.lt.s32.totalorder %v479, 0
      %v598 = vsub.s32 0, %v479
      %v599 = vsel %vm597, %v598, %v479
      %v600 = vmul.u32.u64.compose %v599, 2863311531
      %v601 = vextract.low.u32 %v600
      %v602 = vextract.high.u32 %v600
      %v603 = vshrl.u32 %v602, 4
      %v604 = vmul.u32 %v603, 24
      %v605 = vsub.s32 %v599, %v604
      %v606 = vsub.s32 0, %v605
      %v607 = vsel %vm597, %v606, %v605
      %vm608 = vcmp.lt.s32.totalorder %v480, 0
      %v609 = vsub.s32 0, %v480
      %v610 = vsel %vm608, %v609, %v480
      %v611 = vmul.u32.u64.compose %v610, 2863311531
      %v612 = vextract.low.u32 %v611
      %v613 = vextract.high.u32 %v611
      %v614 = vshrl.u32 %v613, 4
      %v615 = vmul.u32 %v614, 24
      %v616 = vsub.s32 %v610, %v615
      %v617 = vsub.s32 0, %v616
      %v618 = vsel %vm608, %v617, %v616
      %vm619 = vcmp.lt.s32.totalorder %v481, 0
      %v620 = vsub.s32 0, %v481
      %v621 = vsel %vm619, %v620, %v481
      %v622 = vmul.u32.u64.compose %v621, 2863311531
      %v623 = vextract.low.u32 %v622
      %v624 = vextract.high.u32 %v622
      %v625 = vshrl.u32 %v624, 4
      %v626 = vmul.u32 %v625, 24
      %v627 = vsub.s32 %v621, %v626
      %v628 = vsub.s32 0, %v627
      %v629 = vsel %vm619, %v628, %v627
      %vm630 = vcmp.lt.s32.totalorder %v482, 0
      %v631 = vsub.s32 0, %v482
      %v632 = vsel %vm630, %v631, %v482
      %v633 = vmul.u32.u64.compose %v632, 2863311531
      %v634 = vextract.low.u32 %v633
      %v635 = vextract.high.u32 %v633
      %v636 = vshrl.u32 %v635, 4
      %v637 = vmul.u32 %v636, 24
      %v638 = vsub.s32 %v632, %v637
      %v639 = vsub.s32 0, %v638
      %v640 = vsel %vm630, %v639, %v638
      %vm641 = vcmp.lt.s32.totalorder %v483, 0
      %v642 = vsub.s32 0, %v483
      %v643 = vsel %vm641, %v642, %v483
      %v644 = vmul.u32.u64.compose %v643, 2863311531
      %v645 = vextract.low.u32 %v644
      %v646 = vextract.high.u32 %v644
      %v647 = vshrl.u32 %v646, 4
      %v648 = vmul.u32 %v647, 24
      %v649 = vsub.s32 %v643, %v648
      %v650 = vsub.s32 0, %v649
      %v651 = vsel %vm641, %v650, %v649
      %vm652 = vcmp.lt.s32.totalorder %v484, 0
      %v653 = vsub.s32 0, %v484
      %v654 = vsel %vm652, %v653, %v484
      %v655 = vmul.u32.u64.compose %v654, 2863311531
      %v656 = vextract.low.u32 %v655
      %v657 = vextract.high.u32 %v655
      %v658 = vshrl.u32 %v657, 4
      %v659 = vmul.u32 %v658, 24
      %v660 = vsub.s32 %v654, %v659
      %v661 = vsub.s32 0, %v660
      %v662 = vsel %vm652, %v661, %v660
      %vm663 = vcmp.lt.s32.totalorder %v485, 0
      %v664 = vsub.s32 0, %v485
      %v665 = vsel %vm663, %v664, %v485
      %v666 = vmul.u32.u64.compose %v665, 2863311531
      %v667 = vextract.low.u32 %v666
      %v668 = vextract.high.u32 %v666
      %v669 = vshrl.u32 %v668, 4
      %v670 = vmul.u32 %v669, 24
      %v671 = vsub.s32 %v665, %v670
      %v672 = vsub.s32 0, %v671
      %v673 = vsel %vm663, %v672, %v671
      %vm674 = vcmp.lt.s32.totalorder %v486, 0
      %v675 = vsub.s32 0, %v486
      %v676 = vsel %vm674, %v675, %v486
      %v677 = vmul.u32.u64.compose %v676, 2863311531
      %v678 = vextract.low.u32 %v677
      %v679 = vextract.high.u32 %v677
      %v680 = vshrl.u32 %v679, 4
      %v681 = vmul.u32 %v680, 24
      %v682 = vsub.s32 %v676, %v681
      %v683 = vsub.s32 0, %v682
      %v684 = vsel %vm674, %v683, %v682
      %vm685 = vcmp.lt.s32.totalorder %v487, 0
      %v686 = vsub.s32 0, %v487
      %v687 = vsel %vm685, %v686, %v487
      %v688 = vmul.u32.u64.compose %v687, 2863311531
      %v689 = vextract.low.u32 %v688
      %v690 = vextract.high.u32 %v688
      %v691 = vshrl.u32 %v690, 4
      %v692 = vmul.u32 %v691, 24
      %v693 = vsub.s32 %v687, %v692
      %v694 = vsub.s32 0, %v693
      %v695 = vsel %vm685, %v694, %v693
      %vm696 = vcmp.lt.s32.totalorder %v488, 0
      %v697 = vsub.s32 0, %v488
      %v698 = vsel %vm696, %v697, %v488
      %v699 = vmul.u32.u64.compose %v698, 2863311531
      %v700 = vextract.low.u32 %v699
      %v701 = vextract.high.u32 %v699
      %v702 = vshrl.u32 %v701, 4
      %v703 = vmul.u32 %v702, 24
      %v704 = vsub.s32 %v698, %v703
      %v705 = vsub.s32 0, %v704
      %v706 = vsel %vm696, %v705, %v704
      %vm707 = vcmp.lt.s32.totalorder %v489, 0
      %v708 = vsub.s32 0, %v489
      %v709 = vsel %vm707, %v708, %v489
      %v710 = vmul.u32.u64.compose %v709, 2863311531
      %v711 = vextract.low.u32 %v710
      %v712 = vextract.high.u32 %v710
      %v713 = vshrl.u32 %v712, 4
      %v714 = vmul.u32 %v713, 24
      %v715 = vsub.s32 %v709, %v714
      %v716 = vsub.s32 0, %v715
      %v717 = vsel %vm707, %v716, %v715
      %vm718 = vcmp.lt.s32.totalorder %v490, 0
      %v719 = vsub.s32 0, %v490
      %v720 = vsel %vm718, %v719, %v490
      %v721 = vmul.u32.u64.compose %v720, 2863311531
      %v722 = vextract.low.u32 %v721
      %v723 = vextract.high.u32 %v721
      %v724 = vshrl.u32 %v723, 4
      %v725 = vmul.u32 %v724, 24
      %v726 = vsub.s32 %v720, %v725
      %v727 = vsub.s32 0, %v726
      %v728 = vsel %vm718, %v727, %v726
      %vm729 = vcmp.lt.s32.totalorder %v491, 0
      %v730 = vsub.s32 0, %v491
      %v731 = vsel %vm729, %v730, %v491
      %v732 = vmul.u32.u64.compose %v731, 2863311531
      %v733 = vextract.low.u32 %v732
      %v734 = vextract.high.u32 %v732
      %v735 = vshrl.u32 %v734, 4
      %v736 = vmul.u32 %v735, 24
      %v737 = vsub.s32 %v731, %v736
      %v738 = vsub.s32 0, %v737
      %v739 = vsel %vm729, %v738, %v737
      %vm740 = vcmp.lt.s32.totalorder %v492, 0
      %v741 = vsub.s32 0, %v492
      %v742 = vsel %vm740, %v741, %v492
      %v743 = vmul.u32.u64.compose %v742, 2863311531
      %v744 = vextract.low.u32 %v743
      %v745 = vextract.high.u32 %v743
      %v746 = vshrl.u32 %v745, 4
      %v747 = vmul.u32 %v746, 24
      %v748 = vsub.s32 %v742, %v747
      %v749 = vsub.s32 0, %v748
      %v750 = vsel %vm740, %v749, %v748
      %vm751 = vcmp.lt.s32.totalorder %v493, 0
      %v752 = vsub.s32 0, %v493
      %v753 = vsel %vm751, %v752, %v493
      %v754 = vmul.u32.u64.compose %v753, 2863311531
      %v755 = vextract.low.u32 %v754
      %v756 = vextract.high.u32 %v754
      %v757 = vshrl.u32 %v756, 4
      %v758 = vmul.u32 %v757, 24
      %v759 = vsub.s32 %v753, %v758
      %v760 = vsub.s32 0, %v759
      %v761 = vsel %vm751, %v760, %v759
      %vm762 = vcmp.lt.s32.totalorder %v494, 0
      %v763 = vsub.s32 0, %v494
      %v764 = vsel %vm762, %v763, %v494
      %v765 = vmul.u32.u64.compose %v764, 2863311531
      %v766 = vextract.low.u32 %v765
      %v767 = vextract.high.u32 %v765
      %v768 = vshrl.u32 %v767, 4
      %v769 = vmul.u32 %v768, 24
      %v770 = vsub.s32 %v764, %v769
      %v771 = vsub.s32 0, %v770
      %v772 = vsel %vm762, %v771, %v770
      %vm773 = vcmp.lt.s32.totalorder %v495, 0
      %v774 = vsub.s32 0, %v495
      %v775 = vsel %vm773, %v774, %v495
      %v776 = vmul.u32.u64.compose %v775, 2863311531
      %v777 = vextract.low.u32 %v776
      %v778 = vextract.high.u32 %v776
      %v779 = vshrl.u32 %v778, 4
      %v780 = vmul.u32 %v779, 24
      %v781 = vsub.s32 %v775, %v780
      %v782 = vsub.s32 0, %v781
      %v783 = vsel %vm773, %v782, %v781
      %vm784 = vcmp.lt.s32.totalorder %v496, 0
      %v785 = vsub.s32 0, %v496
      %v786 = vsel %vm784, %v785, %v496
      %v787 = vmul.u32.u64.compose %v786, 2863311531
      %v788 = vextract.low.u32 %v787
      %v789 = vextract.high.u32 %v787
      %v790 = vshrl.u32 %v789, 4
      %v791 = vmul.u32 %v790, 24
      %v792 = vsub.s32 %v786, %v791
      %v793 = vsub.s32 0, %v792
      %v794 = vsel %vm784, %v793, %v792
      %vm795 = vcmp.lt.s32.totalorder %v497, 0
      %v796 = vsub.s32 0, %v497
      %v797 = vsel %vm795, %v796, %v497
      %v798 = vmul.u32.u64.compose %v797, 2863311531
      %v799 = vextract.low.u32 %v798
      %v800 = vextract.high.u32 %v798
      %v801 = vshrl.u32 %v800, 4
      %v802 = vmul.u32 %v801, 24
      %v803 = vsub.s32 %v797, %v802
      %v804 = vsub.s32 0, %v803
      %v805 = vsel %vm795, %v804, %v803
      %vm806 = vcmp.lt.s32.totalorder %v498, 0
      %v807 = vsub.s32 0, %v498
      %v808 = vsel %vm806, %v807, %v498
      %v809 = vmul.u32.u64.compose %v808, 2863311531
      %v810 = vextract.low.u32 %v809
      %v811 = vextract.high.u32 %v809
      %v812 = vshrl.u32 %v811, 4
      %v813 = vmul.u32 %v812, 24
      %v814 = vsub.s32 %v808, %v813
      %v815 = vsub.s32 0, %v814
      %v816 = vsel %vm806, %v815, %v814
      %vm817 = vcmp.lt.s32.totalorder %v499, 0
      %v818 = vsub.s32 0, %v499
      %v819 = vsel %vm817, %v818, %v499
      %v820 = vmul.u32.u64.compose %v819, 2863311531
      %v821 = vextract.low.u32 %v820
      %v822 = vextract.high.u32 %v820
      %v823 = vshrl.u32 %v822, 4
      %v824 = vmul.u32 %v823, 24
      %v825 = vsub.s32 %v819, %v824
      %v826 = vsub.s32 0, %v825
      %v827 = vsel %vm817, %v826, %v825
      %vm828 = vcmp.lt.s32.totalorder %v500, 0
      %v829 = vsub.s32 0, %v500
      %v830 = vsel %vm828, %v829, %v500
      %v831 = vmul.u32.u64.compose %v830, 2863311531
      %v832 = vextract.low.u32 %v831
      %v833 = vextract.high.u32 %v831
      %v834 = vshrl.u32 %v833, 4
      %v835 = vmul.u32 %v834, 24
      %v836 = vsub.s32 %v830, %v835
      %v837 = vsub.s32 0, %v836
      %v838 = vsel %vm828, %v837, %v836
      %vm839 = vcmp.lt.s32.totalorder %v501, 0
      %v840 = vsub.s32 0, %v501
      %v841 = vsel %vm839, %v840, %v501
      %v842 = vmul.u32.u64.compose %v841, 2863311531
      %v843 = vextract.low.u32 %v842
      %v844 = vextract.high.u32 %v842
      %v845 = vshrl.u32 %v844, 4
      %v846 = vmul.u32 %v845, 24
      %v847 = vsub.s32 %v841, %v846
      %v848 = vsub.s32 0, %v847
      %v849 = vsel %vm839, %v848, %v847
      %vm850 = vcmp.lt.s32.totalorder %v502, 0
      %v851 = vsub.s32 0, %v502
      %v852 = vsel %vm850, %v851, %v502
      %v853 = vmul.u32.u64.compose %v852, 2863311531
      %v854 = vextract.low.u32 %v853
      %v855 = vextract.high.u32 %v853
      %v856 = vshrl.u32 %v855, 4
      %v857 = vmul.u32 %v856, 24
      %v858 = vsub.s32 %v852, %v857
      %v859 = vsub.s32 0, %v858
      %v860 = vsel %vm850, %v859, %v858
      %vm861 = vcmp.lt.s32.totalorder %v503, 0
      %v862 = vsub.s32 0, %v503
      %v863 = vsel %vm861, %v862, %v503
      %v864 = vmul.u32.u64.compose %v863, 2863311531
      %v865 = vextract.low.u32 %v864
      %v866 = vextract.high.u32 %v864
      %v867 = vshrl.u32 %v866, 4
      %v868 = vmul.u32 %v867, 24
      %v869 = vsub.s32 %v863, %v868
      %v870 = vsub.s32 0, %v869
      %v871 = vsel %vm861, %v870, %v869
      %vm872 = vcmp.lt.s32.totalorder %v504, 0
      %v873 = vsub.s32 0, %v504
      %v874 = vsel %vm872, %v873, %v504
      %v875 = vmul.u32.u64.compose %v874, 2863311531
      %v876 = vextract.low.u32 %v875
      %v877 = vextract.high.u32 %v875
      %v878 = vshrl.u32 %v877, 4
      %v879 = vmul.u32 %v878, 24
      %v880 = vsub.s32 %v874, %v879
      %v881 = vsub.s32 0, %v880
      %v882 = vsel %vm872, %v881, %v880
      %vm883 = vcmp.lt.s32.totalorder %v505, 0
      %v884 = vsub.s32 0, %v505
      %v885 = vsel %vm883, %v884, %v505
      %v886 = vmul.u32.u64.compose %v885, 2863311531
      %v887 = vextract.low.u32 %v886
      %v888 = vextract.high.u32 %v886
      %v889 = vshrl.u32 %v888, 4
      %v890 = vmul.u32 %v889, 24
      %v891 = vsub.s32 %v885, %v890
      %v892 = vsub.s32 0, %v891
      %v893 = vsel %vm883, %v892, %v891
      %vm894 = vcmp.lt.s32.totalorder %v506, 0
      %v895 = vsub.s32 0, %v506
      %v896 = vsel %vm894, %v895, %v506
      %v897 = vmul.u32.u64.compose %v896, 2863311531
      %v898 = vextract.low.u32 %v897
      %v899 = vextract.high.u32 %v897
      %v900 = vshrl.u32 %v899, 4
      %v901 = vmul.u32 %v900, 24
      %v902 = vsub.s32 %v896, %v901
      %v903 = vsub.s32 0, %v902
      %v904 = vsel %vm894, %v903, %v902
      %vm905 = vcmp.lt.s32.totalorder %v507, 0
      %v906 = vsub.s32 0, %v507
      %v907 = vsel %vm905, %v906, %v507
      %v908 = vmul.u32.u64.compose %v907, 2863311531
      %v909 = vextract.low.u32 %v908
      %v910 = vextract.high.u32 %v908
      %v911 = vshrl.u32 %v910, 4
      %v912 = vmul.u32 %v911, 24
      %v913 = vsub.s32 %v907, %v912
      %v914 = vsub.s32 0, %v913
      %v915 = vsel %vm905, %v914, %v913
      %vm916 = vcmp.lt.s32.totalorder %v508, 0
      %v917 = vsub.s32 0, %v508
      %v918 = vsel %vm916, %v917, %v508
      %v919 = vmul.u32.u64.compose %v918, 2863311531
      %v920 = vextract.low.u32 %v919
      %v921 = vextract.high.u32 %v919
      %v922 = vshrl.u32 %v921, 4
      %v923 = vmul.u32 %v922, 24
      %v924 = vsub.s32 %v918, %v923
      %v925 = vsub.s32 0, %v924
      %v926 = vsel %vm916, %v925, %v924
      %vm927 = vcmp.lt.s32.totalorder %v509, 0
      %v928 = vsub.s32 0, %v509
      %v929 = vsel %vm927, %v928, %v509
      %v930 = vmul.u32.u64.compose %v929, 2863311531
      %v931 = vextract.low.u32 %v930
      %v932 = vextract.high.u32 %v930
      %v933 = vshrl.u32 %v932, 4
      %v934 = vmul.u32 %v933, 24
      %v935 = vsub.s32 %v929, %v934
      %v936 = vsub.s32 0, %v935
      %v937 = vsel %vm927, %v936, %v935
      %vm938 = vcmp.lt.s32.totalorder %v510, 0
      %v939 = vsub.s32 0, %v510
      %v940 = vsel %vm938, %v939, %v510
      %v941 = vmul.u32.u64.compose %v940, 2863311531
      %v942 = vextract.low.u32 %v941
      %v943 = vextract.high.u32 %v941
      %v944 = vshrl.u32 %v943, 4
      %v945 = vmul.u32 %v944, 24
      %v946 = vsub.s32 %v940, %v945
      %v947 = vsub.s32 0, %v946
      %v948 = vsel %vm938, %v947, %v946
      %vm949 = vcmp.lt.s32.totalorder %v511, 0
      %v950 = vsub.s32 0, %v511
      %v951 = vsel %vm949, %v950, %v511
      %v952 = vmul.u32.u64.compose %v951, 2863311531
      %v953 = vextract.low.u32 %v952
      %v954 = vextract.high.u32 %v952
      %v955 = vshrl.u32 %v954, 4
      %v956 = vmul.u32 %v955, 24
      %v957 = vsub.s32 %v951, %v956
      %v958 = vsub.s32 0, %v957
      %v959 = vsel %vm949, %v958, %v957
      %vm960 = vcmp.lt.s32.totalorder %v512, 0
      %v961 = vsub.s32 0, %v512
      %v962 = vsel %vm960, %v961, %v512
      %v963 = vmul.u32.u64.compose %v962, 2863311531
      %v964 = vextract.low.u32 %v963
      %v965 = vextract.high.u32 %v963
      %v966 = vshrl.u32 %v965, 4
      %v967 = vmul.u32 %v966, 24
      %v968 = vsub.s32 %v962, %v967
      %v969 = vsub.s32 0, %v968
      %v970 = vsel %vm960, %v969, %v968
      %vm971 = vcmp.lt.s32.totalorder %v513, 0
      %v972 = vsub.s32 0, %v513
      %v973 = vsel %vm971, %v972, %v513
      %v974 = vmul.u32.u64.compose %v973, 2863311531
      %v975 = vextract.low.u32 %v974
      %v976 = vextract.high.u32 %v974
      %v977 = vshrl.u32 %v976, 4
      %v978 = vmul.u32 %v977, 24
      %v979 = vsub.s32 %v973, %v978
      %v980 = vsub.s32 0, %v979
      %v981 = vsel %vm971, %v980, %v979
      %vm982 = vcmp.lt.s32.totalorder %v514, 0
      %v983 = vsub.s32 0, %v514
      %v984 = vsel %vm982, %v983, %v514
      %v985 = vmul.u32.u64.compose %v984, 2863311531
      %v986 = vextract.low.u32 %v985
      %v987 = vextract.high.u32 %v985
      %v988 = vshrl.u32 %v987, 4
      %v989 = vmul.u32 %v988, 24
      %v990 = vsub.s32 %v984, %v989
      %v991 = vsub.s32 0, %v990
      %v992 = vsel %vm982, %v991, %v990
      %vm993 = vcmp.lt.s32.totalorder %v515, 0
      %v994 = vsub.s32 0, %v515
      %v995 = vsel %vm993, %v994, %v515
      %v996 = vmul.u32.u64.compose %v995, 2863311531
      %v997 = vextract.low.u32 %v996
      %v998 = vextract.high.u32 %v996
      %v999 = vshrl.u32 %v998, 4
      %v1000 = vmul.u32 %v999, 24
      %v1001 = vsub.s32 %v995, %v1000
      %v1002 = vsub.s32 0, %v1001
      %v1003 = vsel %vm993, %v1002, %v1001
      %vm1004 = vcmp.lt.s32.totalorder %v516, 0
      %v1005 = vsub.s32 0, %v516
      %v1006 = vsel %vm1004, %v1005, %v516
      %v1007 = vmul.u32.u64.compose %v1006, 2863311531
      %v1008 = vextract.low.u32 %v1007
      %v1009 = vextract.high.u32 %v1007
      %v1010 = vshrl.u32 %v1009, 4
      %v1011 = vmul.u32 %v1010, 24
      %v1012 = vsub.s32 %v1006, %v1011
      %v1013 = vsub.s32 0, %v1012
      %v1014 = vsel %vm1004, %v1013, %v1012
      %vm1015 = vcmp.lt.s32.totalorder %v517, 0
      %v1016 = vsub.s32 0, %v517
      %v1017 = vsel %vm1015, %v1016, %v517
      %v1018 = vmul.u32.u64.compose %v1017, 2863311531
      %v1019 = vextract.low.u32 %v1018
      %v1020 = vextract.high.u32 %v1018
      %v1021 = vshrl.u32 %v1020, 4
      %v1022 = vmul.u32 %v1021, 24
      %v1023 = vsub.s32 %v1017, %v1022
      %v1024 = vsub.s32 0, %v1023
      %v1025 = vsel %vm1015, %v1024, %v1023
      %vm1026 = vcmp.lt.s32.totalorder %v518, 0
      %v1027 = vsub.s32 0, %v518
      %v1028 = vsel %vm1026, %v1027, %v518
      %v1029 = vmul.u32.u64.compose %v1028, 2863311531
      %v1030 = vextract.low.u32 %v1029
      %v1031 = vextract.high.u32 %v1029
      %v1032 = vshrl.u32 %v1031, 4
      %v1033 = vmul.u32 %v1032, 24
      %v1034 = vsub.s32 %v1028, %v1033
      %v1035 = vsub.s32 0, %v1034
      %v1036 = vsel %vm1026, %v1035, %v1034
      %vm1037 = vcmp.lt.s32.totalorder %v519, 0
      %v1038 = vsub.s32 0, %v519
      %v1039 = vsel %vm1037, %v1038, %v519
      %v1040 = vmul.u32.u64.compose %v1039, 2863311531
      %v1041 = vextract.low.u32 %v1040
      %v1042 = vextract.high.u32 %v1040
      %v1043 = vshrl.u32 %v1042, 4
      %v1044 = vmul.u32 %v1043, 24
      %v1045 = vsub.s32 %v1039, %v1044
      %v1046 = vsub.s32 0, %v1045
      %v1047 = vsel %vm1037, %v1046, %v1045
      %vm1048 = vcmp.ne.s32.totalorder %v530, 0
      %vm1049 = vcmp.ne.s32.totalorder %v541, 0
      %vm1050 = vcmp.ne.s32.totalorder %v552, 0
      %vm1051 = vcmp.ne.s32.totalorder %v563, 0
      %vm1052 = vcmp.ne.s32.totalorder %v574, 0
      %vm1053 = vcmp.ne.s32.totalorder %v585, 0
      %vm1054 = vcmp.ne.s32.totalorder %v596, 0
      %vm1055 = vcmp.ne.s32.totalorder %v607, 0
      %vm1056 = vcmp.ne.s32.totalorder %v618, 0
      %vm1057 = vcmp.ne.s32.totalorder %v629, 0
      %vm1058 = vcmp.ne.s32.totalorder %v640, 0
      %vm1059 = vcmp.ne.s32.totalorder %v651, 0
      %vm1060 = vcmp.ne.s32.totalorder %v662, 0
      %vm1061 = vcmp.ne.s32.totalorder %v673, 0
      %vm1062 = vcmp.ne.s32.totalorder %v684, 0
      %vm1063 = vcmp.ne.s32.totalorder %v695, 0
      %vm1064 = vcmp.ne.s32.totalorder %v706, 0
      %vm1065 = vcmp.ne.s32.totalorder %v717, 0
      %vm1066 = vcmp.ne.s32.totalorder %v728, 0
      %vm1067 = vcmp.ne.s32.totalorder %v739, 0
      %vm1068 = vcmp.ne.s32.totalorder %v750, 0
      %vm1069 = vcmp.ne.s32.totalorder %v761, 0
      %vm1070 = vcmp.ne.s32.totalorder %v772, 0
      %vm1071 = vcmp.ne.s32.totalorder %v783, 0
      %vm1072 = vcmp.ne.s32.totalorder %v794, 0
      %vm1073 = vcmp.ne.s32.totalorder %v805, 0
      %vm1074 = vcmp.ne.s32.totalorder %v816, 0
      %vm1075 = vcmp.ne.s32.totalorder %v827, 0
      %vm1076 = vcmp.ne.s32.totalorder %v838, 0
      %vm1077 = vcmp.ne.s32.totalorder %v849, 0
      %vm1078 = vcmp.ne.s32.totalorder %v860, 0
      %vm1079 = vcmp.ne.s32.totalorder %v871, 0
      %vm1080 = vcmp.ne.s32.totalorder %v882, 0
      %vm1081 = vcmp.ne.s32.totalorder %v893, 0
      %vm1082 = vcmp.ne.s32.totalorder %v904, 0
      %vm1083 = vcmp.ne.s32.totalorder %v915, 0
      %vm1084 = vcmp.ne.s32.totalorder %v926, 0
      %vm1085 = vcmp.ne.s32.totalorder %v937, 0
      %vm1086 = vcmp.ne.s32.totalorder %v948, 0
      %vm1087 = vcmp.ne.s32.totalorder %v959, 0
      %vm1088 = vcmp.ne.s32.totalorder %v970, 0
      %vm1089 = vcmp.ne.s32.totalorder %v981, 0
      %vm1090 = vcmp.ne.s32.totalorder %v992, 0
      %vm1091 = vcmp.ne.s32.totalorder %v1003, 0
      %vm1092 = vcmp.ne.s32.totalorder %v1014, 0
      %vm1093 = vcmp.ne.s32.totalorder %v1025, 0
      %vm1094 = vcmp.ne.s32.totalorder %v1036, 0
      %vm1095 = vcmp.ne.s32.totalorder %v1047, 0
      %vm1096 = vcmp.lt.s32.totalorder %v530, 0
      %vm1097 = vcmp.lt.s32.totalorder %v541, 0
      %vm1098 = vcmp.lt.s32.totalorder %v552, 0
      %vm1099 = vcmp.lt.s32.totalorder %v563, 0
      %vm1100 = vcmp.lt.s32.totalorder %v574, 0
      %vm1101 = vcmp.lt.s32.totalorder %v585, 0
      %vm1102 = vcmp.lt.s32.totalorder %v596, 0
      %vm1103 = vcmp.lt.s32.totalorder %v607, 0
      %vm1104 = vcmp.lt.s32.totalorder %v618, 0
      %vm1105 = vcmp.lt.s32.totalorder %v629, 0
      %vm1106 = vcmp.lt.s32.totalorder %v640, 0
      %vm1107 = vcmp.lt.s32.totalorder %v651, 0
      %vm1108 = vcmp.lt.s32.totalorder %v662, 0
      %vm1109 = vcmp.lt.s32.totalorder %v673, 0
      %vm1110 = vcmp.lt.s32.totalorder %v684, 0
      %vm1111 = vcmp.lt.s32.totalorder %v695, 0
      %vm1112 = vcmp.lt.s32.totalorder %v706, 0
      %vm1113 = vcmp.lt.s32.totalorder %v717, 0
      %vm1114 = vcmp.lt.s32.totalorder %v728, 0
      %vm1115 = vcmp.lt.s32.totalorder %v739, 0
      %vm1116 = vcmp.lt.s32.totalorder %v750, 0
      %vm1117 = vcmp.lt.s32.totalorder %v761, 0
      %vm1118 = vcmp.lt.s32.totalorder %v772, 0
      %vm1119 = vcmp.lt.s32.totalorder %v783, 0
      %vm1120 = vcmp.lt.s32.totalorder %v794, 0
      %vm1121 = vcmp.lt.s32.totalorder %v805, 0
      %vm1122 = vcmp.lt.s32.totalorder %v816, 0
      %vm1123 = vcmp.lt.s32.totalorder %v827, 0
      %vm1124 = vcmp.lt.s32.totalorder %v838, 0
      %vm1125 = vcmp.lt.s32.totalorder %v849, 0
      %vm1126 = vcmp.lt.s32.totalorder %v860, 0
      %vm1127 = vcmp.lt.s32.totalorder %v871, 0
      %vm1128 = vcmp.lt.s32.totalorder %v882, 0
      %vm1129 = vcmp.lt.s32.totalorder %v893, 0
      %vm1130 = vcmp.lt.s32.totalorder %v904, 0
      %vm1131 = vcmp.lt.s32.totalorder %v915, 0
      %vm1132 = vcmp.lt.s32.totalorder %v926, 0
      %vm1133 = vcmp.lt.s32.totalorder %v937, 0
      %vm1134 = vcmp.lt.s32.totalorder %v948, 0
      %vm1135 = vcmp.lt.s32.totalorder %v959, 0
      %vm1136 = vcmp.lt.s32.totalorder %v970, 0
      %vm1137 = vcmp.lt.s32.totalorder %v981, 0
      %vm1138 = vcmp.lt.s32.totalorder %v992, 0
      %vm1139 = vcmp.lt.s32.totalorder %v1003, 0
      %vm1140 = vcmp.lt.s32.totalorder %v1014, 0
      %vm1141 = vcmp.lt.s32.totalorder %v1025, 0
      %vm1142 = vcmp.lt.s32.totalorder %v1036, 0
      %vm1143 = vcmp.lt.s32.totalorder %v1047, 0
      %vm1144 = vmand %vm1096, %vm1048
      %vm1145 = vmand %vm1097, %vm1049
      %vm1146 = vmand %vm1098, %vm1050
      %vm1147 = vmand %vm1099, %vm1051
      %vm1148 = vmand %vm1100, %vm1052
      %vm1149 = vmand %vm1101, %vm1053
      %vm1150 = vmand %vm1102, %vm1054
      %vm1151 = vmand %vm1103, %vm1055
      %vm1152 = vmand %vm1104, %vm1056
      %vm1153 = vmand %vm1105, %vm1057
      %vm1154 = vmand %vm1106, %vm1058
      %vm1155 = vmand %vm1107, %vm1059
      %vm1156 = vmand %vm1108, %vm1060
      %vm1157 = vmand %vm1109, %vm1061
      %vm1158 = vmand %vm1110, %vm1062
      %vm1159 = vmand %vm1111, %vm1063
      %vm1160 = vmand %vm1112, %vm1064
      %vm1161 = vmand %vm1113, %vm1065
      %vm1162 = vmand %vm1114, %vm1066
      %vm1163 = vmand %vm1115, %vm1067
      %vm1164 = vmand %vm1116, %vm1068
      %vm1165 = vmand %vm1117, %vm1069
      %vm1166 = vmand %vm1118, %vm1070
      %vm1167 = vmand %vm1119, %vm1071
      %vm1168 = vmand %vm1120, %vm1072
      %vm1169 = vmand %vm1121, %vm1073
      %vm1170 = vmand %vm1122, %vm1074
      %vm1171 = vmand %vm1123, %vm1075
      %vm1172 = vmand %vm1124, %vm1076
      %vm1173 = vmand %vm1125, %vm1077
      %vm1174 = vmand %vm1126, %vm1078
      %vm1175 = vmand %vm1127, %vm1079
      %vm1176 = vmand %vm1128, %vm1080
      %vm1177 = vmand %vm1129, %vm1081
      %vm1178 = vmand %vm1130, %vm1082
      %vm1179 = vmand %vm1131, %vm1083
      %vm1180 = vmand %vm1132, %vm1084
      %vm1181 = vmand %vm1133, %vm1085
      %vm1182 = vmand %vm1134, %vm1086
      %vm1183 = vmand %vm1135, %vm1087
      %vm1184 = vmand %vm1136, %vm1088
      %vm1185 = vmand %vm1137, %vm1089
      %vm1186 = vmand %vm1138, %vm1090
      %vm1187 = vmand %vm1139, %vm1091
      %vm1188 = vmand %vm1140, %vm1092
      %vm1189 = vmand %vm1141, %vm1093
      %vm1190 = vmand %vm1142, %vm1094
      %vm1191 = vmand %vm1143, %vm1095
      %v1192 = vadd.s32 %v530, 24
      %v1193 = vadd.s32 %v541, 24
      %v1194 = vadd.s32 %v552, 24
      %v1195 = vadd.s32 %v563, 24
      %v1196 = vadd.s32 %v574, 24
      %v1197 = vadd.s32 %v585, 24
      %v1198 = vadd.s32 %v596, 24
      %v1199 = vadd.s32 %v607, 24
      %v1200 = vadd.s32 %v618, 24
      %v1201 = vadd.s32 %v629, 24
      %v1202 = vadd.s32 %v640, 24
      %v1203 = vadd.s32 %v651, 24
      %v1204 = vadd.s32 %v662, 24
      %v1205 = vadd.s32 %v673, 24
      %v1206 = vadd.s32 %v684, 24
      %v1207 = vadd.s32 %v695, 24
      %v1208 = vadd.s32 %v706, 24
      %v1209 = vadd.s32 %v717, 24
      %v1210 = vadd.s32 %v728, 24
      %v1211 = vadd.s32 %v739, 24
      %v1212 = vadd.s32 %v750, 24
      %v1213 = vadd.s32 %v761, 24
      %v1214 = vadd.s32 %v772, 24
      %v1215 = vadd.s32 %v783, 24
      %v1216 = vadd.s32 %v794, 24
      %v1217 = vadd.s32 %v805, 24
      %v1218 = vadd.s32 %v816, 24
      %v1219 = vadd.s32 %v827, 24
      %v1220 = vadd.s32 %v838, 24
      %v1221 = vadd.s32 %v849, 24
      %v1222 = vadd.s32 %v860, 24
      %v1223 = vadd.s32 %v871, 24
      %v1224 = vadd.s32 %v882, 24
      %v1225 = vadd.s32 %v893, 24
      %v1226 = vadd.s32 %v904, 24
      %v1227 = vadd.s32 %v915, 24
      %v1228 = vadd.s32 %v926, 24
      %v1229 = vadd.s32 %v937, 24
      %v1230 = vadd.s32 %v948, 24
      %v1231 = vadd.s32 %v959, 24
      %v1232 = vadd.s32 %v970, 24
      %v1233 = vadd.s32 %v981, 24
      %v1234 = vadd.s32 %v992, 24
      %v1235 = vadd.s32 %v1003, 24
      %v1236 = vadd.s32 %v1014, 24
      %v1237 = vadd.s32 %v1025, 24
      %v1238 = vadd.s32 %v1036, 24
      %v1239 = vadd.s32 %v1047, 24
      %v1240 = vsel %vm1144, %v1192, %v530
      %v1241 = vsel %vm1145, %v1193, %v541
      %v1242 = vsel %vm1146, %v1194, %v552
      %v1243 = vsel %vm1147, %v1195, %v563
      %v1244 = vsel %vm1148, %v1196, %v574
      %v1245 = vsel %vm1149, %v1197, %v585
      %v1246 = vsel %vm1150, %v1198, %v596
      %v1247 = vsel %vm1151, %v1199, %v607
      %v1248 = vsel %vm1152, %v1200, %v618
      %v1249 = vsel %vm1153, %v1201, %v629
      %v1250 = vsel %vm1154, %v1202, %v640
      %v1251 = vsel %vm1155, %v1203, %v651
      %v1252 = vsel %vm1156, %v1204, %v662
      %v1253 = vsel %vm1157, %v1205, %v673
      %v1254 = vsel %vm1158, %v1206, %v684
      %v1255 = vsel %vm1159, %v1207, %v695
      %v1256 = vsel %vm1160, %v1208, %v706
      %v1257 = vsel %vm1161, %v1209, %v717
      %v1258 = vsel %vm1162, %v1210, %v728
      %v1259 = vsel %vm1163, %v1211, %v739
      %v1260 = vsel %vm1164, %v1212, %v750
      %v1261 = vsel %vm1165, %v1213, %v761
      %v1262 = vsel %vm1166, %v1214, %v772
      %v1263 = vsel %vm1167, %v1215, %v783
      %v1264 = vsel %vm1168, %v1216, %v794
      %v1265 = vsel %vm1169, %v1217, %v805
      %v1266 = vsel %vm1170, %v1218, %v816
      %v1267 = vsel %vm1171, %v1219, %v827
      %v1268 = vsel %vm1172, %v1220, %v838
      %v1269 = vsel %vm1173, %v1221, %v849
      %v1270 = vsel %vm1174, %v1222, %v860
      %v1271 = vsel %vm1175, %v1223, %v871
      %v1272 = vsel %vm1176, %v1224, %v882
      %v1273 = vsel %vm1177, %v1225, %v893
      %v1274 = vsel %vm1178, %v1226, %v904
      %v1275 = vsel %vm1179, %v1227, %v915
      %v1276 = vsel %vm1180, %v1228, %v926
      %v1277 = vsel %vm1181, %v1229, %v937
      %v1278 = vsel %vm1182, %v1230, %v948
      %v1279 = vsel %vm1183, %v1231, %v959
      %v1280 = vsel %vm1184, %v1232, %v970
      %v1281 = vsel %vm1185, %v1233, %v981
      %v1282 = vsel %vm1186, %v1234, %v992
      %v1283 = vsel %vm1187, %v1235, %v1003
      %v1284 = vsel %vm1188, %v1236, %v1014
      %v1285 = vsel %vm1189, %v1237, %v1025
      %v1286 = vsel %vm1190, %v1238, %v1036
      %v1287 = vsel %vm1191, %v1239, %v1047
      %vm1288 = vcmp.lt.s32.totalorder %v1240, 16
      %vm1289 = vcmp.lt.s32.totalorder %v1241, 16
      %vm1290 = vcmp.lt.s32.totalorder %v1242, 16
      %vm1291 = vcmp.lt.s32.totalorder %v1243, 16
      %vm1292 = vcmp.lt.s32.totalorder %v1244, 16
      %vm1293 = vcmp.lt.s32.totalorder %v1245, 16
      %vm1294 = vcmp.lt.s32.totalorder %v1246, 16
      %vm1295 = vcmp.lt.s32.totalorder %v1247, 16
      %vm1296 = vcmp.lt.s32.totalorder %v1248, 16
      %vm1297 = vcmp.lt.s32.totalorder %v1249, 16
      %vm1298 = vcmp.lt.s32.totalorder %v1250, 16
      %vm1299 = vcmp.lt.s32.totalorder %v1251, 16
      %vm1300 = vcmp.lt.s32.totalorder %v1252, 16
      %vm1301 = vcmp.lt.s32.totalorder %v1253, 16
      %vm1302 = vcmp.lt.s32.totalorder %v1254, 16
      %vm1303 = vcmp.lt.s32.totalorder %v1255, 16
      %vm1304 = vcmp.lt.s32.totalorder %v1256, 16
      %vm1305 = vcmp.lt.s32.totalorder %v1257, 16
      %vm1306 = vcmp.lt.s32.totalorder %v1258, 16
      %vm1307 = vcmp.lt.s32.totalorder %v1259, 16
      %vm1308 = vcmp.lt.s32.totalorder %v1260, 16
      %vm1309 = vcmp.lt.s32.totalorder %v1261, 16
      %vm1310 = vcmp.lt.s32.totalorder %v1262, 16
      %vm1311 = vcmp.lt.s32.totalorder %v1263, 16
      %vm1312 = vcmp.lt.s32.totalorder %v1264, 16
      %vm1313 = vcmp.lt.s32.totalorder %v1265, 16
      %vm1314 = vcmp.lt.s32.totalorder %v1266, 16
      %vm1315 = vcmp.lt.s32.totalorder %v1267, 16
      %vm1316 = vcmp.lt.s32.totalorder %v1268, 16
      %vm1317 = vcmp.lt.s32.totalorder %v1269, 16
      %vm1318 = vcmp.lt.s32.totalorder %v1270, 16
      %vm1319 = vcmp.lt.s32.totalorder %v1271, 16
      %vm1320 = vcmp.lt.s32.totalorder %v1272, 16
      %vm1321 = vcmp.lt.s32.totalorder %v1273, 16
      %vm1322 = vcmp.lt.s32.totalorder %v1274, 16
      %vm1323 = vcmp.lt.s32.totalorder %v1275, 16
      %vm1324 = vcmp.lt.s32.totalorder %v1276, 16
      %vm1325 = vcmp.lt.s32.totalorder %v1277, 16
      %vm1326 = vcmp.lt.s32.totalorder %v1278, 16
      %vm1327 = vcmp.lt.s32.totalorder %v1279, 16
      %vm1328 = vcmp.lt.s32.totalorder %v1280, 16
      %vm1329 = vcmp.lt.s32.totalorder %v1281, 16
      %vm1330 = vcmp.lt.s32.totalorder %v1282, 16
      %vm1331 = vcmp.lt.s32.totalorder %v1283, 16
      %vm1332 = vcmp.lt.s32.totalorder %v1284, 16
      %vm1333 = vcmp.lt.s32.totalorder %v1285, 16
      %vm1334 = vcmp.lt.s32.totalorder %v1286, 16
      %vm1335 = vcmp.lt.s32.totalorder %v1287, 16
      %v1336 = vld [vmem:[#allocation2 + $0x19] sm:$0xff]
      %v1337 = vld [vmem:[#allocation2 + $0x21] sm:$0xff]
      %v1338 = vld [vmem:[#allocation2 + $0x29] sm:$0xff]
      %v1339 = vld [vmem:[#allocation2 + $0x31] sm:$0xff]
      %v1340 = vld [vmem:[#allocation2 + $0x39] sm:$0xff]
      %v1341 = vld [vmem:[#allocation2 + $0x41] sm:$0xff]
      %v1342 = vld [vmem:[#allocation2 + $0x49] sm:$0xff]
      %v1343 = vld [vmem:[#allocation2 + $0x51] sm:$0xff]
      %v1344 = vld [vmem:[#allocation2 + $0x59] sm:$0xff]
      %v1345 = vld [vmem:[#allocation2 + $0x61] sm:$0xff]
      %v1346 = vld [vmem:[#allocation2 + $0x69] sm:$0xff]
      %v1347 = vld [vmem:[#allocation2 + $0x71] sm:$0xff]
      %v1348 = vld [vmem:[#allocation2 + $0x79] sm:$0xff]
      %v1349 = vld [vmem:[#allocation2 + $0x81] sm:$0xff]
      %v1350 = vld [vmem:[#allocation2 + $0x89] sm:$0xff]
      %v1351 = vld [vmem:[#allocation2 + $0x91] sm:$0xff]
      %v1352 = vld [vmem:[#allocation2 + $0x99] sm:$0xff]
      %v1353 = vld [vmem:[#allocation2 + $0xa1] sm:$0xff]
      %v1354 = vld [vmem:[#allocation2 + $0xa9] sm:$0xff]
      %v1355 = vld [vmem:[#allocation2 + $0xb1] sm:$0xff]
      %v1356 = vld [vmem:[#allocation2 + $0xb9] sm:$0xff]
      %v1357 = vld [vmem:[#allocation2 + $0xc1] sm:$0xff]
      %v1358 = vld [vmem:[#allocation2 + $0xc9] sm:$0xff]
      %v1359 = vld [vmem:[#allocation2 + $0xd1] sm:$0xff]
      %v1360 = vld [vmem:[#allocation2 + $0xd9] sm:$0xff]
      %v1361 = vld [vmem:[#allocation2 + $0xe1] sm:$0xff]
      %v1362 = vld [vmem:[#allocation2 + $0xe9] sm:$0xff]
      %v1363 = vld [vmem:[#allocation2 + $0xf1] sm:$0xff]
      %v1364 = vld [vmem:[#allocation2 + $0xf9] sm:$0xff]
      %v1365 = vld [vmem:[#allocation2 + $0x101] sm:$0xff]
      %v1366 = vld [vmem:[#allocation2 + $0x109] sm:$0xff]
      %v1367 = vld [vmem:[#allocation2 + $0x111] sm:$0xff]
      %v1368 = vld [vmem:[#allocation2 + $0x119] sm:$0xff]
      %v1369 = vld [vmem:[#allocation2 + $0x121] sm:$0xff]
      %v1370 = vld [vmem:[#allocation2 + $0x129] sm:$0xff]
      %v1371 = vld [vmem:[#allocation2 + $0x131] sm:$0xff]
      %v1372 = vld [vmem:[#allocation2 + $0x139] sm:$0xff]
      %v1373 = vld [vmem:[#allocation2 + $0x141] sm:$0xff]
      %v1374 = vld [vmem:[#allocation2 + $0x149] sm:$0xff]
      %v1375 = vld [vmem:[#allocation2 + $0x151] sm:$0xff]
      %v1376 = vld [vmem:[#allocation2 + $0x159] sm:$0xff]
      %v1377 = vld [vmem:[#allocation2 + $0x161] sm:$0xff]
      %v1378 = vld [vmem:[#allocation2 + $0x169] sm:$0xff]
      %v1379 = vld [vmem:[#allocation2 + $0x171] sm:$0xff]
      %v1380 = vld [vmem:[#allocation2 + $0x179] sm:$0xff]
      %v1381 = vld [vmem:[#allocation2 + $0x181] sm:$0xff]
      %v1382 = vld [vmem:[#allocation2 + $0x189] sm:$0xff]
      %v1383 = vld [vmem:[#allocation2 + $0x191] sm:$0xff]
      %v1384 = vsel %vm1288, 1, 0
      %v1385 = vsel %vm1289, 1, 0
      %v1386 = vsel %vm1290, 1, 0
      %v1387 = vsel %vm1291, 1, 0
      %v1388 = vsel %vm1292, 1, 0
      %v1389 = vsel %vm1293, 1, 0
      %v1390 = vsel %vm1294, 1, 0
      %v1391 = vsel %vm1295, 1, 0
      %v1392 = vsel %vm1296, 1, 0
      %v1393 = vsel %vm1297, 1, 0
      %v1394 = vsel %vm1298, 1, 0
      %v1395 = vsel %vm1299, 1, 0
      %v1396 = vsel %vm1300, 1, 0
      %v1397 = vsel %vm1301, 1, 0
      %v1398 = vsel %vm1302, 1, 0
      %v1399 = vsel %vm1303, 1, 0
      %v1400 = vsel %vm1304, 1, 0
      %v1401 = vsel %vm1305, 1, 0
      %v1402 = vsel %vm1306, 1, 0
      %v1403 = vsel %vm1307, 1, 0
      %v1404 = vsel %vm1308, 1, 0
      %v1405 = vsel %vm1309, 1, 0
      %v1406 = vsel %vm1310, 1, 0
      %v1407 = vsel %vm1311, 1, 0
      %v1408 = vsel %vm1312, 1, 0
      %v1409 = vsel %vm1313, 1, 0
      %v1410 = vsel %vm1314, 1, 0
      %v1411 = vsel %vm1315, 1, 0
      %v1412 = vsel %vm1316, 1, 0
      %v1413 = vsel %vm1317, 1, 0
      %v1414 = vsel %vm1318, 1, 0
      %v1415 = vsel %vm1319, 1, 0
      %v1416 = vsel %vm1320, 1, 0
      %v1417 = vsel %vm1321, 1, 0
      %v1418 = vsel %vm1322, 1, 0
      %v1419 = vsel %vm1323, 1, 0
      %v1420 = vsel %vm1324, 1, 0
      %v1421 = vsel %vm1325, 1, 0
      %v1422 = vsel %vm1326, 1, 0
      %v1423 = vsel %vm1327, 1, 0
      %v1424 = vsel %vm1328, 1, 0
      %v1425 = vsel %vm1329, 1, 0
      %v1426 = vsel %vm1330, 1, 0
      %v1427 = vsel %vm1331, 1, 0
      %v1428 = vsel %vm1332, 1, 0
      %v1429 = vsel %vm1333, 1, 0
      %v1430 = vsel %vm1334, 1, 0
      %v1431 = vsel %vm1335, 1, 0
      %vm1432 = vcmp.eq.s32.totalorder %v1384, 1
      %vm1433 = vcmp.eq.s32.totalorder %v1385, 1
      %vm1434 = vcmp.eq.s32.totalorder %v1386, 1
      %vm1435 = vcmp.eq.s32.totalorder %v1387, 1
      %vm1436 = vcmp.eq.s32.totalorder %v1388, 1
      %vm1437 = vcmp.eq.s32.totalorder %v1389, 1
      %vm1438 = vcmp.eq.s32.totalorder %v1390, 1
      %vm1439 = vcmp.eq.s32.totalorder %v1391, 1
      %vm1440 = vcmp.eq.s32.totalorder %v1392, 1
      %vm1441 = vcmp.eq.s32.totalorder %v1393, 1
      %vm1442 = vcmp.eq.s32.totalorder %v1394, 1
      %vm1443 = vcmp.eq.s32.totalorder %v1395, 1
      %vm1444 = vcmp.eq.s32.totalorder %v1396, 1
      %vm1445 = vcmp.eq.s32.totalorder %v1397, 1
      %vm1446 = vcmp.eq.s32.totalorder %v1398, 1
      %vm1447 = vcmp.eq.s32.totalorder %v1399, 1
      %vm1448 = vcmp.eq.s32.totalorder %v1400, 1
      %vm1449 = vcmp.eq.s32.totalorder %v1401, 1
      %vm1450 = vcmp.eq.s32.totalorder %v1402, 1
      %vm1451 = vcmp.eq.s32.totalorder %v1403, 1
      %vm1452 = vcmp.eq.s32.totalorder %v1404, 1
      %vm1453 = vcmp.eq.s32.totalorder %v1405, 1
      %vm1454 = vcmp.eq.s32.totalorder %v1406, 1
      %vm1455 = vcmp.eq.s32.totalorder %v1407, 1
      %vm1456 = vcmp.eq.s32.totalorder %v1408, 1
      %vm1457 = vcmp.eq.s32.totalorder %v1409, 1
      %vm1458 = vcmp.eq.s32.totalorder %v1410, 1
      %vm1459 = vcmp.eq.s32.totalorder %v1411, 1
      %vm1460 = vcmp.eq.s32.totalorder %v1412, 1
      %vm1461 = vcmp.eq.s32.totalorder %v1413, 1
      %vm1462 = vcmp.eq.s32.totalorder %v1414, 1
      %vm1463 = vcmp.eq.s32.totalorder %v1415, 1
      %vm1464 = vcmp.eq.s32.totalorder %v1416, 1
      %vm1465 = vcmp.eq.s32.totalorder %v1417, 1
      %vm1466 = vcmp.eq.s32.totalorder %v1418, 1
      %vm1467 = vcmp.eq.s32.totalorder %v1419, 1
      %vm1468 = vcmp.eq.s32.totalorder %v1420, 1
      %vm1469 = vcmp.eq.s32.totalorder %v1421, 1
      %vm1470 = vcmp.eq.s32.totalorder %v1422, 1
      %vm1471 = vcmp.eq.s32.totalorder %v1423, 1
      %vm1472 = vcmp.eq.s32.totalorder %v1424, 1
      %vm1473 = vcmp.eq.s32.totalorder %v1425, 1
      %vm1474 = vcmp.eq.s32.totalorder %v1426, 1
      %vm1475 = vcmp.eq.s32.totalorder %v1427, 1
      %vm1476 = vcmp.eq.s32.totalorder %v1428, 1
      %vm1477 = vcmp.eq.s32.totalorder %v1429, 1
      %vm1478 = vcmp.eq.s32.totalorder %v1430, 1
      %vm1479 = vcmp.eq.s32.totalorder %v1431, 1
      %v1480 = vsel %vm1432, %v1336, 0.0
      %v1481 = vsel %vm1433, %v1337, 0.0
      %v1482 = vsel %vm1434, %v1338, 0.0
      %v1483 = vsel %vm1435, %v1339, 0.0
      %v1484 = vsel %vm1436, %v1340, 0.0
      %v1485 = vsel %vm1437, %v1341, 0.0
      %v1486 = vsel %vm1438, %v1342, 0.0
      %v1487 = vsel %vm1439, %v1343, 0.0
      %v1488 = vsel %vm1440, %v1344, 0.0
      %v1489 = vsel %vm1441, %v1345, 0.0
      %v1490 = vsel %vm1442, %v1346, 0.0
      %v1491 = vsel %vm1443, %v1347, 0.0
      %v1492 = vsel %vm1444, %v1348, 0.0
      %v1493 = vsel %vm1445, %v1349, 0.0
      %v1494 = vsel %vm1446, %v1350, 0.0
      %v1495 = vsel %vm1447, %v1351, 0.0
      %v1496 = vsel %vm1448, %v1352, 0.0
      %v1497 = vsel %vm1449, %v1353, 0.0
      %v1498 = vsel %vm1450, %v1354, 0.0
      %v1499 = vsel %vm1451, %v1355, 0.0
      %v1500 = vsel %vm1452, %v1356, 0.0
      %v1501 = vsel %vm1453, %v1357, 0.0
      %v1502 = vsel %vm1454, %v1358, 0.0
      %v1503 = vsel %vm1455, %v1359, 0.0
      %v1504 = vsel %vm1456, %v1360, 0.0
      %v1505 = vsel %vm1457, %v1361, 0.0
      %v1506 = vsel %vm1458, %v1362, 0.0
      %v1507 = vsel %vm1459, %v1363, 0.0
      %v1508 = vsel %vm1460, %v1364, 0.0
      %v1509 = vsel %vm1461, %v1365, 0.0
      %v1510 = vsel %vm1462, %v1366, 0.0
      %v1511 = vsel %vm1463, %v1367, 0.0
      %v1512 = vsel %vm1464, %v1368, 0.0
      %v1513 = vsel %vm1465, %v1369, 0.0
      %v1514 = vsel %vm1466, %v1370, 0.0
      %v1515 = vsel %vm1467, %v1371, 0.0
      %v1516 = vsel %vm1468, %v1372, 0.0
      %v1517 = vsel %vm1469, %v1373, 0.0
      %v1518 = vsel %vm1470, %v1374, 0.0
      %v1519 = vsel %vm1471, %v1375, 0.0
      %v1520 = vsel %vm1472, %v1376, 0.0
      %v1521 = vsel %vm1473, %v1377, 0.0
      %v1522 = vsel %vm1474, %v1378, 0.0
      %v1523 = vsel %vm1475, %v1379, 0.0
      %v1524 = vsel %vm1476, %v1380, 0.0
      %v1525 = vsel %vm1477, %v1381, 0.0
      %v1526 = vsel %vm1478, %v1382, 0.0
      %v1527 = vsel %vm1479, %v1383, 0.0
      %v1528 = vpack.c.bf16 %v1481, %v1480
      %v1529 = vpack.c.bf16 %v1483, %v1482
      %v1530 = vpack.c.bf16 %v1485, %v1484
      %v1531 = vpack.c.bf16 %v1487, %v1486
      %v1532 = vpack.c.bf16 %v1489, %v1488
      %v1533 = vpack.c.bf16 %v1491, %v1490
      %v1534 = vpack.c.bf16 %v1493, %v1492
      %v1535 = vpack.c.bf16 %v1495, %v1494
      %v1536 = vpack.c.bf16 %v1497, %v1496
      %v1537 = vpack.c.bf16 %v1499, %v1498
      %v1538 = vpack.c.bf16 %v1501, %v1500
      %v1539 = vpack.c.bf16 %v1503, %v1502
      %v1540 = vpack.c.bf16 %v1505, %v1504
      %v1541 = vpack.c.bf16 %v1507, %v1506
      %v1542 = vpack.c.bf16 %v1509, %v1508
      %v1543 = vpack.c.bf16 %v1511, %v1510
      %v1544 = vpack.c.bf16 %v1513, %v1512
      %v1545 = vpack.c.bf16 %v1515, %v1514
      %v1546 = vpack.c.bf16 %v1517, %v1516
      %v1547 = vpack.c.bf16 %v1519, %v1518
      %v1548 = vpack.c.bf16 %v1521, %v1520
      %v1549 = vpack.c.bf16 %v1523, %v1522
      %v1550 = vpack.c.bf16 %v1525, %v1524
      %v1551 = vpack.c.bf16 %v1527, %v1526
      %v1552 = vld [vmem:[%s1] sm:$0x3]
      %v1553 = vld [vmem:[%s2] sm:$0x1]
      %v1555 = vlaneseq
      %v1556 = vshrl.u32 %v1555, 7
      %v1557 = vsub.s32 0, %v1556
      %v1558 = vrot.slane %v1553, %v1557
      %v1561 = vsel %vm334, %v1528, 0
      %v1564 = vsel %vm334, %v1529, 0
      %v1567 = vsel %vm334, %v1530, 0
      %v1570 = vsel %vm334, %v1531, 0
      %v1573 = vsel %vm334, %v1532, 0
      %v1576 = vsel %vm334, %v1533, 0
      %v1579 = vsel %vm334, %v1534, 0
      %v1582 = vsel %vm334, %v1535, 0
      %v1585 = vsel %vm334, %v1536, 0
      %v1588 = vsel %vm334, %v1537, 0
      %v1591 = vsel %vm334, %v1538, 0
      %v1594 = vsel %vm334, %v1539, 0
      %v1597 = vsel %vm334, %v1540, 0
      %v1600 = vsel %vm334, %v1541, 0
      %v1603 = vsel %vm334, %v1542, 0
      %v1606 = vsel %vm334, %v1543, 0
      %v1609 = vsel %vm334, %v1544, 0
      %v1612 = vsel %vm334, %v1545, 0
      %v1615 = vsel %vm334, %v1546, 0
      %v1618 = vsel %vm334, %v1547, 0
      %v1621 = vsel %vm334, %v1548, 0
      %v1624 = vsel %vm334, %v1549, 0
      %v1627 = vsel %vm334, %v1550, 0
      %v1630 = vsel %vm334, %v1551, 0
      %vm1632 = vcmask 1041408
      %v1634 = vsel %vm1632, %v1552, 0
      %1636 = vmatprep.subr.bf16.mxu0 0
      %1637 = vmatpush1.bf16.msra.mxu0 %v1634
      %1638 = vmatprep.subr.bf16.mxu0 0
      %1639 = vmatpush1.bf16.msra.mxu0 0
      %1640 = vmatprep.subr.bf16.mxu0 0
      %1641 = vmatpush1.bf16.msra.mxu0 0
      %1642 = vmatprep.subr.bf16.mxu0 0
      %1643 = vmatpush1.bf16.msra.mxu0 0
      %1644 = vmatprep.subr.bf16.mxu0 0
      %1645 = vmatpush1.bf16.msra.mxu0 0
      %1646 = vmatprep.subr.bf16.mxu0 0
      %1647 = vmatpush1.bf16.msra.mxu0 0
      %1648 = vmatprep.subr.bf16.mxu0 0
      %1649 = vmatpush1.bf16.msra.mxu0 0
      %1650 = vmatprep.subr.bf16.mxu0 0
      %1651 = vmatpush1.bf16.msra.mxu0 0
      %1652 = vmatprep.subr.bf16.mxu0 0
      %1653 = vmatpush1.bf16.msra.mxu0 0
      %1654 = vmatprep.subr.bf16.mxu0 0
      %1655 = vmatpush1.bf16.msra.mxu0 0
      %1656 = vmatprep.subr.bf16.mxu0 0
      %1657 = vmatpush1.bf16.msra.mxu0 0
      %1658 = vmatprep.subr.bf16.mxu0 0
      %1659 = vmatpush1.bf16.msra.mxu0 0
      %1660 = vmatprep.subr.bf16.mxu0 0
      %1661 = vmatpush1.bf16.msra.mxu0 0
      %1662 = vmatprep.subr.bf16.mxu0 0
      %1663 = vmatpush1.bf16.msra.mxu0 0
      %1664 = vmatprep.subr.bf16.mxu0 0
      %1665 = vmatpush1.bf16.msra.mxu0 0
      %1666 = vmatprep.subr.bf16.mxu0 0
      %1667 = vmatpush1.bf16.msra.mxu0 0
      %1668 = vmatprep.mubr.bf16.mxu0 0
      %1669 = vmatmul.mubr.bf16.gmra.mrb[0].mxu0 %v1561
      %v1670 = vpop.f32.mrb[0].mxu0
      %v1671 = vadd.f32 %v1558, %v1670
      %v1672 = vpop.f32.mrb[0].mxu0
      %v1673 = vpop.f32.mrb[0].mxu0
      %v1674 = vadd.f32 %v1558, %v1673
      %v1675 = vpop.f32.mrb[0].mxu0
      %1676 = vmatprep.mubr.bf16.mxu0 0
      %1677 = vmatmul.mubr.bf16.gmra.mrb[0].mxu0 %v1564
      %v1678 = vpop.f32.mrb[0].mxu0
      %v1679 = vadd.f32 %v1558, %v1678
      %v1680 = vpop.f32.mrb[0].mxu0
      %v1681 = vpop.f32.mrb[0].mxu0
      %v1682 = vadd.f32 %v1558, %v1681
      %v1683 = vpop.f32.mrb[0].mxu0
      %1684 = vmatprep.mubr.bf16.mxu0 0
      %1685 = vmatmul.mubr.bf16.gmra.mrb[0].mxu0 %v1567
      %v1686 = vpop.f32.mrb[0].mxu0
      %v1687 = vadd.f32 %v1558, %v1686
      %v1688 = vpop.f32.mrb[0].mxu0
      %v1689 = vpop.f32.mrb[0].mxu0
      %v1690 = vadd.f32 %v1558, %v1689
      %v1691 = vpop.f32.mrb[0].mxu0
      %1692 = vmatprep.mubr.bf16.mxu0 0
      %1693 = vmatmul.mubr.bf16.gmra.mrb[0].mxu0 %v1570
      %v1694 = vpop.f32.mrb[0].mxu0
      %v1695 = vadd.f32 %v1558, %v1694
      %v1696 = vpop.f32.mrb[0].mxu0
      %v1697 = vpop.f32.mrb[0].mxu0
      %v1698 = vadd.f32 %v1558, %v1697
      %v1699 = vpop.f32.mrb[0].mxu0
      %1700 = vmatprep.mubr.bf16.mxu0 0
      %1701 = vmatmul.mubr.bf16.gmra.mrb[0].mxu0 %v1573
      %v1702 = vpop.f32.mrb[0].mxu0
      %v1703 = vadd.f32 %v1558, %v1702
      %v1704 = vpop.f32.mrb[0].mxu0
      %v1705 = vpop.f32.mrb[0].mxu0
      %v1706 = vadd.f32 %v1558, %v1705
      %v1707 = vpop.f32.mrb[0].mxu0
      %1708 = vmatprep.mubr.bf16.mxu0 0
      %1709 = vmatmul.mubr.bf16.gmra.mrb[0].mxu0 %v1576
      %v1710 = vpop.f32.mrb[0].mxu0
      %v1711 = vadd.f32 %v1558, %v1710
      %v1712 = vpop.f32.mrb[0].mxu0
      %v1713 = vpop.f32.mrb[0].mxu0
      %v1714 = vadd.f32 %v1558, %v1713
      %v1715 = vpop.f32.mrb[0].mxu0
      %1716 = vmatprep.mubr.bf16.mxu0 0
      %1717 = vmatmul.mubr.bf16.gmra.mrb[0].mxu0 %v1579
      %v1718 = vpop.f32.mrb[0].mxu0
      %v1719 = vadd.f32 %v1558, %v1718
      %v1720 = vpop.f32.mrb[0].mxu0
      %v1721 = vpop.f32.mrb[0].mxu0
      %v1722 = vadd.f32 %v1558, %v1721
      %v1723 = vpop.f32.mrb[0].mxu0
      %1724 = vmatprep.mubr.bf16.mxu0 0
      %1725 = vmatmul.mubr.bf16.gmra.mrb[0].mxu0 %v1582
      %v1726 = vpop.f32.mrb[0].mxu0
      %v1727 = vadd.f32 %v1558, %v1726
      %v1728 = vpop.f32.mrb[0].mxu0
      %v1729 = vpop.f32.mrb[0].mxu0
      %v1730 = vadd.f32 %v1558, %v1729
      %v1731 = vpop.f32.mrb[0].mxu0
      %1732 = vmatprep.mubr.bf16.mxu0 0
      %1733 = vmatmul.mubr.bf16.gmra.mrb[0].mxu0 %v1585
      %v1734 = vpop.f32.mrb[0].mxu0
      %v1735 = vadd.f32 %v1558, %v1734
      %v1736 = vpop.f32.mrb[0].mxu0
      %v1737 = vpop.f32.mrb[0].mxu0
      %v1738 = vadd.f32 %v1558, %v1737
      %v1739 = vpop.f32.mrb[0].mxu0
      %1740 = vmatprep.mubr.bf16.mxu0 0
      %1741 = vmatmul.mubr.bf16.gmra.mrb[0].mxu0 %v1588
      %v1742 = vpop.f32.mrb[0].mxu0
      %v1743 = vadd.f32 %v1558, %v1742
      %v1744 = vpop.f32.mrb[0].mxu0
      %v1745 = vpop.f32.mrb[0].mxu0
      %v1746 = vadd.f32 %v1558, %v1745
      %v1747 = vpop.f32.mrb[0].mxu0
      %1748 = vmatprep.mubr.bf16.mxu0 0
      %1749 = vmatmul.mubr.bf16.gmra.mrb[0].mxu0 %v1591
      %v1750 = vpop.f32.mrb[0].mxu0
      %v1751 = vadd.f32 %v1558, %v1750
      %v1752 = vpop.f32.mrb[0].mxu0
      %v1753 = vpop.f32.mrb[0].mxu0
      %v1754 = vadd.f32 %v1558, %v1753
      %v1755 = vpop.f32.mrb[0].mxu0
      %1756 = vmatprep.mubr.bf16.mxu0 0
      %1757 = vmatmul.mubr.bf16.gmra.mrb[0].mxu0 %v1594
      %v1758 = vpop.f32.mrb[0].mxu0
      %v1759 = vadd.f32 %v1558, %v1758
      %v1760 = vpop.f32.mrb[0].mxu0
      %v1761 = vpop.f32.mrb[0].mxu0
      %v1762 = vadd.f32 %v1558, %v1761
      %v1763 = vpop.f32.mrb[0].mxu0
      %1764 = vmatprep.mubr.bf16.mxu0 0
      %1765 = vmatmul.mubr.bf16.gmra.mrb[0].mxu0 %v1597
      %v1766 = vpop.f32.mrb[0].mxu0
      %v1767 = vadd.f32 %v1558, %v1766
      %v1768 = vpop.f32.mrb[0].mxu0
      %v1769 = vpop.f32.mrb[0].mxu0
      %v1770 = vadd.f32 %v1558, %v1769
      %v1771 = vpop.f32.mrb[0].mxu0
      %1772 = vmatprep.mubr.bf16.mxu0 0
      %1773 = vmatmul.mubr.bf16.gmra.mrb[0].mxu0 %v1600
      %v1774 = vpop.f32.mrb[0].mxu0
      %v1775 = vadd.f32 %v1558, %v1774
      %v1776 = vpop.f32.mrb[0].mxu0
      %v1777 = vpop.f32.mrb[0].mxu0
      %v1778 = vadd.f32 %v1558, %v1777
      %v1779 = vpop.f32.mrb[0].mxu0
      %1780 = vmatprep.mubr.bf16.mxu0 0
      %1781 = vmatmul.mubr.bf16.gmra.mrb[0].mxu0 %v1603
      %v1782 = vpop.f32.mrb[0].mxu0
      %v1783 = vadd.f32 %v1558, %v1782
      %v1784 = vpop.f32.mrb[0].mxu0
      %v1785 = vpop.f32.mrb[0].mxu0
      %v1786 = vadd.f32 %v1558, %v1785
      %v1787 = vpop.f32.mrb[0].mxu0
      %1788 = vmatprep.mubr.bf16.mxu0 0
      %1789 = vmatmul.mubr.bf16.gmra.mrb[0].mxu0 %v1606
      %v1790 = vpop.f32.mrb[0].mxu0
      %v1791 = vadd.f32 %v1558, %v1790
      %v1792 = vpop.f32.mrb[0].mxu0
      %v1793 = vpop.f32.mrb[0].mxu0
      %v1794 = vadd.f32 %v1558, %v1793
      %v1795 = vpop.f32.mrb[0].mxu0
      %1796 = vmatprep.mubr.bf16.mxu0 0
      %1797 = vmatmul.mubr.bf16.gmra.mrb[0].mxu0 %v1609
      %v1798 = vpop.f32.mrb[0].mxu0
      %v1799 = vadd.f32 %v1558, %v1798
      %v1800 = vpop.f32.mrb[0].mxu0
      %v1801 = vpop.f32.mrb[0].mxu0
      %v1802 = vadd.f32 %v1558, %v1801
      %v1803 = vpop.f32.mrb[0].mxu0
      %1804 = vmatprep.mubr.bf16.mxu0 0
      %1805 = vmatmul.mubr.bf16.gmra.mrb[0].mxu0 %v1612
      %v1806 = vpop.f32.mrb[0].mxu0
      %v1807 = vadd.f32 %v1558, %v1806
      %v1808 = vpop.f32.mrb[0].mxu0
      %v1809 = vpop.f32.mrb[0].mxu0
      %v1810 = vadd.f32 %v1558, %v1809
      %v1811 = vpop.f32.mrb[0].mxu0
      %1812 = vmatprep.mubr.bf16.mxu0 0
      %1813 = vmatmul.mubr.bf16.gmra.mrb[0].mxu0 %v1615
      %v1814 = vpop.f32.mrb[0].mxu0
      %v1815 = vadd.f32 %v1558, %v1814
      %v1816 = vpop.f32.mrb[0].mxu0
      %v1817 = vpop.f32.mrb[0].mxu0
      %v1818 = vadd.f32 %v1558, %v1817
      %v1819 = vpop.f32.mrb[0].mxu0
      %1820 = vmatprep.mubr.bf16.mxu0 0
      %1821 = vmatmul.mubr.bf16.gmra.mrb[0].mxu0 %v1618
      %v1822 = vpop.f32.mrb[0].mxu0
      %v1823 = vadd.f32 %v1558, %v1822
      %v1824 = vpop.f32.mrb[0].mxu0
      %v1825 = vpop.f32.mrb[0].mxu0
      %v1826 = vadd.f32 %v1558, %v1825
      %v1827 = vpop.f32.mrb[0].mxu0
      %1828 = vmatprep.mubr.bf16.mxu0 0
      %1829 = vmatmul.mubr.bf16.gmra.mrb[0].mxu0 %v1621
      %v1830 = vpop.f32.mrb[0].mxu0
      %v1831 = vadd.f32 %v1558, %v1830
      %v1832 = vpop.f32.mrb[0].mxu0
      %v1833 = vpop.f32.mrb[0].mxu0
      %v1834 = vadd.f32 %v1558, %v1833
      %v1835 = vpop.f32.mrb[0].mxu0
      %1836 = vmatprep.mubr.bf16.mxu0 0
      %1837 = vmatmul.mubr.bf16.gmra.mrb[0].mxu0 %v1624
      %v1838 = vpop.f32.mrb[0].mxu0
      %v1839 = vadd.f32 %v1558, %v1838
      %v1840 = vpop.f32.mrb[0].mxu0
      %v1841 = vpop.f32.mrb[0].mxu0
      %v1842 = vadd.f32 %v1558, %v1841
      %v1843 = vpop.f32.mrb[0].mxu0
      %1844 = vmatprep.mubr.bf16.mxu0 0
      %1845 = vmatmul.mubr.bf16.gmra.mrb[0].mxu0 %v1627
      %v1846 = vpop.f32.mrb[0].mxu0
      %v1847 = vadd.f32 %v1558, %v1846
      %v1848 = vpop.f32.mrb[0].mxu0
      %v1849 = vpop.f32.mrb[0].mxu0
      %v1850 = vadd.f32 %v1558, %v1849
      %v1851 = vpop.f32.mrb[0].mxu0
      %1852 = vmatprep.mubr.bf16.mxu0 0
      %1853 = vmatmul.mubr.bf16.gmra.mrb[0].mxu0 %v1630
      %v1854 = vpop.f32.mrb[0].mxu0
      %v1855 = vadd.f32 %v1558, %v1854
      %v1856 = vpop.f32.mrb[0].mxu0
      %v1857 = vpop.f32.mrb[0].mxu0
      %v1858 = vadd.f32 %v1558, %v1857
      %v1859 = vpop.f32.mrb[0].mxu0
      %1860 = vdwg.mxu0
      %v1861 = vmax.f32 %v1671, 0.0
      %v1862 = vmax.f32 %v1674, 0.0
      %v1863 = vmax.f32 %v1679, 0.0
      %v1864 = vmax.f32 %v1682, 0.0
      %v1865 = vmax.f32 %v1687, 0.0
      %v1866 = vmax.f32 %v1690, 0.0
      %v1867 = vmax.f32 %v1695, 0.0
      %v1868 = vmax.f32 %v1698, 0.0
      %v1869 = vmax.f32 %v1703, 0.0
      %v1870 = vmax.f32 %v1706, 0.0
      %v1871 = vmax.f32 %v1711, 0.0
      %v1872 = vmax.f32 %v1714, 0.0
      %v1873 = vmax.f32 %v1719, 0.0
      %v1874 = vmax.f32 %v1722, 0.0
      %v1875 = vmax.f32 %v1727, 0.0
      %v1876 = vmax.f32 %v1730, 0.0
      %v1877 = vmax.f32 %v1735, 0.0
      %v1878 = vmax.f32 %v1738, 0.0
      %v1879 = vmax.f32 %v1743, 0.0
      %v1880 = vmax.f32 %v1746, 0.0
      %v1881 = vmax.f32 %v1751, 0.0
      %v1882 = vmax.f32 %v1754, 0.0
      %v1883 = vmax.f32 %v1759, 0.0
      %v1884 = vmax.f32 %v1762, 0.0
      %v1885 = vmax.f32 %v1767, 0.0
      %v1886 = vmax.f32 %v1770, 0.0
      %v1887 = vmax.f32 %v1775, 0.0
      %v1888 = vmax.f32 %v1778, 0.0
      %v1889 = vmax.f32 %v1783, 0.0
      %v1890 = vmax.f32 %v1786, 0.0
      %v1891 = vmax.f32 %v1791, 0.0
      %v1892 = vmax.f32 %v1794, 0.0
      %v1893 = vmax.f32 %v1799, 0.0
      %v1894 = vmax.f32 %v1802, 0.0
      %v1895 = vmax.f32 %v1807, 0.0
      %v1896 = vmax.f32 %v1810, 0.0
      %v1897 = vmax.f32 %v1815, 0.0
      %v1898 = vmax.f32 %v1818, 0.0
      %v1899 = vmax.f32 %v1823, 0.0
      %v1900 = vmax.f32 %v1826, 0.0
      %v1901 = vmax.f32 %v1831, 0.0
      %v1902 = vmax.f32 %v1834, 0.0
      %v1903 = vmax.f32 %v1839, 0.0
      %v1904 = vmax.f32 %v1842, 0.0
      %v1905 = vmax.f32 %v1847, 0.0
      %v1906 = vmax.f32 %v1850, 0.0
      %v1907 = vmax.f32 %v1855, 0.0
      %v1908 = vmax.f32 %v1858, 0.0
      %v1909 = vld [vmem:[#allocation2] sm:$0xff]
      %v1910 = vld [vmem:[#allocation2 + $0x8] sm:$0xff]
      %v1911 = vld [vmem:[#allocation2 + $0x10] sm:$0xff]
      %v1912 = vld [vmem:[#allocation2 + $0x18] sm:$0xff]
      %v1913 = vld [vmem:[#allocation2 + $0x20] sm:$0xff]
      %v1914 = vld [vmem:[#allocation2 + $0x28] sm:$0xff]
      %v1915 = vld [vmem:[#allocation2 + $0x30] sm:$0xff]
      %v1916 = vld [vmem:[#allocation2 + $0x38] sm:$0xff]
      %v1917 = vld [vmem:[#allocation2 + $0x40] sm:$0xff]
      %v1918 = vld [vmem:[#allocation2 + $0x48] sm:$0xff]
      %v1919 = vld [vmem:[#allocation2 + $0x50] sm:$0xff]
      %v1920 = vld [vmem:[#allocation2 + $0x58] sm:$0xff]
      %v1921 = vld [vmem:[#allocation2 + $0x60] sm:$0xff]
      %v1922 = vld [vmem:[#allocation2 + $0x68] sm:$0xff]
      %v1923 = vld [vmem:[#allocation2 + $0x70] sm:$0xff]
      %v1924 = vld [vmem:[#allocation2 + $0x78] sm:$0xff]
      %v1925 = vld [vmem:[#allocation2 + $0x80] sm:$0xff]
      %v1926 = vld [vmem:[#allocation2 + $0x88] sm:$0xff]
      %v1927 = vld [vmem:[#allocation2 + $0x90] sm:$0xff]
      %v1928 = vld [vmem:[#allocation2 + $0x98] sm:$0xff]
      %v1929 = vld [vmem:[#allocation2 + $0xa0] sm:$0xff]
      %v1930 = vld [vmem:[#allocation2 + $0xa8] sm:$0xff]
      %v1931 = vld [vmem:[#allocation2 + $0xb0] sm:$0xff]
      %v1932 = vld [vmem:[#allocation2 + $0xb8] sm:$0xff]
      %v1933 = vld [vmem:[#allocation2 + $0xc0] sm:$0xff]
      %v1934 = vld [vmem:[#allocation2 + $0xc8] sm:$0xff]
      %v1935 = vld [vmem:[#allocation2 + $0xd0] sm:$0xff]
      %v1936 = vld [vmem:[#allocation2 + $0xd8] sm:$0xff]
      %v1937 = vld [vmem:[#allocation2 + $0xe0] sm:$0xff]
      %v1938 = vld [vmem:[#allocation2 + $0xe8] sm:$0xff]
      %v1939 = vld [vmem:[#allocation2 + $0xf0] sm:$0xff]
      %v1940 = vld [vmem:[#allocation2 + $0xf8] sm:$0xff]
      %v1941 = vld [vmem:[#allocation2 + $0x100] sm:$0xff]
      %v1942 = vld [vmem:[#allocation2 + $0x108] sm:$0xff]
      %v1943 = vld [vmem:[#allocation2 + $0x110] sm:$0xff]
      %v1944 = vld [vmem:[#allocation2 + $0x118] sm:$0xff]
      %v1945 = vld [vmem:[#allocation2 + $0x120] sm:$0xff]
      %v1946 = vld [vmem:[#allocation2 + $0x128] sm:$0xff]
      %v1947 = vld [vmem:[#allocation2 + $0x130] sm:$0xff]
      %v1948 = vld [vmem:[#allocation2 + $0x138] sm:$0xff]
      %v1949 = vld [vmem:[#allocation2 + $0x140] sm:$0xff]
      %v1950 = vld [vmem:[#allocation2 + $0x148] sm:$0xff]
      %v1951 = vld [vmem:[#allocation2 + $0x150] sm:$0xff]
      %v1952 = vld [vmem:[#allocation2 + $0x158] sm:$0xff]
      %v1953 = vld [vmem:[#allocation2 + $0x160] sm:$0xff]
      %v1954 = vld [vmem:[#allocation2 + $0x168] sm:$0xff]
      %v1955 = vld [vmem:[#allocation2 + $0x170] sm:$0xff]
      %v1956 = vld [vmem:[#allocation2 + $0x178] sm:$0xff]
      %v1957 = vld [vmem:[#allocation2 + $0x1] sm:$0xff]
      %v1958 = vld [vmem:[#allocation2 + $0x9] sm:$0xff]
      %v1959 = vld [vmem:[#allocation2 + $0x11] sm:$0xff]
      %v1960 = vld [vmem:[#allocation2 + $0x19] sm:$0xff]
      %v1961 = vld [vmem:[#allocation2 + $0x21] sm:$0xff]
      %v1962 = vld [vmem:[#allocation2 + $0x29] sm:$0xff]
      %v1963 = vld [vmem:[#allocation2 + $0x31] sm:$0xff]
      %v1964 = vld [vmem:[#allocation2 + $0x39] sm:$0xff]
      %v1965 = vld [vmem:[#allocation2 + $0x41] sm:$0xff]
      %v1966 = vld [vmem:[#allocation2 + $0x49] sm:$0xff]
      %v1967 = vld [vmem:[#allocation2 + $0x51] sm:$0xff]
      %v1968 = vld [vmem:[#allocation2 + $0x59] sm:$0xff]
      %v1969 = vld [vmem:[#allocation2 + $0x61] sm:$0xff]
      %v1970 = vld [vmem:[#allocation2 + $0x69] sm:$0xff]
      %v1971 = vld [vmem:[#allocation2 + $0x71] sm:$0xff]
      %v1972 = vld [vmem:[#allocation2 + $0x79] sm:$0xff]
      %v1973 = vld [vmem:[#allocation2 + $0x81] sm:$0xff]
      %v1974 = vld [vmem:[#allocation2 + $0x89] sm:$0xff]
      %v1975 = vld [vmem:[#allocation2 + $0x91] sm:$0xff]
      %v1976 = vld [vmem:[#allocation2 + $0x99] sm:$0xff]
      %v1977 = vld [vmem:[#allocation2 + $0xa1] sm:$0xff]
      %v1978 = vld [vmem:[#allocation2 + $0xa9] sm:$0xff]
      %v1979 = vld [vmem:[#allocation2 + $0xb1] sm:$0xff]
      %v1980 = vld [vmem:[#allocation2 + $0xb9] sm:$0xff]
      %v1981 = vld [vmem:[#allocation2 + $0xc1] sm:$0xff]
      %v1982 = vld [vmem:[#allocation2 + $0xc9] sm:$0xff]
      %v1983 = vld [vmem:[#allocation2 + $0xd1] sm:$0xff]
      %v1984 = vld [vmem:[#allocation2 + $0xd9] sm:$0xff]
      %v1985 = vld [vmem:[#allocation2 + $0xe1] sm:$0xff]
      %v1986 = vld [vmem:[#allocation2 + $0xe9] sm:$0xff]
      %v1987 = vld [vmem:[#allocation2 + $0xf1] sm:$0xff]
      %v1988 = vld [vmem:[#allocation2 + $0xf9] sm:$0xff]
      %v1989 = vld [vmem:[#allocation2 + $0x101] sm:$0xff]
      %v1990 = vld [vmem:[#allocation2 + $0x109] sm:$0xff]
      %v1991 = vld [vmem:[#allocation2 + $0x111] sm:$0xff]
      %v1992 = vld [vmem:[#allocation2 + $0x119] sm:$0xff]
      %v1993 = vld [vmem:[#allocation2 + $0x121] sm:$0xff]
      %v1994 = vld [vmem:[#allocation2 + $0x129] sm:$0xff]
      %v1995 = vld [vmem:[#allocation2 + $0x131] sm:$0xff]
      %v1996 = vld [vmem:[#allocation2 + $0x139] sm:$0xff]
      %v1997 = vld [vmem:[#allocation2 + $0x141] sm:$0xff]
      %v1998 = vld [vmem:[#allocation2 + $0x149] sm:$0xff]
      %v1999 = vld [vmem:[#allocation2 + $0x151] sm:$0xff]
      %v2000 = vld [vmem:[#allocation2 + $0x159] sm:$0xff]
      %v2001 = vld [vmem:[#allocation2 + $0x161] sm:$0xff]
      %v2002 = vld [vmem:[#allocation2 + $0x169] sm:$0xff]
      %v2003 = vld [vmem:[#allocation2 + $0x171] sm:$0xff]
      %v2004 = vld [vmem:[#allocation2 + $0x179] sm:$0xff]
      %v2005 = vmax.f32 %v1909, %v1957
      %v2006 = vmax.f32 %v1910, %v1958
      %v2007 = vmax.f32 %v1911, %v1959
      %v2008 = vmax.f32 %v1912, %v1960
      %v2009 = vmax.f32 %v1913, %v1961
      %v2010 = vmax.f32 %v1914, %v1962
      %v2011 = vmax.f32 %v1915, %v1963
      %v2012 = vmax.f32 %v1916, %v1964
      %v2013 = vmax.f32 %v1917, %v1965
      %v2014 = vmax.f32 %v1918, %v1966
      %v2015 = vmax.f32 %v1919, %v1967
      %v2016 = vmax.f32 %v1920, %v1968
      %v2017 = vmax.f32 %v1921, %v1969
      %v2018 = vmax.f32 %v1922, %v1970
      %v2019 = vmax.f32 %v1923, %v1971
      %v2020 = vmax.f32 %v1924, %v1972
      %v2021 = vmax.f32 %v1925, %v1973
      %v2022 = vmax.f32 %v1926, %v1974
      %v2023 = vmax.f32 %v1927, %v1975
      %v2024 = vmax.f32 %v1928, %v1976
      %v2025 = vmax.f32 %v1929, %v1977
      %v2026 = vmax.f32 %v1930, %v1978
      %v2027 = vmax.f32 %v1931, %v1979
      %v2028 = vmax.f32 %v1932, %v1980
      %v2029 = vmax.f32 %v1933, %v1981
      %v2030 = vmax.f32 %v1934, %v1982
      %v2031 = vmax.f32 %v1935, %v1983
      %v2032 = vmax.f32 %v1936, %v1984
      %v2033 = vmax.f32 %v1937, %v1985
      %v2034 = vmax.f32 %v1938, %v1986
      %v2035 = vmax.f32 %v1939, %v1987
      %v2036 = vmax.f32 %v1940, %v1988
      %v2037 = vmax.f32 %v1941, %v1989
      %v2038 = vmax.f32 %v1942, %v1990
      %v2039 = vmax.f32 %v1943, %v1991
      %v2040 = vmax.f32 %v1944, %v1992
      %v2041 = vmax.f32 %v1945, %v1993
      %v2042 = vmax.f32 %v1946, %v1994
      %v2043 = vmax.f32 %v1947, %v1995
      %v2044 = vmax.f32 %v1948, %v1996
      %v2045 = vmax.f32 %v1949, %v1997
      %v2046 = vmax.f32 %v1950, %v1998
      %v2047 = vmax.f32 %v1951, %v1999
      %v2048 = vmax.f32 %v1952, %v2000
      %v2049 = vmax.f32 %v1953, %v2001
      %v2050 = vmax.f32 %v1954, %v2002
      %v2051 = vmax.f32 %v1955, %v2003
      %v2052 = vmax.f32 %v1956, %v2004
      %v2053 = vld [vmem:[#allocation2 + $0x2] sm:$0xff]
      %v2054 = vld [vmem:[#allocation2 + $0xa] sm:$0xff]
      %v2055 = vld [vmem:[#allocation2 + $0x12] sm:$0xff]
      %v2056 = vld [vmem:[#allocation2 + $0x1a] sm:$0xff]
      %v2057 = vld [vmem:[#allocation2 + $0x22] sm:$0xff]
      %v2058 = vld [vmem:[#allocation2 + $0x2a] sm:$0xff]
      %v2059 = vld [vmem:[#allocation2 + $0x32] sm:$0xff]
      %v2060 = vld [vmem:[#allocation2 + $0x3a] sm:$0xff]
      %v2061 = vld [vmem:[#allocation2 + $0x42] sm:$0xff]
      %v2062 = vld [vmem:[#allocation2 + $0x4a] sm:$0xff]
      %v2063 = vld [vmem:[#allocation2 + $0x52] sm:$0xff]
      %v2064 = vld [vmem:[#allocation2 + $0x5a] sm:$0xff]
      %v2065 = vld [vmem:[#allocation2 + $0x62] sm:$0xff]
      %v2066 = vld [vmem:[#allocation2 + $0x6a] sm:$0xff]
      %v2067 = vld [vmem:[#allocation2 + $0x72] sm:$0xff]
      %v2068 = vld [vmem:[#allocation2 + $0x7a] sm:$0xff]
      %v2069 = vld [vmem:[#allocation2 + $0x82] sm:$0xff]
      %v2070 = vld [vmem:[#allocation2 + $0x8a] sm:$0xff]
      %v2071 = vld [vmem:[#allocation2 + $0x92] sm:$0xff]
      %v2072 = vld [vmem:[#allocation2 + $0x9a] sm:$0xff]
      %v2073 = vld [vmem:[#allocation2 + $0xa2] sm:$0xff]
      %v2074 = vld [vmem:[#allocation2 + $0xaa] sm:$0xff]
      %v2075 = vld [vmem:[#allocation2 + $0xb2] sm:$0xff]
      %v2076 = vld [vmem:[#allocation2 + $0xba] sm:$0xff]
      %v2077 = vld [vmem:[#allocation2 + $0xc2] sm:$0xff]
      %v2078 = vld [vmem:[#allocation2 + $0xca] sm:$0xff]
      %v2079 = vld [vmem:[#allocation2 + $0xd2] sm:$0xff]
      %v2080 = vld [vmem:[#allocation2 + $0xda] sm:$0xff]
      %v2081 = vld [vmem:[#allocation2 + $0xe2] sm:$0xff]
      %v2082 = vld [vmem:[#allocation2 + $0xea] sm:$0xff]
      %v2083 = vld [vmem:[#allocation2 + $0xf2] sm:$0xff]
      %v2084 = vld [vmem:[#allocation2 + $0xfa] sm:$0xff]
      %v2085 = vld [vmem:[#allocation2 + $0x102] sm:$0xff]
      %v2086 = vld [vmem:[#allocation2 + $0x10a] sm:$0xff]
      %v2087 = vld [vmem:[#allocation2 + $0x112] sm:$0xff]
      %v2088 = vld [vmem:[#allocation2 + $0x11a] sm:$0xff]
      %v2089 = vld [vmem:[#allocation2 + $0x122] sm:$0xff]
      %v2090 = vld [vmem:[#allocation2 + $0x12a] sm:$0xff]
      %v2091 = vld [vmem:[#allocation2 + $0x132] sm:$0xff]
      %v2092 = vld [vmem:[#allocation2 + $0x13a] sm:$0xff]
      %v2093 = vld [vmem:[#allocation2 + $0x142] sm:$0xff]
      %v2094 = vld [vmem:[#allocation2 + $0x14a] sm:$0xff]
      %v2095 = vld [vmem:[#allocation2 + $0x152] sm:$0xff]
      %v2096 = vld [vmem:[#allocation2 + $0x15a] sm:$0xff]
      %v2097 = vld [vmem:[#allocation2 + $0x162] sm:$0xff]
      %v2098 = vld [vmem:[#allocation2 + $0x16a] sm:$0xff]
      %v2099 = vld [vmem:[#allocation2 + $0x172] sm:$0xff]
      %v2100 = vld [vmem:[#allocation2 + $0x17a] sm:$0xff]
      %v2101 = vmax.f32 %v2005, %v2053
      %v2102 = vmax.f32 %v2006, %v2054
      %v2103 = vmax.f32 %v2007, %v2055
      %v2104 = vmax.f32 %v2008, %v2056
      %v2105 = vmax.f32 %v2009, %v2057
      %v2106 = vmax.f32 %v2010, %v2058
      %v2107 = vmax.f32 %v2011, %v2059
      %v2108 = vmax.f32 %v2012, %v2060
      %v2109 = vmax.f32 %v2013, %v2061
      %v2110 = vmax.f32 %v2014, %v2062
      %v2111 = vmax.f32 %v2015, %v2063
      %v2112 = vmax.f32 %v2016, %v2064
      %v2113 = vmax.f32 %v2017, %v2065
      %v2114 = vmax.f32 %v2018, %v2066
      %v2115 = vmax.f32 %v2019, %v2067
      %v2116 = vmax.f32 %v2020, %v2068
      %v2117 = vmax.f32 %v2021, %v2069
      %v2118 = vmax.f32 %v2022, %v2070
      %v2119 = vmax.f32 %v2023, %v2071
      %v2120 = vmax.f32 %v2024, %v2072
      %v2121 = vmax.f32 %v2025, %v2073
      %v2122 = vmax.f32 %v2026, %v2074
      %v2123 = vmax.f32 %v2027, %v2075
      %v2124 = vmax.f32 %v2028, %v2076
      %v2125 = vmax.f32 %v2029, %v2077
      %v2126 = vmax.f32 %v2030, %v2078
      %v2127 = vmax.f32 %v2031, %v2079
      %v2128 = vmax.f32 %v2032, %v2080
      %v2129 = vmax.f32 %v2033, %v2081
      %v2130 = vmax.f32 %v2034, %v2082
      %v2131 = vmax.f32 %v2035, %v2083
      %v2132 = vmax.f32 %v2036, %v2084
      %v2133 = vmax.f32 %v2037, %v2085
      %v2134 = vmax.f32 %v2038, %v2086
      %v2135 = vmax.f32 %v2039, %v2087
      %v2136 = vmax.f32 %v2040, %v2088
      %v2137 = vmax.f32 %v2041, %v2089
      %v2138 = vmax.f32 %v2042, %v2090
      %v2139 = vmax.f32 %v2043, %v2091
      %v2140 = vmax.f32 %v2044, %v2092
      %v2141 = vmax.f32 %v2045, %v2093
      %v2142 = vmax.f32 %v2046, %v2094
      %v2143 = vmax.f32 %v2047, %v2095
      %v2144 = vmax.f32 %v2048, %v2096
      %v2145 = vmax.f32 %v2049, %v2097
      %v2146 = vmax.f32 %v2050, %v2098
      %v2147 = vmax.f32 %v2051, %v2099
      %v2148 = vmax.f32 %v2052, %v2100
      %v2149 = vld [vmem:[#allocation2 + $0x180] sm:$0xff]
      %v2150 = vld [vmem:[#allocation2 + $0x188] sm:$0xff]
      %v2151 = vld [vmem:[#allocation2 + $0x190] sm:$0xff]
      %v2152 = vmax.f32 %v2101, %v1912
      %v2153 = vmax.f32 %v2102, %v1913
      %v2154 = vmax.f32 %v2103, %v1914
      %v2155 = vmax.f32 %v2104, %v1915
      %v2156 = vmax.f32 %v2105, %v1916
      %v2157 = vmax.f32 %v2106, %v1917
      %v2158 = vmax.f32 %v2107, %v1918
      %v2159 = vmax.f32 %v2108, %v1919
      %v2160 = vmax.f32 %v2109, %v1920
      %v2161 = vmax.f32 %v2110, %v1921
      %v2162 = vmax.f32 %v2111, %v1922
      %v2163 = vmax.f32 %v2112, %v1923
      %v2164 = vmax.f32 %v2113, %v1924
      %v2165 = vmax.f32 %v2114, %v1925
      %v2166 = vmax.f32 %v2115, %v1926
      %v2167 = vmax.f32 %v2116, %v1927
      %v2168 = vmax.f32 %v2117, %v1928
      %v2169 = vmax.f32 %v2118, %v1929
      %v2170 = vmax.f32 %v2119, %v1930
      %v2171 = vmax.f32 %v2120, %v1931
      %v2172 = vmax.f32 %v2121, %v1932
      %v2173 = vmax.f32 %v2122, %v1933
      %v2174 = vmax.f32 %v2123, %v1934
      %v2175 = vmax.f32 %v2124, %v1935
      %v2176 = vmax.f32 %v2125, %v1936
      %v2177 = vmax.f32 %v2126, %v1937
      %v2178 = vmax.f32 %v2127, %v1938
      %v2179 = vmax.f32 %v2128, %v1939
      %v2180 = vmax.f32 %v2129, %v1940
      %v2181 = vmax.f32 %v2130, %v1941
      %v2182 = vmax.f32 %v2131, %v1942
      %v2183 = vmax.f32 %v2132, %v1943
      %v2184 = vmax.f32 %v2133, %v1944
      %v2185 = vmax.f32 %v2134, %v1945
      %v2186 = vmax.f32 %v2135, %v1946
      %v2187 = vmax.f32 %v2136, %v1947
      %v2188 = vmax.f32 %v2137, %v1948
      %v2189 = vmax.f32 %v2138, %v1949
      %v2190 = vmax.f32 %v2139, %v1950
      %v2191 = vmax.f32 %v2140, %v1951
      %v2192 = vmax.f32 %v2141, %v1952
      %v2193 = vmax.f32 %v2142, %v1953
      %v2194 = vmax.f32 %v2143, %v1954
      %v2195 = vmax.f32 %v2144, %v1955
      %v2196 = vmax.f32 %v2145, %v1956
      %v2197 = vmax.f32 %v2146, %v2149
      %v2198 = vmax.f32 %v2147, %v2150
      %v2199 = vmax.f32 %v2148, %v2151
      %v2200 = vmax.f32 %v2152, %v1336
      %v2201 = vmax.f32 %v2153, %v1337
      %v2202 = vmax.f32 %v2154, %v1338
      %v2203 = vmax.f32 %v2155, %v1339
      %v2204 = vmax.f32 %v2156, %v1340
      %v2205 = vmax.f32 %v2157, %v1341
      %v2206 = vmax.f32 %v2158, %v1342
      %v2207 = vmax.f32 %v2159, %v1343
      %v2208 = vmax.f32 %v2160, %v1344
      %v2209 = vmax.f32 %v2161, %v1345
      %v2210 = vmax.f32 %v2162, %v1346
      %v2211 = vmax.f32 %v2163, %v1347
      %v2212 = vmax.f32 %v2164, %v1348
      %v2213 = vmax.f32 %v2165, %v1349
      %v2214 = vmax.f32 %v2166, %v1350
      %v2215 = vmax.f32 %v2167, %v1351
      %v2216 = vmax.f32 %v2168, %v1352
      %v2217 = vmax.f32 %v2169, %v1353
      %v2218 = vmax.f32 %v2170, %v1354
      %v2219 = vmax.f32 %v2171, %v1355
      %v2220 = vmax.f32 %v2172, %v1356
      %v2221 = vmax.f32 %v2173, %v1357
      %v2222 = vmax.f32 %v2174, %v1358
      %v2223 = vmax.f32 %v2175, %v1359
      %v2224 = vmax.f32 %v2176, %v1360
      %v2225 = vmax.f32 %v2177, %v1361
      %v2226 = vmax.f32 %v2178, %v1362
      %v2227 = vmax.f32 %v2179, %v1363
      %v2228 = vmax.f32 %v2180, %v1364
      %v2229 = vmax.f32 %v2181, %v1365
      %v2230 = vmax.f32 %v2182, %v1366
      %v2231 = vmax.f32 %v2183, %v1367
      %v2232 = vmax.f32 %v2184, %v1368
      %v2233 = vmax.f32 %v2185, %v1369
      %v2234 = vmax.f32 %v2186, %v1370
      %v2235 = vmax.f32 %v2187, %v1371
      %v2236 = vmax.f32 %v2188, %v1372
      %v2237 = vmax.f32 %v2189, %v1373
      %v2238 = vmax.f32 %v2190, %v1374
      %v2239 = vmax.f32 %v2191, %v1375
      %v2240 = vmax.f32 %v2192, %v1376
      %v2241 = vmax.f32 %v2193, %v1377
      %v2242 = vmax.f32 %v2194, %v1378
      %v2243 = vmax.f32 %v2195, %v1379
      %v2244 = vmax.f32 %v2196, %v1380
      %v2245 = vmax.f32 %v2197, %v1381
      %v2246 = vmax.f32 %v2198, %v1382
      %v2247 = vmax.f32 %v2199, %v1383
      %v2248 = vld [vmem:[#allocation2 + $0x182] sm:$0xff]
      %v2249 = vld [vmem:[#allocation2 + $0x18a] sm:$0xff]
      %v2250 = vld [vmem:[#allocation2 + $0x192] sm:$0xff]
      %v2251 = vmax.f32 %v2200, %v2056
      %v2252 = vmax.f32 %v2201, %v2057
      %v2253 = vmax.f32 %v2202, %v2058
      %v2254 = vmax.f32 %v2203, %v2059
      %v2255 = vmax.f32 %v2204, %v2060
      %v2256 = vmax.f32 %v2205, %v2061
      %v2257 = vmax.f32 %v2206, %v2062
      %v2258 = vmax.f32 %v2207, %v2063
      %v2259 = vmax.f32 %v2208, %v2064
      %v2260 = vmax.f32 %v2209, %v2065
      %v2261 = vmax.f32 %v2210, %v2066
      %v2262 = vmax.f32 %v2211, %v2067
      %v2263 = vmax.f32 %v2212, %v2068
      %v2264 = vmax.f32 %v2213, %v2069
      %v2265 = vmax.f32 %v2214, %v2070
      %v2266 = vmax.f32 %v2215, %v2071
      %v2267 = vmax.f32 %v2216, %v2072
      %v2268 = vmax.f32 %v2217, %v2073
      %v2269 = vmax.f32 %v2218, %v2074
      %v2270 = vmax.f32 %v2219, %v2075
      %v2271 = vmax.f32 %v2220, %v2076
      %v2272 = vmax.f32 %v2221, %v2077
      %v2273 = vmax.f32 %v2222, %v2078
      %v2274 = vmax.f32 %v2223, %v2079
      %v2275 = vmax.f32 %v2224, %v2080
      %v2276 = vmax.f32 %v2225, %v2081
      %v2277 = vmax.f32 %v2226, %v2082
      %v2278 = vmax.f32 %v2227, %v2083
      %v2279 = vmax.f32 %v2228, %v2084
      %v2280 = vmax.f32 %v2229, %v2085
      %v2281 = vmax.f32 %v2230, %v2086
      %v2282 = vmax.f32 %v2231, %v2087
      %v2283 = vmax.f32 %v2232, %v2088
      %v2284 = vmax.f32 %v2233, %v2089
      %v2285 = vmax.f32 %v2234, %v2090
      %v2286 = vmax.f32 %v2235, %v2091
      %v2287 = vmax.f32 %v2236, %v2092
      %v2288 = vmax.f32 %v2237, %v2093
      %v2289 = vmax.f32 %v2238, %v2094
      %v2290 = vmax.f32 %v2239, %v2095
      %v2291 = vmax.f32 %v2240, %v2096
      %v2292 = vmax.f32 %v2241, %v2097
      %v2293 = vmax.f32 %v2242, %v2098
      %v2294 = vmax.f32 %v2243, %v2099
      %v2295 = vmax.f32 %v2244, %v2100
      %v2296 = vmax.f32 %v2245, %v2248
      %v2297 = vmax.f32 %v2246, %v2249
      %v2298 = vmax.f32 %v2247, %v2250
      %v2299 = vld [vmem:[#allocation2 + $0x198] sm:$0xff]
      %v2300 = vld [vmem:[#allocation2 + $0x1a0] sm:$0xff]
      %v2301 = vld [vmem:[#allocation2 + $0x1a8] sm:$0xff]
      %v2302 = vmax.f32 %v2251, %v1915
      %v2303 = vmax.f32 %v2252, %v1916
      %v2304 = vmax.f32 %v2253, %v1917
      %v2305 = vmax.f32 %v2254, %v1918
      %v2306 = vmax.f32 %v2255, %v1919
      %v2307 = vmax.f32 %v2256, %v1920
      %v2308 = vmax.f32 %v2257, %v1921
      %v2309 = vmax.f32 %v2258, %v1922
      %v2310 = vmax.f32 %v2259, %v1923
      %v2311 = vmax.f32 %v2260, %v1924
      %v2312 = vmax.f32 %v2261, %v1925
      %v2313 = vmax.f32 %v2262, %v1926
      %v2314 = vmax.f32 %v2263, %v1927
      %v2315 = vmax.f32 %v2264, %v1928
      %v2316 = vmax.f32 %v2265, %v1929
      %v2317 = vmax.f32 %v2266, %v1930
      %v2318 = vmax.f32 %v2267, %v1931
      %v2319 = vmax.f32 %v2268, %v1932
      %v2320 = vmax.f32 %v2269, %v1933
      %v2321 = vmax.f32 %v2270, %v1934
      %v2322 = vmax.f32 %v2271, %v1935
      %v2323 = vmax.f32 %v2272, %v1936
      %v2324 = vmax.f32 %v2273, %v1937
      %v2325 = vmax.f32 %v2274, %v1938
      %v2326 = vmax.f32 %v2275, %v1939
      %v2327 = vmax.f32 %v2276, %v1940
      %v2328 = vmax.f32 %v2277, %v1941
      %v2329 = vmax.f32 %v2278, %v1942
      %v2330 = vmax.f32 %v2279, %v1943
      %v2331 = vmax.f32 %v2280, %v1944
      %v2332 = vmax.f32 %v2281, %v1945
      %v2333 = vmax.f32 %v2282, %v1946
      %v2334 = vmax.f32 %v2283, %v1947
      %v2335 = vmax.f32 %v2284, %v1948
      %v2336 = vmax.f32 %v2285, %v1949
      %v2337 = vmax.f32 %v2286, %v1950
      %v2338 = vmax.f32 %v2287, %v1951
      %v2339 = vmax.f32 %v2288, %v1952
      %v2340 = vmax.f32 %v2289, %v1953
      %v2341 = vmax.f32 %v2290, %v1954
      %v2342 = vmax.f32 %v2291, %v1955
      %v2343 = vmax.f32 %v2292, %v1956
      %v2344 = vmax.f32 %v2293, %v2149
      %v2345 = vmax.f32 %v2294, %v2150
      %v2346 = vmax.f32 %v2295, %v2151
      %v2347 = vmax.f32 %v2296, %v2299
      %v2348 = vmax.f32 %v2297, %v2300
      %v2349 = vmax.f32 %v2298, %v2301
      %v2350 = vld [vmem:[#allocation2 + $0x181] sm:$0xff]
      %v2351 = vld [vmem:[#allocation2 + $0x189] sm:$0xff]
      %v2352 = vld [vmem:[#allocation2 + $0x191] sm:$0xff]
      %v2353 = vld [vmem:[#allocation2 + $0x199] sm:$0xff]
      %v2354 = vld [vmem:[#allocation2 + $0x1a1] sm:$0xff]
      %v2355 = vld [vmem:[#allocation2 + $0x1a9] sm:$0xff]
      %v2356 = vmax.f32 %v2302, %v1963
      %v2357 = vmax.f32 %v2303, %v1964
      %v2358 = vmax.f32 %v2304, %v1965
      %v2359 = vmax.f32 %v2305, %v1966
      %v2360 = vmax.f32 %v2306, %v1967
      %v2361 = vmax.f32 %v2307, %v1968
      %v2362 = vmax.f32 %v2308, %v1969
      %v2363 = vmax.f32 %v2309, %v1970
      %v2364 = vmax.f32 %v2310, %v1971
      %v2365 = vmax.f32 %v2311, %v1972
      %v2366 = vmax.f32 %v2312, %v1973
      %v2367 = vmax.f32 %v2313, %v1974
      %v2368 = vmax.f32 %v2314, %v1975
      %v2369 = vmax.f32 %v2315, %v1976
      %v2370 = vmax.f32 %v2316, %v1977
      %v2371 = vmax.f32 %v2317, %v1978
      %v2372 = vmax.f32 %v2318, %v1979
      %v2373 = vmax.f32 %v2319, %v1980
      %v2374 = vmax.f32 %v2320, %v1981
      %v2375 = vmax.f32 %v2321, %v1982
      %v2376 = vmax.f32 %v2322, %v1983
      %v2377 = vmax.f32 %v2323, %v1984
      %v2378 = vmax.f32 %v2324, %v1985
      %v2379 = vmax.f32 %v2325, %v1986
      %v2380 = vmax.f32 %v2326, %v1987
      %v2381 = vmax.f32 %v2327, %v1988
      %v2382 = vmax.f32 %v2328, %v1989
      %v2383 = vmax.f32 %v2329, %v1990
      %v2384 = vmax.f32 %v2330, %v1991
      %v2385 = vmax.f32 %v2331, %v1992
      %v2386 = vmax.f32 %v2332, %v1993
      %v2387 = vmax.f32 %v2333, %v1994
      %v2388 = vmax.f32 %v2334, %v1995
      %v2389 = vmax.f32 %v2335, %v1996
      %v2390 = vmax.f32 %v2336, %v1997
      %v2391 = vmax.f32 %v2337, %v1998
      %v2392 = vmax.f32 %v2338, %v1999
      %v2393 = vmax.f32 %v2339, %v2000
      %v2394 = vmax.f32 %v2340, %v2001
      %v2395 = vmax.f32 %v2341, %v2002
      %v2396 = vmax.f32 %v2342, %v2003
      %v2397 = vmax.f32 %v2343, %v2004
      %v2398 = vmax.f32 %v2344, %v2350
      %v2399 = vmax.f32 %v2345, %v2351
      %v2400 = vmax.f32 %v2346, %v2352
      %v2401 = vmax.f32 %v2347, %v2353
      %v2402 = vmax.f32 %v2348, %v2354
      %v2403 = vmax.f32 %v2349, %v2355
      %v2404 = vld [vmem:[#allocation2 + $0x19a] sm:$0xff]
      %v2405 = vld [vmem:[#allocation2 + $0x1a2] sm:$0xff]
      %v2406 = vld [vmem:[#allocation2 + $0x1aa] sm:$0xff]
      %v2407 = vmax.f32 %v2356, %v2059
      %v2408 = vmax.f32 %v2357, %v2060
      %v2409 = vmax.f32 %v2358, %v2061
      %v2410 = vmax.f32 %v2359, %v2062
      %v2411 = vmax.f32 %v2360, %v2063
      %v2412 = vmax.f32 %v2361, %v2064
      %v2413 = vmax.f32 %v2362, %v2065
      %v2414 = vmax.f32 %v2363, %v2066
      %v2415 = vmax.f32 %v2364, %v2067
      %v2416 = vmax.f32 %v2365, %v2068
      %v2417 = vmax.f32 %v2366, %v2069
      %v2418 = vmax.f32 %v2367, %v2070
      %v2419 = vmax.f32 %v2368, %v2071
      %v2420 = vmax.f32 %v2369, %v2072
      %v2421 = vmax.f32 %v2370, %v2073
      %v2422 = vmax.f32 %v2371, %v2074
      %v2423 = vmax.f32 %v2372, %v2075
      %v2424 = vmax.f32 %v2373, %v2076
      %v2425 = vmax.f32 %v2374, %v2077
      %v2426 = vmax.f32 %v2375, %v2078
      %v2427 = vmax.f32 %v2376, %v2079
      %v2428 = vmax.f32 %v2377, %v2080
      %v2429 = vmax.f32 %v2378, %v2081
      %v2430 = vmax.f32 %v2379, %v2082
      %v2431 = vmax.f32 %v2380, %v2083
      %v2432 = vmax.f32 %v2381, %v2084
      %v2433 = vmax.f32 %v2382, %v2085
      %v2434 = vmax.f32 %v2383, %v2086
      %v2435 = vmax.f32 %v2384, %v2087
      %v2436 = vmax.f32 %v2385, %v2088
      %v2437 = vmax.f32 %v2386, %v2089
      %v2438 = vmax.f32 %v2387, %v2090
      %v2439 = vmax.f32 %v2388, %v2091
      %v2440 = vmax.f32 %v2389, %v2092
      %v2441 = vmax.f32 %v2390, %v2093
      %v2442 = vmax.f32 %v2391, %v2094
      %v2443 = vmax.f32 %v2392, %v2095
      %v2444 = vmax.f32 %v2393, %v2096
      %v2445 = vmax.f32 %v2394, %v2097
      %v2446 = vmax.f32 %v2395, %v2098
      %v2447 = vmax.f32 %v2396, %v2099
      %v2448 = vmax.f32 %v2397, %v2100
      %v2449 = vmax.f32 %v2398, %v2248
      %v2450 = vmax.f32 %v2399, %v2249
      %v2451 = vmax.f32 %v2400, %v2250
      %v2452 = vmax.f32 %v2401, %v2404
      %v2453 = vmax.f32 %v2402, %v2405
      %v2454 = vmax.f32 %v2403, %v2406
      %v2455 = vsel %vm1432, %v2407, 0.0
      %v2456 = vsel %vm1433, %v2408, 0.0
      %v2457 = vsel %vm1434, %v2409, 0.0
      %v2458 = vsel %vm1435, %v2410, 0.0
      %v2459 = vsel %vm1436, %v2411, 0.0
      %v2460 = vsel %vm1437, %v2412, 0.0
      %v2461 = vsel %vm1438, %v2413, 0.0
      %v2462 = vsel %vm1439, %v2414, 0.0
      %v2463 = vsel %vm1440, %v2415, 0.0
      %v2464 = vsel %vm1441, %v2416, 0.0
      %v2465 = vsel %vm1442, %v2417, 0.0
      %v2466 = vsel %vm1443, %v2418, 0.0
      %v2467 = vsel %vm1444, %v2419, 0.0
      %v2468 = vsel %vm1445, %v2420, 0.0
      %v2469 = vsel %vm1446, %v2421, 0.0
      %v2470 = vsel %vm1447, %v2422, 0.0
      %v2471 = vsel %vm1448, %v2423, 0.0
      %v2472 = vsel %vm1449, %v2424, 0.0
      %v2473 = vsel %vm1450, %v2425, 0.0
      %v2474 = vsel %vm1451, %v2426, 0.0
      %v2475 = vsel %vm1452, %v2427, 0.0
      %v2476 = vsel %vm1453, %v2428, 0.0
      %v2477 = vsel %vm1454, %v2429, 0.0
      %v2478 = vsel %vm1455, %v2430, 0.0
      %v2479 = vsel %vm1456, %v2431, 0.0
      %v2480 = vsel %vm1457, %v2432, 0.0
      %v2481 = vsel %vm1458, %v2433, 0.0
      %v2482 = vsel %vm1459, %v2434, 0.0
      %v2483 = vsel %vm1460, %v2435, 0.0
      %v2484 = vsel %vm1461, %v2436, 0.0
      %v2485 = vsel %vm1462, %v2437, 0.0
      %v2486 = vsel %vm1463, %v2438, 0.0
      %v2487 = vsel %vm1464, %v2439, 0.0
      %v2488 = vsel %vm1465, %v2440, 0.0
      %v2489 = vsel %vm1466, %v2441, 0.0
      %v2490 = vsel %vm1467, %v2442, 0.0
      %v2491 = vsel %vm1468, %v2443, 0.0
      %v2492 = vsel %vm1469, %v2444, 0.0
      %v2493 = vsel %vm1470, %v2445, 0.0
      %v2494 = vsel %vm1471, %v2446, 0.0
      %v2495 = vsel %vm1472, %v2447, 0.0
      %v2496 = vsel %vm1473, %v2448, 0.0
      %v2497 = vsel %vm1474, %v2449, 0.0
      %v2498 = vsel %vm1475, %v2450, 0.0
      %v2499 = vsel %vm1476, %v2451, 0.0
      %v2500 = vsel %vm1477, %v2452, 0.0
      %v2501 = vsel %vm1478, %v2453, 0.0
      %v2502 = vsel %vm1479, %v2454, 0.0
      %v2503 = vpack.c.bf16 %v2456, %v2455
      %v2504 = vpack.c.bf16 %v2458, %v2457
      %v2505 = vpack.c.bf16 %v2460, %v2459
      %v2506 = vpack.c.bf16 %v2462, %v2461
      %v2507 = vpack.c.bf16 %v2464, %v2463
      %v2508 = vpack.c.bf16 %v2466, %v2465
      %v2509 = vpack.c.bf16 %v2468, %v2467
      %v2510 = vpack.c.bf16 %v2470, %v2469
      %v2511 = vpack.c.bf16 %v2472, %v2471
      %v2512 = vpack.c.bf16 %v2474, %v2473
      %v2513 = vpack.c.bf16 %v2476, %v2475
      %v2514 = vpack.c.bf16 %v2478, %v2477
      %v2515 = vpack.c.bf16 %v2480, %v2479
      %v2516 = vpack.c.bf16 %v2482, %v2481
      %v2517 = vpack.c.bf16 %v2484, %v2483
      %v2518 = vpack.c.bf16 %v2486, %v2485
      %v2519 = vpack.c.bf16 %v2488, %v2487
      %v2520 = vpack.c.bf16 %v2490, %v2489
      %v2521 = vpack.c.bf16 %v2492, %v2491
      %v2522 = vpack.c.bf16 %v2494, %v2493
      %v2523 = vpack.c.bf16 %v2496, %v2495
      %v2524 = vpack.c.bf16 %v2498, %v2497
      %v2525 = vpack.c.bf16 %v2500, %v2499
      %v2526 = vpack.c.bf16 %v2502, %v2501
      %v2527 = vld [vmem:[%s7] sm:$0x3]
      %v2528 = vld [vmem:[%s8] sm:$0x1]
      %v2530 = vlaneseq
      %v2531 = vshrl.u32 %v2530, 7
      %v2532 = vsub.s32 0, %v2531
      %v2533 = vrot.slane %v2528, %v2532
      %v2536 = vsel %vm334, %v2503, 0
      %v2539 = vsel %vm334, %v2504, 0
      %v2542 = vsel %vm334, %v2505, 0
      %v2545 = vsel %vm334, %v2506, 0
      %v2548 = vsel %vm334, %v2507, 0
      %v2551 = vsel %vm334, %v2508, 0
      %v2554 = vsel %vm334, %v2509, 0
      %v2557 = vsel %vm334, %v2510, 0
      %v2560 = vsel %vm334, %v2511, 0
      %v2563 = vsel %vm334, %v2512, 0
      %v2566 = vsel %vm334, %v2513, 0
      %v2569 = vsel %vm334, %v2514, 0
      %v2572 = vsel %vm334, %v2515, 0
      %v2575 = vsel %vm334, %v2516, 0
      %v2578 = vsel %vm334, %v2517, 0
      %v2581 = vsel %vm334, %v2518, 0
      %v2584 = vsel %vm334, %v2519, 0
      %v2587 = vsel %vm334, %v2520, 0
      %v2590 = vsel %vm334, %v2521, 0
      %v2593 = vsel %vm334, %v2522, 0
      %v2596 = vsel %vm334, %v2523, 0
      %v2599 = vsel %vm334, %v2524, 0
      %v2602 = vsel %vm334, %v2525, 0
      %v2605 = vsel %vm334, %v2526, 0
      %v2608 = vsel %vm1632, %v2527, 0
      %2610 = vmatprep.subr.bf16.mxu0 0
      %2611 = vmatpush1.bf16.msra.mxu0 %v2608
      %2612 = vmatprep.subr.bf16.mxu0 0
      %2613 = vmatpush1.bf16.msra.mxu0 0
      %2614 = vmatprep.subr.bf16.mxu0 0
      %2615 = vmatpush1.bf16.msra.mxu0 0
      %2616 = vmatprep.subr.bf16.mxu0 0
      %2617 = vmatpush1.bf16.msra.mxu0 0
      %2618 = vmatprep.subr.bf16.mxu0 0
      %2619 = vmatpush1.bf16.msra.mxu0 0
      %2620 = vmatprep.subr.bf16.mxu0 0
      %2621 = vmatpush1.bf16.msra.mxu0 0
      %2622 = vmatprep.subr.bf16.mxu0 0
      %2623 = vmatpush1.bf16.msra.mxu0 0
      %2624 = vmatprep.subr.bf16.mxu0 0
      %2625 = vmatpush1.bf16.msra.mxu0 0
      %2626 = vmatprep.subr.bf16.mxu0 0
      %2627 = vmatpush1.bf16.msra.mxu0 0
      %2628 = vmatprep.subr.bf16.mxu0 0
      %2629 = vmatpush1.bf16.msra.mxu0 0
      %2630 = vmatprep.subr.bf16.mxu0 0
      %2631 = vmatpush1.bf16.msra.mxu0 0
      %2632 = vmatprep.subr.bf16.mxu0 0
      %2633 = vmatpush1.bf16.msra.mxu0 0
      %2634 = vmatprep.subr.bf16.mxu0 0
      %2635 = vmatpush1.bf16.msra.mxu0 0
      %2636 = vmatprep.subr.bf16.mxu0 0
      %2637 = vmatpush1.bf16.msra.mxu0 0
      %2638 = vmatprep.subr.bf16.mxu0 0
      %2639 = vmatpush1.bf16.msra.mxu0 0
      %2640 = vmatprep.subr.bf16.mxu0 0
      %2641 = vmatpush1.bf16.msra.mxu0 0
      %2642 = vmatprep.mubr.bf16.mxu0 0
      %2643 = vmatmul.mubr.bf16.gmra.mrb[0].mxu0 %v2536
      %v2644 = vpop.f32.mrb[0].mxu0
      %v2645 = vadd.f32 %v2533, %v2644
      %v2646 = vpop.f32.mrb[0].mxu0
      %v2647 = vpop.f32.mrb[0].mxu0
      %v2648 = vadd.f32 %v2533, %v2647
      %v2649 = vpop.f32.mrb[0].mxu0
      %2650 = vmatprep.mubr.bf16.mxu0 0
      %2651 = vmatmul.mubr.bf16.gmra.mrb[0].mxu0 %v2539
      %v2652 = vpop.f32.mrb[0].mxu0
      %v2653 = vpop.f32.mrb[0].mxu0
      %v2654 = vpop.f32.mrb[0].mxu0
      %v2655 = vadd.f32 %v2533, %v2654
      %v2656 = vpop.f32.mrb[0].mxu0
      %2657 = vmatprep.mubr.bf16.mxu0 0
      %2658 = vmatmul.mubr.bf16.gmra.mrb[0].mxu0 %v2542
      %v2659 = vpop.f32.mrb[0].mxu0
      %v2660 = vadd.f32 %v2533, %v2659
      %v2661 = vpop.f32.mrb[0].mxu0
      %v2662 = vpop.f32.mrb[0].mxu0
      %v2663 = vpop.f32.mrb[0].mxu0
      %2664 = vmatprep.mubr.bf16.mxu0 0
      %2665 = vmatmul.mubr.bf16.gmra.mrb[0].mxu0 %v2545
      %v2666 = vpop.f32.mrb[0].mxu0
      %v2667 = vadd.f32 %v2533, %v2666
      %v2668 = vpop.f32.mrb[0].mxu0
      %v2669 = vpop.f32.mrb[0].mxu0
      %v2670 = vadd.f32 %v2533, %v2669
      %v2671 = vpop.f32.mrb[0].mxu0
      %2672 = vmatprep.mubr.bf16.mxu0 0
      %2673 = vmatmul.mubr.bf16.gmra.mrb[0].mxu0 %v2548
      %v2674 = vpop.f32.mrb[0].mxu0
      %v2675 = vpop.f32.mrb[0].mxu0
      %v2676 = vpop.f32.mrb[0].mxu0
      %v2677 = vadd.f32 %v2533, %v2676
      %v2678 = vpop.f32.mrb[0].mxu0
      %2679 = vmatprep.mubr.bf16.mxu0 0
      %2680 = vmatmul.mubr.bf16.gmra.mrb[0].mxu0 %v2551
      %v2681 = vpop.f32.mrb[0].mxu0
      %v2682 = vadd.f32 %v2533, %v2681
      %v2683 = vpop.f32.mrb[0].mxu0
      %v2684 = vpop.f32.mrb[0].mxu0
      %v2685 = vpop.f32.mrb[0].mxu0
      %2686 = vmatprep.mubr.bf16.mxu0 0
      %2687 = vmatmul.mubr.bf16.gmra.mrb[0].mxu0 %v2554
      %v2688 = vpop.f32.mrb[0].mxu0
      %v2689 = vadd.f32 %v2533, %v2688
      %v2690 = vpop.f32.mrb[0].mxu0
      %v2691 = vpop.f32.mrb[0].mxu0
      %v2692 = vadd.f32 %v2533, %v2691
      %v2693 = vpop.f32.mrb[0].mxu0
      %2694 = vmatprep.mubr.bf16.mxu0 0
      %2695 = vmatmul.mubr.bf16.gmra.mrb[0].mxu0 %v2557
      %v2696 = vpop.f32.mrb[0].mxu0
      %v2697 = vpop.f32.mrb[0].mxu0
      %v2698 = vpop.f32.mrb[0].mxu0
      %v2699 = vadd.f32 %v2533, %v2698
      %v2700 = vpop.f32.mrb[0].mxu0
      %2701 = vmatprep.mubr.bf16.mxu0 0
      %2702 = vmatmul.mubr.bf16.gmra.mrb[0].mxu0 %v2560
      %v2703 = vpop.f32.mrb[0].mxu0
      %v2704 = vadd.f32 %v2533, %v2703
      %v2705 = vpop.f32.mrb[0].mxu0
      %v2706 = vpop.f32.mrb[0].mxu0
      %v2707 = vpop.f32.mrb[0].mxu0
      %2708 = vmatprep.mubr.bf16.mxu0 0
      %2709 = vmatmul.mubr.bf16.gmra.mrb[0].mxu0 %v2563
      %v2710 = vpop.f32.mrb[0].mxu0
      %v2711 = vadd.f32 %v2533, %v2710
      %v2712 = vpop.f32.mrb[0].mxu0
      %v2713 = vpop.f32.mrb[0].mxu0
      %v2714 = vadd.f32 %v2533, %v2713
      %v2715 = vpop.f32.mrb[0].mxu0
      %2716 = vmatprep.mubr.bf16.mxu0 0
      %2717 = vmatmul.mubr.bf16.gmra.mrb[0].mxu0 %v2566
      %v2718 = vpop.f32.mrb[0].mxu0
      %v2719 = vpop.f32.mrb[0].mxu0
      %v2720 = vpop.f32.mrb[0].mxu0
      %v2721 = vadd.f32 %v2533, %v2720
      %v2722 = vpop.f32.mrb[0].mxu0
      %2723 = vmatprep.mubr.bf16.mxu0 0
      %2724 = vmatmul.mubr.bf16.gmra.mrb[0].mxu0 %v2569
      %v2725 = vpop.f32.mrb[0].mxu0
      %v2726 = vadd.f32 %v2533, %v2725
      %v2727 = vpop.f32.mrb[0].mxu0
      %v2728 = vpop.f32.mrb[0].mxu0
      %v2729 = vpop.f32.mrb[0].mxu0
      %2730 = vmatprep.mubr.bf16.mxu0 0
      %2731 = vmatmul.mubr.bf16.gmra.mrb[0].mxu0 %v2572
      %v2732 = vpop.f32.mrb[0].mxu0
      %v2733 = vadd.f32 %v2533, %v2732
      %v2734 = vpop.f32.mrb[0].mxu0
      %v2735 = vpop.f32.mrb[0].mxu0
      %v2736 = vadd.f32 %v2533, %v2735
      %v2737 = vpop.f32.mrb[0].mxu0
      %2738 = vmatprep.mubr.bf16.mxu0 0
      %2739 = vmatmul.mubr.bf16.gmra.mrb[0].mxu0 %v2575
      %v2740 = vpop.f32.mrb[0].mxu0
      %v2741 = vpop.f32.mrb[0].mxu0
      %v2742 = vpop.f32.mrb[0].mxu0
      %v2743 = vadd.f32 %v2533, %v2742
      %v2744 = vpop.f32.mrb[0].mxu0
      %2745 = vmatprep.mubr.bf16.mxu0 0
      %2746 = vmatmul.mubr.bf16.gmra.mrb[0].mxu0 %v2578
      %v2747 = vpop.f32.mrb[0].mxu0
      %v2748 = vadd.f32 %v2533, %v2747
      %v2749 = vpop.f32.mrb[0].mxu0
      %v2750 = vpop.f32.mrb[0].mxu0
      %v2751 = vpop.f32.mrb[0].mxu0
      %2752 = vmatprep.mubr.bf16.mxu0 0
      %2753 = vmatmul.mubr.bf16.gmra.mrb[0].mxu0 %v2581
      %v2754 = vpop.f32.mrb[0].mxu0
      %v2755 = vadd.f32 %v2533, %v2754
      %v2756 = vpop.f32.mrb[0].mxu0
      %v2757 = vpop.f32.mrb[0].mxu0
      %v2758 = vadd.f32 %v2533, %v2757
      %v2759 = vpop.f32.mrb[0].mxu0
      %2760 = vmatprep.mubr.bf16.mxu0 0
      %2761 = vmatmul.mubr.bf16.gmra.mrb[0].mxu0 %v2584
      %v2762 = vpop.f32.mrb[0].mxu0
      %v2763 = vpop.f32.mrb[0].mxu0
      %v2764 = vpop.f32.mrb[0].mxu0
      %v2765 = vadd.f32 %v2533, %v2764
      %v2766 = vpop.f32.mrb[0].mxu0
      %2767 = vmatprep.mubr.bf16.mxu0 0
      %2768 = vmatmul.mubr.bf16.gmra.mrb[0].mxu0 %v2587
      %v2769 = vpop.f32.mrb[0].mxu0
      %v2770 = vadd.f32 %v2533, %v2769
      %v2771 = vpop.f32.mrb[0].mxu0
      %v2772 = vpop.f32.mrb[0].mxu0
      %v2773 = vpop.f32.mrb[0].mxu0
      %2774 = vmatprep.mubr.bf16.mxu0 0
      %2775 = vmatmul.mubr.bf16.gmra.mrb[0].mxu0 %v2590
      %v2776 = vpop.f32.mrb[0].mxu0
      %v2777 = vadd.f32 %v2533, %v2776
      %v2778 = vpop.f32.mrb[0].mxu0
      %v2779 = vpop.f32.mrb[0].mxu0
      %v2780 = vadd.f32 %v2533, %v2779
      %v2781 = vpop.f32.mrb[0].mxu0
      %2782 = vmatprep.mubr.bf16.mxu0 0
      %2783 = vmatmul.mubr.bf16.gmra.mrb[0].mxu0 %v2593
      %v2784 = vpop.f32.mrb[0].mxu0
      %v2785 = vpop.f32.mrb[0].mxu0
      %v2786 = vpop.f32.mrb[0].mxu0
      %v2787 = vadd.f32 %v2533, %v2786
      %v2788 = vpop.f32.mrb[0].mxu0
      %2789 = vmatprep.mubr.bf16.mxu0 0
      %2790 = vmatmul.mubr.bf16.gmra.mrb[0].mxu0 %v2596
      %v2791 = vpop.f32.mrb[0].mxu0
      %v2792 = vadd.f32 %v2533, %v2791
      %v2793 = vpop.f32.mrb[0].mxu0
      %v2794 = vpop.f32.mrb[0].mxu0
      %v2795 = vpop.f32.mrb[0].mxu0
      %2796 = vmatprep.mubr.bf16.mxu0 0
      %2797 = vmatmul.mubr.bf16.gmra.mrb[0].mxu0 %v2599
      %v2798 = vpop.f32.mrb[0].mxu0
      %v2799 = vadd.f32 %v2533, %v2798
      %v2800 = vpop.f32.mrb[0].mxu0
      %v2801 = vpop.f32.mrb[0].mxu0
      %v2802 = vadd.f32 %v2533, %v2801
      %v2803 = vpop.f32.mrb[0].mxu0
      %2804 = vmatprep.mubr.bf16.mxu0 0
      %2805 = vmatmul.mubr.bf16.gmra.mrb[0].mxu0 %v2602
      %v2806 = vpop.f32.mrb[0].mxu0
      %v2807 = vpop.f32.mrb[0].mxu0
      %v2808 = vpop.f32.mrb[0].mxu0
      %v2809 = vadd.f32 %v2533, %v2808
      %v2810 = vpop.f32.mrb[0].mxu0
      %2811 = vmatprep.mubr.bf16.mxu0 0
      %2812 = vmatmul.mubr.bf16.gmra.mrb[0].mxu0 %v2605
      %v2813 = vpop.f32.mrb[0].mxu0
      %v2814 = vadd.f32 %v2533, %v2813
      %v2815 = vpop.f32.mrb[0].mxu0
      %v2816 = vpop.f32.mrb[0].mxu0
      %v2817 = vpop.f32.mrb[0].mxu0
      %2818 = vdwg.mxu0
      %v2819 = vmax.f32 %v2645, 0.0
      %v2820 = vmax.f32 %v2648, 0.0
      %v2821 = vmax.f32 %v2655, 0.0
      %v2822 = vmax.f32 %v2660, 0.0
      %v2823 = vmax.f32 %v2667, 0.0
      %v2824 = vmax.f32 %v2670, 0.0
      %v2825 = vmax.f32 %v2677, 0.0
      %v2826 = vmax.f32 %v2682, 0.0
      %v2827 = vmax.f32 %v2689, 0.0
      %v2828 = vmax.f32 %v2692, 0.0
      %v2829 = vmax.f32 %v2699, 0.0
      %v2830 = vmax.f32 %v2704, 0.0
      %v2831 = vmax.f32 %v2711, 0.0
      %v2832 = vmax.f32 %v2714, 0.0
      %v2833 = vmax.f32 %v2721, 0.0
      %v2834 = vmax.f32 %v2726, 0.0
      %v2835 = vmax.f32 %v2733, 0.0
      %v2836 = vmax.f32 %v2736, 0.0
      %v2837 = vmax.f32 %v2743, 0.0
      %v2838 = vmax.f32 %v2748, 0.0
      %v2839 = vmax.f32 %v2755, 0.0
      %v2840 = vmax.f32 %v2758, 0.0
      %v2841 = vmax.f32 %v2765, 0.0
      %v2842 = vmax.f32 %v2770, 0.0
      %v2843 = vmax.f32 %v2777, 0.0
      %v2844 = vmax.f32 %v2780, 0.0
      %v2845 = vmax.f32 %v2787, 0.0
      %v2846 = vmax.f32 %v2792, 0.0
      %v2847 = vmax.f32 %v2799, 0.0
      %v2848 = vmax.f32 %v2802, 0.0
      %v2849 = vmax.f32 %v2809, 0.0
      %v2850 = vmax.f32 %v2814, 0.0
      %v2851 = vsel %vm1432, %v1861, 0.0
      %v2852 = vsel %vm1433, %v1862, 0.0
      %v2853 = vsel %vm1434, %v1863, 0.0
      %v2854 = vsel %vm1435, %v1864, 0.0
      %v2855 = vsel %vm1436, %v1865, 0.0
      %v2856 = vsel %vm1437, %v1866, 0.0
      %v2857 = vsel %vm1438, %v1867, 0.0
      %v2858 = vsel %vm1439, %v1868, 0.0
      %v2859 = vsel %vm1440, %v1869, 0.0
      %v2860 = vsel %vm1441, %v1870, 0.0
      %v2861 = vsel %vm1442, %v1871, 0.0
      %v2862 = vsel %vm1443, %v1872, 0.0
      %v2863 = vsel %vm1444, %v1873, 0.0
      %v2864 = vsel %vm1445, %v1874, 0.0
      %v2865 = vsel %vm1446, %v1875, 0.0
      %v2866 = vsel %vm1447, %v1876, 0.0
      %v2867 = vsel %vm1448, %v1877, 0.0
      %v2868 = vsel %vm1449, %v1878, 0.0
      %v2869 = vsel %vm1450, %v1879, 0.0
      %v2870 = vsel %vm1451, %v1880, 0.0
      %v2871 = vsel %vm1452, %v1881, 0.0
      %v2872 = vsel %vm1453, %v1882, 0.0
      %v2873 = vsel %vm1454, %v1883, 0.0
      %v2874 = vsel %vm1455, %v1884, 0.0
      %v2875 = vsel %vm1456, %v1885, 0.0
      %v2876 = vsel %vm1457, %v1886, 0.0
      %v2877 = vsel %vm1458, %v1887, 0.0
      %v2878 = vsel %vm1459, %v1888, 0.0
      %v2879 = vsel %vm1460, %v1889, 0.0
      %v2880 = vsel %vm1461, %v1890, 0.0
      %v2881 = vsel %vm1462, %v1891, 0.0
      %v2882 = vsel %vm1463, %v1892, 0.0
      %v2883 = vsel %vm1464, %v1893, 0.0
      %v2884 = vsel %vm1465, %v1894, 0.0
      %v2885 = vsel %vm1466, %v1895, 0.0
      %v2886 = vsel %vm1467, %v1896, 0.0
      %v2887 = vsel %vm1468, %v1897, 0.0
      %v2888 = vsel %vm1469, %v1898, 0.0
      %v2889 = vsel %vm1470, %v1899, 0.0
      %v2890 = vsel %vm1471, %v1900, 0.0
      %v2891 = vsel %vm1472, %v1901, 0.0
      %v2892 = vsel %vm1473, %v1902, 0.0
      %v2893 = vsel %vm1474, %v1903, 0.0
      %v2894 = vsel %vm1475, %v1904, 0.0
      %v2895 = vsel %vm1476, %v1905, 0.0
      %v2896 = vsel %vm1477, %v1906, 0.0
      %v2897 = vsel %vm1478, %v1907, 0.0
      %v2898 = vsel %vm1479, %v1908, 0.0
      %v2899 = vpack.c.bf16 %v2852, %v2851
      %v2900 = vpack.c.bf16 %v2854, %v2853
      %v2901 = vpack.c.bf16 %v2856, %v2855
      %v2902 = vpack.c.bf16 %v2858, %v2857
      %v2903 = vpack.c.bf16 %v2860, %v2859
      %v2904 = vpack.c.bf16 %v2862, %v2861
      %v2905 = vpack.c.bf16 %v2864, %v2863
      %v2906 = vpack.c.bf16 %v2866, %v2865
      %v2907 = vpack.c.bf16 %v2868, %v2867
      %v2908 = vpack.c.bf16 %v2870, %v2869
      %v2909 = vpack.c.bf16 %v2872, %v2871
      %v2910 = vpack.c.bf16 %v2874, %v2873
      %v2911 = vpack.c.bf16 %v2876, %v2875
      %v2912 = vpack.c.bf16 %v2878, %v2877
      %v2913 = vpack.c.bf16 %v2880, %v2879
      %v2914 = vpack.c.bf16 %v2882, %v2881
      %v2915 = vpack.c.bf16 %v2884, %v2883
      %v2916 = vpack.c.bf16 %v2886, %v2885
      %v2917 = vpack.c.bf16 %v2888, %v2887
      %v2918 = vpack.c.bf16 %v2890, %v2889
      %v2919 = vpack.c.bf16 %v2892, %v2891
      %v2920 = vpack.c.bf16 %v2894, %v2893
      %v2921 = vpack.c.bf16 %v2896, %v2895
      %v2922 = vpack.c.bf16 %v2898, %v2897
      %vm2923 = vcmask 64512
      %2924 = vst.msk [vmem:[#allocation3] sm:$0xff] %vm2923, 0
      %2925 = vst.msk [vmem:[#allocation3 + $0x8] sm:$0xff] %vm2923, 0
      %2926 = vst.msk [vmem:[#allocation3 + $0x10] sm:$0xff] %vm2923, 0
      %2927 = vst.msk [vmem:[#allocation3 + $0x18] sm:$0xff] %vm2923, 0
      %2928 = vst.msk [vmem:[#allocation3 + $0x20] sm:$0xff] %vm2923, 0
      %2929 = vst.msk [vmem:[#allocation3 + $0x28] sm:$0xff] %vm2923, 0
      %2930 = vst.msk [vmem:[#allocation3 + $0x30] sm:$0xff] %vm2923, 0
      %2931 = vst.msk [vmem:[#allocation3 + $0x38] sm:$0xff] %vm2923, 0
      %2932 = vst.msk [vmem:[#allocation3 + $0x40] sm:$0xff] %vm2923, 0
      %2933 = vst.msk [vmem:[#allocation3 + $0x48] sm:$0xff] %vm2923, 0
      %2934 = vst.msk [vmem:[#allocation3 + $0x50] sm:$0xff] %vm2923, 0
      %2935 = vst.msk [vmem:[#allocation3 + $0x58] sm:$0xff] %vm2923, 0
      %2936 = vst.msk [vmem:[#allocation3 + $0x60] sm:$0xff] %vm2923, 0
      %2937 = vst.msk [vmem:[#allocation3 + $0x68] sm:$0xff] %vm2923, 0
      %2938 = vst.msk [vmem:[#allocation3 + $0x70] sm:$0xff] %vm2923, 0
      %2939 = vst.msk [vmem:[#allocation3 + $0x78] sm:$0xff] %vm2923, 0
      %2940 = vst.msk [vmem:[#allocation3 + $0x80] sm:$0xff] %vm2923, 0
      %2941 = vst.msk [vmem:[#allocation3 + $0x88] sm:$0xff] %vm2923, 0
      %2942 = vst.msk [vmem:[#allocation3 + $0x90] sm:$0xff] %vm2923, 0
      %2943 = vst.msk [vmem:[#allocation3 + $0x98] sm:$0xff] %vm2923, 0
      %2944 = vst.msk [vmem:[#allocation3 + $0xa0] sm:$0xff] %vm2923, 0
      %2945 = vst.msk [vmem:[#allocation3 + $0xa8] sm:$0xff] %vm2923, 0
      %2946 = vst.msk [vmem:[#allocation3 + $0xb0] sm:$0xff] %vm2923, 0
      %2947 = vst.msk [vmem:[#allocation3 + $0xb8] sm:$0xff] %vm2923, 0
      %2948 = vst.msk [vmem:[#allocation3 + $0xc0] sm:$0xff] %vm2923, 0
      %2949 = vst.msk [vmem:[#allocation3 + $0xc8] sm:$0xff] %vm2923, 0
      %2950 = vst.msk [vmem:[#allocation3 + $0xd0] sm:$0xff] %vm2923, 0
      %2951 = vst.msk [vmem:[#allocation3 + $0xd8] sm:$0xff] %vm2923, 0
      %2952 = vst.msk [vmem:[#allocation3 + $0xe0] sm:$0xff] %vm2923, 0
      %2953 = vst.msk [vmem:[#allocation3 + $0xe8] sm:$0xff] %vm2923, 0
      %2978 = vrot.lane.b32.xlu0 %v2899, 120
      %v2979 = vpop.permute.xlu0 %2978
      %2980 = vrot.lane.b32.xlu0 %v2900, 120
      %v2981 = vpop.permute.xlu0 %2980
      %2982 = vrot.lane.b32.xlu0 %v2901, 120
      %v2983 = vpop.permute.xlu0 %2982
      %2984 = vrot.lane.b32.xlu0 %v2902, 120
      %v2985 = vpop.permute.xlu0 %2984
      %2986 = vrot.lane.b32.xlu0 %v2903, 120
      %v2987 = vpop.permute.xlu0 %2986
      %2988 = vrot.lane.b32.xlu0 %v2904, 120
      %v2989 = vpop.permute.xlu0 %2988
      %2990 = vrot.lane.b32.xlu0 %v2905, 120
      %v2991 = vpop.permute.xlu0 %2990
      %2992 = vrot.lane.b32.xlu0 %v2906, 120
      %v2993 = vpop.permute.xlu0 %2992
      %2994 = vrot.lane.b32.xlu0 %v2907, 120
      %v2995 = vpop.permute.xlu0 %2994
      %2996 = vrot.lane.b32.xlu0 %v2908, 120
      %v2997 = vpop.permute.xlu0 %2996
      %2998 = vrot.lane.b32.xlu0 %v2909, 120
      %v2999 = vpop.permute.xlu0 %2998
      %3000 = vrot.lane.b32.xlu0 %v2910, 120
      %v3001 = vpop.permute.xlu0 %3000
      %3002 = vrot.lane.b32.xlu0 %v2911, 120
      %v3003 = vpop.permute.xlu0 %3002
      %3004 = vrot.lane.b32.xlu0 %v2912, 120
      %v3005 = vpop.permute.xlu0 %3004
      %3006 = vrot.lane.b32.xlu0 %v2913, 120
      %v3007 = vpop.permute.xlu0 %3006
      %3008 = vrot.lane.b32.xlu0 %v2914, 120
      %v3009 = vpop.permute.xlu0 %3008
      %3010 = vrot.lane.b32.xlu0 %v2915, 120
      %v3011 = vpop.permute.xlu0 %3010
      %3012 = vrot.lane.b32.xlu0 %v2916, 120
      %v3013 = vpop.permute.xlu0 %3012
      %3014 = vrot.lane.b32.xlu0 %v2917, 120
      %v3015 = vpop.permute.xlu0 %3014
      %3016 = vrot.lane.b32.xlu0 %v2918, 120
      %v3017 = vpop.permute.xlu0 %3016
      %3018 = vrot.lane.b32.xlu0 %v2919, 120
      %v3019 = vpop.permute.xlu0 %3018
      %3020 = vrot.lane.b32.xlu0 %v2920, 120
      %v3021 = vpop.permute.xlu0 %3020
      %3022 = vrot.lane.b32.xlu0 %v2921, 120
      %v3023 = vpop.permute.xlu0 %3022
      %3024 = vrot.lane.b32.xlu0 %v2922, 120
      %v3025 = vpop.permute.xlu0 %3024
      %3050 = vst.msk [vmem:[#allocation3 + $0x18] sm:$0xff] %vm2923, %v2979
      %3051 = vst.msk [vmem:[#allocation3 + $0x20] sm:$0xff] %vm2923, %v2981
      %3052 = vst.msk [vmem:[#allocation3 + $0x28] sm:$0xff] %vm2923, %v2983
      %3053 = vst.msk [vmem:[#allocation3 + $0x30] sm:$0xff] %vm2923, %v2985
      %3054 = vst.msk [vmem:[#allocation3 + $0x38] sm:$0xff] %vm2923, %v2987
      %3055 = vst.msk [vmem:[#allocation3 + $0x40] sm:$0xff] %vm2923, %v2989
      %3056 = vst.msk [vmem:[#allocation3 + $0x48] sm:$0xff] %vm2923, %v2991
      %3057 = vst.msk [vmem:[#allocation3 + $0x50] sm:$0xff] %vm2923, %v2993
      %3058 = vst.msk [vmem:[#allocation3 + $0x58] sm:$0xff] %vm2923, %v2995
      %3059 = vst.msk [vmem:[#allocation3 + $0x60] sm:$0xff] %vm2923, %v2997
      %3060 = vst.msk [vmem:[#allocation3 + $0x68] sm:$0xff] %vm2923, %v2999
      %3061 = vst.msk [vmem:[#allocation3 + $0x70] sm:$0xff] %vm2923, %v3001
      %3062 = vst.msk [vmem:[#allocation3 + $0x78] sm:$0xff] %vm2923, %v3003
      %3063 = vst.msk [vmem:[#allocation3 + $0x80] sm:$0xff] %vm2923, %v3005
      %3064 = vst.msk [vmem:[#allocation3 + $0x88] sm:$0xff] %vm2923, %v3007
      %3065 = vst.msk [vmem:[#allocation3 + $0x90] sm:$0xff] %vm2923, %v3009
      %3066 = vst.msk [vmem:[#allocation3 + $0x98] sm:$0xff] %vm2923, %v3011
      %3067 = vst.msk [vmem:[#allocation3 + $0xa0] sm:$0xff] %vm2923, %v3013
      %3068 = vst.msk [vmem:[#allocation3 + $0xa8] sm:$0xff] %vm2923, %v3015
      %3069 = vst.msk [vmem:[#allocation3 + $0xb0] sm:$0xff] %vm2923, %v3017
      %3070 = vst.msk [vmem:[#allocation3 + $0xb8] sm:$0xff] %vm2923, %v3019
      %3071 = vst.msk [vmem:[#allocation3 + $0xc0] sm:$0xff] %vm2923, %v3021
      %3072 = vst.msk [vmem:[#allocation3 + $0xc8] sm:$0xff] %vm2923, %v3023
      %3073 = vst.msk [vmem:[#allocation3 + $0xd0] sm:$0xff] %vm2923, %v3025
      %3074 = vst.msk [vmem:[#allocation4] sm:$0xff] %vm334, 0
      %3075 = vst.msk [vmem:[#allocation4 + $0x8] sm:$0xff] %vm334, 0
      %3076 = vst.msk [vmem:[#allocation4 + $0x10] sm:$0xff] %vm334, 0
      %3077 = vst.msk [vmem:[#allocation4 + $0x18] sm:$0xff] %vm334, 0
      %3078 = vst.msk [vmem:[#allocation4 + $0x20] sm:$0xff] %vm334, 0
      %3079 = vst.msk [vmem:[#allocation4 + $0x28] sm:$0xff] %vm334, 0
      %3080 = vst.msk [vmem:[#allocation4 + $0x30] sm:$0xff] %vm334, 0
      %3081 = vst.msk [vmem:[#allocation4 + $0x38] sm:$0xff] %vm334, 0
      %3082 = vst.msk [vmem:[#allocation4 + $0x40] sm:$0xff] %vm334, 0
      %3083 = vst.msk [vmem:[#allocation4 + $0x48] sm:$0xff] %vm334, 0
      %3084 = vst.msk [vmem:[#allocation4 + $0x50] sm:$0xff] %vm334, 0
      %3085 = vst.msk [vmem:[#allocation4 + $0x58] sm:$0xff] %vm334, 0
      %3086 = vst.msk [vmem:[#allocation4 + $0x60] sm:$0xff] %vm334, 0
      %3087 = vst.msk [vmem:[#allocation4 + $0x68] sm:$0xff] %vm334, 0
      %3088 = vst.msk [vmem:[#allocation4 + $0x70] sm:$0xff] %vm334, 0
      %3089 = vst.msk [vmem:[#allocation4 + $0x78] sm:$0xff] %vm334, 0
      %3090 = vst.msk [vmem:[#allocation4 + $0x80] sm:$0xff] %vm334, 0
      %3091 = vst.msk [vmem:[#allocation4 + $0x88] sm:$0xff] %vm334, 0
      %3092 = vst.msk [vmem:[#allocation4 + $0x90] sm:$0xff] %vm334, 0
      %3093 = vst.msk [vmem:[#allocation4 + $0x98] sm:$0xff] %vm334, 0
      %3094 = vst.msk [vmem:[#allocation4 + $0xa0] sm:$0xff] %vm334, 0
      %3095 = vst.msk [vmem:[#allocation4 + $0xa8] sm:$0xff] %vm334, 0
      %3096 = vst.msk [vmem:[#allocation4 + $0xb0] sm:$0xff] %vm334, 0
      %3097 = vst.msk [vmem:[#allocation4 + $0xb8] sm:$0xff] %vm334, 0
      %3098 = vst.msk [vmem:[#allocation4 + $0xc0] sm:$0xff] %vm334, 0
      %3099 = vst.msk [vmem:[#allocation4 + $0xc8] sm:$0xff] %vm334, 0
      %3100 = vst.msk [vmem:[#allocation4 + $0xd0] sm:$0xff] %vm334, 0
      %3101 = vst.msk [vmem:[#allocation4 + $0xd8] sm:$0xff] %vm334, 0
      %3102 = vst.msk [vmem:[#allocation4 + $0xe0] sm:$0xff] %vm334, 0
      %3103 = vst.msk [vmem:[#allocation4 + $0xe8] sm:$0xff] %vm334, 0
      %3104 = vst.msk [vmem:[#allocation4 + $0xf0] sm:$0xff] %vm334, 0
      %3105 = vst.msk [vmem:[#allocation4 + $0xf8] sm:$0xff] %vm334, 0
      %3106 = vst.msk [vmem:[#allocation4 + $0x100] sm:$0xff] %vm334, 0
      %vm3107 = vcmask 1043456
      %v3108 = vrot.slane %v2899, 4
      %v3109 = vrot.slane %v2900, 4
      %v3110 = vsel %vm3107, %v3108, %v3109
      %v3111 = vrot.slane %v2901, 4
      %v3112 = vsel %vm3107, %v3109, %v3111
      %v3113 = vrot.slane %v2902, 4
      %v3114 = vsel %vm3107, %v3111, %v3113
      %v3115 = vrot.slane %v2903, 4
      %v3116 = vsel %vm3107, %v3113, %v3115
      %v3117 = vrot.slane %v2904, 4
      %v3118 = vsel %vm3107, %v3115, %v3117
      %v3119 = vrot.slane %v2905, 4
      %v3120 = vsel %vm3107, %v3117, %v3119
      %v3121 = vrot.slane %v2906, 4
      %v3122 = vsel %vm3107, %v3119, %v3121
      %v3123 = vrot.slane %v2907, 4
      %v3124 = vsel %vm3107, %v3121, %v3123
      %v3125 = vrot.slane %v2908, 4
      %v3126 = vsel %vm3107, %v3123, %v3125
      %v3127 = vrot.slane %v2909, 4
      %v3128 = vsel %vm3107, %v3125, %v3127
      %v3129 = vrot.slane %v2910, 4
      %v3130 = vsel %vm3107, %v3127, %v3129
      %v3131 = vrot.slane %v2911, 4
      %v3132 = vsel %vm3107, %v3129, %v3131
      %v3133 = vrot.slane %v2912, 4
      %v3134 = vsel %vm3107, %v3131, %v3133
      %v3135 = vrot.slane %v2913, 4
      %v3136 = vsel %vm3107, %v3133, %v3135
      %v3137 = vrot.slane %v2914, 4
      %v3138 = vsel %vm3107, %v3135, %v3137
      %v3139 = vrot.slane %v2915, 4
      %v3140 = vsel %vm3107, %v3137, %v3139
      %v3141 = vrot.slane %v2916, 4
      %v3142 = vsel %vm3107, %v3139, %v3141
      %v3143 = vrot.slane %v2917, 4
      %v3144 = vsel %vm3107, %v3141, %v3143
      %v3145 = vrot.slane %v2918, 4
      %v3146 = vsel %vm3107, %v3143, %v3145
      %v3147 = vrot.slane %v2919, 4
      %v3148 = vsel %vm3107, %v3145, %v3147
      %v3149 = vrot.slane %v2920, 4
      %v3150 = vsel %vm3107, %v3147, %v3149
      %v3151 = vrot.slane %v2921, 4
      %v3152 = vsel %vm3107, %v3149, %v3151
      %v3153 = vrot.slane %v2922, 4
      %v3154 = vsel %vm3107, %v3151, %v3153
      %3155 = vrot.lane.b32.xlu0 %v3108, 112
      %v3156 = vpop.permute.xlu0 %3155
      %3157 = vrot.lane.b32.xlu0 %v3110, 112
      %v3158 = vpop.permute.xlu0 %3157
      %3159 = vrot.lane.b32.xlu0 %v3112, 112
      %v3160 = vpop.permute.xlu0 %3159
      %3161 = vrot.lane.b32.xlu0 %v3114, 112
      %v3162 = vpop.permute.xlu0 %3161
      %3163 = vrot.lane.b32.xlu0 %v3116, 112
      %v3164 = vpop.permute.xlu0 %3163
      %3165 = vrot.lane.b32.xlu0 %v3118, 112
      %v3166 = vpop.permute.xlu0 %3165
      %3167 = vrot.lane.b32.xlu0 %v3120, 112
      %v3168 = vpop.permute.xlu0 %3167
      %3169 = vrot.lane.b32.xlu0 %v3122, 112
      %v3170 = vpop.permute.xlu0 %3169
      %3171 = vrot.lane.b32.xlu0 %v3124, 112
      %v3172 = vpop.permute.xlu0 %3171
      %3173 = vrot.lane.b32.xlu0 %v3126, 112
      %v3174 = vpop.permute.xlu0 %3173
      %3175 = vrot.lane.b32.xlu0 %v3128, 112
      %v3176 = vpop.permute.xlu0 %3175
      %3177 = vrot.lane.b32.xlu0 %v3130, 112
      %v3178 = vpop.permute.xlu0 %3177
      %3179 = vrot.lane.b32.xlu0 %v3132, 112
      %v3180 = vpop.permute.xlu0 %3179
      %3181 = vrot.lane.b32.xlu0 %v3134, 112
      %v3182 = vpop.permute.xlu0 %3181
      %3183 = vrot.lane.b32.xlu0 %v3136, 112
      %v3184 = vpop.permute.xlu0 %3183
      %3185 = vrot.lane.b32.xlu0 %v3138, 112
      %v3186 = vpop.permute.xlu0 %3185
      %3187 = vrot.lane.b32.xlu0 %v3140, 112
      %v3188 = vpop.permute.xlu0 %3187
      %3189 = vrot.lane.b32.xlu0 %v3142, 112
      %v3190 = vpop.permute.xlu0 %3189
      %3191 = vrot.lane.b32.xlu0 %v3144, 112
      %v3192 = vpop.permute.xlu0 %3191
      %3193 = vrot.lane.b32.xlu0 %v3146, 112
      %v3194 = vpop.permute.xlu0 %3193
      %3195 = vrot.lane.b32.xlu0 %v3148, 112
      %v3196 = vpop.permute.xlu0 %3195
      %3197 = vrot.lane.b32.xlu0 %v3150, 112
      %v3198 = vpop.permute.xlu0 %3197
      %3199 = vrot.lane.b32.xlu0 %v3152, 112
      %v3200 = vpop.permute.xlu0 %3199
      %3201 = vrot.lane.b32.xlu0 %v3154, 112
      %v3202 = vpop.permute.xlu0 %3201
      %3203 = vrot.lane.b32.xlu0 %v3153, 112
      %v3204 = vpop.permute.xlu0 %3203
      %vm3230 = vcmask 31748
      %3231 = vst.msk [vmem:[#allocation4 + $0x20] sm:$0xf0] %vm3230, %v3156
      %3232 = vst.msk [vmem:[#allocation4 + $0x28] sm:$0xff] %vm334, %v3158
      %3233 = vst.msk [vmem:[#allocation4 + $0x30] sm:$0xff] %vm334, %v3160
      %3234 = vst.msk [vmem:[#allocation4 + $0x38] sm:$0xff] %vm334, %v3162
      %3235 = vst.msk [vmem:[#allocation4 + $0x40] sm:$0xff] %vm334, %v3164
      %3236 = vst.msk [vmem:[#allocation4 + $0x48] sm:$0xff] %vm334, %v3166
      %3237 = vst.msk [vmem:[#allocation4 + $0x50] sm:$0xff] %vm334, %v3168
      %3238 = vst.msk [vmem:[#allocation4 + $0x58] sm:$0xff] %vm334, %v3170
      %3239 = vst.msk [vmem:[#allocation4 + $0x60] sm:$0xff] %vm334, %v3172
      %3240 = vst.msk [vmem:[#allocation4 + $0x68] sm:$0xff] %vm334, %v3174
      %3241 = vst.msk [vmem:[#allocation4 + $0x70] sm:$0xff] %vm334, %v3176
      %3242 = vst.msk [vmem:[#allocation4 + $0x78] sm:$0xff] %vm334, %v3178
      %3243 = vst.msk [vmem:[#allocation4 + $0x80] sm:$0xff] %vm334, %v3180
      %3244 = vst.msk [vmem:[#allocation4 + $0x88] sm:$0xff] %vm334, %v3182
      %3245 = vst.msk [vmem:[#allocation4 + $0x90] sm:$0xff] %vm334, %v3184
      %3246 = vst.msk [vmem:[#allocation4 + $0x98] sm:$0xff] %vm334, %v3186
      %3247 = vst.msk [vmem:[#allocation4 + $0xa0] sm:$0xff] %vm334, %v3188
      %3248 = vst.msk [vmem:[#allocation4 + $0xa8] sm:$0xff] %vm334, %v3190
      %3249 = vst.msk [vmem:[#allocation4 + $0xb0] sm:$0xff] %vm334, %v3192
      %3250 = vst.msk [vmem:[#allocation4 + $0xb8] sm:$0xff] %vm334, %v3194
      %3251 = vst.msk [vmem:[#allocation4 + $0xc0] sm:$0xff] %vm334, %v3196
      %3252 = vst.msk [vmem:[#allocation4 + $0xc8] sm:$0xff] %vm334, %v3198
      %3253 = vst.msk [vmem:[#allocation4 + $0xd0] sm:$0xff] %vm334, %v3200
      %3254 = vst.msk [vmem:[#allocation4 + $0xd8] sm:$0xff] %vm334, %v3202
      %vm3255 = vcmask 27648
      %3256 = vst.msk [vmem:[#allocation4 + $0xe0] sm:$0xf] %vm3255, %v3204
      %v3257 = vld [vmem:[#allocation3 + $0x8] sm:$0xf8]
      %v3258 = vld [vmem:[#allocation3 + $0x10] sm:$0xff]
      %v3259 = vld [vmem:[#allocation3 + $0x18] sm:$0xff]
      %v3260 = vld [vmem:[#allocation3 + $0x20] sm:$0xff]
      %v3261 = vld [vmem:[#allocation3 + $0x28] sm:$0xff]
      %v3262 = vld [vmem:[#allocation3 + $0x30] sm:$0xff]
      %v3263 = vld [vmem:[#allocation3 + $0x38] sm:$0xff]
      %v3264 = vld [vmem:[#allocation3 + $0x40] sm:$0xff]
      %v3265 = vld [vmem:[#allocation3 + $0x48] sm:$0xff]
      %v3266 = vld [vmem:[#allocation3 + $0x50] sm:$0xff]
      %v3267 = vld [vmem:[#allocation3 + $0x58] sm:$0xff]
      %v3268 = vld [vmem:[#allocation3 + $0x60] sm:$0xff]
      %v3269 = vld [vmem:[#allocation3 + $0x68] sm:$0xff]
      %v3270 = vld [vmem:[#allocation3 + $0x70] sm:$0xff]
      %v3271 = vld [vmem:[#allocation3 + $0x78] sm:$0xff]
      %v3272 = vld [vmem:[#allocation3 + $0x80] sm:$0xff]
      %v3273 = vld [vmem:[#allocation3 + $0x88] sm:$0xff]
      %v3274 = vld [vmem:[#allocation3 + $0x90] sm:$0xff]
      %v3275 = vld [vmem:[#allocation3 + $0x98] sm:$0xff]
      %v3276 = vld [vmem:[#allocation3 + $0xa0] sm:$0xff]
      %v3277 = vld [vmem:[#allocation3 + $0xa8] sm:$0xff]
      %v3278 = vld [vmem:[#allocation3 + $0xb0] sm:$0xff]
      %v3279 = vld [vmem:[#allocation3 + $0xb8] sm:$0xff]
      %v3280 = vld [vmem:[#allocation3 + $0xc0] sm:$0xff]
      %v3281 = vld [vmem:[#allocation3 + $0xc8] sm:$0xf]
      %v3282 = vld [vmem:[#allocation3 + $0x8] sm:$0xf0]
      %v3283 = vld [vmem:[#allocation3 + $0xc8] sm:$0x1f]
      %vm3284 = vsmask.f32 7424
      %v3286 = vshrl.u32 %v3282, 16
      %v3288 = vshll.u32 %v3282, 16
      %v3290 = vrot.slane %v3288, 1
      %v3291 = vor.u32 %v3286, %v3290
      %v3293 = vshll.u32 %v3258, 16
      %v3295 = vrot.slane %v3293, 1
      %v3296 = vsel %vm3284, %v3291, %v3295
      %v3297 = vshrl.u32 %v3258, 16
      %v3299 = vor.u32 %v3297, %v3295
      %v3301 = vshll.u32 %v3259, 16
      %v3303 = vrot.slane %v3301, 1
      %v3304 = vsel %vm3284, %v3299, %v3303
      %v3305 = vshrl.u32 %v3259, 16
      %v3307 = vor.u32 %v3305, %v3303
      %v3309 = vshll.u32 %v3260, 16
      %v3311 = vrot.slane %v3309, 1
      %v3312 = vsel %vm3284, %v3307, %v3311
      %v3313 = vshrl.u32 %v3260, 16
      %v3315 = vor.u32 %v3313, %v3311
      %v3317 = vshll.u32 %v3261, 16
      %v3319 = vrot.slane %v3317, 1
      %v3320 = vsel %vm3284, %v3315, %v3319
      %v3321 = vshrl.u32 %v3261, 16
      %v3323 = vor.u32 %v3321, %v3319
      %v3325 = vshll.u32 %v3262, 16
      %v3327 = vrot.slane %v3325, 1
      %v3328 = vsel %vm3284, %v3323, %v3327
      %v3329 = vshrl.u32 %v3262, 16
      %v3331 = vor.u32 %v3329, %v3327
      %v3333 = vshll.u32 %v3263, 16
      %v3335 = vrot.slane %v3333, 1
      %v3336 = vsel %vm3284, %v3331, %v3335
      %v3337 = vshrl.u32 %v3263, 16
      %v3339 = vor.u32 %v3337, %v3335
      %v3341 = vshll.u32 %v3264, 16
      %v3343 = vrot.slane %v3341, 1
      %v3344 = vsel %vm3284, %v3339, %v3343
      %v3345 = vshrl.u32 %v3264, 16
      %v3347 = vor.u32 %v3345, %v3343
      %v3349 = vshll.u32 %v3265, 16
      %v3351 = vrot.slane %v3349, 1
      %v3352 = vsel %vm3284, %v3347, %v3351
      %v3353 = vshrl.u32 %v3265, 16
      %v3355 = vor.u32 %v3353, %v3351
      %v3357 = vshll.u32 %v3266, 16
      %v3359 = vrot.slane %v3357, 1
      %v3360 = vsel %vm3284, %v3355, %v3359
      %v3361 = vshrl.u32 %v3266, 16
      %v3363 = vor.u32 %v3361, %v3359
      %v3365 = vshll.u32 %v3267, 16
      %v3367 = vrot.slane %v3365, 1
      %v3368 = vsel %vm3284, %v3363, %v3367
      %v3369 = vshrl.u32 %v3267, 16
      %v3371 = vor.u32 %v3369, %v3367
      %v3373 = vshll.u32 %v3268, 16
      %v3375 = vrot.slane %v3373, 1
      %v3376 = vsel %vm3284, %v3371, %v3375
      %v3377 = vshrl.u32 %v3268, 16
      %v3379 = vor.u32 %v3377, %v3375
      %v3381 = vshll.u32 %v3269, 16
      %v3383 = vrot.slane %v3381, 1
      %v3384 = vsel %vm3284, %v3379, %v3383
      %v3385 = vshrl.u32 %v3269, 16
      %v3387 = vor.u32 %v3385, %v3383
      %v3389 = vshll.u32 %v3270, 16
      %v3391 = vrot.slane %v3389, 1
      %v3392 = vsel %vm3284, %v3387, %v3391
      %v3393 = vshrl.u32 %v3270, 16
      %v3395 = vor.u32 %v3393, %v3391
      %v3397 = vshll.u32 %v3271, 16
      %v3399 = vrot.slane %v3397, 1
      %v3400 = vsel %vm3284, %v3395, %v3399
      %v3401 = vshrl.u32 %v3271, 16
      %v3403 = vor.u32 %v3401, %v3399
      %v3405 = vshll.u32 %v3272, 16
      %v3407 = vrot.slane %v3405, 1
      %v3408 = vsel %vm3284, %v3403, %v3407
      %v3409 = vshrl.u32 %v3272, 16
      %v3411 = vor.u32 %v3409, %v3407
      %v3413 = vshll.u32 %v3273, 16
      %v3415 = vrot.slane %v3413, 1
      %v3416 = vsel %vm3284, %v3411, %v3415
      %v3417 = vshrl.u32 %v3273, 16
      %v3419 = vor.u32 %v3417, %v3415
      %v3421 = vshll.u32 %v3274, 16
      %v3423 = vrot.slane %v3421, 1
      %v3424 = vsel %vm3284, %v3419, %v3423
      %v3425 = vshrl.u32 %v3274, 16
      %v3427 = vor.u32 %v3425, %v3423
      %v3429 = vshll.u32 %v3275, 16
      %v3431 = vrot.slane %v3429, 1
      %v3432 = vsel %vm3284, %v3427, %v3431
      %v3433 = vshrl.u32 %v3275, 16
      %v3435 = vor.u32 %v3433, %v3431
      %v3437 = vshll.u32 %v3276, 16
      %v3439 = vrot.slane %v3437, 1
      %v3440 = vsel %vm3284, %v3435, %v3439
      %v3441 = vshrl.u32 %v3276, 16
      %v3443 = vor.u32 %v3441, %v3439
      %v3445 = vshll.u32 %v3277, 16
      %v3447 = vrot.slane %v3445, 1
      %v3448 = vsel %vm3284, %v3443, %v3447
      %v3449 = vshrl.u32 %v3277, 16
      %v3451 = vor.u32 %v3449, %v3447
      %v3453 = vshll.u32 %v3278, 16
      %v3455 = vrot.slane %v3453, 1
      %v3456 = vsel %vm3284, %v3451, %v3455
      %v3457 = vshrl.u32 %v3278, 16
      %v3459 = vor.u32 %v3457, %v3455
      %v3461 = vshll.u32 %v3279, 16
      %v3463 = vrot.slane %v3461, 1
      %v3464 = vsel %vm3284, %v3459, %v3463
      %v3465 = vshrl.u32 %v3279, 16
      %v3467 = vor.u32 %v3465, %v3463
      %v3469 = vshll.u32 %v3280, 16
      %v3471 = vrot.slane %v3469, 1
      %v3472 = vsel %vm3284, %v3467, %v3471
      %v3473 = vshrl.u32 %v3280, 16
      %v3475 = vor.u32 %v3473, %v3471
      %v3477 = vshll.u32 %v3281, 16
      %v3479 = vrot.slane %v3477, 1
      %v3480 = vsel %vm3284, %v3475, %v3479
      %v3481 = vshrl.u32 %v3281, 16
      %v3483 = vor.u32 %v3481, %v3479
      %3484 = vrot.lane.b32.xlu0 %v3296, 8
      %v3485 = vpop.permute.xlu0 %3484
      %3486 = vrot.lane.b32.xlu0 %v3304, 8
      %v3487 = vpop.permute.xlu0 %3486
      %3488 = vrot.lane.b32.xlu0 %v3312, 8
      %v3489 = vpop.permute.xlu0 %3488
      %3490 = vrot.lane.b32.xlu0 %v3320, 8
      %v3491 = vpop.permute.xlu0 %3490
      %3492 = vrot.lane.b32.xlu0 %v3328, 8
      %v3493 = vpop.permute.xlu0 %3492
      %3494 = vrot.lane.b32.xlu0 %v3336, 8
      %v3495 = vpop.permute.xlu0 %3494
      %3496 = vrot.lane.b32.xlu0 %v3344, 8
      %v3497 = vpop.permute.xlu0 %3496
      %3498 = vrot.lane.b32.xlu0 %v3352, 8
      %v3499 = vpop.permute.xlu0 %3498
      %3500 = vrot.lane.b32.xlu0 %v3360, 8
      %v3501 = vpop.permute.xlu0 %3500
      %3502 = vrot.lane.b32.xlu0 %v3368, 8
      %v3503 = vpop.permute.xlu0 %3502
      %3504 = vrot.lane.b32.xlu0 %v3376, 8
      %v3505 = vpop.permute.xlu0 %3504
      %3506 = vrot.lane.b32.xlu0 %v3384, 8
      %v3507 = vpop.permute.xlu0 %3506
      %3508 = vrot.lane.b32.xlu0 %v3392, 8
      %v3509 = vpop.permute.xlu0 %3508
      %3510 = vrot.lane.b32.xlu0 %v3400, 8
      %v3511 = vpop.permute.xlu0 %3510
      %3512 = vrot.lane.b32.xlu0 %v3408, 8
      %v3513 = vpop.permute.xlu0 %3512
      %3514 = vrot.lane.b32.xlu0 %v3416, 8
      %v3515 = vpop.permute.xlu0 %3514
      %3516 = vrot.lane.b32.xlu0 %v3424, 8
      %v3517 = vpop.permute.xlu0 %3516
      %3518 = vrot.lane.b32.xlu0 %v3432, 8
      %v3519 = vpop.permute.xlu0 %3518
      %3520 = vrot.lane.b32.xlu0 %v3440, 8
      %v3521 = vpop.permute.xlu0 %3520
      %3522 = vrot.lane.b32.xlu0 %v3448, 8
      %v3523 = vpop.permute.xlu0 %3522
      %3524 = vrot.lane.b32.xlu0 %v3456, 8
      %v3525 = vpop.permute.xlu0 %3524
      %3526 = vrot.lane.b32.xlu0 %v3464, 8
      %v3527 = vpop.permute.xlu0 %3526
      %3528 = vrot.lane.b32.xlu0 %v3472, 8
      %v3529 = vpop.permute.xlu0 %3528
      %3530 = vrot.lane.b32.xlu0 %v3480, 8
      %v3531 = vpop.permute.xlu0 %3530
      %3532 = vrot.lane.b32.xlu0 %v3483, 8
      %v3533 = vpop.permute.xlu0 %3532
      %vm3559 = vcmask 1046528
      %v3560 = vrot.slane %v3282, 1
      %v3561 = vrot.slane %v3258, 1
      %v3562 = vsel %vm3559, %v3560, %v3561
      %v3563 = vrot.slane %v3259, 1
      %v3564 = vsel %vm3559, %v3561, %v3563
      %v3565 = vrot.slane %v3260, 1
      %v3566 = vsel %vm3559, %v3563, %v3565
      %v3567 = vrot.slane %v3261, 1
      %v3568 = vsel %vm3559, %v3565, %v3567
      %v3569 = vrot.slane %v3262, 1
      %v3570 = vsel %vm3559, %v3567, %v3569
      %v3571 = vrot.slane %v3263, 1
      %v3572 = vsel %vm3559, %v3569, %v3571
      %v3573 = vrot.slane %v3264, 1
      %v3574 = vsel %vm3559, %v3571, %v3573
      %v3575 = vrot.slane %v3265, 1
      %v3576 = vsel %vm3559, %v3573, %v3575
      %v3577 = vrot.slane %v3266, 1
      %v3578 = vsel %vm3559, %v3575, %v3577
      %v3579 = vrot.slane %v3267, 1
      %v3580 = vsel %vm3559, %v3577, %v3579
      %v3581 = vrot.slane %v3268, 1
      %v3582 = vsel %vm3559, %v3579, %v3581
      %v3583 = vrot.slane %v3269, 1
      %v3584 = vsel %vm3559, %v3581, %v3583
      %v3585 = vrot.slane %v3270, 1
      %v3586 = vsel %vm3559, %v3583, %v3585
      %v3587 = vrot.slane %v3271, 1
      %v3588 = vsel %vm3559, %v3585, %v3587
      %v3589 = vrot.slane %v3272, 1
      %v3590 = vsel %vm3559, %v3587, %v3589
      %v3591 = vrot.slane %v3273, 1
      %v3592 = vsel %vm3559, %v3589, %v3591
      %v3593 = vrot.slane %v3274, 1
      %v3594 = vsel %vm3559, %v3591, %v3593
      %v3595 = vrot.slane %v3275, 1
      %v3596 = vsel %vm3559, %v3593, %v3595
      %v3597 = vrot.slane %v3276, 1
      %v3598 = vsel %vm3559, %v3595, %v3597
      %v3599 = vrot.slane %v3277, 1
      %v3600 = vsel %vm3559, %v3597, %v3599
      %v3601 = vrot.slane %v3278, 1
      %v3602 = vsel %vm3559, %v3599, %v3601
      %v3603 = vrot.slane %v3279, 1
      %v3604 = vsel %vm3559, %v3601, %v3603
      %v3605 = vrot.slane %v3280, 1
      %v3606 = vsel %vm3559, %v3603, %v3605
      %v3607 = vrot.slane %v3283, 1
      %v3608 = vsel %vm3559, %v3605, %v3607
      %3609 = vrot.lane.b32.xlu0 %v3562, 16
      %v3610 = vpop.permute.xlu0 %3609
      %3611 = vrot.lane.b32.xlu0 %v3564, 16
      %v3612 = vpop.permute.xlu0 %3611
      %3613 = vrot.lane.b32.xlu0 %v3566, 16
      %v3614 = vpop.permute.xlu0 %3613
      %3615 = vrot.lane.b32.xlu0 %v3568, 16
      %v3616 = vpop.permute.xlu0 %3615
      %3617 = vrot.lane.b32.xlu0 %v3570, 16
      %v3618 = vpop.permute.xlu0 %3617
      %3619 = vrot.lane.b32.xlu0 %v3572, 16
      %v3620 = vpop.permute.xlu0 %3619
      %3621 = vrot.lane.b32.xlu0 %v3574, 16
      %v3622 = vpop.permute.xlu0 %3621
      %3623 = vrot.lane.b32.xlu0 %v3576, 16
      %v3624 = vpop.permute.xlu0 %3623
      %3625 = vrot.lane.b32.xlu0 %v3578, 16
      %v3626 = vpop.permute.xlu0 %3625
      %3627 = vrot.lane.b32.xlu0 %v3580, 16
      %v3628 = vpop.permute.xlu0 %3627
      %3629 = vrot.lane.b32.xlu0 %v3582, 16
      %v3630 = vpop.permute.xlu0 %3629
      %3631 = vrot.lane.b32.xlu0 %v3584, 16
      %v3632 = vpop.permute.xlu0 %3631
      %3633 = vrot.lane.b32.xlu0 %v3586, 16
      %v3634 = vpop.permute.xlu0 %3633
      %3635 = vrot.lane.b32.xlu0 %v3588, 16
      %v3636 = vpop.permute.xlu0 %3635
      %3637 = vrot.lane.b32.xlu0 %v3590, 16
      %v3638 = vpop.permute.xlu0 %3637
      %3639 = vrot.lane.b32.xlu0 %v3592, 16
      %v3640 = vpop.permute.xlu0 %3639
      %3641 = vrot.lane.b32.xlu0 %v3594, 16
      %v3642 = vpop.permute.xlu0 %3641
      %3643 = vrot.lane.b32.xlu0 %v3596, 16
      %v3644 = vpop.permute.xlu0 %3643
      %3645 = vrot.lane.b32.xlu0 %v3598, 16
      %v3646 = vpop.permute.xlu0 %3645
      %3647 = vrot.lane.b32.xlu0 %v3600, 16
      %v3648 = vpop.permute.xlu0 %3647
      %3649 = vrot.lane.b32.xlu0 %v3602, 16
      %v3650 = vpop.permute.xlu0 %3649
      %3651 = vrot.lane.b32.xlu0 %v3604, 16
      %v3652 = vpop.permute.xlu0 %3651
      %3653 = vrot.lane.b32.xlu0 %v3606, 16
      %v3654 = vpop.permute.xlu0 %3653
      %3655 = vrot.lane.b32.xlu0 %v3608, 16
      %v3656 = vpop.permute.xlu0 %3655
      %3657 = vrot.lane.b32.xlu0 %v3607, 16
      %v3658 = vpop.permute.xlu0 %3657
      %v3661 = vsel %vm2923, %v3257, %v3485
      %v3663 = vsel %vm2923, %v3258, %v3487
      %v3665 = vsel %vm2923, %v3259, %v3489
      %v3667 = vsel %vm2923, %v3260, %v3491
      %v3669 = vsel %vm2923, %v3261, %v3493
      %v3671 = vsel %vm2923, %v3262, %v3495
      %v3673 = vsel %vm2923, %v3263, %v3497
      %v3675 = vsel %vm2923, %v3264, %v3499
      %v3677 = vsel %vm2923, %v3265, %v3501
      %v3679 = vsel %vm2923, %v3266, %v3503
      %v3681 = vsel %vm2923, %v3267, %v3505
      %v3683 = vsel %vm2923, %v3268, %v3507
      %v3685 = vsel %vm2923, %v3269, %v3509
      %v3687 = vsel %vm2923, %v3270, %v3511
      %v3689 = vsel %vm2923, %v3271, %v3513
      %v3691 = vsel %vm2923, %v3272, %v3515
      %v3693 = vsel %vm2923, %v3273, %v3517
      %v3695 = vsel %vm2923, %v3274, %v3519
      %v3697 = vsel %vm2923, %v3275, %v3521
      %v3699 = vsel %vm2923, %v3276, %v3523
      %v3701 = vsel %vm2923, %v3277, %v3525
      %v3703 = vsel %vm2923, %v3278, %v3527
      %v3705 = vsel %vm2923, %v3279, %v3529
      %v3707 = vsel %vm2923, %v3280, %v3531
      %v3709 = vsel %vm2923, %v3281, %v3533
      %vm3710 = vcmask 130048
      %v3712 = vsel %vm3710, %v3661, %v3610
      %v3714 = vsel %vm3710, %v3663, %v3612
      %v3716 = vsel %vm3710, %v3665, %v3614
      %v3718 = vsel %vm3710, %v3667, %v3616
      %v3720 = vsel %vm3710, %v3669, %v3618
      %v3722 = vsel %vm3710, %v3671, %v3620
      %v3724 = vsel %vm3710, %v3673, %v3622
      %v3726 = vsel %vm3710, %v3675, %v3624
      %v3728 = vsel %vm3710, %v3677, %v3626
      %v3730 = vsel %vm3710, %v3679, %v3628
      %v3732 = vsel %vm3710, %v3681, %v3630
      %v3734 = vsel %vm3710, %v3683, %v3632
      %v3736 = vsel %vm3710, %v3685, %v3634
      %v3738 = vsel %vm3710, %v3687, %v3636
      %v3740 = vsel %vm3710, %v3689, %v3638
      %v3742 = vsel %vm3710, %v3691, %v3640
      %v3744 = vsel %vm3710, %v3693, %v3642
      %v3746 = vsel %vm3710, %v3695, %v3644
      %v3748 = vsel %vm3710, %v3697, %v3646
      %v3750 = vsel %vm3710, %v3699, %v3648
      %v3752 = vsel %vm3710, %v3701, %v3650
      %v3754 = vsel %vm3710, %v3703, %v3652
      %v3756 = vsel %vm3710, %v3705, %v3654
      %v3758 = vsel %vm3710, %v3707, %v3656
      %v3760 = vsel %vm3710, %v3709, %v3658
      %v3761 = vld [vmem:[%s3] sm:$0xf]
      %v3762 = vld [vmem:[%s3 + $0x4] sm:$0xf]
      %v3763 = vld [vmem:[%s3 + $0x8] sm:$0xf]
      %v3764 = vld [vmem:[#allocation3 + $0x10] sm:$0x80]
      %v3765 = vld [vmem:[#allocation3 + $0xc8] sm:$0xff]
      %v3766 = vld [vmem:[#allocation3 + $0xd0] sm:$0xff]
      %v3767 = vld [vmem:[#allocation3 + $0xd8] sm:$0x1]
      %v3769 = vshll.u32 %v3765, 16
      %v3771 = vrot.slane %v3769, 1
      %v3772 = vsel %vm3284, %v3475, %v3771
      %v3773 = vshrl.u32 %v3765, 16
      %v3775 = vor.u32 %v3773, %v3771
      %v3777 = vshll.u32 %v3766, 16
      %v3779 = vrot.slane %v3777, 1
      %v3780 = vsel %vm3284, %v3775, %v3779
      %v3781 = vshrl.u32 %v3766, 16
      %v3783 = vor.u32 %v3781, %v3779
      %3784 = vrot.lane.b32.xlu0 %v3303, 8
      %v3785 = vpop.permute.xlu0 %3784
      %3786 = vrot.lane.b32.xlu0 %v3772, 8
      %v3787 = vpop.permute.xlu0 %3786
      %3788 = vrot.lane.b32.xlu0 %v3780, 8
      %v3789 = vpop.permute.xlu0 %3788
      %3790 = vrot.lane.b32.xlu0 %v3783, 8
      %v3791 = vpop.permute.xlu0 %3790
      %v3795 = vrot.slane %v3765, 1
      %v3796 = vsel %vm3559, %v3605, %v3795
      %v3797 = vrot.slane %v3766, 1
      %v3798 = vsel %vm3559, %v3795, %v3797
      %v3799 = vrot.slane %v3767, 1
      %v3800 = vsel %vm3559, %v3797, %v3799
      %3801 = vrot.lane.b32.xlu0 %v3563, 16
      %v3802 = vpop.permute.xlu0 %3801
      %3803 = vrot.lane.b32.xlu0 %v3796, 16
      %v3804 = vpop.permute.xlu0 %3803
      %3805 = vrot.lane.b32.xlu0 %v3798, 16
      %v3806 = vpop.permute.xlu0 %3805
      %3807 = vrot.lane.b32.xlu0 %v3800, 16
      %v3808 = vpop.permute.xlu0 %3807
      %v3811 = vsel %vm2923, %v3764, %v3785
      %v3813 = vsel %vm2923, %v3280, %v3787
      %v3815 = vsel %vm2923, %v3765, %v3789
      %v3817 = vsel %vm2923, %v3766, %v3791
      %v3819 = vsel %vm3710, %v3811, %v3802
      %v3821 = vsel %vm3710, %v3813, %v3804
      %v3823 = vsel %vm3710, %v3815, %v3806
      %v3825 = vsel %vm3710, %v3817, %v3808
      %s3826 = scalar_lea.vmem %s3, 12
      %v3827 = vld [vmem:[%s3826] sm:$0xf]
      %v3828 = vld [vmem:[%s3826 + $0x4] sm:$0xf]
      %v3829 = vld [vmem:[%s3826 + $0x8] sm:$0xf]
      %vm3830 = vsmask.f32 256
      %v3831 = vshrl.u32 %v3819, 16
      %v3833 = vrot.slane %v3831, 7
      %v3834 = vshrl.u32 %v3716, 16
      %v3836 = vrot.slane %v3834, 7
      %v3837 = vshll.u32 %v3716, 16
      %v3839 = vor.u32 %v3836, %v3837
      %v3840 = vsel %vm3830, %v3833, %v3839
      %v3841 = vshrl.u32 %v3718, 16
      %v3843 = vrot.slane %v3841, 7
      %v3844 = vshll.u32 %v3718, 16
      %v3846 = vor.u32 %v3843, %v3844
      %v3847 = vsel %vm3830, %v3836, %v3846
      %v3848 = vshrl.u32 %v3720, 16
      %v3850 = vrot.slane %v3848, 7
      %v3851 = vshll.u32 %v3720, 16
      %v3853 = vor.u32 %v3850, %v3851
      %v3854 = vsel %vm3830, %v3843, %v3853
      %v3855 = vshrl.u32 %v3722, 16
      %v3857 = vrot.slane %v3855, 7
      %v3858 = vshll.u32 %v3722, 16
      %v3860 = vor.u32 %v3857, %v3858
      %v3861 = vsel %vm3830, %v3850, %v3860
      %v3862 = vshrl.u32 %v3724, 16
      %v3864 = vrot.slane %v3862, 7
      %v3865 = vshll.u32 %v3724, 16
      %v3867 = vor.u32 %v3864, %v3865
      %v3868 = vsel %vm3830, %v3857, %v3867
      %v3869 = vshrl.u32 %v3726, 16
      %v3871 = vrot.slane %v3869, 7
      %v3872 = vshll.u32 %v3726, 16
      %v3874 = vor.u32 %v3871, %v3872
      %v3875 = vsel %vm3830, %v3864, %v3874
      %v3876 = vshrl.u32 %v3728, 16
      %v3878 = vrot.slane %v3876, 7
      %v3879 = vshll.u32 %v3728, 16
      %v3881 = vor.u32 %v3878, %v3879
      %v3882 = vsel %vm3830, %v3871, %v3881
      %v3883 = vshrl.u32 %v3730, 16
      %v3885 = vrot.slane %v3883, 7
      %v3886 = vshll.u32 %v3730, 16
      %v3888 = vor.u32 %v3885, %v3886
      %v3889 = vsel %vm3830, %v3878, %v3888
      %v3890 = vshrl.u32 %v3732, 16
      %v3892 = vrot.slane %v3890, 7
      %v3893 = vshll.u32 %v3732, 16
      %v3895 = vor.u32 %v3892, %v3893
      %v3896 = vsel %vm3830, %v3885, %v3895
      %v3897 = vshrl.u32 %v3734, 16
      %v3899 = vrot.slane %v3897, 7
      %v3900 = vshll.u32 %v3734, 16
      %v3902 = vor.u32 %v3899, %v3900
      %v3903 = vsel %vm3830, %v3892, %v3902
      %v3904 = vshrl.u32 %v3736, 16
      %v3906 = vrot.slane %v3904, 7
      %v3907 = vshll.u32 %v3736, 16
      %v3909 = vor.u32 %v3906, %v3907
      %v3910 = vsel %vm3830, %v3899, %v3909
      %v3911 = vshrl.u32 %v3738, 16
      %v3913 = vrot.slane %v3911, 7
      %v3914 = vshll.u32 %v3738, 16
      %v3916 = vor.u32 %v3913, %v3914
      %v3917 = vsel %vm3830, %v3906, %v3916
      %v3918 = vshrl.u32 %v3740, 16
      %v3920 = vrot.slane %v3918, 7
      %v3921 = vshll.u32 %v3740, 16
      %v3923 = vor.u32 %v3920, %v3921
      %v3924 = vsel %vm3830, %v3913, %v3923
      %v3925 = vshrl.u32 %v3742, 16
      %v3927 = vrot.slane %v3925, 7
      %v3928 = vshll.u32 %v3742, 16
      %v3930 = vor.u32 %v3927, %v3928
      %v3931 = vsel %vm3830, %v3920, %v3930
      %v3932 = vshrl.u32 %v3744, 16
      %v3934 = vrot.slane %v3932, 7
      %v3935 = vshll.u32 %v3744, 16
      %v3937 = vor.u32 %v3934, %v3935
      %v3938 = vsel %vm3830, %v3927, %v3937
      %v3939 = vshrl.u32 %v3746, 16
      %v3941 = vrot.slane %v3939, 7
      %v3942 = vshll.u32 %v3746, 16
      %v3944 = vor.u32 %v3941, %v3942
      %v3945 = vsel %vm3830, %v3934, %v3944
      %v3946 = vshrl.u32 %v3748, 16
      %v3948 = vrot.slane %v3946, 7
      %v3949 = vshll.u32 %v3748, 16
      %v3951 = vor.u32 %v3948, %v3949
      %v3952 = vsel %vm3830, %v3941, %v3951
      %v3953 = vshrl.u32 %v3750, 16
      %v3955 = vrot.slane %v3953, 7
      %v3956 = vshll.u32 %v3750, 16
      %v3958 = vor.u32 %v3955, %v3956
      %v3959 = vsel %vm3830, %v3948, %v3958
      %v3960 = vshrl.u32 %v3752, 16
      %v3962 = vrot.slane %v3960, 7
      %v3963 = vshll.u32 %v3752, 16
      %v3965 = vor.u32 %v3962, %v3963
      %v3966 = vsel %vm3830, %v3955, %v3965
      %v3967 = vshrl.u32 %v3754, 16
      %v3969 = vrot.slane %v3967, 7
      %v3970 = vshll.u32 %v3754, 16
      %v3972 = vor.u32 %v3969, %v3970
      %v3973 = vsel %vm3830, %v3962, %v3972
      %v3974 = vshrl.u32 %v3756, 16
      %v3976 = vrot.slane %v3974, 7
      %v3977 = vshll.u32 %v3756, 16
      %v3979 = vor.u32 %v3976, %v3977
      %v3980 = vsel %vm3830, %v3969, %v3979
      %v3981 = vshrl.u32 %v3821, 16
      %v3983 = vrot.slane %v3981, 7
      %v3984 = vshll.u32 %v3821, 16
      %v3986 = vor.u32 %v3983, %v3984
      %v3987 = vsel %vm3830, %v3976, %v3986
      %v3988 = vshrl.u32 %v3823, 16
      %v3990 = vrot.slane %v3988, 7
      %v3991 = vshll.u32 %v3823, 16
      %v3993 = vor.u32 %v3990, %v3991
      %v3994 = vsel %vm3830, %v3983, %v3993
      %v3995 = vshrl.u32 %v3825, 16
      %v3997 = vrot.slane %v3995, 7
      %v3998 = vshll.u32 %v3825, 16
      %v4000 = vor.u32 %v3997, %v3998
      %v4001 = vsel %vm3830, %v3990, %v4000
      %v4005 = vunpack.c.l.b16 %v3827
      %v4006 = vunpack.c.l.b16 %v3828
      %v4007 = vunpack.c.l.b16 %v3829
      %v4008 = vpack.c.b16 %v4006, %v4005
      %v4009 = vpack.c.b16 %v4007, %v4007
      %vm4011 = vcmask 195584
      %v4013 = vsel %vm4011, %v3840, 0
      %v4016 = vsel %vm4011, %v3847, 0
      %v4019 = vsel %vm4011, %v3854, 0
      %v4022 = vsel %vm4011, %v3861, 0
      %v4025 = vsel %vm4011, %v3868, 0
      %v4028 = vsel %vm4011, %v3875, 0
      %v4031 = vsel %vm4011, %v3882, 0
      %v4034 = vsel %vm4011, %v3889, 0
      %v4037 = vsel %vm4011, %v3896, 0
      %v4040 = vsel %vm4011, %v3903, 0
      %v4043 = vsel %vm4011, %v3910, 0
      %v4046 = vsel %vm4011, %v3917, 0
      %v4049 = vsel %vm4011, %v3924, 0
      %v4052 = vsel %vm4011, %v3931, 0
      %v4055 = vsel %vm4011, %v3938, 0
      %v4058 = vsel %vm4011, %v3945, 0
      %v4061 = vsel %vm4011, %v3952, 0
      %v4064 = vsel %vm4011, %v3959, 0
      %v4067 = vsel %vm4011, %v3966, 0
      %v4070 = vsel %vm4011, %v3973, 0
      %v4073 = vsel %vm4011, %v3980, 0
      %v4076 = vsel %vm4011, %v3987, 0
      %v4079 = vsel %vm4011, %v3994, 0
      %v4082 = vsel %vm4011, %v4001, 0
      %vm4084 = vcmask 1043456
      %v4086 = vsel %vm4084, %v4009, 0
      %4088 = vmatprep.subr.bf16.mxu0 0
      %4089 = vmatpush1.bf16.msra.mxu0 %v4008
      %4090 = vmatprep.subr.bf16.mxu0 0
      %4091 = vmatpush1.bf16.msra.mxu0 %v4086
      %4092 = vmatprep.subr.bf16.mxu0 0
      %4093 = vmatpush1.bf16.msra.mxu0 0
      %4094 = vmatprep.subr.bf16.mxu0 0
      %4095 = vmatpush1.bf16.msra.mxu0 0
      %4096 = vmatprep.subr.bf16.mxu0 0
      %4097 = vmatpush1.bf16.msra.mxu0 0
      %4098 = vmatprep.subr.bf16.mxu0 0
      %4099 = vmatpush1.bf16.msra.mxu0 0
      %4100 = vmatprep.subr.bf16.mxu0 0
      %4101 = vmatpush1.bf16.msra.mxu0 0
      %4102 = vmatprep.subr.bf16.mxu0 0
      %4103 = vmatpush1.bf16.msra.mxu0 0
      %4104 = vmatprep.subr.bf16.mxu0 0
      %4105 = vmatpush1.bf16.msra.mxu0 0
      %4106 = vmatprep.subr.bf16.mxu0 0
      %4107 = vmatpush1.bf16.msra.mxu0 0
      %4108 = vmatprep.subr.bf16.mxu0 0
      %4109 = vmatpush1.bf16.msra.mxu0 0
      %4110 = vmatprep.subr.bf16.mxu0 0
      %4111 = vmatpush1.bf16.msra.mxu0 0
      %4112 = vmatprep.subr.bf16.mxu0 0
      %4113 = vmatpush1.bf16.msra.mxu0 0
      %4114 = vmatprep.subr.bf16.mxu0 0
      %4115 = vmatpush1.bf16.msra.mxu0 0
      %4116 = vmatprep.subr.bf16.mxu0 0
      %4117 = vmatpush1.bf16.msra.mxu0 0
      %4118 = vmatprep.subr.bf16.mxu0 0
      %4119 = vmatpush1.bf16.msra.mxu0 0
      %4120 = vmatprep.mubr.bf16.mxu0 0
      %4121 = vmatmul.mubr.bf16.gmra.mrb[0].mxu0 %v4013
      %v4122 = vpop.f32.mrb[0].mxu0
      %v4123 = vadd.f32 0.0, %v4122
      %v4124 = vpop.f32.mrb[0].mxu0
      %v4125 = vpop.f32.mrb[0].mxu0
      %v4126 = vadd.f32 0.0, %v4125
      %v4127 = vpop.f32.mrb[0].mxu0
      %4128 = vmatprep.mubr.bf16.mxu0 0
      %4129 = vmatmul.mubr.bf16.gmra.mrb[0].mxu0 %v4016
      %v4130 = vpop.f32.mrb[0].mxu0
      %v4131 = vpop.f32.mrb[0].mxu0
      %v4132 = vpop.f32.mrb[0].mxu0
      %v4133 = vadd.f32 0.0, %v4132
      %v4134 = vpop.f32.mrb[0].mxu0
      %4135 = vmatprep.mubr.bf16.mxu0 0
      %4136 = vmatmul.mubr.bf16.gmra.mrb[0].mxu0 %v4019
      %v4137 = vpop.f32.mrb[0].mxu0
      %v4138 = vadd.f32 0.0, %v4137
      %v4139 = vpop.f32.mrb[0].mxu0
      %v4140 = vpop.f32.mrb[0].mxu0
      %v4141 = vpop.f32.mrb[0].mxu0
      %4142 = vmatprep.mubr.bf16.mxu0 0
      %4143 = vmatmul.mubr.bf16.gmra.mrb[0].mxu0 %v4022
      %v4144 = vpop.f32.mrb[0].mxu0
      %v4145 = vadd.f32 0.0, %v4144
      %v4146 = vpop.f32.mrb[0].mxu0
      %v4147 = vpop.f32.mrb[0].mxu0
      %v4148 = vadd.f32 0.0, %v4147
      %v4149 = vpop.f32.mrb[0].mxu0
      %4150 = vmatprep.mubr.bf16.mxu0 0
      %4151 = vmatmul.mubr.bf16.gmra.mrb[0].mxu0 %v4025
      %v4152 = vpop.f32.mrb[0].mxu0
      %v4153 = vpop.f32.mrb[0].mxu0
      %v4154 = vpop.f32.mrb[0].mxu0
      %v4155 = vadd.f32 0.0, %v4154
      %v4156 = vpop.f32.mrb[0].mxu0
      %4157 = vmatprep.mubr.bf16.mxu0 0
      %4158 = vmatmul.mubr.bf16.gmra.mrb[0].mxu0 %v4028
      %v4159 = vpop.f32.mrb[0].mxu0
      %v4160 = vadd.f32 0.0, %v4159
      %v4161 = vpop.f32.mrb[0].mxu0
      %v4162 = vpop.f32.mrb[0].mxu0
      %v4163 = vpop.f32.mrb[0].mxu0
      %4164 = vmatprep.mubr.bf16.mxu0 0
      %4165 = vmatmul.mubr.bf16.gmra.mrb[0].mxu0 %v4031
      %v4166 = vpop.f32.mrb[0].mxu0
      %v4167 = vadd.f32 0.0, %v4166
      %v4168 = vpop.f32.mrb[0].mxu0
      %v4169 = vpop.f32.mrb[0].mxu0
      %v4170 = vadd.f32 0.0, %v4169
      %v4171 = vpop.f32.mrb[0].mxu0
      %4172 = vmatprep.mubr.bf16.mxu0 0
      %4173 = vmatmul.mubr.bf16.gmra.mrb[0].mxu0 %v4034
      %v4174 = vpop.f32.mrb[0].mxu0
      %v4175 = vpop.f32.mrb[0].mxu0
      %v4176 = vpop.f32.mrb[0].mxu0
      %v4177 = vadd.f32 0.0, %v4176
      %v4178 = vpop.f32.mrb[0].mxu0
      %4179 = vmatprep.mubr.bf16.mxu0 0
      %4180 = vmatmul.mubr.bf16.gmra.mrb[0].mxu0 %v4037
      %v4181 = vpop.f32.mrb[0].mxu0
      %v4182 = vadd.f32 0.0, %v4181
      %v4183 = vpop.f32.mrb[0].mxu0
      %v4184 = vpop.f32.mrb[0].mxu0
      %v4185 = vpop.f32.mrb[0].mxu0
      %4186 = vmatprep.mubr.bf16.mxu0 0
      %4187 = vmatmul.mubr.bf16.gmra.mrb[0].mxu0 %v4040
      %v4188 = vpop.f32.mrb[0].mxu0
      %v4189 = vadd.f32 0.0, %v4188
      %v4190 = vpop.f32.mrb[0].mxu0
      %v4191 = vpop.f32.mrb[0].mxu0
      %v4192 = vadd.f32 0.0, %v4191
      %v4193 = vpop.f32.mrb[0].mxu0
      %4194 = vmatprep.mubr.bf16.mxu0 0
      %4195 = vmatmul.mubr.bf16.gmra.mrb[0].mxu0 %v4043
      %v4196 = vpop.f32.mrb[0].mxu0
      %v4197 = vpop.f32.mrb[0].mxu0
      %v4198 = vpop.f32.mrb[0].mxu0
      %v4199 = vadd.f32 0.0, %v4198
      %v4200 = vpop.f32.mrb[0].mxu0
      %4201 = vmatprep.mubr.bf16.mxu0 0
      %4202 = vmatmul.mubr.bf16.gmra.mrb[0].mxu0 %v4046
      %v4203 = vpop.f32.mrb[0].mxu0
      %v4204 = vadd.f32 0.0, %v4203
      %v4205 = vpop.f32.mrb[0].mxu0
      %v4206 = vpop.f32.mrb[0].mxu0
      %v4207 = vpop.f32.mrb[0].mxu0
      %4208 = vmatprep.mubr.bf16.mxu0 0
      %4209 = vmatmul.mubr.bf16.gmra.mrb[0].mxu0 %v4049
      %v4210 = vpop.f32.mrb[0].mxu0
      %v4211 = vadd.f32 0.0, %v4210
      %v4212 = vpop.f32.mrb[0].mxu0
      %v4213 = vpop.f32.mrb[0].mxu0
      %v4214 = vadd.f32 0.0, %v4213
      %v4215 = vpop.f32.mrb[0].mxu0
      %4216 = vmatprep.mubr.bf16.mxu0 0
      %4217 = vmatmul.mubr.bf16.gmra.mrb[0].mxu0 %v4052
      %v4218 = vpop.f32.mrb[0].mxu0
      %v4219 = vpop.f32.mrb[0].mxu0
      %v4220 = vpop.f32.mrb[0].mxu0
      %v4221 = vadd.f32 0.0, %v4220
      %v4222 = vpop.f32.mrb[0].mxu0
      %4223 = vmatprep.mubr.bf16.mxu0 0
      %4224 = vmatmul.mubr.bf16.gmra.mrb[0].mxu0 %v4055
      %v4225 = vpop.f32.mrb[0].mxu0
      %v4226 = vadd.f32 0.0, %v4225
      %v4227 = vpop.f32.mrb[0].mxu0
      %v4228 = vpop.f32.mrb[0].mxu0
      %v4229 = vpop.f32.mrb[0].mxu0
      %4230 = vmatprep.mubr.bf16.mxu0 0
      %4231 = vmatmul.mubr.bf16.gmra.mrb[0].mxu0 %v4058
      %v4232 = vpop.f32.mrb[0].mxu0
      %v4233 = vadd.f32 0.0, %v4232
      %v4234 = vpop.f32.mrb[0].mxu0
      %v4235 = vpop.f32.mrb[0].mxu0
      %v4236 = vadd.f32 0.0, %v4235
      %v4237 = vpop.f32.mrb[0].mxu0
      %4238 = vmatprep.mubr.bf16.mxu0 0
      %4239 = vmatmul.mubr.bf16.gmra.mrb[0].mxu0 %v4061
      %v4240 = vpop.f32.mrb[0].mxu0
      %v4241 = vpop.f32.mrb[0].mxu0
      %v4242 = vpop.f32.mrb[0].mxu0
      %v4243 = vadd.f32 0.0, %v4242
      %v4244 = vpop.f32.mrb[0].mxu0
      %4245 = vmatprep.mubr.bf16.mxu0 0
      %4246 = vmatmul.mubr.bf16.gmra.mrb[0].mxu0 %v4064
      %v4247 = vpop.f32.mrb[0].mxu0
      %v4248 = vadd.f32 0.0, %v4247
      %v4249 = vpop.f32.mrb[0].mxu0
      %v4250 = vpop.f32.mrb[0].mxu0
      %v4251 = vpop.f32.mrb[0].mxu0
      %4252 = vmatprep.mubr.bf16.mxu0 0
      %4253 = vmatmul.mubr.bf16.gmra.mrb[0].mxu0 %v4067
      %v4254 = vpop.f32.mrb[0].mxu0
      %v4255 = vadd.f32 0.0, %v4254
      %v4256 = vpop.f32.mrb[0].mxu0
      %v4257 = vpop.f32.mrb[0].mxu0
      %v4258 = vadd.f32 0.0, %v4257
      %v4259 = vpop.f32.mrb[0].mxu0
      %4260 = vmatprep.mubr.bf16.mxu0 0
      %4261 = vmatmul.mubr.bf16.gmra.mrb[0].mxu0 %v4070
      %v4262 = vpop.f32.mrb[0].mxu0
      %v4263 = vpop.f32.mrb[0].mxu0
      %v4264 = vpop.f32.mrb[0].mxu0
      %v4265 = vadd.f32 0.0, %v4264
      %v4266 = vpop.f32.mrb[0].mxu0
      %4267 = vmatprep.mubr.bf16.mxu0 0
      %4268 = vmatmul.mubr.bf16.gmra.mrb[0].mxu0 %v4073
      %v4269 = vpop.f32.mrb[0].mxu0
      %v4270 = vadd.f32 0.0, %v4269
      %v4271 = vpop.f32.mrb[0].mxu0
      %v4272 = vpop.f32.mrb[0].mxu0
      %v4273 = vpop.f32.mrb[0].mxu0
      %4274 = vmatprep.mubr.bf16.mxu0 0
      %4275 = vmatmul.mubr.bf16.gmra.mrb[0].mxu0 %v4076
      %v4276 = vpop.f32.mrb[0].mxu0
      %v4277 = vadd.f32 0.0, %v4276
      %v4278 = vpop.f32.mrb[0].mxu0
      %v4279 = vpop.f32.mrb[0].mxu0
      %v4280 = vadd.f32 0.0, %v4279
      %v4281 = vpop.f32.mrb[0].mxu0
      %4282 = vmatprep.mubr.bf16.mxu0 0
      %4283 = vmatmul.mubr.bf16.gmra.mrb[0].mxu0 %v4079
      %v4284 = vpop.f32.mrb[0].mxu0
      %v4285 = vpop.f32.mrb[0].mxu0
      %v4286 = vpop.f32.mrb[0].mxu0
      %v4287 = vadd.f32 0.0, %v4286
      %v4288 = vpop.f32.mrb[0].mxu0
      %4289 = vmatprep.mubr.bf16.mxu0 0
      %4290 = vmatmul.mubr.bf16.gmra.mrb[0].mxu0 %v4082
      %v4291 = vpop.f32.mrb[0].mxu0
      %v4292 = vadd.f32 0.0, %v4291
      %v4293 = vpop.f32.mrb[0].mxu0
      %v4294 = vpop.f32.mrb[0].mxu0
      %v4295 = vpop.f32.mrb[0].mxu0
      %4296 = vdwg.mxu0
      %vm4297 = vsmask.f32 4352
      %v4298 = vshrl.u32 %v3712, 16
      %v4300 = vrot.slane %v4298, 3
      %v4301 = vshll.u32 %v3712, 16
      %v4303 = vrot.slane %v4301, 4
      %v4304 = vor.u32 %v4300, %v4303
      %v4305 = vshrl.u32 %v3714, 16
      %v4307 = vrot.slane %v4305, 3
      %v4308 = vshll.u32 %v3714, 16
      %v4310 = vrot.slane %v4308, 4
      %v4311 = vor.u32 %v4307, %v4310
      %v4312 = vsel %vm4297, %v4304, %v4311
      %v4313 = vrot.slane %v3834, 3
      %v4314 = vrot.slane %v3837, 4
      %v4315 = vor.u32 %v4313, %v4314
      %v4316 = vsel %vm4297, %v4311, %v4315
      %v4317 = vrot.slane %v3841, 3
      %v4318 = vrot.slane %v3844, 4
      %v4319 = vor.u32 %v4317, %v4318
      %v4320 = vsel %vm4297, %v4315, %v4319
      %v4321 = vrot.slane %v3848, 3
      %v4322 = vrot.slane %v3851, 4
      %v4323 = vor.u32 %v4321, %v4322
      %v4324 = vsel %vm4297, %v4319, %v4323
      %v4325 = vrot.slane %v3855, 3
      %v4326 = vrot.slane %v3858, 4
      %v4327 = vor.u32 %v4325, %v4326
      %v4328 = vsel %vm4297, %v4323, %v4327
      %v4329 = vrot.slane %v3862, 3
      %v4330 = vrot.slane %v3865, 4
      %v4331 = vor.u32 %v4329, %v4330
      %v4332 = vsel %vm4297, %v4327, %v4331
      %v4333 = vrot.slane %v3869, 3
      %v4334 = vrot.slane %v3872, 4
      %v4335 = vor.u32 %v4333, %v4334
      %v4336 = vsel %vm4297, %v4331, %v4335
      %v4337 = vrot.slane %v3876, 3
      %v4338 = vrot.slane %v3879, 4
      %v4339 = vor.u32 %v4337, %v4338
      %v4340 = vsel %vm4297, %v4335, %v4339
      %v4341 = vrot.slane %v3883, 3
      %v4342 = vrot.slane %v3886, 4
      %v4343 = vor.u32 %v4341, %v4342
      %v4344 = vsel %vm4297, %v4339, %v4343
      %v4345 = vrot.slane %v3890, 3
      %v4346 = vrot.slane %v3893, 4
      %v4347 = vor.u32 %v4345, %v4346
      %v4348 = vsel %vm4297, %v4343, %v4347
      %v4349 = vrot.slane %v3897, 3
      %v4350 = vrot.slane %v3900, 4
      %v4351 = vor.u32 %v4349, %v4350
      %v4352 = vsel %vm4297, %v4347, %v4351
      %v4353 = vrot.slane %v3904, 3
      %v4354 = vrot.slane %v3907, 4
      %v4355 = vor.u32 %v4353, %v4354
      %v4356 = vsel %vm4297, %v4351, %v4355
      %v4357 = vrot.slane %v3911, 3
      %v4358 = vrot.slane %v3914, 4
      %v4359 = vor.u32 %v4357, %v4358
      %v4360 = vsel %vm4297, %v4355, %v4359
      %v4361 = vrot.slane %v3918, 3
      %v4362 = vrot.slane %v3921, 4
      %v4363 = vor.u32 %v4361, %v4362
      %v4364 = vsel %vm4297, %v4359, %v4363
      %v4365 = vrot.slane %v3925, 3
      %v4366 = vrot.slane %v3928, 4
      %v4367 = vor.u32 %v4365, %v4366
      %v4368 = vsel %vm4297, %v4363, %v4367
      %v4369 = vrot.slane %v3932, 3
      %v4370 = vrot.slane %v3935, 4
      %v4371 = vor.u32 %v4369, %v4370
      %v4372 = vsel %vm4297, %v4367, %v4371
      %v4373 = vrot.slane %v3939, 3
      %v4374 = vrot.slane %v3942, 4
      %v4375 = vor.u32 %v4373, %v4374
      %v4376 = vsel %vm4297, %v4371, %v4375
      %v4377 = vrot.slane %v3946, 3
      %v4378 = vrot.slane %v3949, 4
      %v4379 = vor.u32 %v4377, %v4378
      %v4380 = vsel %vm4297, %v4375, %v4379
      %v4381 = vrot.slane %v3953, 3
      %v4382 = vrot.slane %v3956, 4
      %v4383 = vor.u32 %v4381, %v4382
      %v4384 = vsel %vm4297, %v4379, %v4383
      %v4385 = vrot.slane %v3960, 3
      %v4386 = vrot.slane %v3963, 4
      %v4387 = vor.u32 %v4385, %v4386
      %v4388 = vsel %vm4297, %v4383, %v4387
      %v4389 = vrot.slane %v3967, 3
      %v4390 = vrot.slane %v3970, 4
      %v4391 = vor.u32 %v4389, %v4390
      %v4392 = vsel %vm4297, %v4387, %v4391
      %v4393 = vrot.slane %v3974, 3
      %v4394 = vrot.slane %v3977, 4
      %v4395 = vor.u32 %v4393, %v4394
      %v4396 = vsel %vm4297, %v4391, %v4395
      %v4397 = vshrl.u32 %v3758, 16
      %v4399 = vrot.slane %v4397, 3
      %v4400 = vshll.u32 %v3758, 16
      %v4402 = vrot.slane %v4400, 4
      %v4403 = vor.u32 %v4399, %v4402
      %v4404 = vsel %vm4297, %v4395, %v4403
      %v4405 = vshrl.u32 %v3760, 16
      %v4407 = vrot.slane %v4405, 3
      %v4408 = vshll.u32 %v3760, 16
      %v4410 = vrot.slane %v4408, 4
      %v4411 = vor.u32 %v4407, %v4410
      %v4412 = vsel %vm4297, %v4403, %v4411
      %v4416 = vunpack.c.l.b16 %v3761
      %v4417 = vunpack.c.l.b16 %v3762
      %v4418 = vunpack.c.l.b16 %v3763
      %v4419 = vpack.c.b16 %v4417, %v4416
      %v4420 = vpack.c.b16 %v4418, %v4418
      %v4423 = vsel %vm4011, %v4312, 0
      %v4426 = vsel %vm4011, %v4316, 0
      %v4429 = vsel %vm4011, %v4320, 0
      %v4432 = vsel %vm4011, %v4324, 0
      %v4435 = vsel %vm4011, %v4328, 0
      %v4438 = vsel %vm4011, %v4332, 0
      %v4441 = vsel %vm4011, %v4336, 0
      %v4444 = vsel %vm4011, %v4340, 0
      %v4447 = vsel %vm4011, %v4344, 0
      %v4450 = vsel %vm4011, %v4348, 0
      %v4453 = vsel %vm4011, %v4352, 0
      %v4456 = vsel %vm4011, %v4356, 0
      %v4459 = vsel %vm4011, %v4360, 0
      %v4462 = vsel %vm4011, %v4364, 0
      %v4465 = vsel %vm4011, %v4368, 0
      %v4468 = vsel %vm4011, %v4372, 0
      %v4471 = vsel %vm4011, %v4376, 0
      %v4474 = vsel %vm4011, %v4380, 0
      %v4477 = vsel %vm4011, %v4384, 0
      %v4480 = vsel %vm4011, %v4388, 0
      %v4483 = vsel %vm4011, %v4392, 0
      %v4486 = vsel %vm4011, %v4396, 0
      %v4489 = vsel %vm4011, %v4404, 0
      %v4492 = vsel %vm4011, %v4412, 0
      %v4495 = vsel %vm4084, %v4420, 0
      %4497 = vmatprep.subr.bf16.mxu0 0
      %4498 = vmatpush1.bf16.msra.mxu0 %v4419
      %4499 = vmatprep.subr.bf16.mxu0 0
      %4500 = vmatpush1.bf16.msra.mxu0 %v4495
      %4501 = vmatprep.subr.bf16.mxu0 0
      %4502 = vmatpush1.bf16.msra.mxu0 0
      %4503 = vmatprep.subr.bf16.mxu0 0
      %4504 = vmatpush1.bf16.msra.mxu0 0
      %4505 = vmatprep.subr.bf16.mxu0 0
      %4506 = vmatpush1.bf16.msra.mxu0 0
      %4507 = vmatprep.subr.bf16.mxu0 0
      %4508 = vmatpush1.bf16.msra.mxu0 0
      %4509 = vmatprep.subr.bf16.mxu0 0
      %4510 = vmatpush1.bf16.msra.mxu0 0
      %4511 = vmatprep.subr.bf16.mxu0 0
      %4512 = vmatpush1.bf16.msra.mxu0 0
      %4513 = vmatprep.subr.bf16.mxu0 0
      %4514 = vmatpush1.bf16.msra.mxu0 0
      %4515 = vmatprep.subr.bf16.mxu0 0
      %4516 = vmatpush1.bf16.msra.mxu0 0
      %4517 = vmatprep.subr.bf16.mxu0 0
      %4518 = vmatpush1.bf16.msra.mxu0 0
      %4519 = vmatprep.subr.bf16.mxu0 0
      %4520 = vmatpush1.bf16.msra.mxu0 0
      %4521 = vmatprep.subr.bf16.mxu0 0
      %4522 = vmatpush1.bf16.msra.mxu0 0
      %4523 = vmatprep.subr.bf16.mxu0 0
      %4524 = vmatpush1.bf16.msra.mxu0 0
      %4525 = vmatprep.subr.bf16.mxu0 0
      %4526 = vmatpush1.bf16.msra.mxu0 0
      %4527 = vmatprep.subr.bf16.mxu0 0
      %4528 = vmatpush1.bf16.msra.mxu0 0
      %4529 = vmatprep.mubr.bf16.mxu0 0
      %4530 = vmatmul.mubr.bf16.gmra.mrb[0].mxu0 %v4423
      %v4531 = vpop.f32.mrb[0].mxu0
      %v4532 = vadd.f32 %v4123, %v4531
      %v4533 = vpop.f32.mrb[0].mxu0
      %v4534 = vpop.f32.mrb[0].mxu0
      %v4535 = vadd.f32 %v4126, %v4534
      %v4536 = vpop.f32.mrb[0].mxu0
      %4537 = vmatprep.mubr.bf16.mxu0 0
      %4538 = vmatmul.mubr.bf16.gmra.mrb[0].mxu0 %v4426
      %v4539 = vpop.f32.mrb[0].mxu0
      %v4540 = vpop.f32.mrb[0].mxu0
      %v4541 = vpop.f32.mrb[0].mxu0
      %v4542 = vadd.f32 %v4133, %v4541
      %v4543 = vpop.f32.mrb[0].mxu0
      %4544 = vmatprep.mubr.bf16.mxu0 0
      %4545 = vmatmul.mubr.bf16.gmra.mrb[0].mxu0 %v4429
      %v4546 = vpop.f32.mrb[0].mxu0
      %v4547 = vadd.f32 %v4138, %v4546
      %v4548 = vpop.f32.mrb[0].mxu0
      %v4549 = vpop.f32.mrb[0].mxu0
      %v4550 = vpop.f32.mrb[0].mxu0
      %4551 = vmatprep.mubr.bf16.mxu0 0
      %4552 = vmatmul.mubr.bf16.gmra.mrb[0].mxu0 %v4432
      %v4553 = vpop.f32.mrb[0].mxu0
      %v4554 = vadd.f32 %v4145, %v4553
      %v4555 = vpop.f32.mrb[0].mxu0
      %v4556 = vpop.f32.mrb[0].mxu0
      %v4557 = vadd.f32 %v4148, %v4556
      %v4558 = vpop.f32.mrb[0].mxu0
      %4559 = vmatprep.mubr.bf16.mxu0 0
      %4560 = vmatmul.mubr.bf16.gmra.mrb[0].mxu0 %v4435
      %v4561 = vpop.f32.mrb[0].mxu0
      %v4562 = vpop.f32.mrb[0].mxu0
      %v4563 = vpop.f32.mrb[0].mxu0
      %v4564 = vadd.f32 %v4155, %v4563
      %v4565 = vpop.f32.mrb[0].mxu0
      %4566 = vmatprep.mubr.bf16.mxu0 0
      %4567 = vmatmul.mubr.bf16.gmra.mrb[0].mxu0 %v4438
      %v4568 = vpop.f32.mrb[0].mxu0
      %v4569 = vadd.f32 %v4160, %v4568
      %v4570 = vpop.f32.mrb[0].mxu0
      %v4571 = vpop.f32.mrb[0].mxu0
      %v4572 = vpop.f32.mrb[0].mxu0
      %4573 = vmatprep.mubr.bf16.mxu0 0
      %4574 = vmatmul.mubr.bf16.gmra.mrb[0].mxu0 %v4441
      %v4575 = vpop.f32.mrb[0].mxu0
      %v4576 = vadd.f32 %v4167, %v4575
      %v4577 = vpop.f32.mrb[0].mxu0
      %v4578 = vpop.f32.mrb[0].mxu0
      %v4579 = vadd.f32 %v4170, %v4578
      %v4580 = vpop.f32.mrb[0].mxu0
      %4581 = vmatprep.mubr.bf16.mxu0 0
      %4582 = vmatmul.mubr.bf16.gmra.mrb[0].mxu0 %v4444
      %v4583 = vpop.f32.mrb[0].mxu0
      %v4584 = vpop.f32.mrb[0].mxu0
      %v4585 = vpop.f32.mrb[0].mxu0
      %v4586 = vadd.f32 %v4177, %v4585
      %v4587 = vpop.f32.mrb[0].mxu0
      %4588 = vmatprep.mubr.bf16.mxu0 0
      %4589 = vmatmul.mubr.bf16.gmra.mrb[0].mxu0 %v4447
      %v4590 = vpop.f32.mrb[0].mxu0
      %v4591 = vadd.f32 %v4182, %v4590
      %v4592 = vpop.f32.mrb[0].mxu0
      %v4593 = vpop.f32.mrb[0].mxu0
      %v4594 = vpop.f32.mrb[0].mxu0
      %4595 = vmatprep.mubr.bf16.mxu0 0
      %4596 = vmatmul.mubr.bf16.gmra.mrb[0].mxu0 %v4450
      %v4597 = vpop.f32.mrb[0].mxu0
      %v4598 = vadd.f32 %v4189, %v4597
      %v4599 = vpop.f32.mrb[0].mxu0
      %v4600 = vpop.f32.mrb[0].mxu0
      %v4601 = vadd.f32 %v4192, %v4600
      %v4602 = vpop.f32.mrb[0].mxu0
      %4603 = vmatprep.mubr.bf16.mxu0 0
      %4604 = vmatmul.mubr.bf16.gmra.mrb[0].mxu0 %v4453
      %v4605 = vpop.f32.mrb[0].mxu0
      %v4606 = vpop.f32.mrb[0].mxu0
      %v4607 = vpop.f32.mrb[0].mxu0
      %v4608 = vadd.f32 %v4199, %v4607
      %v4609 = vpop.f32.mrb[0].mxu0
      %4610 = vmatprep.mubr.bf16.mxu0 0
      %4611 = vmatmul.mubr.bf16.gmra.mrb[0].mxu0 %v4456
      %v4612 = vpop.f32.mrb[0].mxu0
      %v4613 = vadd.f32 %v4204, %v4612
      %v4614 = vpop.f32.mrb[0].mxu0
      %v4615 = vpop.f32.mrb[0].mxu0
      %v4616 = vpop.f32.mrb[0].mxu0
      %4617 = vmatprep.mubr.bf16.mxu0 0
      %4618 = vmatmul.mubr.bf16.gmra.mrb[0].mxu0 %v4459
      %v4619 = vpop.f32.mrb[0].mxu0
      %v4620 = vadd.f32 %v4211, %v4619
      %v4621 = vpop.f32.mrb[0].mxu0
      %v4622 = vpop.f32.mrb[0].mxu0
      %v4623 = vadd.f32 %v4214, %v4622
      %v4624 = vpop.f32.mrb[0].mxu0
      %4625 = vmatprep.mubr.bf16.mxu0 0
      %4626 = vmatmul.mubr.bf16.gmra.mrb[0].mxu0 %v4462
      %v4627 = vpop.f32.mrb[0].mxu0
      %v4628 = vpop.f32.mrb[0].mxu0
      %v4629 = vpop.f32.mrb[0].mxu0
      %v4630 = vadd.f32 %v4221, %v4629
      %v4631 = vpop.f32.mrb[0].mxu0
      %4632 = vmatprep.mubr.bf16.mxu0 0
      %4633 = vmatmul.mubr.bf16.gmra.mrb[0].mxu0 %v4465
      %v4634 = vpop.f32.mrb[0].mxu0
      %v4635 = vadd.f32 %v4226, %v4634
      %v4636 = vpop.f32.mrb[0].mxu0
      %v4637 = vpop.f32.mrb[0].mxu0
      %v4638 = vpop.f32.mrb[0].mxu0
      %4639 = vmatprep.mubr.bf16.mxu0 0
      %4640 = vmatmul.mubr.bf16.gmra.mrb[0].mxu0 %v4468
      %v4641 = vpop.f32.mrb[0].mxu0
      %v4642 = vadd.f32 %v4233, %v4641
      %v4643 = vpop.f32.mrb[0].mxu0
      %v4644 = vpop.f32.mrb[0].mxu0
      %v4645 = vadd.f32 %v4236, %v4644
      %v4646 = vpop.f32.mrb[0].mxu0
      %4647 = vmatprep.mubr.bf16.mxu0 0
      %4648 = vmatmul.mubr.bf16.gmra.mrb[0].mxu0 %v4471
      %v4649 = vpop.f32.mrb[0].mxu0
      %v4650 = vpop.f32.mrb[0].mxu0
      %v4651 = vpop.f32.mrb[0].mxu0
      %v4652 = vadd.f32 %v4243, %v4651
      %v4653 = vpop.f32.mrb[0].mxu0
      %4654 = vmatprep.mubr.bf16.mxu0 0
      %4655 = vmatmul.mubr.bf16.gmra.mrb[0].mxu0 %v4474
      %v4656 = vpop.f32.mrb[0].mxu0
      %v4657 = vadd.f32 %v4248, %v4656
      %v4658 = vpop.f32.mrb[0].mxu0
      %v4659 = vpop.f32.mrb[0].mxu0
      %v4660 = vpop.f32.mrb[0].mxu0
      %4661 = vmatprep.mubr.bf16.mxu0 0
      %4662 = vmatmul.mubr.bf16.gmra.mrb[0].mxu0 %v4477
      %v4663 = vpop.f32.mrb[0].mxu0
      %v4664 = vadd.f32 %v4255, %v4663
      %v4665 = vpop.f32.mrb[0].mxu0
      %v4666 = vpop.f32.mrb[0].mxu0
      %v4667 = vadd.f32 %v4258, %v4666
      %v4668 = vpop.f32.mrb[0].mxu0
      %4669 = vmatprep.mubr.bf16.mxu0 0
      %4670 = vmatmul.mubr.bf16.gmra.mrb[0].mxu0 %v4480
      %v4671 = vpop.f32.mrb[0].mxu0
      %v4672 = vpop.f32.mrb[0].mxu0
      %v4673 = vpop.f32.mrb[0].mxu0
      %v4674 = vadd.f32 %v4265, %v4673
      %v4675 = vpop.f32.mrb[0].mxu0
      %4676 = vmatprep.mubr.bf16.mxu0 0
      %4677 = vmatmul.mubr.bf16.gmra.mrb[0].mxu0 %v4483
      %v4678 = vpop.f32.mrb[0].mxu0
      %v4679 = vadd.f32 %v4270, %v4678
      %v4680 = vpop.f32.mrb[0].mxu0
      %v4681 = vpop.f32.mrb[0].mxu0
      %v4682 = vpop.f32.mrb[0].mxu0
      %4683 = vmatprep.mubr.bf16.mxu0 0
      %4684 = vmatmul.mubr.bf16.gmra.mrb[0].mxu0 %v4486
      %v4685 = vpop.f32.mrb[0].mxu0
      %v4686 = vadd.f32 %v4277, %v4685
      %v4687 = vpop.f32.mrb[0].mxu0
      %v4688 = vpop.f32.mrb[0].mxu0
      %v4689 = vadd.f32 %v4280, %v4688
      %v4690 = vpop.f32.mrb[0].mxu0
      %4691 = vmatprep.mubr.bf16.mxu0 0
      %4692 = vmatmul.mubr.bf16.gmra.mrb[0].mxu0 %v4489
      %v4693 = vpop.f32.mrb[0].mxu0
      %v4694 = vpop.f32.mrb[0].mxu0
      %v4695 = vpop.f32.mrb[0].mxu0
      %v4696 = vadd.f32 %v4287, %v4695
      %v4697 = vpop.f32.mrb[0].mxu0
      %4698 = vmatprep.mubr.bf16.mxu0 0
      %4699 = vmatmul.mubr.bf16.gmra.mrb[0].mxu0 %v4492
      %v4700 = vpop.f32.mrb[0].mxu0
      %v4701 = vadd.f32 %v4292, %v4700
      %v4702 = vpop.f32.mrb[0].mxu0
      %v4703 = vpop.f32.mrb[0].mxu0
      %v4704 = vpop.f32.mrb[0].mxu0
      %4705 = vdwg.mxu0
      %v4706 = vld [vmem:[#allocation3 + $0x20] sm:$0xf8]
      %v4707 = vld [vmem:[#allocation3 + $0x28] sm:$0xff]
      %v4708 = vld [vmem:[#allocation3 + $0x30] sm:$0xff]
      %v4709 = vld [vmem:[#allocation3 + $0x38] sm:$0xff]
      %v4710 = vld [vmem:[#allocation3 + $0x40] sm:$0xff]
      %v4711 = vld [vmem:[#allocation3 + $0x48] sm:$0xff]
      %v4712 = vld [vmem:[#allocation3 + $0x50] sm:$0xff]
      %v4713 = vld [vmem:[#allocation3 + $0x58] sm:$0xff]
      %v4714 = vld [vmem:[#allocation3 + $0x60] sm:$0xff]
      %v4715 = vld [vmem:[#allocation3 + $0x68] sm:$0xff]
      %v4716 = vld [vmem:[#allocation3 + $0x70] sm:$0xff]
      %v4717 = vld [vmem:[#allocation3 + $0x78] sm:$0xff]
      %v4718 = vld [vmem:[#allocation3 + $0x80] sm:$0xff]
      %v4719 = vld [vmem:[#allocation3 + $0x88] sm:$0xff]
      %v4720 = vld [vmem:[#allocation3 + $0x90] sm:$0xff]
      %v4721 = vld [vmem:[#allocation3 + $0x98] sm:$0xff]
      %v4722 = vld [vmem:[#allocation3 + $0xa0] sm:$0xff]
      %v4723 = vld [vmem:[#allocation3 + $0xa8] sm:$0xff]
      %v4724 = vld [vmem:[#allocation3 + $0xb0] sm:$0xff]
      %v4725 = vld [vmem:[#allocation3 + $0xb8] sm:$0xff]
      %v4726 = vld [vmem:[#allocation3 + $0xc0] sm:$0xff]
      %v4727 = vld [vmem:[#allocation3 + $0xc8] sm:$0xff]
      %v4728 = vld [vmem:[#allocation3 + $0xd0] sm:$0xff]
      %v4729 = vld [vmem:[#allocation3 + $0xd8] sm:$0xff]
      %v4730 = vld [vmem:[#allocation3 + $0xe0] sm:$0xf]
      %v4731 = vld [vmem:[#allocation3 + $0x20] sm:$0xf0]
      %v4732 = vld [vmem:[#allocation3 + $0xe0] sm:$0x1f]
      %v4734 = vshrl.u32 %v4731, 16
      %v4736 = vshll.u32 %v4731, 16
      %v4738 = vrot.slane %v4736, 1
      %v4739 = vor.u32 %v4734, %v4738
      %v4741 = vshll.u32 %v4707, 16
      %v4743 = vrot.slane %v4741, 1
      %v4744 = vsel %vm3284, %v4739, %v4743
      %v4745 = vshrl.u32 %v4707, 16
      %v4747 = vor.u32 %v4745, %v4743
      %v4749 = vshll.u32 %v4708, 16
      %v4751 = vrot.slane %v4749, 1
      %v4752 = vsel %vm3284, %v4747, %v4751
      %v4753 = vshrl.u32 %v4708, 16
      %v4755 = vor.u32 %v4753, %v4751
      %v4757 = vshll.u32 %v4709, 16
      %v4759 = vrot.slane %v4757, 1
      %v4760 = vsel %vm3284, %v4755, %v4759
      %v4761 = vshrl.u32 %v4709, 16
      %v4763 = vor.u32 %v4761, %v4759
      %v4765 = vshll.u32 %v4710, 16
      %v4767 = vrot.slane %v4765, 1
      %v4768 = vsel %vm3284, %v4763, %v4767
      %v4769 = vshrl.u32 %v4710, 16
      %v4771 = vor.u32 %v4769, %v4767
      %v4773 = vshll.u32 %v4711, 16
      %v4775 = vrot.slane %v4773, 1
      %v4776 = vsel %vm3284, %v4771, %v4775
      %v4777 = vshrl.u32 %v4711, 16
      %v4779 = vor.u32 %v4777, %v4775
      %v4781 = vshll.u32 %v4712, 16
      %v4783 = vrot.slane %v4781, 1
      %v4784 = vsel %vm3284, %v4779, %v4783
      %v4785 = vshrl.u32 %v4712, 16
      %v4787 = vor.u32 %v4785, %v4783
      %v4789 = vshll.u32 %v4713, 16
      %v4791 = vrot.slane %v4789, 1
      %v4792 = vsel %vm3284, %v4787, %v4791
      %v4793 = vshrl.u32 %v4713, 16
      %v4795 = vor.u32 %v4793, %v4791
      %v4797 = vshll.u32 %v4714, 16
      %v4799 = vrot.slane %v4797, 1
      %v4800 = vsel %vm3284, %v4795, %v4799
      %v4801 = vshrl.u32 %v4714, 16
      %v4803 = vor.u32 %v4801, %v4799
      %v4805 = vshll.u32 %v4715, 16
      %v4807 = vrot.slane %v4805, 1
      %v4808 = vsel %vm3284, %v4803, %v4807
      %v4809 = vshrl.u32 %v4715, 16
      %v4811 = vor.u32 %v4809, %v4807
      %v4813 = vshll.u32 %v4716, 16
      %v4815 = vrot.slane %v4813, 1
      %v4816 = vsel %vm3284, %v4811, %v4815
      %v4817 = vshrl.u32 %v4716, 16
      %v4819 = vor.u32 %v4817, %v4815
      %v4821 = vshll.u32 %v4717, 16
      %v4823 = vrot.slane %v4821, 1
      %v4824 = vsel %vm3284, %v4819, %v4823
      %v4825 = vshrl.u32 %v4717, 16
      %v4827 = vor.u32 %v4825, %v4823
      %v4829 = vshll.u32 %v4718, 16
      %v4831 = vrot.slane %v4829, 1
      %v4832 = vsel %vm3284, %v4827, %v4831
      %v4833 = vshrl.u32 %v4718, 16
      %v4835 = vor.u32 %v4833, %v4831
      %v4837 = vshll.u32 %v4719, 16
      %v4839 = vrot.slane %v4837, 1
      %v4840 = vsel %vm3284, %v4835, %v4839
      %v4841 = vshrl.u32 %v4719, 16
      %v4843 = vor.u32 %v4841, %v4839
      %v4845 = vshll.u32 %v4720, 16
      %v4847 = vrot.slane %v4845, 1
      %v4848 = vsel %vm3284, %v4843, %v4847
      %v4849 = vshrl.u32 %v4720, 16
      %v4851 = vor.u32 %v4849, %v4847
      %v4853 = vshll.u32 %v4721, 16
      %v4855 = vrot.slane %v4853, 1
      %v4856 = vsel %vm3284, %v4851, %v4855
      %v4857 = vshrl.u32 %v4721, 16
      %v4859 = vor.u32 %v4857, %v4855
      %v4861 = vshll.u32 %v4722, 16
      %v4863 = vrot.slane %v4861, 1
      %v4864 = vsel %vm3284, %v4859, %v4863
      %v4865 = vshrl.u32 %v4722, 16
      %v4867 = vor.u32 %v4865, %v4863
      %v4869 = vshll.u32 %v4723, 16
      %v4871 = vrot.slane %v4869, 1
      %v4872 = vsel %vm3284, %v4867, %v4871
      %v4873 = vshrl.u32 %v4723, 16
      %v4875 = vor.u32 %v4873, %v4871
      %v4877 = vshll.u32 %v4724, 16
      %v4879 = vrot.slane %v4877, 1
      %v4880 = vsel %vm3284, %v4875, %v4879
      %v4881 = vshrl.u32 %v4724, 16
      %v4883 = vor.u32 %v4881, %v4879
      %v4885 = vshll.u32 %v4725, 16
      %v4887 = vrot.slane %v4885, 1
      %v4888 = vsel %vm3284, %v4883, %v4887
      %v4889 = vshrl.u32 %v4725, 16
      %v4891 = vor.u32 %v4889, %v4887
      %v4893 = vshll.u32 %v4726, 16
      %v4895 = vrot.slane %v4893, 1
      %v4896 = vsel %vm3284, %v4891, %v4895
      %v4897 = vshrl.u32 %v4726, 16
      %v4899 = vor.u32 %v4897, %v4895
      %v4901 = vshll.u32 %v4727, 16
      %v4903 = vrot.slane %v4901, 1
      %v4904 = vsel %vm3284, %v4899, %v4903
      %v4905 = vshrl.u32 %v4727, 16
      %v4907 = vor.u32 %v4905, %v4903
      %v4909 = vshll.u32 %v4728, 16
      %v4911 = vrot.slane %v4909, 1
      %v4912 = vsel %vm3284, %v4907, %v4911
      %v4913 = vshrl.u32 %v4728, 16
      %v4915 = vor.u32 %v4913, %v4911
      %v4917 = vshll.u32 %v4729, 16
      %v4919 = vrot.slane %v4917, 1
      %v4920 = vsel %vm3284, %v4915, %v4919
      %v4921 = vshrl.u32 %v4729, 16
      %v4923 = vor.u32 %v4921, %v4919
      %v4925 = vshll.u32 %v4730, 16
      %v4927 = vrot.slane %v4925, 1
      %v4928 = vsel %vm3284, %v4923, %v4927
      %v4929 = vshrl.u32 %v4730, 16
      %v4931 = vor.u32 %v4929, %v4927
      %4932 = vrot.lane.b32.xlu0 %v4744, 8
      %v4933 = vpop.permute.xlu0 %4932
      %4934 = vrot.lane.b32.xlu0 %v4752, 8
      %v4935 = vpop.permute.xlu0 %4934
      %4936 = vrot.lane.b32.xlu0 %v4760, 8
      %v4937 = vpop.permute.xlu0 %4936
      %4938 = vrot.lane.b32.xlu0 %v4768, 8
      %v4939 = vpop.permute.xlu0 %4938
      %4940 = vrot.lane.b32.xlu0 %v4776, 8
      %v4941 = vpop.permute.xlu0 %4940
      %4942 = vrot.lane.b32.xlu0 %v4784, 8
      %v4943 = vpop.permute.xlu0 %4942
      %4944 = vrot.lane.b32.xlu0 %v4792, 8
      %v4945 = vpop.permute.xlu0 %4944
      %4946 = vrot.lane.b32.xlu0 %v4800, 8
      %v4947 = vpop.permute.xlu0 %4946
      %4948 = vrot.lane.b32.xlu0 %v4808, 8
      %v4949 = vpop.permute.xlu0 %4948
      %4950 = vrot.lane.b32.xlu0 %v4816, 8
      %v4951 = vpop.permute.xlu0 %4950
      %4952 = vrot.lane.b32.xlu0 %v4824, 8
      %v4953 = vpop.permute.xlu0 %4952
      %4954 = vrot.lane.b32.xlu0 %v4832, 8
      %v4955 = vpop.permute.xlu0 %4954
      %4956 = vrot.lane.b32.xlu0 %v4840, 8
      %v4957 = vpop.permute.xlu0 %4956
      %4958 = vrot.lane.b32.xlu0 %v4848, 8
      %v4959 = vpop.permute.xlu0 %4958
      %4960 = vrot.lane.b32.xlu0 %v4856, 8
      %v4961 = vpop.permute.xlu0 %4960
      %4962 = vrot.lane.b32.xlu0 %v4864, 8
      %v4963 = vpop.permute.xlu0 %4962
      %4964 = vrot.lane.b32.xlu0 %v4872, 8
      %v4965 = vpop.permute.xlu0 %4964
      %4966 = vrot.lane.b32.xlu0 %v4880, 8
      %v4967 = vpop.permute.xlu0 %4966
      %4968 = vrot.lane.b32.xlu0 %v4888, 8
      %v4969 = vpop.permute.xlu0 %4968
      %4970 = vrot.lane.b32.xlu0 %v4896, 8
      %v4971 = vpop.permute.xlu0 %4970
      %4972 = vrot.lane.b32.xlu0 %v4904, 8
      %v4973 = vpop.permute.xlu0 %4972
      %4974 = vrot.lane.b32.xlu0 %v4912, 8
      %v4975 = vpop.permute.xlu0 %4974
      %4976 = vrot.lane.b32.xlu0 %v4920, 8
      %v4977 = vpop.permute.xlu0 %4976
      %4978 = vrot.lane.b32.xlu0 %v4928, 8
      %v4979 = vpop.permute.xlu0 %4978
      %4980 = vrot.lane.b32.xlu0 %v4931, 8
      %v4981 = vpop.permute.xlu0 %4980
      %v5007 = vrot.slane %v4731, 1
      %v5008 = vrot.slane %v4707, 1
      %v5009 = vsel %vm3559, %v5007, %v5008
      %v5010 = vrot.slane %v4708, 1
      %v5011 = vsel %vm3559, %v5008, %v5010
      %v5012 = vrot.slane %v4709, 1
      %v5013 = vsel %vm3559, %v5010, %v5012
      %v5014 = vrot.slane %v4710, 1
      %v5015 = vsel %vm3559, %v5012, %v5014
      %v5016 = vrot.slane %v4711, 1
      %v5017 = vsel %vm3559, %v5014, %v5016
      %v5018 = vrot.slane %v4712, 1
      %v5019 = vsel %vm3559, %v5016, %v5018
      %v5020 = vrot.slane %v4713, 1
      %v5021 = vsel %vm3559, %v5018, %v5020
      %v5022 = vrot.slane %v4714, 1
      %v5023 = vsel %vm3559, %v5020, %v5022
      %v5024 = vrot.slane %v4715, 1
      %v5025 = vsel %vm3559, %v5022, %v5024
      %v5026 = vrot.slane %v4716, 1
      %v5027 = vsel %vm3559, %v5024, %v5026
      %v5028 = vrot.slane %v4717, 1
      %v5029 = vsel %vm3559, %v5026, %v5028
      %v5030 = vrot.slane %v4718, 1
      %v5031 = vsel %vm3559, %v5028, %v5030
      %v5032 = vrot.slane %v4719, 1
      %v5033 = vsel %vm3559, %v5030, %v5032
      %v5034 = vrot.slane %v4720, 1
      %v5035 = vsel %vm3559, %v5032, %v5034
      %v5036 = vrot.slane %v4721, 1
      %v5037 = vsel %vm3559, %v5034, %v5036
      %v5038 = vrot.slane %v4722, 1
      %v5039 = vsel %vm3559, %v5036, %v5038
      %v5040 = vrot.slane %v4723, 1
      %v5041 = vsel %vm3559, %v5038, %v5040
      %v5042 = vrot.slane %v4724, 1
      %v5043 = vsel %vm3559, %v5040, %v5042
      %v5044 = vrot.slane %v4725, 1
      %v5045 = vsel %vm3559, %v5042, %v5044
      %v5046 = vrot.slane %v4726, 1
      %v5047 = vsel %vm3559, %v5044, %v5046
      %v5048 = vrot.slane %v4727, 1
      %v5049 = vsel %vm3559, %v5046, %v5048
      %v5050 = vrot.slane %v4728, 1
      %v5051 = vsel %vm3559, %v5048, %v5050
      %v5052 = vrot.slane %v4729, 1
      %v5053 = vsel %vm3559, %v5050, %v5052
      %v5054 = vrot.slane %v4732, 1
      %v5055 = vsel %vm3559, %v5052, %v5054
      %5056 = vrot.lane.b32.xlu0 %v5009, 16
      %v5057 = vpop.permute.xlu0 %5056
      %5058 = vrot.lane.b32.xlu0 %v5011, 16
      %v5059 = vpop.permute.xlu0 %5058
      %5060 = vrot.lane.b32.xlu0 %v5013, 16
      %v5061 = vpop.permute.xlu0 %5060
      %5062 = vrot.lane.b32.xlu0 %v5015, 16
      %v5063 = vpop.permute.xlu0 %5062
      %5064 = vrot.lane.b32.xlu0 %v5017, 16
      %v5065 = vpop.permute.xlu0 %5064
      %5066 = vrot.lane.b32.xlu0 %v5019, 16
      %v5067 = vpop.permute.xlu0 %5066
      %5068 = vrot.lane.b32.xlu0 %v5021, 16
      %v5069 = vpop.permute.xlu0 %5068
      %5070 = vrot.lane.b32.xlu0 %v5023, 16
      %v5071 = vpop.permute.xlu0 %5070
      %5072 = vrot.lane.b32.xlu0 %v5025, 16
      %v5073 = vpop.permute.xlu0 %5072
      %5074 = vrot.lane.b32.xlu0 %v5027, 16
      %v5075 = vpop.permute.xlu0 %5074
      %5076 = vrot.lane.b32.xlu0 %v5029, 16
      %v5077 = vpop.permute.xlu0 %5076
      %5078 = vrot.lane.b32.xlu0 %v5031, 16
      %v5079 = vpop.permute.xlu0 %5078
      %5080 = vrot.lane.b32.xlu0 %v5033, 16
      %v5081 = vpop.permute.xlu0 %5080
      %5082 = vrot.lane.b32.xlu0 %v5035, 16
      %v5083 = vpop.permute.xlu0 %5082
      %5084 = vrot.lane.b32.xlu0 %v5037, 16
      %v5085 = vpop.permute.xlu0 %5084
      %5086 = vrot.lane.b32.xlu0 %v5039, 16
      %v5087 = vpop.permute.xlu0 %5086
      %5088 = vrot.lane.b32.xlu0 %v5041, 16
      %v5089 = vpop.permute.xlu0 %5088
      %5090 = vrot.lane.b32.xlu0 %v5043, 16
      %v5091 = vpop.permute.xlu0 %5090
      %5092 = vrot.lane.b32.xlu0 %v5045, 16
      %v5093 = vpop.permute.xlu0 %5092
      %5094 = vrot.lane.b32.xlu0 %v5047, 16
      %v5095 = vpop.permute.xlu0 %5094
      %5096 = vrot.lane.b32.xlu0 %v5049, 16
      %v5097 = vpop.permute.xlu0 %5096
      %5098 = vrot.lane.b32.xlu0 %v5051, 16
      %v5099 = vpop.permute.xlu0 %5098
      %5100 = vrot.lane.b32.xlu0 %v5053, 16
      %v5101 = vpop.permute.xlu0 %5100
      %5102 = vrot.lane.b32.xlu0 %v5055, 16
      %v5103 = vpop.permute.xlu0 %5102
      %5104 = vrot.lane.b32.xlu0 %v5054, 16
      %v5105 = vpop.permute.xlu0 %5104
      %v5108 = vsel %vm2923, %v4706, %v4933
      %v5110 = vsel %vm2923, %v4707, %v4935
      %v5112 = vsel %vm2923, %v4708, %v4937
      %v5114 = vsel %vm2923, %v4709, %v4939
      %v5116 = vsel %vm2923, %v4710, %v4941
      %v5118 = vsel %vm2923, %v4711, %v4943
      %v5120 = vsel %vm2923, %v4712, %v4945
      %v5122 = vsel %vm2923, %v4713, %v4947
      %v5124 = vsel %vm2923, %v4714, %v4949
      %v5126 = vsel %vm2923, %v4715, %v4951
      %v5128 = vsel %vm2923, %v4716, %v4953
      %v5130 = vsel %vm2923, %v4717, %v4955
      %v5132 = vsel %vm2923, %v4718, %v4957
      %v5134 = vsel %vm2923, %v4719, %v4959
      %v5136 = vsel %vm2923, %v4720, %v4961
      %v5138 = vsel %vm2923, %v4721, %v4963
      %v5140 = vsel %vm2923, %v4722, %v4965
      %v5142 = vsel %vm2923, %v4723, %v4967
      %v5144 = vsel %vm2923, %v4724, %v4969
      %v5146 = vsel %vm2923, %v4725, %v4971
      %v5148 = vsel %vm2923, %v4726, %v4973
      %v5150 = vsel %vm2923, %v4727, %v4975
      %v5152 = vsel %vm2923, %v4728, %v4977
      %v5154 = vsel %vm2923, %v4729, %v4979
      %v5156 = vsel %vm2923, %v4730, %v4981
      %v5158 = vsel %vm3710, %v5108, %v5057
      %v5160 = vsel %vm3710, %v5110, %v5059
      %v5162 = vsel %vm3710, %v5112, %v5061
      %v5164 = vsel %vm3710, %v5114, %v5063
      %v5166 = vsel %vm3710, %v5116, %v5065
      %v5168 = vsel %vm3710, %v5118, %v5067
      %v5170 = vsel %vm3710, %v5120, %v5069
      %v5172 = vsel %vm3710, %v5122, %v5071
      %v5174 = vsel %vm3710, %v5124, %v5073
      %v5176 = vsel %vm3710, %v5126, %v5075
      %v5178 = vsel %vm3710, %v5128, %v5077
      %v5180 = vsel %vm3710, %v5130, %v5079
      %v5182 = vsel %vm3710, %v5132, %v5081
      %v5184 = vsel %vm3710, %v5134, %v5083
      %v5186 = vsel %vm3710, %v5136, %v5085
      %v5188 = vsel %vm3710, %v5138, %v5087
      %v5190 = vsel %vm3710, %v5140, %v5089
      %v5192 = vsel %vm3710, %v5142, %v5091
      %v5194 = vsel %vm3710, %v5144, %v5093
      %v5196 = vsel %vm3710, %v5146, %v5095
      %v5198 = vsel %vm3710, %v5148, %v5097
      %v5200 = vsel %vm3710, %v5150, %v5099
      %v5202 = vsel %vm3710, %v5152, %v5101
      %v5204 = vsel %vm3710, %v5154, %v5103
      %v5206 = vsel %vm3710, %v5156, %v5105
      %s5207 = scalar_lea.vmem %s3, 24
      %v5208 = vld [vmem:[%s5207] sm:$0xf]
      %v5209 = vld [vmem:[%s5207 + $0x4] sm:$0xf]
      %v5210 = vld [vmem:[%s5207 + $0x8] sm:$0xf]
      %v5211 = vshrl.u32 %v5158, 16
      %v5213 = vrot.slane %v5211, 3
      %v5214 = vshll.u32 %v5158, 16
      %v5216 = vrot.slane %v5214, 4
      %v5217 = vor.u32 %v5213, %v5216
      %v5218 = vshrl.u32 %v5160, 16
      %v5220 = vrot.slane %v5218, 3
      %v5221 = vshll.u32 %v5160, 16
      %v5223 = vrot.slane %v5221, 4
      %v5224 = vor.u32 %v5220, %v5223
      %v5225 = vsel %vm4297, %v5217, %v5224
      %v5226 = vshrl.u32 %v5162, 16
      %v5228 = vrot.slane %v5226, 3
      %v5229 = vshll.u32 %v5162, 16
      %v5231 = vrot.slane %v5229, 4
      %v5232 = vor.u32 %v5228, %v5231
      %v5233 = vsel %vm4297, %v5224, %v5232
      %v5234 = vshrl.u32 %v5164, 16
      %v5236 = vrot.slane %v5234, 3
      %v5237 = vshll.u32 %v5164, 16
      %v5239 = vrot.slane %v5237, 4
      %v5240 = vor.u32 %v5236, %v5239
      %v5241 = vsel %vm4297, %v5232, %v5240
      %v5242 = vshrl.u32 %v5166, 16
      %v5244 = vrot.slane %v5242, 3
      %v5245 = vshll.u32 %v5166, 16
      %v5247 = vrot.slane %v5245, 4
      %v5248 = vor.u32 %v5244, %v5247
      %v5249 = vsel %vm4297, %v5240, %v5248
      %v5250 = vshrl.u32 %v5168, 16
      %v5252 = vrot.slane %v5250, 3
      %v5253 = vshll.u32 %v5168, 16
      %v5255 = vrot.slane %v5253, 4
      %v5256 = vor.u32 %v5252, %v5255
      %v5257 = vsel %vm4297, %v5248, %v5256
      %v5258 = vshrl.u32 %v5170, 16
      %v5260 = vrot.slane %v5258, 3
      %v5261 = vshll.u32 %v5170, 16
      %v5263 = vrot.slane %v5261, 4
      %v5264 = vor.u32 %v5260, %v5263
      %v5265 = vsel %vm4297, %v5256, %v5264
      %v5266 = vshrl.u32 %v5172, 16
      %v5268 = vrot.slane %v5266, 3
      %v5269 = vshll.u32 %v5172, 16
      %v5271 = vrot.slane %v5269, 4
      %v5272 = vor.u32 %v5268, %v5271
      %v5273 = vsel %vm4297, %v5264, %v5272
      %v5274 = vshrl.u32 %v5174, 16
      %v5276 = vrot.slane %v5274, 3
      %v5277 = vshll.u32 %v5174, 16
      %v5279 = vrot.slane %v5277, 4
      %v5280 = vor.u32 %v5276, %v5279
      %v5281 = vsel %vm4297, %v5272, %v5280
      %v5282 = vshrl.u32 %v5176, 16
      %v5284 = vrot.slane %v5282, 3
      %v5285 = vshll.u32 %v5176, 16
      %v5287 = vrot.slane %v5285, 4
      %v5288 = vor.u32 %v5284, %v5287
      %v5289 = vsel %vm4297, %v5280, %v5288
      %v5290 = vshrl.u32 %v5178, 16
      %v5292 = vrot.slane %v5290, 3
      %v5293 = vshll.u32 %v5178, 16
      %v5295 = vrot.slane %v5293, 4
      %v5296 = vor.u32 %v5292, %v5295
      %v5297 = vsel %vm4297, %v5288, %v5296
      %v5298 = vshrl.u32 %v5180, 16
      %v5300 = vrot.slane %v5298, 3
      %v5301 = vshll.u32 %v5180, 16
      %v5303 = vrot.slane %v5301, 4
      %v5304 = vor.u32 %v5300, %v5303
      %v5305 = vsel %vm4297, %v5296, %v5304
      %v5306 = vshrl.u32 %v5182, 16
      %v5308 = vrot.slane %v5306, 3
      %v5309 = vshll.u32 %v5182, 16
      %v5311 = vrot.slane %v5309, 4
      %v5312 = vor.u32 %v5308, %v5311
      %v5313 = vsel %vm4297, %v5304, %v5312
      %v5314 = vshrl.u32 %v5184, 16
      %v5316 = vrot.slane %v5314, 3
      %v5317 = vshll.u32 %v5184, 16
      %v5319 = vrot.slane %v5317, 4
      %v5320 = vor.u32 %v5316, %v5319
      %v5321 = vsel %vm4297, %v5312, %v5320
      %v5322 = vshrl.u32 %v5186, 16
      %v5324 = vrot.slane %v5322, 3
      %v5325 = vshll.u32 %v5186, 16
      %v5327 = vrot.slane %v5325, 4
      %v5328 = vor.u32 %v5324, %v5327
      %v5329 = vsel %vm4297, %v5320, %v5328
      %v5330 = vshrl.u32 %v5188, 16
      %v5332 = vrot.slane %v5330, 3
      %v5333 = vshll.u32 %v5188, 16
      %v5335 = vrot.slane %v5333, 4
      %v5336 = vor.u32 %v5332, %v5335
      %v5337 = vsel %vm4297, %v5328, %v5336
      %v5338 = vshrl.u32 %v5190, 16
      %v5340 = vrot.slane %v5338, 3
      %v5341 = vshll.u32 %v5190, 16
      %v5343 = vrot.slane %v5341, 4
      %v5344 = vor.u32 %v5340, %v5343
      %v5345 = vsel %vm4297, %v5336, %v5344
      %v5346 = vshrl.u32 %v5192, 16
      %v5348 = vrot.slane %v5346, 3
      %v5349 = vshll.u32 %v5192, 16
      %v5351 = vrot.slane %v5349, 4
      %v5352 = vor.u32 %v5348, %v5351
      %v5353 = vsel %vm4297, %v5344, %v5352
      %v5354 = vshrl.u32 %v5194, 16
      %v5356 = vrot.slane %v5354, 3
      %v5357 = vshll.u32 %v5194, 16
      %v5359 = vrot.slane %v5357, 4
      %v5360 = vor.u32 %v5356, %v5359
      %v5361 = vsel %vm4297, %v5352, %v5360
      %v5362 = vshrl.u32 %v5196, 16
      %v5364 = vrot.slane %v5362, 3
      %v5365 = vshll.u32 %v5196, 16
      %v5367 = vrot.slane %v5365, 4
      %v5368 = vor.u32 %v5364, %v5367
      %v5369 = vsel %vm4297, %v5360, %v5368
      %v5370 = vshrl.u32 %v5198, 16
      %v5372 = vrot.slane %v5370, 3
      %v5373 = vshll.u32 %v5198, 16
      %v5375 = vrot.slane %v5373, 4
      %v5376 = vor.u32 %v5372, %v5375
      %v5377 = vsel %vm4297, %v5368, %v5376
      %v5378 = vshrl.u32 %v5200, 16
      %v5380 = vrot.slane %v5378, 3
      %v5381 = vshll.u32 %v5200, 16
      %v5383 = vrot.slane %v5381, 4
      %v5384 = vor.u32 %v5380, %v5383
      %v5385 = vsel %vm4297, %v5376, %v5384
      %v5386 = vshrl.u32 %v5202, 16
      %v5388 = vrot.slane %v5386, 3
      %v5389 = vshll.u32 %v5202, 16
      %v5391 = vrot.slane %v5389, 4
      %v5392 = vor.u32 %v5388, %v5391
      %v5393 = vsel %vm4297, %v5384, %v5392
      %v5394 = vshrl.u32 %v5204, 16
      %v5396 = vrot.slane %v5394, 3
      %v5397 = vshll.u32 %v5204, 16
      %v5399 = vrot.slane %v5397, 4
      %v5400 = vor.u32 %v5396, %v5399
      %v5401 = vsel %vm4297, %v5392, %v5400
      %v5402 = vshrl.u32 %v5206, 16
      %v5404 = vrot.slane %v5402, 3
      %v5405 = vshll.u32 %v5206, 16
      %v5407 = vrot.slane %v5405, 4
      %v5408 = vor.u32 %v5404, %v5407
      %v5409 = vsel %vm4297, %v5400, %v5408
      %v5413 = vunpack.c.l.b16 %v5208
      %v5414 = vunpack.c.l.b16 %v5209
      %v5415 = vunpack.c.l.b16 %v5210
      %v5416 = vpack.c.b16 %v5414, %v5413
      %v5417 = vpack.c.b16 %v5415, %v5415
      %v5420 = vsel %vm4011, %v5225, 0
      %v5423 = vsel %vm4011, %v5233, 0
      %v5426 = vsel %vm4011, %v5241, 0
      %v5429 = vsel %vm4011, %v5249, 0
      %v5432 = vsel %vm4011, %v5257, 0
      %v5435 = vsel %vm4011, %v5265, 0
      %v5438 = vsel %vm4011, %v5273, 0
      %v5441 = vsel %vm4011, %v5281, 0
      %v5444 = vsel %vm4011, %v5289, 0
      %v5447 = vsel %vm4011, %v5297, 0
      %v5450 = vsel %vm4011, %v5305, 0
      %v5453 = vsel %vm4011, %v5313, 0
      %v5456 = vsel %vm4011, %v5321, 0
      %v5459 = vsel %vm4011, %v5329, 0
      %v5462 = vsel %vm4011, %v5337, 0
      %v5465 = vsel %vm4011, %v5345, 0
      %v5468 = vsel %vm4011, %v5353, 0
      %v5471 = vsel %vm4011, %v5361, 0
      %v5474 = vsel %vm4011, %v5369, 0
      %v5477 = vsel %vm4011, %v5377, 0
      %v5480 = vsel %vm4011, %v5385, 0
      %v5483 = vsel %vm4011, %v5393, 0
      %v5486 = vsel %vm4011, %v5401, 0
      %v5489 = vsel %vm4011, %v5409, 0
      %v5492 = vsel %vm4084, %v5417, 0
      %5494 = vmatprep.subr.bf16.mxu0 0
      %5495 = vmatpush1.bf16.msra.mxu0 %v5416
      %5496 = vmatprep.subr.bf16.mxu0 0
      %5497 = vmatpush1.bf16.msra.mxu0 %v5492
      %5498 = vmatprep.subr.bf16.mxu0 0
      %5499 = vmatpush1.bf16.msra.mxu0 0
      %5500 = vmatprep.subr.bf16.mxu0 0
      %5501 = vmatpush1.bf16.msra.mxu0 0
      %5502 = vmatprep.subr.bf16.mxu0 0
      %5503 = vmatpush1.bf16.msra.mxu0 0
      %5504 = vmatprep.subr.bf16.mxu0 0
      %5505 = vmatpush1.bf16.msra.mxu0 0
      %5506 = vmatprep.subr.bf16.mxu0 0
      %5507 = vmatpush1.bf16.msra.mxu0 0
      %5508 = vmatprep.subr.bf16.mxu0 0
      %5509 = vmatpush1.bf16.msra.mxu0 0
      %5510 = vmatprep.subr.bf16.mxu0 0
      %5511 = vmatpush1.bf16.msra.mxu0 0
      %5512 = vmatprep.subr.bf16.mxu0 0
      %5513 = vmatpush1.bf16.msra.mxu0 0
      %5514 = vmatprep.subr.bf16.mxu0 0
      %5515 = vmatpush1.bf16.msra.mxu0 0
      %5516 = vmatprep.subr.bf16.mxu0 0
      %5517 = vmatpush1.bf16.msra.mxu0 0
      %5518 = vmatprep.subr.bf16.mxu0 0
      %5519 = vmatpush1.bf16.msra.mxu0 0
      %5520 = vmatprep.subr.bf16.mxu0 0
      %5521 = vmatpush1.bf16.msra.mxu0 0
      %5522 = vmatprep.subr.bf16.mxu0 0
      %5523 = vmatpush1.bf16.msra.mxu0 0
      %5524 = vmatprep.subr.bf16.mxu0 0
      %5525 = vmatpush1.bf16.msra.mxu0 0
      %5526 = vmatprep.mubr.bf16.mxu0 0
      %5527 = vmatmul.mubr.bf16.gmra.mrb[0].mxu0 %v5420
      %v5528 = vpop.f32.mrb[0].mxu0
      %v5529 = vadd.f32 0.0, %v5528
      %v5530 = vpop.f32.mrb[0].mxu0
      %v5531 = vpop.f32.mrb[0].mxu0
      %v5532 = vadd.f32 0.0, %v5531
      %v5533 = vpop.f32.mrb[0].mxu0
      %5534 = vmatprep.mubr.bf16.mxu0 0
      %5535 = vmatmul.mubr.bf16.gmra.mrb[0].mxu0 %v5423
      %v5536 = vpop.f32.mrb[0].mxu0
      %v5537 = vpop.f32.mrb[0].mxu0
      %v5538 = vpop.f32.mrb[0].mxu0
      %v5539 = vadd.f32 0.0, %v5538
      %v5540 = vpop.f32.mrb[0].mxu0
      %5541 = vmatprep.mubr.bf16.mxu0 0
      %5542 = vmatmul.mubr.bf16.gmra.mrb[0].mxu0 %v5426
      %v5543 = vpop.f32.mrb[0].mxu0
      %v5544 = vadd.f32 0.0, %v5543
      %v5545 = vpop.f32.mrb[0].mxu0
      %v5546 = vpop.f32.mrb[0].mxu0
      %v5547 = vpop.f32.mrb[0].mxu0
      %5548 = vmatprep.mubr.bf16.mxu0 0
      %5549 = vmatmul.mubr.bf16.gmra.mrb[0].mxu0 %v5429
      %v5550 = vpop.f32.mrb[0].mxu0
      %v5551 = vadd.f32 0.0, %v5550
      %v5552 = vpop.f32.mrb[0].mxu0
      %v5553 = vpop.f32.mrb[0].mxu0
      %v5554 = vadd.f32 0.0, %v5553
      %v5555 = vpop.f32.mrb[0].mxu0
      %5556 = vmatprep.mubr.bf16.mxu0 0
      %5557 = vmatmul.mubr.bf16.gmra.mrb[0].mxu0 %v5432
      %v5558 = vpop.f32.mrb[0].mxu0
      %v5559 = vpop.f32.mrb[0].mxu0
      %v5560 = vpop.f32.mrb[0].mxu0
      %v5561 = vadd.f32 0.0, %v5560
      %v5562 = vpop.f32.mrb[0].mxu0
      %5563 = vmatprep.mubr.bf16.mxu0 0
      %5564 = vmatmul.mubr.bf16.gmra.mrb[0].mxu0 %v5435
      %v5565 = vpop.f32.mrb[0].mxu0
      %v5566 = vadd.f32 0.0, %v5565
      %v5567 = vpop.f32.mrb[0].mxu0
      %v5568 = vpop.f32.mrb[0].mxu0
      %v5569 = vpop.f32.mrb[0].mxu0
      %5570 = vmatprep.mubr.bf16.mxu0 0
      %5571 = vmatmul.mubr.bf16.gmra.mrb[0].mxu0 %v5438
      %v5572 = vpop.f32.mrb[0].mxu0
      %v5573 = vadd.f32 0.0, %v5572
      %v5574 = vpop.f32.mrb[0].mxu0
      %v5575 = vpop.f32.mrb[0].mxu0
      %v5576 = vadd.f32 0.0, %v5575
      %v5577 = vpop.f32.mrb[0].mxu0
      %5578 = vmatprep.mubr.bf16.mxu0 0
      %5579 = vmatmul.mubr.bf16.gmra.mrb[0].mxu0 %v5441
      %v5580 = vpop.f32.mrb[0].mxu0
      %v5581 = vpop.f32.mrb[0].mxu0
      %v5582 = vpop.f32.mrb[0].mxu0
      %v5583 = vadd.f32 0.0, %v5582
      %v5584 = vpop.f32.mrb[0].mxu0
      %5585 = vmatprep.mubr.bf16.mxu0 0
      %5586 = vmatmul.mubr.bf16.gmra.mrb[0].mxu0 %v5444
      %v5587 = vpop.f32.mrb[0].mxu0
      %v5588 = vadd.f32 0.0, %v5587
      %v5589 = vpop.f32.mrb[0].mxu0
      %v5590 = vpop.f32.mrb[0].mxu0
      %v5591 = vpop.f32.mrb[0].mxu0
      %5592 = vmatprep.mubr.bf16.mxu0 0
      %5593 = vmatmul.mubr.bf16.gmra.mrb[0].mxu0 %v5447
      %v5594 = vpop.f32.mrb[0].mxu0
      %v5595 = vadd.f32 0.0, %v5594
      %v5596 = vpop.f32.mrb[0].mxu0
      %v5597 = vpop.f32.mrb[0].mxu0
      %v5598 = vadd.f32 0.0, %v5597
      %v5599 = vpop.f32.mrb[0].mxu0
      %5600 = vmatprep.mubr.bf16.mxu0 0
      %5601 = vmatmul.mubr.bf16.gmra.mrb[0].mxu0 %v5450
      %v5602 = vpop.f32.mrb[0].mxu0
      %v5603 = vpop.f32.mrb[0].mxu0
      %v5604 = vpop.f32.mrb[0].mxu0
      %v5605 = vadd.f32 0.0, %v5604
      %v5606 = vpop.f32.mrb[0].mxu0
      %5607 = vmatprep.mubr.bf16.mxu0 0
      %5608 = vmatmul.mubr.bf16.gmra.mrb[0].mxu0 %v5453
      %v5609 = vpop.f32.mrb[0].mxu0
      %v5610 = vadd.f32 0.0, %v5609
      %v5611 = vpop.f32.mrb[0].mxu0
      %v5612 = vpop.f32.mrb[0].mxu0
      %v5613 = vpop.f32.mrb[0].mxu0
      %5614 = vmatprep.mubr.bf16.mxu0 0
      %5615 = vmatmul.mubr.bf16.gmra.mrb[0].mxu0 %v5456
      %v5616 = vpop.f32.mrb[0].mxu0
      %v5617 = vadd.f32 0.0, %v5616
      %v5618 = vpop.f32.mrb[0].mxu0
      %v5619 = vpop.f32.mrb[0].mxu0
      %v5620 = vadd.f32 0.0, %v5619
      %v5621 = vpop.f32.mrb[0].mxu0
      %5622 = vmatprep.mubr.bf16.mxu0 0
      %5623 = vmatmul.mubr.bf16.gmra.mrb[0].mxu0 %v5459
      %v5624 = vpop.f32.mrb[0].mxu0
      %v5625 = vpop.f32.mrb[0].mxu0
      %v5626 = vpop.f32.mrb[0].mxu0
      %v5627 = vadd.f32 0.0, %v5626
      %v5628 = vpop.f32.mrb[0].mxu0
      %5629 = vmatprep.mubr.bf16.mxu0 0
      %5630 = vmatmul.mubr.bf16.gmra.mrb[0].mxu0 %v5462
      %v5631 = vpop.f32.mrb[0].mxu0
      %v5632 = vadd.f32 0.0, %v5631
      %v5633 = vpop.f32.mrb[0].mxu0
      %v5634 = vpop.f32.mrb[0].mxu0
      %v5635 = vpop.f32.mrb[0].mxu0
      %5636 = vmatprep.mubr.bf16.mxu0 0
      %5637 = vmatmul.mubr.bf16.gmra.mrb[0].mxu0 %v5465
      %v5638 = vpop.f32.mrb[0].mxu0
      %v5639 = vadd.f32 0.0, %v5638
      %v5640 = vpop.f32.mrb[0].mxu0
      %v5641 = vpop.f32.mrb[0].mxu0
      %v5642 = vadd.f32 0.0, %v5641
      %v5643 = vpop.f32.mrb[0].mxu0
      %5644 = vmatprep.mubr.bf16.mxu0 0
      %5645 = vmatmul.mubr.bf16.gmra.mrb[0].mxu0 %v5468
      %v5646 = vpop.f32.mrb[0].mxu0
      %v5647 = vpop.f32.mrb[0].mxu0
      %v5648 = vpop.f32.mrb[0].mxu0
      %v5649 = vadd.f32 0.0, %v5648
      %v5650 = vpop.f32.mrb[0].mxu0
      %5651 = vmatprep.mubr.bf16.mxu0 0
      %5652 = vmatmul.mubr.bf16.gmra.mrb[0].mxu0 %v5471
      %v5653 = vpop.f32.mrb[0].mxu0
      %v5654 = vadd.f32 0.0, %v5653
      %v5655 = vpop.f32.mrb[0].mxu0
      %v5656 = vpop.f32.mrb[0].mxu0
      %v5657 = vpop.f32.mrb[0].mxu0
      %5658 = vmatprep.mubr.bf16.mxu0 0
      %5659 = vmatmul.mubr.bf16.gmra.mrb[0].mxu0 %v5474
      %v5660 = vpop.f32.mrb[0].mxu0
      %v5661 = vadd.f32 0.0, %v5660
      %v5662 = vpop.f32.mrb[0].mxu0
      %v5663 = vpop.f32.mrb[0].mxu0
      %v5664 = vadd.f32 0.0, %v5663
      %v5665 = vpop.f32.mrb[0].mxu0
      %5666 = vmatprep.mubr.bf16.mxu0 0
      %5667 = vmatmul.mubr.bf16.gmra.mrb[0].mxu0 %v5477
      %v5668 = vpop.f32.mrb[0].mxu0
      %v5669 = vpop.f32.mrb[0].mxu0
      %v5670 = vpop.f32.mrb[0].mxu0
      %v5671 = vadd.f32 0.0, %v5670
      %v5672 = vpop.f32.mrb[0].mxu0
      %5673 = vmatprep.mubr.bf16.mxu0 0
      %5674 = vmatmul.mubr.bf16.gmra.mrb[0].mxu0 %v5480
      %v5675 = vpop.f32.mrb[0].mxu0
      %v5676 = vadd.f32 0.0, %v5675
      %v5677 = vpop.f32.mrb[0].mxu0
      %v5678 = vpop.f32.mrb[0].mxu0
      %v5679 = vpop.f32.mrb[0].mxu0
      %5680 = vmatprep.mubr.bf16.mxu0 0
      %5681 = vmatmul.mubr.bf16.gmra.mrb[0].mxu0 %v5483
      %v5682 = vpop.f32.mrb[0].mxu0
      %v5683 = vadd.f32 0.0, %v5682
      %v5684 = vpop.f32.mrb[0].mxu0
      %v5685 = vpop.f32.mrb[0].mxu0
      %v5686 = vadd.f32 0.0, %v5685
      %v5687 = vpop.f32.mrb[0].mxu0
      %5688 = vmatprep.mubr.bf16.mxu0 0
      %5689 = vmatmul.mubr.bf16.gmra.mrb[0].mxu0 %v5486
      %v5690 = vpop.f32.mrb[0].mxu0
      %v5691 = vpop.f32.mrb[0].mxu0
      %v5692 = vpop.f32.mrb[0].mxu0
      %v5693 = vadd.f32 0.0, %v5692
      %v5694 = vpop.f32.mrb[0].mxu0
      %5695 = vmatprep.mubr.bf16.mxu0 0
      %5696 = vmatmul.mubr.bf16.gmra.mrb[0].mxu0 %v5489
      %v5697 = vpop.f32.mrb[0].mxu0
      %v5698 = vadd.f32 0.0, %v5697
      %v5699 = vpop.f32.mrb[0].mxu0
      %v5700 = vpop.f32.mrb[0].mxu0
      %v5701 = vpop.f32.mrb[0].mxu0
      %5702 = vdwg.mxu0
      %v5703 = vadd.f32 %v4532, %v5529
      %v5704 = vadd.f32 %v4535, %v5532
      %v5705 = vadd.f32 %v4542, %v5539
      %v5706 = vadd.f32 %v4547, %v5544
      %v5707 = vadd.f32 %v4554, %v5551
      %v5708 = vadd.f32 %v4557, %v5554
      %v5709 = vadd.f32 %v4564, %v5561
      %v5710 = vadd.f32 %v4569, %v5566
      %v5711 = vadd.f32 %v4576, %v5573
      %v5712 = vadd.f32 %v4579, %v5576
      %v5713 = vadd.f32 %v4586, %v5583
      %v5714 = vadd.f32 %v4591, %v5588
      %v5715 = vadd.f32 %v4598, %v5595
      %v5716 = vadd.f32 %v4601, %v5598
      %v5717 = vadd.f32 %v4608, %v5605
      %v5718 = vadd.f32 %v4613, %v5610
      %v5719 = vadd.f32 %v4620, %v5617
      %v5720 = vadd.f32 %v4623, %v5620
      %v5721 = vadd.f32 %v4630, %v5627
      %v5722 = vadd.f32 %v4635, %v5632
      %v5723 = vadd.f32 %v4642, %v5639
      %v5724 = vadd.f32 %v4645, %v5642
      %v5725 = vadd.f32 %v4652, %v5649
      %v5726 = vadd.f32 %v4657, %v5654
      %v5727 = vadd.f32 %v4664, %v5661
      %v5728 = vadd.f32 %v4667, %v5664
      %v5729 = vadd.f32 %v4674, %v5671
      %v5730 = vadd.f32 %v4679, %v5676
      %v5731 = vadd.f32 %v4686, %v5683
      %v5732 = vadd.f32 %v4689, %v5686
      %v5733 = vadd.f32 %v4696, %v5693
      %v5734 = vadd.f32 %v4701, %v5698
      %v5735 = vld [vmem:[%s4] sm:$0x1]
      %v5737 = vlaneseq
      %v5738 = vshrl.u32 %v5737, 7
      %v5739 = vsub.s32 0, %v5738
      %v5740 = vrot.slane %v5735, %v5739
      %v5742 = vadd.f32 %v5703, %v5740
      %v5743 = vadd.f32 %v5704, %v5740
      %v5744 = vadd.f32 %v5705, %v5740
      %v5745 = vadd.f32 %v5706, %v5740
      %v5746 = vadd.f32 %v5707, %v5740
      %v5747 = vadd.f32 %v5708, %v5740
      %v5748 = vadd.f32 %v5709, %v5740
      %v5749 = vadd.f32 %v5710, %v5740
      %v5750 = vadd.f32 %v5711, %v5740
      %v5751 = vadd.f32 %v5712, %v5740
      %v5752 = vadd.f32 %v5713, %v5740
      %v5753 = vadd.f32 %v5714, %v5740
      %v5754 = vadd.f32 %v5715, %v5740
      %v5755 = vadd.f32 %v5716, %v5740
      %v5756 = vadd.f32 %v5717, %v5740
      %v5757 = vadd.f32 %v5718, %v5740
      %v5758 = vadd.f32 %v5719, %v5740
      %v5759 = vadd.f32 %v5720, %v5740
      %v5760 = vadd.f32 %v5721, %v5740
      %v5761 = vadd.f32 %v5722, %v5740
      %v5762 = vadd.f32 %v5723, %v5740
      %v5763 = vadd.f32 %v5724, %v5740
      %v5764 = vadd.f32 %v5725, %v5740
      %v5765 = vadd.f32 %v5726, %v5740
      %v5766 = vadd.f32 %v5727, %v5740
      %v5767 = vadd.f32 %v5728, %v5740
      %v5768 = vadd.f32 %v5729, %v5740
      %v5769 = vadd.f32 %v5730, %v5740
      %v5770 = vadd.f32 %v5731, %v5740
      %v5771 = vadd.f32 %v5732, %v5740
      %v5772 = vadd.f32 %v5733, %v5740
      %v5773 = vadd.f32 %v5734, %v5740
      %v5774 = vmax.f32 %v5742, 0.0
      %v5775 = vmax.f32 %v5743, 0.0
      %v5776 = vmax.f32 %v5744, 0.0
      %v5777 = vmax.f32 %v5745, 0.0
      %v5778 = vmax.f32 %v5746, 0.0
      %v5779 = vmax.f32 %v5747, 0.0
      %v5780 = vmax.f32 %v5748, 0.0
      %v5781 = vmax.f32 %v5749, 0.0
      %v5782 = vmax.f32 %v5750, 0.0
      %v5783 = vmax.f32 %v5751, 0.0
      %v5784 = vmax.f32 %v5752, 0.0
      %v5785 = vmax.f32 %v5753, 0.0
      %v5786 = vmax.f32 %v5754, 0.0
      %v5787 = vmax.f32 %v5755, 0.0
      %v5788 = vmax.f32 %v5756, 0.0
      %v5789 = vmax.f32 %v5757, 0.0
      %v5790 = vmax.f32 %v5758, 0.0
      %v5791 = vmax.f32 %v5759, 0.0
      %v5792 = vmax.f32 %v5760, 0.0
      %v5793 = vmax.f32 %v5761, 0.0
      %v5794 = vmax.f32 %v5762, 0.0
      %v5795 = vmax.f32 %v5763, 0.0
      %v5796 = vmax.f32 %v5764, 0.0
      %v5797 = vmax.f32 %v5765, 0.0
      %v5798 = vmax.f32 %v5766, 0.0
      %v5799 = vmax.f32 %v5767, 0.0
      %v5800 = vmax.f32 %v5768, 0.0
      %v5801 = vmax.f32 %v5769, 0.0
      %v5802 = vmax.f32 %v5770, 0.0
      %v5803 = vmax.f32 %v5771, 0.0
      %v5804 = vmax.f32 %v5772, 0.0
      %v5805 = vmax.f32 %v5773, 0.0
      %v5806 = vld [vmem:[#allocation4 + $0x8] sm:$0xf8]
      %v5807 = vld [vmem:[#allocation4 + $0x10] sm:$0xff]
      %v5808 = vld [vmem:[#allocation4 + $0x18] sm:$0xff]
      %v5809 = vld [vmem:[#allocation4 + $0x20] sm:$0xff]
      %v5810 = vld [vmem:[#allocation4 + $0x28] sm:$0xff]
      %v5811 = vld [vmem:[#allocation4 + $0x30] sm:$0xff]
      %v5812 = vld [vmem:[#allocation4 + $0x38] sm:$0xff]
      %v5813 = vld [vmem:[#allocation4 + $0x40] sm:$0xff]
      %v5814 = vld [vmem:[#allocation4 + $0x48] sm:$0xff]
      %v5815 = vld [vmem:[#allocation4 + $0x50] sm:$0xff]
      %v5816 = vld [vmem:[#allocation4 + $0x58] sm:$0xff]
      %v5817 = vld [vmem:[#allocation4 + $0x60] sm:$0xff]
      %v5818 = vld [vmem:[#allocation4 + $0x68] sm:$0xff]
      %v5819 = vld [vmem:[#allocation4 + $0x70] sm:$0xff]
      %v5820 = vld [vmem:[#allocation4 + $0x78] sm:$0xff]
      %v5821 = vld [vmem:[#allocation4 + $0x80] sm:$0xff]
      %v5822 = vld [vmem:[#allocation4 + $0x88] sm:$0xff]
      %v5823 = vld [vmem:[#allocation4 + $0x90] sm:$0xff]
      %v5824 = vld [vmem:[#allocation4 + $0x98] sm:$0xff]
      %v5825 = vld [vmem:[#allocation4 + $0xa0] sm:$0xff]
      %v5826 = vld [vmem:[#allocation4 + $0xa8] sm:$0xff]
      %v5827 = vld [vmem:[#allocation4 + $0xb0] sm:$0xff]
      %v5828 = vld [vmem:[#allocation4 + $0xb8] sm:$0xff]
      %v5829 = vld [vmem:[#allocation4 + $0xc0] sm:$0xff]
      %v5830 = vld [vmem:[#allocation4 + $0xc8] sm:$0x7]
      %v5831 = vld [vmem:[#allocation4 + $0xc8] sm:$0xf]
      %v5832 = vld [vmem:[#allocation4 + $0x8] sm:$0xf0]
      %v5833 = vld [vmem:[#allocation4 + $0xc8] sm:$0x1f]
      %v5834 = vld [vmem:[#allocation4 + $0x8] sm:$0xe0]
      %v5836 = vshrl.u32 %v5806, 16
      %v5838 = vshll.u32 %v5806, 16
      %v5840 = vrot.slane %v5838, 1
      %v5841 = vor.u32 %v5836, %v5840
      %v5843 = vshll.u32 %v5807, 16
      %v5845 = vrot.slane %v5843, 1
      %v5846 = vsel %vm3284, %v5841, %v5845
      %v5847 = vshrl.u32 %v5807, 16
      %v5849 = vor.u32 %v5847, %v5845
      %v5851 = vshll.u32 %v5808, 16
      %v5853 = vrot.slane %v5851, 1
      %v5854 = vsel %vm3284, %v5849, %v5853
      %v5855 = vshrl.u32 %v5808, 16
      %v5857 = vor.u32 %v5855, %v5853
      %v5859 = vshll.u32 %v5809, 16
      %v5861 = vrot.slane %v5859, 1
      %v5862 = vsel %vm3284, %v5857, %v5861
      %v5863 = vshrl.u32 %v5809, 16
      %v5865 = vor.u32 %v5863, %v5861
      %v5867 = vshll.u32 %v5810, 16
      %v5869 = vrot.slane %v5867, 1
      %v5870 = vsel %vm3284, %v5865, %v5869
      %v5871 = vshrl.u32 %v5810, 16
      %v5873 = vor.u32 %v5871, %v5869
      %v5875 = vshll.u32 %v5811, 16
      %v5877 = vrot.slane %v5875, 1
      %v5878 = vsel %vm3284, %v5873, %v5877
      %v5879 = vshrl.u32 %v5811, 16
      %v5881 = vor.u32 %v5879, %v5877
      %v5883 = vshll.u32 %v5812, 16
      %v5885 = vrot.slane %v5883, 1
      %v5886 = vsel %vm3284, %v5881, %v5885
      %v5887 = vshrl.u32 %v5812, 16
      %v5889 = vor.u32 %v5887, %v5885
      %v5891 = vshll.u32 %v5813, 16
      %v5893 = vrot.slane %v5891, 1
      %v5894 = vsel %vm3284, %v5889, %v5893
      %v5895 = vshrl.u32 %v5813, 16
      %v5897 = vor.u32 %v5895, %v5893
      %v5899 = vshll.u32 %v5814, 16
      %v5901 = vrot.slane %v5899, 1
      %v5902 = vsel %vm3284, %v5897, %v5901
      %v5903 = vshrl.u32 %v5814, 16
      %v5905 = vor.u32 %v5903, %v5901
      %v5907 = vshll.u32 %v5815, 16
      %v5909 = vrot.slane %v5907, 1
      %v5910 = vsel %vm3284, %v5905, %v5909
      %v5911 = vshrl.u32 %v5815, 16
      %v5913 = vor.u32 %v5911, %v5909
      %v5915 = vshll.u32 %v5816, 16
      %v5917 = vrot.slane %v5915, 1
      %v5918 = vsel %vm3284, %v5913, %v5917
      %v5919 = vshrl.u32 %v5816, 16
      %v5921 = vor.u32 %v5919, %v5917
      %v5923 = vshll.u32 %v5817, 16
      %v5925 = vrot.slane %v5923, 1
      %v5926 = vsel %vm3284, %v5921, %v5925
      %v5927 = vshrl.u32 %v5817, 16
      %v5929 = vor.u32 %v5927, %v5925
      %v5931 = vshll.u32 %v5818, 16
      %v5933 = vrot.slane %v5931, 1
      %v5934 = vsel %vm3284, %v5929, %v5933
      %v5935 = vshrl.u32 %v5818, 16
      %v5937 = vor.u32 %v5935, %v5933
      %v5939 = vshll.u32 %v5819, 16
      %v5941 = vrot.slane %v5939, 1
      %v5942 = vsel %vm3284, %v5937, %v5941
      %v5943 = vshrl.u32 %v5819, 16
      %v5945 = vor.u32 %v5943, %v5941
      %v5947 = vshll.u32 %v5820, 16
      %v5949 = vrot.slane %v5947, 1
      %v5950 = vsel %vm3284, %v5945, %v5949
      %v5951 = vshrl.u32 %v5820, 16
      %v5953 = vor.u32 %v5951, %v5949
      %v5955 = vshll.u32 %v5821, 16
      %v5957 = vrot.slane %v5955, 1
      %v5958 = vsel %vm3284, %v5953, %v5957
      %v5959 = vshrl.u32 %v5821, 16
      %v5961 = vor.u32 %v5959, %v5957
      %v5963 = vshll.u32 %v5822, 16
      %v5965 = vrot.slane %v5963, 1
      %v5966 = vsel %vm3284, %v5961, %v5965
      %v5967 = vshrl.u32 %v5822, 16
      %v5969 = vor.u32 %v5967, %v5965
      %v5971 = vshll.u32 %v5823, 16
      %v5973 = vrot.slane %v5971, 1
      %v5974 = vsel %vm3284, %v5969, %v5973
      %v5975 = vshrl.u32 %v5823, 16
      %v5977 = vor.u32 %v5975, %v5973
      %v5979 = vshll.u32 %v5824, 16
      %v5981 = vrot.slane %v5979, 1
      %v5982 = vsel %vm3284, %v5977, %v5981
      %v5983 = vshrl.u32 %v5824, 16
      %v5985 = vor.u32 %v5983, %v5981
      %v5987 = vshll.u32 %v5825, 16
      %v5989 = vrot.slane %v5987, 1
      %v5990 = vsel %vm3284, %v5985, %v5989
      %v5991 = vshrl.u32 %v5825, 16
      %v5993 = vor.u32 %v5991, %v5989
      %v5995 = vshll.u32 %v5826, 16
      %v5997 = vrot.slane %v5995, 1
      %v5998 = vsel %vm3284, %v5993, %v5997
      %v5999 = vshrl.u32 %v5826, 16
      %v6001 = vor.u32 %v5999, %v5997
      %v6003 = vshll.u32 %v5827, 16
      %v6005 = vrot.slane %v6003, 1
      %v6006 = vsel %vm3284, %v6001, %v6005
      %v6007 = vshrl.u32 %v5827, 16
      %v6009 = vor.u32 %v6007, %v6005
      %v6011 = vshll.u32 %v5828, 16
      %v6013 = vrot.slane %v6011, 1
      %v6014 = vsel %vm3284, %v6009, %v6013
      %v6015 = vshrl.u32 %v5828, 16
      %v6017 = vor.u32 %v6015, %v6013
      %v6019 = vshll.u32 %v5829, 16
      %v6021 = vrot.slane %v6019, 1
      %v6022 = vsel %vm3284, %v6017, %v6021
      %v6023 = vshrl.u32 %v5829, 16
      %v6025 = vor.u32 %v6023, %v6021
      %v6027 = vshll.u32 %v5831, 16
      %v6029 = vrot.slane %v6027, 1
      %v6030 = vsel %vm3284, %v6025, %v6029
      %v6031 = vshrl.u32 %v5831, 16
      %v6033 = vor.u32 %v6031, %v6029
      %6034 = vrot.lane.b32.xlu0 %v5846, 4
      %v6035 = vpop.permute.xlu0 %6034
      %6036 = vrot.lane.b32.xlu0 %v5854, 4
      %v6037 = vpop.permute.xlu0 %6036
      %6038 = vrot.lane.b32.xlu0 %v5862, 4
      %v6039 = vpop.permute.xlu0 %6038
      %6040 = vrot.lane.b32.xlu0 %v5870, 4
      %v6041 = vpop.permute.xlu0 %6040
      %6042 = vrot.lane.b32.xlu0 %v5878, 4
      %v6043 = vpop.permute.xlu0 %6042
      %6044 = vrot.lane.b32.xlu0 %v5886, 4
      %v6045 = vpop.permute.xlu0 %6044
      %6046 = vrot.lane.b32.xlu0 %v5894, 4
      %v6047 = vpop.permute.xlu0 %6046
      %6048 = vrot.lane.b32.xlu0 %v5902, 4
      %v6049 = vpop.permute.xlu0 %6048
      %6050 = vrot.lane.b32.xlu0 %v5910, 4
      %v6051 = vpop.permute.xlu0 %6050
      %6052 = vrot.lane.b32.xlu0 %v5918, 4
      %v6053 = vpop.permute.xlu0 %6052
      %6054 = vrot.lane.b32.xlu0 %v5926, 4
      %v6055 = vpop.permute.xlu0 %6054
      %6056 = vrot.lane.b32.xlu0 %v5934, 4
      %v6057 = vpop.permute.xlu0 %6056
      %6058 = vrot.lane.b32.xlu0 %v5942, 4
      %v6059 = vpop.permute.xlu0 %6058
      %6060 = vrot.lane.b32.xlu0 %v5950, 4
      %v6061 = vpop.permute.xlu0 %6060
      %6062 = vrot.lane.b32.xlu0 %v5958, 4
      %v6063 = vpop.permute.xlu0 %6062
      %6064 = vrot.lane.b32.xlu0 %v5966, 4
      %v6065 = vpop.permute.xlu0 %6064
      %6066 = vrot.lane.b32.xlu0 %v5974, 4
      %v6067 = vpop.permute.xlu0 %6066
      %6068 = vrot.lane.b32.xlu0 %v5982, 4
      %v6069 = vpop.permute.xlu0 %6068
      %6070 = vrot.lane.b32.xlu0 %v5990, 4
      %v6071 = vpop.permute.xlu0 %6070
      %6072 = vrot.lane.b32.xlu0 %v5998, 4
      %v6073 = vpop.permute.xlu0 %6072
      %6074 = vrot.lane.b32.xlu0 %v6006, 4
      %v6075 = vpop.permute.xlu0 %6074
      %6076 = vrot.lane.b32.xlu0 %v6014, 4
      %v6077 = vpop.permute.xlu0 %6076
      %6078 = vrot.lane.b32.xlu0 %v6022, 4
      %v6079 = vpop.permute.xlu0 %6078
      %6080 = vrot.lane.b32.xlu0 %v6030, 4
      %v6081 = vpop.permute.xlu0 %6080
      %6082 = vrot.lane.b32.xlu0 %v6033, 4
      %v6083 = vpop.permute.xlu0 %6082
      %v6109 = vrot.slane %v5832, 1
      %v6110 = vrot.slane %v5807, 1
      %v6111 = vsel %vm3559, %v6109, %v6110
      %v6112 = vrot.slane %v5808, 1
      %v6113 = vsel %vm3559, %v6110, %v6112
      %v6114 = vrot.slane %v5809, 1
      %v6115 = vsel %vm3559, %v6112, %v6114
      %v6116 = vrot.slane %v5810, 1
      %v6117 = vsel %vm3559, %v6114, %v6116
      %v6118 = vrot.slane %v5811, 1
      %v6119 = vsel %vm3559, %v6116, %v6118
      %v6120 = vrot.slane %v5812, 1
      %v6121 = vsel %vm3559, %v6118, %v6120
      %v6122 = vrot.slane %v5813, 1
      %v6123 = vsel %vm3559, %v6120, %v6122
      %v6124 = vrot.slane %v5814, 1
      %v6125 = vsel %vm3559, %v6122, %v6124
      %v6126 = vrot.slane %v5815, 1
      %v6127 = vsel %vm3559, %v6124, %v6126
      %v6128 = vrot.slane %v5816, 1
      %v6129 = vsel %vm3559, %v6126, %v6128
      %v6130 = vrot.slane %v5817, 1
      %v6131 = vsel %vm3559, %v6128, %v6130
      %v6132 = vrot.slane %v5818, 1
      %v6133 = vsel %vm3559, %v6130, %v6132
      %v6134 = vrot.slane %v5819, 1
      %v6135 = vsel %vm3559, %v6132, %v6134
      %v6136 = vrot.slane %v5820, 1
      %v6137 = vsel %vm3559, %v6134, %v6136
      %v6138 = vrot.slane %v5821, 1
      %v6139 = vsel %vm3559, %v6136, %v6138
      %v6140 = vrot.slane %v5822, 1
      %v6141 = vsel %vm3559, %v6138, %v6140
      %v6142 = vrot.slane %v5823, 1
      %v6143 = vsel %vm3559, %v6140, %v6142
      %v6144 = vrot.slane %v5824, 1
      %v6145 = vsel %vm3559, %v6142, %v6144
      %v6146 = vrot.slane %v5825, 1
      %v6147 = vsel %vm3559, %v6144, %v6146
      %v6148 = vrot.slane %v5826, 1
      %v6149 = vsel %vm3559, %v6146, %v6148
      %v6150 = vrot.slane %v5827, 1
      %v6151 = vsel %vm3559, %v6148, %v6150
      %v6152 = vrot.slane %v5828, 1
      %v6153 = vsel %vm3559, %v6150, %v6152
      %v6154 = vrot.slane %v5829, 1
      %v6155 = vsel %vm3559, %v6152, %v6154
      %v6156 = vrot.slane %v5831, 1
      %v6157 = vsel %vm3559, %v6154, %v6156
      %6158 = vrot.lane.b32.xlu0 %v6111, 8
      %v6159 = vpop.permute.xlu0 %6158
      %6160 = vrot.lane.b32.xlu0 %v6113, 8
      %v6161 = vpop.permute.xlu0 %6160
      %6162 = vrot.lane.b32.xlu0 %v6115, 8
      %v6163 = vpop.permute.xlu0 %6162
      %6164 = vrot.lane.b32.xlu0 %v6117, 8
      %v6165 = vpop.permute.xlu0 %6164
      %6166 = vrot.lane.b32.xlu0 %v6119, 8
      %v6167 = vpop.permute.xlu0 %6166
      %6168 = vrot.lane.b32.xlu0 %v6121, 8
      %v6169 = vpop.permute.xlu0 %6168
      %6170 = vrot.lane.b32.xlu0 %v6123, 8
      %v6171 = vpop.permute.xlu0 %6170
      %6172 = vrot.lane.b32.xlu0 %v6125, 8
      %v6173 = vpop.permute.xlu0 %6172
      %6174 = vrot.lane.b32.xlu0 %v6127, 8
      %v6175 = vpop.permute.xlu0 %6174
      %6176 = vrot.lane.b32.xlu0 %v6129, 8
      %v6177 = vpop.permute.xlu0 %6176
      %6178 = vrot.lane.b32.xlu0 %v6131, 8
      %v6179 = vpop.permute.xlu0 %6178
      %6180 = vrot.lane.b32.xlu0 %v6133, 8
      %v6181 = vpop.permute.xlu0 %6180
      %6182 = vrot.lane.b32.xlu0 %v6135, 8
      %v6183 = vpop.permute.xlu0 %6182
      %6184 = vrot.lane.b32.xlu0 %v6137, 8
      %v6185 = vpop.permute.xlu0 %6184
      %6186 = vrot.lane.b32.xlu0 %v6139, 8
      %v6187 = vpop.permute.xlu0 %6186
      %6188 = vrot.lane.b32.xlu0 %v6141, 8
      %v6189 = vpop.permute.xlu0 %6188
      %6190 = vrot.lane.b32.xlu0 %v6143, 8
      %v6191 = vpop.permute.xlu0 %6190
      %6192 = vrot.lane.b32.xlu0 %v6145, 8
      %v6193 = vpop.permute.xlu0 %6192
      %6194 = vrot.lane.b32.xlu0 %v6147, 8
      %v6195 = vpop.permute.xlu0 %6194
      %6196 = vrot.lane.b32.xlu0 %v6149, 8
      %v6197 = vpop.permute.xlu0 %6196
      %6198 = vrot.lane.b32.xlu0 %v6151, 8
      %v6199 = vpop.permute.xlu0 %6198
      %6200 = vrot.lane.b32.xlu0 %v6153, 8
      %v6201 = vpop.permute.xlu0 %6200
      %6202 = vrot.lane.b32.xlu0 %v6155, 8
      %v6203 = vpop.permute.xlu0 %6202
      %6204 = vrot.lane.b32.xlu0 %v6157, 8
      %v6205 = vpop.permute.xlu0 %6204
      %6206 = vrot.lane.b32.xlu0 %v6156, 8
      %v6207 = vpop.permute.xlu0 %6206
      %vm6208 = vsmask.f32 6400
      %v6210 = vshrl.u32 %v5832, 16
      %v6212 = vrot.slane %v6210, 1
      %v6213 = vshll.u32 %v5832, 16
      %v6215 = vrot.slane %v6213, 2
      %v6216 = vor.u32 %v6212, %v6215
      %v6217 = vrot.slane %v5847, 1
      %v6218 = vrot.slane %v5843, 2
      %v6219 = vor.u32 %v6217, %v6218
      %v6220 = vsel %vm6208, %v6216, %v6219
      %v6221 = vrot.slane %v5855, 1
      %v6222 = vrot.slane %v5851, 2
      %v6223 = vor.u32 %v6221, %v6222
      %v6224 = vsel %vm6208, %v6219, %v6223
      %v6225 = vrot.slane %v5863, 1
      %v6226 = vrot.slane %v5859, 2
      %v6227 = vor.u32 %v6225, %v6226
      %v6228 = vsel %vm6208, %v6223, %v6227
      %v6229 = vrot.slane %v5871, 1
      %v6230 = vrot.slane %v5867, 2
      %v6231 = vor.u32 %v6229, %v6230
      %v6232 = vsel %vm6208, %v6227, %v6231
      %v6233 = vrot.slane %v5879, 1
      %v6234 = vrot.slane %v5875, 2
      %v6235 = vor.u32 %v6233, %v6234
      %v6236 = vsel %vm6208, %v6231, %v6235
      %v6237 = vrot.slane %v5887, 1
      %v6238 = vrot.slane %v5883, 2
      %v6239 = vor.u32 %v6237, %v6238
      %v6240 = vsel %vm6208, %v6235, %v6239
      %v6241 = vrot.slane %v5895, 1
      %v6242 = vrot.slane %v5891, 2
      %v6243 = vor.u32 %v6241, %v6242
      %v6244 = vsel %vm6208, %v6239, %v6243
      %v6245 = vrot.slane %v5903, 1
      %v6246 = vrot.slane %v5899, 2
      %v6247 = vor.u32 %v6245, %v6246
      %v6248 = vsel %vm6208, %v6243, %v6247
      %v6249 = vrot.slane %v5911, 1
      %v6250 = vrot.slane %v5907, 2
      %v6251 = vor.u32 %v6249, %v6250
      %v6252 = vsel %vm6208, %v6247, %v6251
      %v6253 = vrot.slane %v5919, 1
      %v6254 = vrot.slane %v5915, 2
      %v6255 = vor.u32 %v6253, %v6254
      %v6256 = vsel %vm6208, %v6251, %v6255
      %v6257 = vrot.slane %v5927, 1
      %v6258 = vrot.slane %v5923, 2
      %v6259 = vor.u32 %v6257, %v6258
      %v6260 = vsel %vm6208, %v6255, %v6259
      %v6261 = vrot.slane %v5935, 1
      %v6262 = vrot.slane %v5931, 2
      %v6263 = vor.u32 %v6261, %v6262
      %v6264 = vsel %vm6208, %v6259, %v6263
      %v6265 = vrot.slane %v5943, 1
      %v6266 = vrot.slane %v5939, 2
      %v6267 = vor.u32 %v6265, %v6266
      %v6268 = vsel %vm6208, %v6263, %v6267
      %v6269 = vrot.slane %v5951, 1
      %v6270 = vrot.slane %v5947, 2
      %v6271 = vor.u32 %v6269, %v6270
      %v6272 = vsel %vm6208, %v6267, %v6271
      %v6273 = vrot.slane %v5959, 1
      %v6274 = vrot.slane %v5955, 2
      %v6275 = vor.u32 %v6273, %v6274
      %v6276 = vsel %vm6208, %v6271, %v6275
      %v6277 = vrot.slane %v5967, 1
      %v6278 = vrot.slane %v5963, 2
      %v6279 = vor.u32 %v6277, %v6278
      %v6280 = vsel %vm6208, %v6275, %v6279
      %v6281 = vrot.slane %v5975, 1
      %v6282 = vrot.slane %v5971, 2
      %v6283 = vor.u32 %v6281, %v6282
      %v6284 = vsel %vm6208, %v6279, %v6283
      %v6285 = vrot.slane %v5983, 1
      %v6286 = vrot.slane %v5979, 2
      %v6287 = vor.u32 %v6285, %v6286
      %v6288 = vsel %vm6208, %v6283, %v6287
      %v6289 = vrot.slane %v5991, 1
      %v6290 = vrot.slane %v5987, 2
      %v6291 = vor.u32 %v6289, %v6290
      %v6292 = vsel %vm6208, %v6287, %v6291
      %v6293 = vrot.slane %v5999, 1
      %v6294 = vrot.slane %v5995, 2
      %v6295 = vor.u32 %v6293, %v6294
      %v6296 = vsel %vm6208, %v6291, %v6295
      %v6297 = vrot.slane %v6007, 1
      %v6298 = vrot.slane %v6003, 2
      %v6299 = vor.u32 %v6297, %v6298
      %v6300 = vsel %vm6208, %v6295, %v6299
      %v6301 = vrot.slane %v6015, 1
      %v6302 = vrot.slane %v6011, 2
      %v6303 = vor.u32 %v6301, %v6302
      %v6304 = vsel %vm6208, %v6299, %v6303
      %v6305 = vrot.slane %v6023, 1
      %v6306 = vrot.slane %v6019, 2
      %v6307 = vor.u32 %v6305, %v6306
      %v6308 = vsel %vm6208, %v6303, %v6307
      %v6310 = vshrl.u32 %v5833, 16
      %v6312 = vrot.slane %v6310, 1
      %v6313 = vshll.u32 %v5833, 16
      %v6315 = vrot.slane %v6313, 2
      %v6316 = vor.u32 %v6312, %v6315
      %v6317 = vsel %vm6208, %v6307, %v6316
      %6318 = vrot.lane.b32.xlu0 %v6220, 12
      %v6319 = vpop.permute.xlu0 %6318
      %6320 = vrot.lane.b32.xlu0 %v6224, 12
      %v6321 = vpop.permute.xlu0 %6320
      %6322 = vrot.lane.b32.xlu0 %v6228, 12
      %v6323 = vpop.permute.xlu0 %6322
      %6324 = vrot.lane.b32.xlu0 %v6232, 12
      %v6325 = vpop.permute.xlu0 %6324
      %6326 = vrot.lane.b32.xlu0 %v6236, 12
      %v6327 = vpop.permute.xlu0 %6326
      %6328 = vrot.lane.b32.xlu0 %v6240, 12
      %v6329 = vpop.permute.xlu0 %6328
      %6330 = vrot.lane.b32.xlu0 %v6244, 12
      %v6331 = vpop.permute.xlu0 %6330
      %6332 = vrot.lane.b32.xlu0 %v6248, 12
      %v6333 = vpop.permute.xlu0 %6332
      %6334 = vrot.lane.b32.xlu0 %v6252, 12
      %v6335 = vpop.permute.xlu0 %6334
      %6336 = vrot.lane.b32.xlu0 %v6256, 12
      %v6337 = vpop.permute.xlu0 %6336
      %6338 = vrot.lane.b32.xlu0 %v6260, 12
      %v6339 = vpop.permute.xlu0 %6338
      %6340 = vrot.lane.b32.xlu0 %v6264, 12
      %v6341 = vpop.permute.xlu0 %6340
      %6342 = vrot.lane.b32.xlu0 %v6268, 12
      %v6343 = vpop.permute.xlu0 %6342
      %6344 = vrot.lane.b32.xlu0 %v6272, 12
      %v6345 = vpop.permute.xlu0 %6344
      %6346 = vrot.lane.b32.xlu0 %v6276, 12
      %v6347 = vpop.permute.xlu0 %6346
      %6348 = vrot.lane.b32.xlu0 %v6280, 12
      %v6349 = vpop.permute.xlu0 %6348
      %6350 = vrot.lane.b32.xlu0 %v6284, 12
      %v6351 = vpop.permute.xlu0 %6350
      %6352 = vrot.lane.b32.xlu0 %v6288, 12
      %v6353 = vpop.permute.xlu0 %6352
      %6354 = vrot.lane.b32.xlu0 %v6292, 12
      %v6355 = vpop.permute.xlu0 %6354
      %6356 = vrot.lane.b32.xlu0 %v6296, 12
      %v6357 = vpop.permute.xlu0 %6356
      %6358 = vrot.lane.b32.xlu0 %v6300, 12
      %v6359 = vpop.permute.xlu0 %6358
      %6360 = vrot.lane.b32.xlu0 %v6304, 12
      %v6361 = vpop.permute.xlu0 %6360
      %6362 = vrot.lane.b32.xlu0 %v6308, 12
      %v6363 = vpop.permute.xlu0 %6362
      %6364 = vrot.lane.b32.xlu0 %v6317, 12
      %v6365 = vpop.permute.xlu0 %6364
      %6366 = vrot.lane.b32.xlu0 %v6316, 12
      %v6367 = vpop.permute.xlu0 %6366
      %vm6370 = vcmask 1045504
      %v6371 = vrot.slane %v5834, 2
      %v6372 = vrot.slane %v5807, 2
      %v6373 = vsel %vm6370, %v6371, %v6372
      %v6374 = vrot.slane %v5808, 2
      %v6375 = vsel %vm6370, %v6372, %v6374
      %v6376 = vrot.slane %v5809, 2
      %v6377 = vsel %vm6370, %v6374, %v6376
      %v6378 = vrot.slane %v5810, 2
      %v6379 = vsel %vm6370, %v6376, %v6378
      %v6380 = vrot.slane %v5811, 2
      %v6381 = vsel %vm6370, %v6378, %v6380
      %v6382 = vrot.slane %v5812, 2
      %v6383 = vsel %vm6370, %v6380, %v6382
      %v6384 = vrot.slane %v5813, 2
      %v6385 = vsel %vm6370, %v6382, %v6384
      %v6386 = vrot.slane %v5814, 2
      %v6387 = vsel %vm6370, %v6384, %v6386
      %v6388 = vrot.slane %v5815, 2
      %v6389 = vsel %vm6370, %v6386, %v6388
      %v6390 = vrot.slane %v5816, 2
      %v6391 = vsel %vm6370, %v6388, %v6390
      %v6392 = vrot.slane %v5817, 2
      %v6393 = vsel %vm6370, %v6390, %v6392
      %v6394 = vrot.slane %v5818, 2
      %v6395 = vsel %vm6370, %v6392, %v6394
      %v6396 = vrot.slane %v5819, 2
      %v6397 = vsel %vm6370, %v6394, %v6396
      %v6398 = vrot.slane %v5820, 2
      %v6399 = vsel %vm6370, %v6396, %v6398
      %v6400 = vrot.slane %v5821, 2
      %v6401 = vsel %vm6370, %v6398, %v6400
      %v6402 = vrot.slane %v5822, 2
      %v6403 = vsel %vm6370, %v6400, %v6402
      %v6404 = vrot.slane %v5823, 2
      %v6405 = vsel %vm6370, %v6402, %v6404
      %v6406 = vrot.slane %v5824, 2
      %v6407 = vsel %vm6370, %v6404, %v6406
      %v6408 = vrot.slane %v5825, 2
      %v6409 = vsel %vm6370, %v6406, %v6408
      %v6410 = vrot.slane %v5826, 2
      %v6411 = vsel %vm6370, %v6408, %v6410
      %v6412 = vrot.slane %v5827, 2
      %v6413 = vsel %vm6370, %v6410, %v6412
      %v6414 = vrot.slane %v5828, 2
      %v6415 = vsel %vm6370, %v6412, %v6414
      %v6416 = vrot.slane %v5829, 2
      %v6417 = vsel %vm6370, %v6414, %v6416
      %v6418 = vrot.slane %v5833, 2
      %v6419 = vsel %vm6370, %v6416, %v6418
      %6420 = vrot.lane.b32.xlu0 %v6373, 16
      %v6421 = vpop.permute.xlu0 %6420
      %6422 = vrot.lane.b32.xlu0 %v6375, 16
      %v6423 = vpop.permute.xlu0 %6422
      %6424 = vrot.lane.b32.xlu0 %v6377, 16
      %v6425 = vpop.permute.xlu0 %6424
      %6426 = vrot.lane.b32.xlu0 %v6379, 16
      %v6427 = vpop.permute.xlu0 %6426
      %6428 = vrot.lane.b32.xlu0 %v6381, 16
      %v6429 = vpop.permute.xlu0 %6428
      %6430 = vrot.lane.b32.xlu0 %v6383, 16
      %v6431 = vpop.permute.xlu0 %6430
      %6432 = vrot.lane.b32.xlu0 %v6385, 16
      %v6433 = vpop.permute.xlu0 %6432
      %6434 = vrot.lane.b32.xlu0 %v6387, 16
      %v6435 = vpop.permute.xlu0 %6434
      %6436 = vrot.lane.b32.xlu0 %v6389, 16
      %v6437 = vpop.permute.xlu0 %6436
      %6438 = vrot.lane.b32.xlu0 %v6391, 16
      %v6439 = vpop.permute.xlu0 %6438
      %6440 = vrot.lane.b32.xlu0 %v6393, 16
      %v6441 = vpop.permute.xlu0 %6440
      %6442 = vrot.lane.b32.xlu0 %v6395, 16
      %v6443 = vpop.permute.xlu0 %6442
      %6444 = vrot.lane.b32.xlu0 %v6397, 16
      %v6445 = vpop.permute.xlu0 %6444
      %6446 = vrot.lane.b32.xlu0 %v6399, 16
      %v6447 = vpop.permute.xlu0 %6446
      %6448 = vrot.lane.b32.xlu0 %v6401, 16
      %v6449 = vpop.permute.xlu0 %6448
      %6450 = vrot.lane.b32.xlu0 %v6403, 16
      %v6451 = vpop.permute.xlu0 %6450
      %6452 = vrot.lane.b32.xlu0 %v6405, 16
      %v6453 = vpop.permute.xlu0 %6452
      %6454 = vrot.lane.b32.xlu0 %v6407, 16
      %v6455 = vpop.permute.xlu0 %6454
      %6456 = vrot.lane.b32.xlu0 %v6409, 16
      %v6457 = vpop.permute.xlu0 %6456
      %6458 = vrot.lane.b32.xlu0 %v6411, 16
      %v6459 = vpop.permute.xlu0 %6458
      %6460 = vrot.lane.b32.xlu0 %v6413, 16
      %v6461 = vpop.permute.xlu0 %6460
      %6462 = vrot.lane.b32.xlu0 %v6415, 16
      %v6463 = vpop.permute.xlu0 %6462
      %6464 = vrot.lane.b32.xlu0 %v6417, 16
      %v6465 = vpop.permute.xlu0 %6464
      %6466 = vrot.lane.b32.xlu0 %v6419, 16
      %v6467 = vpop.permute.xlu0 %6466
      %6468 = vrot.lane.b32.xlu0 %v6418, 16
      %v6469 = vpop.permute.xlu0 %6468
      %v6471 = vsel %vm334, %v5806, %v6035
      %v6473 = vsel %vm334, %v5807, %v6037
      %v6475 = vsel %vm334, %v5808, %v6039
      %v6477 = vsel %vm334, %v5809, %v6041
      %v6479 = vsel %vm334, %v5810, %v6043
      %v6481 = vsel %vm334, %v5811, %v6045
      %v6483 = vsel %vm334, %v5812, %v6047
      %v6485 = vsel %vm334, %v5813, %v6049
      %v6487 = vsel %vm334, %v5814, %v6051
      %v6489 = vsel %vm334, %v5815, %v6053
      %v6491 = vsel %vm334, %v5816, %v6055
      %v6493 = vsel %vm334, %v5817, %v6057
      %v6495 = vsel %vm334, %v5818, %v6059
      %v6497 = vsel %vm334, %v5819, %v6061
      %v6499 = vsel %vm334, %v5820, %v6063
      %v6501 = vsel %vm334, %v5821, %v6065
      %v6503 = vsel %vm334, %v5822, %v6067
      %v6505 = vsel %vm334, %v5823, %v6069
      %v6507 = vsel %vm334, %v5824, %v6071
      %v6509 = vsel %vm334, %v5825, %v6073
      %v6511 = vsel %vm334, %v5826, %v6075
      %v6513 = vsel %vm334, %v5827, %v6077
      %v6515 = vsel %vm334, %v5828, %v6079
      %v6517 = vsel %vm334, %v5829, %v6081
      %v6520 = vsel %vm334, %v5830, %v6083
      %v6522 = vsel %vm2923, %v6471, %v6159
      %v6524 = vsel %vm2923, %v6473, %v6161
      %v6526 = vsel %vm2923, %v6475, %v6163
      %v6528 = vsel %vm2923, %v6477, %v6165
      %v6530 = vsel %vm2923, %v6479, %v6167
      %v6532 = vsel %vm2923, %v6481, %v6169
      %v6534 = vsel %vm2923, %v6483, %v6171
      %v6536 = vsel %vm2923, %v6485, %v6173
      %v6538 = vsel %vm2923, %v6487, %v6175
      %v6540 = vsel %vm2923, %v6489, %v6177
      %v6542 = vsel %vm2923, %v6491, %v6179
      %v6544 = vsel %vm2923, %v6493, %v6181
      %v6546 = vsel %vm2923, %v6495, %v6183
      %v6548 = vsel %vm2923, %v6497, %v6185
      %v6550 = vsel %vm2923, %v6499, %v6187
      %v6552 = vsel %vm2923, %v6501, %v6189
      %v6554 = vsel %vm2923, %v6503, %v6191
      %v6556 = vsel %vm2923, %v6505, %v6193
      %v6558 = vsel %vm2923, %v6507, %v6195
      %v6560 = vsel %vm2923, %v6509, %v6197
      %v6562 = vsel %vm2923, %v6511, %v6199
      %v6564 = vsel %vm2923, %v6513, %v6201
      %v6566 = vsel %vm2923, %v6515, %v6203
      %v6568 = vsel %vm2923, %v6517, %v6205
      %v6570 = vsel %vm2923, %v6520, %v6207
      %vm6571 = vcmask 97280
      %v6573 = vsel %vm6571, %v6522, %v6319
      %v6575 = vsel %vm6571, %v6524, %v6321
      %v6577 = vsel %vm6571, %v6526, %v6323
      %v6579 = vsel %vm6571, %v6528, %v6325
      %v6581 = vsel %vm6571, %v6530, %v6327
      %v6583 = vsel %vm6571, %v6532, %v6329
      %v6585 = vsel %vm6571, %v6534, %v6331
      %v6587 = vsel %vm6571, %v6536, %v6333
      %v6589 = vsel %vm6571, %v6538, %v6335
      %v6591 = vsel %vm6571, %v6540, %v6337
      %v6593 = vsel %vm6571, %v6542, %v6339
      %v6595 = vsel %vm6571, %v6544, %v6341
      %v6597 = vsel %vm6571, %v6546, %v6343
      %v6599 = vsel %vm6571, %v6548, %v6345
      %v6601 = vsel %vm6571, %v6550, %v6347
      %v6603 = vsel %vm6571, %v6552, %v6349
      %v6605 = vsel %vm6571, %v6554, %v6351
      %v6607 = vsel %vm6571, %v6556, %v6353
      %v6609 = vsel %vm6571, %v6558, %v6355
      %v6611 = vsel %vm6571, %v6560, %v6357
      %v6613 = vsel %vm6571, %v6562, %v6359
      %v6615 = vsel %vm6571, %v6564, %v6361
      %v6617 = vsel %vm6571, %v6566, %v6363
      %v6619 = vsel %vm6571, %v6568, %v6365
      %v6621 = vsel %vm6571, %v6570, %v6367
      %v6623 = vsel %vm3710, %v6573, %v6421
      %v6625 = vsel %vm3710, %v6575, %v6423
      %v6627 = vsel %vm3710, %v6577, %v6425
      %v6629 = vsel %vm3710, %v6579, %v6427
      %v6631 = vsel %vm3710, %v6581, %v6429
      %v6633 = vsel %vm3710, %v6583, %v6431
      %v6635 = vsel %vm3710, %v6585, %v6433
      %v6637 = vsel %vm3710, %v6587, %v6435
      %v6639 = vsel %vm3710, %v6589, %v6437
      %v6641 = vsel %vm3710, %v6591, %v6439
      %v6643 = vsel %vm3710, %v6593, %v6441
      %v6645 = vsel %vm3710, %v6595, %v6443
      %v6647 = vsel %vm3710, %v6597, %v6445
      %v6649 = vsel %vm3710, %v6599, %v6447
      %v6651 = vsel %vm3710, %v6601, %v6449
      %v6653 = vsel %vm3710, %v6603, %v6451
      %v6655 = vsel %vm3710, %v6605, %v6453
      %v6657 = vsel %vm3710, %v6607, %v6455
      %v6659 = vsel %vm3710, %v6609, %v6457
      %v6661 = vsel %vm3710, %v6611, %v6459
      %v6663 = vsel %vm3710, %v6613, %v6461
      %v6665 = vsel %vm3710, %v6615, %v6463
      %v6667 = vsel %vm3710, %v6617, %v6465
      %v6669 = vsel %vm3710, %v6619, %v6467
      %v6671 = vsel %vm3710, %v6621, %v6469
      %v6672 = vld [vmem:[%s5] sm:$0xf]
      %v6673 = vld [vmem:[%s5 + $0x4] sm:$0xf]
      %v6674 = vld [vmem:[%s5 + $0x8] sm:$0x3]
      %v6675 = vld [vmem:[#allocation4 + $0x10] sm:$0x80]
      %v6676 = vld [vmem:[#allocation4 + $0xc8] sm:$0xff]
      %v6677 = vld [vmem:[#allocation4 + $0xd0] sm:$0x7f]
      %v6678 = vld [vmem:[#allocation4 + $0xd0] sm:$0xff]
      %v6679 = vld [vmem:[#allocation4 + $0xd8] sm:$0x1]
      %v6680 = vld [vmem:[#allocation4 + $0x18] sm:$0xfe]
      %v6682 = vshrl.u32 %v6675, 16
      %v6684 = vsel %vm3284, %v6682, %v5853
      %v6686 = vshll.u32 %v6676, 16
      %v6688 = vrot.slane %v6686, 1
      %v6689 = vsel %vm3284, %v6025, %v6688
      %v6690 = vshrl.u32 %v6676, 16
      %v6692 = vor.u32 %v6690, %v6688
      %v6694 = vshll.u32 %v6678, 16
      %v6696 = vrot.slane %v6694, 1
      %v6697 = vsel %vm3284, %v6692, %v6696
      %v6698 = vshrl.u32 %v6678, 16
      %v6700 = vor.u32 %v6698, %v6696
      %6701 = vrot.lane.b32.xlu0 %v6684, 4
      %v6702 = vpop.permute.xlu0 %6701
      %6703 = vrot.lane.b32.xlu0 %v6689, 4
      %v6704 = vpop.permute.xlu0 %6703
      %6705 = vrot.lane.b32.xlu0 %v6697, 4
      %v6706 = vpop.permute.xlu0 %6705
      %6707 = vrot.lane.b32.xlu0 %v6700, 4
      %v6708 = vpop.permute.xlu0 %6707
      %v6711 = vrot.slane %v6676, 1
      %v6712 = vsel %vm3559, %v6154, %v6711
      %v6713 = vrot.slane %v6678, 1
      %v6714 = vsel %vm3559, %v6711, %v6713
      %6715 = vrot.lane.b32.xlu0 %v6112, 8
      %v6716 = vpop.permute.xlu0 %6715
      %6717 = vrot.lane.b32.xlu0 %v6712, 8
      %v6718 = vpop.permute.xlu0 %6717
      %6719 = vrot.lane.b32.xlu0 %v6714, 8
      %v6720 = vpop.permute.xlu0 %6719
      %6721 = vrot.lane.b32.xlu0 %v6713, 8
      %v6722 = vpop.permute.xlu0 %6721
      %v6723 = vrot.slane %v6690, 1
      %v6724 = vrot.slane %v6686, 2
      %v6725 = vor.u32 %v6723, %v6724
      %v6726 = vsel %vm6208, %v6307, %v6725
      %v6727 = vrot.slane %v6698, 1
      %v6728 = vrot.slane %v6694, 2
      %v6729 = vor.u32 %v6727, %v6728
      %v6730 = vsel %vm6208, %v6725, %v6729
      %v6732 = vshll.u32 %v6679, 16
      %v6734 = vrot.slane %v6732, 2
      %v6735 = vsel %vm6208, %v6729, %v6734
      %6736 = vrot.lane.b32.xlu0 %v6223, 12
      %v6737 = vpop.permute.xlu0 %6736
      %6738 = vrot.lane.b32.xlu0 %v6726, 12
      %v6739 = vpop.permute.xlu0 %6738
      %6740 = vrot.lane.b32.xlu0 %v6730, 12
      %v6741 = vpop.permute.xlu0 %6740
      %6742 = vrot.lane.b32.xlu0 %v6735, 12
      %v6743 = vpop.permute.xlu0 %6742
      %v6746 = vrot.slane %v6680, 2
      %v6747 = vsel %vm6370, %v6746, %v6376
      %v6748 = vrot.slane %v6676, 2
      %v6749 = vsel %vm6370, %v6416, %v6748
      %v6750 = vrot.slane %v6678, 2
      %v6751 = vsel %vm6370, %v6748, %v6750
      %v6752 = vrot.slane %v6679, 2
      %v6753 = vsel %vm6370, %v6750, %v6752
      %6754 = vrot.lane.b32.xlu0 %v6746, 16
      %v6755 = vpop.permute.xlu0 %6754
      %6756 = vrot.lane.b32.xlu0 %v6747, 16
      %v6757 = vpop.permute.xlu0 %6756
      %6758 = vrot.lane.b32.xlu0 %v6749, 16
      %v6759 = vpop.permute.xlu0 %6758
      %6760 = vrot.lane.b32.xlu0 %v6751, 16
      %v6761 = vpop.permute.xlu0 %6760
      %6762 = vrot.lane.b32.xlu0 %v6753, 16
      %v6763 = vpop.permute.xlu0 %6762
      %v6765 = vsel %vm334, %v6675, %v6702
      %v6767 = vsel %vm334, %v5829, %v6704
      %v6769 = vsel %vm334, %v6676, %v6706
      %v6772 = vsel %vm334, %v6677, %v6708
      %v6774 = vsel %vm2923, %v6765, %v6716
      %v6776 = vsel %vm2923, %v6767, %v6718
      %v6778 = vsel %vm2923, %v6769, %v6720
      %v6780 = vsel %vm2923, %v6772, %v6722
      %v6782 = vsel %vm6571, %v6774, %v6737
      %v6784 = vsel %vm6571, %v6776, %v6739
      %v6786 = vsel %vm6571, %v6778, %v6741
      %v6788 = vsel %vm6571, %v6780, %v6743
      %v6790 = vsel %vm3710, %v6782, %v6755
      %v6792 = vsel %vm3710, %v6577, %v6757
      %v6794 = vsel %vm3710, %v6784, %v6759
      %v6796 = vsel %vm3710, %v6786, %v6761
      %v6798 = vsel %vm3710, %v6788, %v6763
      %s6799 = scalar_lea.vmem %s5, 12
      %v6800 = vld [vmem:[%s6799] sm:$0xf]
      %v6801 = vld [vmem:[%s6799 + $0x4] sm:$0xf]
      %v6802 = vld [vmem:[%s6799 + $0x8] sm:$0x3]
      %vm6828 = vcmask 1040384
      %v6829 = vrot.slane %v6790, 7
      %v6830 = vrot.slane %v6792, 7
      %v6831 = vsel %vm6828, %v6829, %v6830
      %v6832 = vrot.slane %v6629, 7
      %v6833 = vsel %vm6828, %v6830, %v6832
      %v6834 = vrot.slane %v6631, 7
      %v6835 = vsel %vm6828, %v6832, %v6834
      %v6836 = vrot.slane %v6633, 7
      %v6837 = vsel %vm6828, %v6834, %v6836
      %v6838 = vrot.slane %v6635, 7
      %v6839 = vsel %vm6828, %v6836, %v6838
      %v6840 = vrot.slane %v6637, 7
      %v6841 = vsel %vm6828, %v6838, %v6840
      %v6842 = vrot.slane %v6639, 7
      %v6843 = vsel %vm6828, %v6840, %v6842
      %v6844 = vrot.slane %v6641, 7
      %v6845 = vsel %vm6828, %v6842, %v6844
      %v6846 = vrot.slane %v6643, 7
      %v6847 = vsel %vm6828, %v6844, %v6846
      %v6848 = vrot.slane %v6645, 7
      %v6849 = vsel %vm6828, %v6846, %v6848
      %v6850 = vrot.slane %v6647, 7
      %v6851 = vsel %vm6828, %v6848, %v6850
      %v6852 = vrot.slane %v6649, 7
      %v6853 = vsel %vm6828, %v6850, %v6852
      %v6854 = vrot.slane %v6651, 7
      %v6855 = vsel %vm6828, %v6852, %v6854
      %v6856 = vrot.slane %v6653, 7
      %v6857 = vsel %vm6828, %v6854, %v6856
      %v6858 = vrot.slane %v6655, 7
      %v6859 = vsel %vm6828, %v6856, %v6858
      %v6860 = vrot.slane %v6657, 7
      %v6861 = vsel %vm6828, %v6858, %v6860
      %v6862 = vrot.slane %v6659, 7
      %v6863 = vsel %vm6828, %v6860, %v6862
      %v6864 = vrot.slane %v6661, 7
      %v6865 = vsel %vm6828, %v6862, %v6864
      %v6866 = vrot.slane %v6663, 7
      %v6867 = vsel %vm6828, %v6864, %v6866
      %v6868 = vrot.slane %v6665, 7
      %v6869 = vsel %vm6828, %v6866, %v6868
      %v6870 = vrot.slane %v6667, 7
      %v6871 = vsel %vm6828, %v6868, %v6870
      %v6872 = vrot.slane %v6794, 7
      %v6873 = vsel %vm6828, %v6870, %v6872
      %v6874 = vrot.slane %v6796, 7
      %v6875 = vsel %vm6828, %v6872, %v6874
      %v6876 = vrot.slane %v6798, 7
      %v6877 = vsel %vm6828, %v6874, %v6876
      %v6881 = vunpack.c.l.b16 %v6800
      %v6882 = vunpack.c.l.b16 %v6801
      %v6883 = vunpack.c.l.b16 %v6802
      %v6884 = vpack.c.b16 %v6882, %v6881
      %v6885 = vpack.c.b16 %v6883, %v6883
      %vm6887 = vcmask 162816
      %v6889 = vsel %vm6887, %v6831, 0
      %v6892 = vsel %vm6887, %v6833, 0
      %v6895 = vsel %vm6887, %v6835, 0
      %v6898 = vsel %vm6887, %v6837, 0
      %v6901 = vsel %vm6887, %v6839, 0
      %v6904 = vsel %vm6887, %v6841, 0
      %v6907 = vsel %vm6887, %v6843, 0
      %v6910 = vsel %vm6887, %v6845, 0
      %v6913 = vsel %vm6887, %v6847, 0
      %v6916 = vsel %vm6887, %v6849, 0
      %v6919 = vsel %vm6887, %v6851, 0
      %v6922 = vsel %vm6887, %v6853, 0
      %v6925 = vsel %vm6887, %v6855, 0
      %v6928 = vsel %vm6887, %v6857, 0
      %v6931 = vsel %vm6887, %v6859, 0
      %v6934 = vsel %vm6887, %v6861, 0
      %v6937 = vsel %vm6887, %v6863, 0
      %v6940 = vsel %vm6887, %v6865, 0
      %v6943 = vsel %vm6887, %v6867, 0
      %v6946 = vsel %vm6887, %v6869, 0
      %v6949 = vsel %vm6887, %v6871, 0
      %v6952 = vsel %vm6887, %v6873, 0
      %v6955 = vsel %vm6887, %v6875, 0
      %v6958 = vsel %vm6887, %v6877, 0
      %v6961 = vsel %vm1632, %v6885, 0
      %6963 = vmatprep.subr.bf16.mxu0 0
      %6964 = vmatpush1.bf16.msra.mxu0 %v6884
      %6965 = vmatprep.subr.bf16.mxu0 0
      %6966 = vmatpush1.bf16.msra.mxu0 %v6961
      %6967 = vmatprep.subr.bf16.mxu0 0
      %6968 = vmatpush1.bf16.msra.mxu0 0
      %6969 = vmatprep.subr.bf16.mxu0 0
      %6970 = vmatpush1.bf16.msra.mxu0 0
      %6971 = vmatprep.subr.bf16.mxu0 0
      %6972 = vmatpush1.bf16.msra.mxu0 0
      %6973 = vmatprep.subr.bf16.mxu0 0
      %6974 = vmatpush1.bf16.msra.mxu0 0
      %6975 = vmatprep.subr.bf16.mxu0 0
      %6976 = vmatpush1.bf16.msra.mxu0 0
      %6977 = vmatprep.subr.bf16.mxu0 0
      %6978 = vmatpush1.bf16.msra.mxu0 0
      %6979 = vmatprep.subr.bf16.mxu0 0
      %6980 = vmatpush1.bf16.msra.mxu0 0
      %6981 = vmatprep.subr.bf16.mxu0 0
      %6982 = vmatpush1.bf16.msra.mxu0 0
      %6983 = vmatprep.subr.bf16.mxu0 0
      %6984 = vmatpush1.bf16.msra.mxu0 0
      %6985 = vmatprep.subr.bf16.mxu0 0
      %6986 = vmatpush1.bf16.msra.mxu0 0
      %6987 = vmatprep.subr.bf16.mxu0 0
      %6988 = vmatpush1.bf16.msra.mxu0 0
      %6989 = vmatprep.subr.bf16.mxu0 0
      %6990 = vmatpush1.bf16.msra.mxu0 0
      %6991 = vmatprep.subr.bf16.mxu0 0
      %6992 = vmatpush1.bf16.msra.mxu0 0
      %6993 = vmatprep.subr.bf16.mxu0 0
      %6994 = vmatpush1.bf16.msra.mxu0 0
      %6995 = vmatprep.mubr.bf16.mxu0 0
      %6996 = vmatmul.mubr.bf16.gmra.mrb[0].mxu0 %v6889
      %v6997 = vpop.f32.mrb[0].mxu0
      %v6998 = vadd.f32 0.0, %v6997
      %v6999 = vpop.f32.mrb[0].mxu0
      %v7000 = vpop.f32.mrb[0].mxu0
      %v7001 = vadd.f32 0.0, %v7000
      %v7002 = vpop.f32.mrb[0].mxu0
      %7003 = vmatprep.mubr.bf16.mxu0 0
      %7004 = vmatmul.mubr.bf16.gmra.mrb[0].mxu0 %v6892
      %v7005 = vpop.f32.mrb[0].mxu0
      %v7006 = vpop.f32.mrb[0].mxu0
      %v7007 = vpop.f32.mrb[0].mxu0
      %v7008 = vadd.f32 0.0, %v7007
      %v7009 = vpop.f32.mrb[0].mxu0
      %7010 = vmatprep.mubr.bf16.mxu0 0
      %7011 = vmatmul.mubr.bf16.gmra.mrb[0].mxu0 %v6895
      %v7012 = vpop.f32.mrb[0].mxu0
      %v7013 = vadd.f32 0.0, %v7012
      %v7014 = vpop.f32.mrb[0].mxu0
      %v7015 = vpop.f32.mrb[0].mxu0
      %v7016 = vpop.f32.mrb[0].mxu0
      %7017 = vmatprep.mubr.bf16.mxu0 0
      %7018 = vmatmul.mubr.bf16.gmra.mrb[0].mxu0 %v6898
      %v7019 = vpop.f32.mrb[0].mxu0
      %v7020 = vadd.f32 0.0, %v7019
      %v7021 = vpop.f32.mrb[0].mxu0
      %v7022 = vpop.f32.mrb[0].mxu0
      %v7023 = vadd.f32 0.0, %v7022
      %v7024 = vpop.f32.mrb[0].mxu0
      %7025 = vmatprep.mubr.bf16.mxu0 0
      %7026 = vmatmul.mubr.bf16.gmra.mrb[0].mxu0 %v6901
      %v7027 = vpop.f32.mrb[0].mxu0
      %v7028 = vpop.f32.mrb[0].mxu0
      %v7029 = vpop.f32.mrb[0].mxu0
      %v7030 = vadd.f32 0.0, %v7029
      %v7031 = vpop.f32.mrb[0].mxu0
      %7032 = vmatprep.mubr.bf16.mxu0 0
      %7033 = vmatmul.mubr.bf16.gmra.mrb[0].mxu0 %v6904
      %v7034 = vpop.f32.mrb[0].mxu0
      %v7035 = vadd.f32 0.0, %v7034
      %v7036 = vpop.f32.mrb[0].mxu0
      %v7037 = vpop.f32.mrb[0].mxu0
      %v7038 = vpop.f32.mrb[0].mxu0
      %7039 = vmatprep.mubr.bf16.mxu0 0
      %7040 = vmatmul.mubr.bf16.gmra.mrb[0].mxu0 %v6907
      %v7041 = vpop.f32.mrb[0].mxu0
      %v7042 = vadd.f32 0.0, %v7041
      %v7043 = vpop.f32.mrb[0].mxu0
      %v7044 = vpop.f32.mrb[0].mxu0
      %v7045 = vadd.f32 0.0, %v7044
      %v7046 = vpop.f32.mrb[0].mxu0
      %7047 = vmatprep.mubr.bf16.mxu0 0
      %7048 = vmatmul.mubr.bf16.gmra.mrb[0].mxu0 %v6910
      %v7049 = vpop.f32.mrb[0].mxu0
      %v7050 = vpop.f32.mrb[0].mxu0
      %v7051 = vpop.f32.mrb[0].mxu0
      %v7052 = vadd.f32 0.0, %v7051
      %v7053 = vpop.f32.mrb[0].mxu0
      %7054 = vmatprep.mubr.bf16.mxu0 0
      %7055 = vmatmul.mubr.bf16.gmra.mrb[0].mxu0 %v6913
      %v7056 = vpop.f32.mrb[0].mxu0
      %v7057 = vadd.f32 0.0, %v7056
      %v7058 = vpop.f32.mrb[0].mxu0
      %v7059 = vpop.f32.mrb[0].mxu0
      %v7060 = vpop.f32.mrb[0].mxu0
      %7061 = vmatprep.mubr.bf16.mxu0 0
      %7062 = vmatmul.mubr.bf16.gmra.mrb[0].mxu0 %v6916
      %v7063 = vpop.f32.mrb[0].mxu0
      %v7064 = vadd.f32 0.0, %v7063
      %v7065 = vpop.f32.mrb[0].mxu0
      %v7066 = vpop.f32.mrb[0].mxu0
      %v7067 = vadd.f32 0.0, %v7066
      %v7068 = vpop.f32.mrb[0].mxu0
      %7069 = vmatprep.mubr.bf16.mxu0 0
      %7070 = vmatmul.mubr.bf16.gmra.mrb[0].mxu0 %v6919
      %v7071 = vpop.f32.mrb[0].mxu0
      %v7072 = vpop.f32.mrb[0].mxu0
      %v7073 = vpop.f32.mrb[0].mxu0
      %v7074 = vadd.f32 0.0, %v7073
      %v7075 = vpop.f32.mrb[0].mxu0
      %7076 = vmatprep.mubr.bf16.mxu0 0
      %7077 = vmatmul.mubr.bf16.gmra.mrb[0].mxu0 %v6922
      %v7078 = vpop.f32.mrb[0].mxu0
      %v7079 = vadd.f32 0.0, %v7078
      %v7080 = vpop.f32.mrb[0].mxu0
      %v7081 = vpop.f32.mrb[0].mxu0
      %v7082 = vpop.f32.mrb[0].mxu0
      %7083 = vmatprep.mubr.bf16.mxu0 0
      %7084 = vmatmul.mubr.bf16.gmra.mrb[0].mxu0 %v6925
      %v7085 = vpop.f32.mrb[0].mxu0
      %v7086 = vadd.f32 0.0, %v7085
      %v7087 = vpop.f32.mrb[0].mxu0
      %v7088 = vpop.f32.mrb[0].mxu0
      %v7089 = vadd.f32 0.0, %v7088
      %v7090 = vpop.f32.mrb[0].mxu0
      %7091 = vmatprep.mubr.bf16.mxu0 0
      %7092 = vmatmul.mubr.bf16.gmra.mrb[0].mxu0 %v6928
      %v7093 = vpop.f32.mrb[0].mxu0
      %v7094 = vpop.f32.mrb[0].mxu0
      %v7095 = vpop.f32.mrb[0].mxu0
      %v7096 = vadd.f32 0.0, %v7095
      %v7097 = vpop.f32.mrb[0].mxu0
      %7098 = vmatprep.mubr.bf16.mxu0 0
      %7099 = vmatmul.mubr.bf16.gmra.mrb[0].mxu0 %v6931
      %v7100 = vpop.f32.mrb[0].mxu0
      %v7101 = vadd.f32 0.0, %v7100
      %v7102 = vpop.f32.mrb[0].mxu0
      %v7103 = vpop.f32.mrb[0].mxu0
      %v7104 = vpop.f32.mrb[0].mxu0
      %7105 = vmatprep.mubr.bf16.mxu0 0
      %7106 = vmatmul.mubr.bf16.gmra.mrb[0].mxu0 %v6934
      %v7107 = vpop.f32.mrb[0].mxu0
      %v7108 = vadd.f32 0.0, %v7107
      %v7109 = vpop.f32.mrb[0].mxu0
      %v7110 = vpop.f32.mrb[0].mxu0
      %v7111 = vadd.f32 0.0, %v7110
      %v7112 = vpop.f32.mrb[0].mxu0
      %7113 = vmatprep.mubr.bf16.mxu0 0
      %7114 = vmatmul.mubr.bf16.gmra.mrb[0].mxu0 %v6937
      %v7115 = vpop.f32.mrb[0].mxu0
      %v7116 = vpop.f32.mrb[0].mxu0
      %v7117 = vpop.f32.mrb[0].mxu0
      %v7118 = vadd.f32 0.0, %v7117
      %v7119 = vpop.f32.mrb[0].mxu0
      %7120 = vmatprep.mubr.bf16.mxu0 0
      %7121 = vmatmul.mubr.bf16.gmra.mrb[0].mxu0 %v6940
      %v7122 = vpop.f32.mrb[0].mxu0
      %v7123 = vadd.f32 0.0, %v7122
      %v7124 = vpop.f32.mrb[0].mxu0
      %v7125 = vpop.f32.mrb[0].mxu0
      %v7126 = vpop.f32.mrb[0].mxu0
      %7127 = vmatprep.mubr.bf16.mxu0 0
      %7128 = vmatmul.mubr.bf16.gmra.mrb[0].mxu0 %v6943
      %v7129 = vpop.f32.mrb[0].mxu0
      %v7130 = vadd.f32 0.0, %v7129
      %v7131 = vpop.f32.mrb[0].mxu0
      %v7132 = vpop.f32.mrb[0].mxu0
      %v7133 = vadd.f32 0.0, %v7132
      %v7134 = vpop.f32.mrb[0].mxu0
      %7135 = vmatprep.mubr.bf16.mxu0 0
      %7136 = vmatmul.mubr.bf16.gmra.mrb[0].mxu0 %v6946
      %v7137 = vpop.f32.mrb[0].mxu0
      %v7138 = vpop.f32.mrb[0].mxu0
      %v7139 = vpop.f32.mrb[0].mxu0
      %v7140 = vadd.f32 0.0, %v7139
      %v7141 = vpop.f32.mrb[0].mxu0
      %7142 = vmatprep.mubr.bf16.mxu0 0
      %7143 = vmatmul.mubr.bf16.gmra.mrb[0].mxu0 %v6949
      %v7144 = vpop.f32.mrb[0].mxu0
      %v7145 = vadd.f32 0.0, %v7144
      %v7146 = vpop.f32.mrb[0].mxu0
      %v7147 = vpop.f32.mrb[0].mxu0
      %v7148 = vpop.f32.mrb[0].mxu0
      %7149 = vmatprep.mubr.bf16.mxu0 0
      %7150 = vmatmul.mubr.bf16.gmra.mrb[0].mxu0 %v6952
      %v7151 = vpop.f32.mrb[0].mxu0
      %v7152 = vadd.f32 0.0, %v7151
      %v7153 = vpop.f32.mrb[0].mxu0
      %v7154 = vpop.f32.mrb[0].mxu0
      %v7155 = vadd.f32 0.0, %v7154
      %v7156 = vpop.f32.mrb[0].mxu0
      %7157 = vmatprep.mubr.bf16.mxu0 0
      %7158 = vmatmul.mubr.bf16.gmra.mrb[0].mxu0 %v6955
      %v7159 = vpop.f32.mrb[0].mxu0
      %v7160 = vpop.f32.mrb[0].mxu0
      %v7161 = vpop.f32.mrb[0].mxu0
      %v7162 = vadd.f32 0.0, %v7161
      %v7163 = vpop.f32.mrb[0].mxu0
      %7164 = vmatprep.mubr.bf16.mxu0 0
      %7165 = vmatmul.mubr.bf16.gmra.mrb[0].mxu0 %v6958
      %v7166 = vpop.f32.mrb[0].mxu0
      %v7167 = vadd.f32 0.0, %v7166
      %v7168 = vpop.f32.mrb[0].mxu0
      %v7169 = vpop.f32.mrb[0].mxu0
      %v7170 = vpop.f32.mrb[0].mxu0
      %7171 = vdwg.mxu0
      %vm7177 = vcmask 1044480
      %v7178 = vrot.slane %v6623, 3
      %v7179 = vrot.slane %v6625, 3
      %v7180 = vsel %vm7177, %v7178, %v7179
      %v7181 = vrot.slane %v6627, 3
      %v7182 = vsel %vm7177, %v7179, %v7181
      %v7183 = vrot.slane %v6629, 3
      %v7184 = vsel %vm7177, %v7181, %v7183
      %v7185 = vrot.slane %v6631, 3
      %v7186 = vsel %vm7177, %v7183, %v7185
      %v7187 = vrot.slane %v6633, 3
      %v7188 = vsel %vm7177, %v7185, %v7187
      %v7189 = vrot.slane %v6635, 3
      %v7190 = vsel %vm7177, %v7187, %v7189
      %v7191 = vrot.slane %v6637, 3
      %v7192 = vsel %vm7177, %v7189, %v7191
      %v7193 = vrot.slane %v6639, 3
      %v7194 = vsel %vm7177, %v7191, %v7193
      %v7195 = vrot.slane %v6641, 3
      %v7196 = vsel %vm7177, %v7193, %v7195
      %v7197 = vrot.slane %v6643, 3
      %v7198 = vsel %vm7177, %v7195, %v7197
      %v7199 = vrot.slane %v6645, 3
      %v7200 = vsel %vm7177, %v7197, %v7199
      %v7201 = vrot.slane %v6647, 3
      %v7202 = vsel %vm7177, %v7199, %v7201
      %v7203 = vrot.slane %v6649, 3
      %v7204 = vsel %vm7177, %v7201, %v7203
      %v7205 = vrot.slane %v6651, 3
      %v7206 = vsel %vm7177, %v7203, %v7205
      %v7207 = vrot.slane %v6653, 3
      %v7208 = vsel %vm7177, %v7205, %v7207
      %v7209 = vrot.slane %v6655, 3
      %v7210 = vsel %vm7177, %v7207, %v7209
      %v7211 = vrot.slane %v6657, 3
      %v7212 = vsel %vm7177, %v7209, %v7211
      %v7213 = vrot.slane %v6659, 3
      %v7214 = vsel %vm7177, %v7211, %v7213
      %v7215 = vrot.slane %v6661, 3
      %v7216 = vsel %vm7177, %v7213, %v7215
      %v7217 = vrot.slane %v6663, 3
      %v7218 = vsel %vm7177, %v7215, %v7217
      %v7219 = vrot.slane %v6665, 3
      %v7220 = vsel %vm7177, %v7217, %v7219
      %v7221 = vrot.slane %v6667, 3
      %v7222 = vsel %vm7177, %v7219, %v7221
      %v7223 = vrot.slane %v6669, 3
      %v7224 = vsel %vm7177, %v7221, %v7223
      %v7225 = vrot.slane %v6671, 3
      %v7226 = vsel %vm7177, %v7223, %v7225
      %v7230 = vunpack.c.l.b16 %v6672
      %v7231 = vunpack.c.l.b16 %v6673
      %v7232 = vunpack.c.l.b16 %v6674
      %v7233 = vpack.c.b16 %v7231, %v7230
      %v7234 = vpack.c.b16 %v7232, %v7232
      %v7237 = vsel %vm6887, %v7180, 0
      %v7240 = vsel %vm6887, %v7182, 0
      %v7243 = vsel %vm6887, %v7184, 0
      %v7246 = vsel %vm6887, %v7186, 0
      %v7249 = vsel %vm6887, %v7188, 0
      %v7252 = vsel %vm6887, %v7190, 0
      %v7255 = vsel %vm6887, %v7192, 0
      %v7258 = vsel %vm6887, %v7194, 0
      %v7261 = vsel %vm6887, %v7196, 0
      %v7264 = vsel %vm6887, %v7198, 0
      %v7267 = vsel %vm6887, %v7200, 0
      %v7270 = vsel %vm6887, %v7202, 0
      %v7273 = vsel %vm6887, %v7204, 0
      %v7276 = vsel %vm6887, %v7206, 0
      %v7279 = vsel %vm6887, %v7208, 0
      %v7282 = vsel %vm6887, %v7210, 0
      %v7285 = vsel %vm6887, %v7212, 0
      %v7288 = vsel %vm6887, %v7214, 0
      %v7291 = vsel %vm6887, %v7216, 0
      %v7294 = vsel %vm6887, %v7218, 0
      %v7297 = vsel %vm6887, %v7220, 0
      %v7300 = vsel %vm6887, %v7222, 0
      %v7303 = vsel %vm6887, %v7224, 0
      %v7306 = vsel %vm6887, %v7226, 0
      %v7309 = vsel %vm1632, %v7234, 0
      %7311 = vmatprep.subr.bf16.mxu0 0
      %7312 = vmatpush1.bf16.msra.mxu0 %v7233
      %7313 = vmatprep.subr.bf16.mxu0 0
      %7314 = vmatpush1.bf16.msra.mxu0 %v7309
      %7315 = vmatprep.subr.bf16.mxu0 0
      %7316 = vmatpush1.bf16.msra.mxu0 0
      %7317 = vmatprep.subr.bf16.mxu0 0
      %7318 = vmatpush1.bf16.msra.mxu0 0
      %7319 = vmatprep.subr.bf16.mxu0 0
      %7320 = vmatpush1.bf16.msra.mxu0 0
      %7321 = vmatprep.subr.bf16.mxu0 0
      %7322 = vmatpush1.bf16.msra.mxu0 0
      %7323 = vmatprep.subr.bf16.mxu0 0
      %7324 = vmatpush1.bf16.msra.mxu0 0
      %7325 = vmatprep.subr.bf16.mxu0 0
      %7326 = vmatpush1.bf16.msra.mxu0 0
      %7327 = vmatprep.subr.bf16.mxu0 0
      %7328 = vmatpush1.bf16.msra.mxu0 0
      %7329 = vmatprep.subr.bf16.mxu0 0
      %7330 = vmatpush1.bf16.msra.mxu0 0
      %7331 = vmatprep.subr.bf16.mxu0 0
      %7332 = vmatpush1.bf16.msra.mxu0 0
      %7333 = vmatprep.subr.bf16.mxu0 0
      %7334 = vmatpush1.bf16.msra.mxu0 0
      %7335 = vmatprep.subr.bf16.mxu0 0
      %7336 = vmatpush1.bf16.msra.mxu0 0
      %7337 = vmatprep.subr.bf16.mxu0 0
      %7338 = vmatpush1.bf16.msra.mxu0 0
      %7339 = vmatprep.subr.bf16.mxu0 0
      %7340 = vmatpush1.bf16.msra.mxu0 0
      %7341 = vmatprep.subr.bf16.mxu0 0
      %7342 = vmatpush1.bf16.msra.mxu0 0
      %7343 = vmatprep.mubr.bf16.mxu0 0
      %7344 = vmatmul.mubr.bf16.gmra.mrb[0].mxu0 %v7237
      %v7345 = vpop.f32.mrb[0].mxu0
      %v7346 = vadd.f32 %v6998, %v7345
      %v7347 = vpop.f32.mrb[0].mxu0
      %v7348 = vpop.f32.mrb[0].mxu0
      %v7349 = vadd.f32 %v7001, %v7348
      %v7350 = vpop.f32.mrb[0].mxu0
      %7351 = vmatprep.mubr.bf16.mxu0 0
      %7352 = vmatmul.mubr.bf16.gmra.mrb[0].mxu0 %v7240
      %v7353 = vpop.f32.mrb[0].mxu0
      %v7354 = vpop.f32.mrb[0].mxu0
      %v7355 = vpop.f32.mrb[0].mxu0
      %v7356 = vadd.f32 %v7008, %v7355
      %v7357 = vpop.f32.mrb[0].mxu0
      %7358 = vmatprep.mubr.bf16.mxu0 0
      %7359 = vmatmul.mubr.bf16.gmra.mrb[0].mxu0 %v7243
      %v7360 = vpop.f32.mrb[0].mxu0
      %v7361 = vadd.f32 %v7013, %v7360
      %v7362 = vpop.f32.mrb[0].mxu0
      %v7363 = vpop.f32.mrb[0].mxu0
      %v7364 = vpop.f32.mrb[0].mxu0
      %7365 = vmatprep.mubr.bf16.mxu0 0
      %7366 = vmatmul.mubr.bf16.gmra.mrb[0].mxu0 %v7246
      %v7367 = vpop.f32.mrb[0].mxu0
      %v7368 = vadd.f32 %v7020, %v7367
      %v7369 = vpop.f32.mrb[0].mxu0
      %v7370 = vpop.f32.mrb[0].mxu0
      %v7371 = vadd.f32 %v7023, %v7370
      %v7372 = vpop.f32.mrb[0].mxu0
      %7373 = vmatprep.mubr.bf16.mxu0 0
      %7374 = vmatmul.mubr.bf16.gmra.mrb[0].mxu0 %v7249
      %v7375 = vpop.f32.mrb[0].mxu0
      %v7376 = vpop.f32.mrb[0].mxu0
      %v7377 = vpop.f32.mrb[0].mxu0
      %v7378 = vadd.f32 %v7030, %v7377
      %v7379 = vpop.f32.mrb[0].mxu0
      %7380 = vmatprep.mubr.bf16.mxu0 0
      %7381 = vmatmul.mubr.bf16.gmra.mrb[0].mxu0 %v7252
      %v7382 = vpop.f32.mrb[0].mxu0
      %v7383 = vadd.f32 %v7035, %v7382
      %v7384 = vpop.f32.mrb[0].mxu0
      %v7385 = vpop.f32.mrb[0].mxu0
      %v7386 = vpop.f32.mrb[0].mxu0
      %7387 = vmatprep.mubr.bf16.mxu0 0
      %7388 = vmatmul.mubr.bf16.gmra.mrb[0].mxu0 %v7255
      %v7389 = vpop.f32.mrb[0].mxu0
      %v7390 = vadd.f32 %v7042, %v7389
      %v7391 = vpop.f32.mrb[0].mxu0
      %v7392 = vpop.f32.mrb[0].mxu0
      %v7393 = vadd.f32 %v7045, %v7392
      %v7394 = vpop.f32.mrb[0].mxu0
      %7395 = vmatprep.mubr.bf16.mxu0 0
      %7396 = vmatmul.mubr.bf16.gmra.mrb[0].mxu0 %v7258
      %v7397 = vpop.f32.mrb[0].mxu0
      %v7398 = vpop.f32.mrb[0].mxu0
      %v7399 = vpop.f32.mrb[0].mxu0
      %v7400 = vadd.f32 %v7052, %v7399
      %v7401 = vpop.f32.mrb[0].mxu0
      %7402 = vmatprep.mubr.bf16.mxu0 0
      %7403 = vmatmul.mubr.bf16.gmra.mrb[0].mxu0 %v7261
      %v7404 = vpop.f32.mrb[0].mxu0
      %v7405 = vadd.f32 %v7057, %v7404
      %v7406 = vpop.f32.mrb[0].mxu0
      %v7407 = vpop.f32.mrb[0].mxu0
      %v7408 = vpop.f32.mrb[0].mxu0
      %7409 = vmatprep.mubr.bf16.mxu0 0
      %7410 = vmatmul.mubr.bf16.gmra.mrb[0].mxu0 %v7264
      %v7411 = vpop.f32.mrb[0].mxu0
      %v7412 = vadd.f32 %v7064, %v7411
      %v7413 = vpop.f32.mrb[0].mxu0
      %v7414 = vpop.f32.mrb[0].mxu0
      %v7415 = vadd.f32 %v7067, %v7414
      %v7416 = vpop.f32.mrb[0].mxu0
      %7417 = vmatprep.mubr.bf16.mxu0 0
      %7418 = vmatmul.mubr.bf16.gmra.mrb[0].mxu0 %v7267
      %v7419 = vpop.f32.mrb[0].mxu0
      %v7420 = vpop.f32.mrb[0].mxu0
      %v7421 = vpop.f32.mrb[0].mxu0
      %v7422 = vadd.f32 %v7074, %v7421
      %v7423 = vpop.f32.mrb[0].mxu0
      %7424 = vmatprep.mubr.bf16.mxu0 0
      %7425 = vmatmul.mubr.bf16.gmra.mrb[0].mxu0 %v7270
      %v7426 = vpop.f32.mrb[0].mxu0
      %v7427 = vadd.f32 %v7079, %v7426
      %v7428 = vpop.f32.mrb[0].mxu0
      %v7429 = vpop.f32.mrb[0].mxu0
      %v7430 = vpop.f32.mrb[0].mxu0
      %7431 = vmatprep.mubr.bf16.mxu0 0
      %7432 = vmatmul.mubr.bf16.gmra.mrb[0].mxu0 %v7273
      %v7433 = vpop.f32.mrb[0].mxu0
      %v7434 = vadd.f32 %v7086, %v7433
      %v7435 = vpop.f32.mrb[0].mxu0
      %v7436 = vpop.f32.mrb[0].mxu0
      %v7437 = vadd.f32 %v7089, %v7436
      %v7438 = vpop.f32.mrb[0].mxu0
      %7439 = vmatprep.mubr.bf16.mxu0 0
      %7440 = vmatmul.mubr.bf16.gmra.mrb[0].mxu0 %v7276
      %v7441 = vpop.f32.mrb[0].mxu0
      %v7442 = vpop.f32.mrb[0].mxu0
      %v7443 = vpop.f32.mrb[0].mxu0
      %v7444 = vadd.f32 %v7096, %v7443
      %v7445 = vpop.f32.mrb[0].mxu0
      %7446 = vmatprep.mubr.bf16.mxu0 0
      %7447 = vmatmul.mubr.bf16.gmra.mrb[0].mxu0 %v7279
      %v7448 = vpop.f32.mrb[0].mxu0
      %v7449 = vadd.f32 %v7101, %v7448
      %v7450 = vpop.f32.mrb[0].mxu0
      %v7451 = vpop.f32.mrb[0].mxu0
      %v7452 = vpop.f32.mrb[0].mxu0
      %7453 = vmatprep.mubr.bf16.mxu0 0
      %7454 = vmatmul.mubr.bf16.gmra.mrb[0].mxu0 %v7282
      %v7455 = vpop.f32.mrb[0].mxu0
      %v7456 = vadd.f32 %v7108, %v7455
      %v7457 = vpop.f32.mrb[0].mxu0
      %v7458 = vpop.f32.mrb[0].mxu0
      %v7459 = vadd.f32 %v7111, %v7458
      %v7460 = vpop.f32.mrb[0].mxu0
      %7461 = vmatprep.mubr.bf16.mxu0 0
      %7462 = vmatmul.mubr.bf16.gmra.mrb[0].mxu0 %v7285
      %v7463 = vpop.f32.mrb[0].mxu0
      %v7464 = vpop.f32.mrb[0].mxu0
      %v7465 = vpop.f32.mrb[0].mxu0
      %v7466 = vadd.f32 %v7118, %v7465
      %v7467 = vpop.f32.mrb[0].mxu0
      %7468 = vmatprep.mubr.bf16.mxu0 0
      %7469 = vmatmul.mubr.bf16.gmra.mrb[0].mxu0 %v7288
      %v7470 = vpop.f32.mrb[0].mxu0
      %v7471 = vadd.f32 %v7123, %v7470
      %v7472 = vpop.f32.mrb[0].mxu0
      %v7473 = vpop.f32.mrb[0].mxu0
      %v7474 = vpop.f32.mrb[0].mxu0
      %7475 = vmatprep.mubr.bf16.mxu0 0
      %7476 = vmatmul.mubr.bf16.gmra.mrb[0].mxu0 %v7291
      %v7477 = vpop.f32.mrb[0].mxu0
      %v7478 = vadd.f32 %v7130, %v7477
      %v7479 = vpop.f32.mrb[0].mxu0
      %v7480 = vpop.f32.mrb[0].mxu0
      %v7481 = vadd.f32 %v7133, %v7480
      %v7482 = vpop.f32.mrb[0].mxu0
      %7483 = vmatprep.mubr.bf16.mxu0 0
      %7484 = vmatmul.mubr.bf16.gmra.mrb[0].mxu0 %v7294
      %v7485 = vpop.f32.mrb[0].mxu0
      %v7486 = vpop.f32.mrb[0].mxu0
      %v7487 = vpop.f32.mrb[0].mxu0
      %v7488 = vadd.f32 %v7140, %v7487
      %v7489 = vpop.f32.mrb[0].mxu0
      %7490 = vmatprep.mubr.bf16.mxu0 0
      %7491 = vmatmul.mubr.bf16.gmra.mrb[0].mxu0 %v7297
      %v7492 = vpop.f32.mrb[0].mxu0
      %v7493 = vadd.f32 %v7145, %v7492
      %v7494 = vpop.f32.mrb[0].mxu0
      %v7495 = vpop.f32.mrb[0].mxu0
      %v7496 = vpop.f32.mrb[0].mxu0
      %7497 = vmatprep.mubr.bf16.mxu0 0
      %7498 = vmatmul.mubr.bf16.gmra.mrb[0].mxu0 %v7300
      %v7499 = vpop.f32.mrb[0].mxu0
      %v7500 = vadd.f32 %v7152, %v7499
      %v7501 = vpop.f32.mrb[0].mxu0
      %v7502 = vpop.f32.mrb[0].mxu0
      %v7503 = vadd.f32 %v7155, %v7502
      %v7504 = vpop.f32.mrb[0].mxu0
      %7505 = vmatprep.mubr.bf16.mxu0 0
      %7506 = vmatmul.mubr.bf16.gmra.mrb[0].mxu0 %v7303
      %v7507 = vpop.f32.mrb[0].mxu0
      %v7508 = vpop.f32.mrb[0].mxu0
      %v7509 = vpop.f32.mrb[0].mxu0
      %v7510 = vadd.f32 %v7162, %v7509
      %v7511 = vpop.f32.mrb[0].mxu0
      %7512 = vmatprep.mubr.bf16.mxu0 0
      %7513 = vmatmul.mubr.bf16.gmra.mrb[0].mxu0 %v7306
      %v7514 = vpop.f32.mrb[0].mxu0
      %v7515 = vadd.f32 %v7167, %v7514
      %v7516 = vpop.f32.mrb[0].mxu0
      %v7517 = vpop.f32.mrb[0].mxu0
      %v7518 = vpop.f32.mrb[0].mxu0
      %7519 = vdwg.mxu0
      %v7520 = vld [vmem:[#allocation4 + $0x20] sm:$0xf8]
      %v7521 = vld [vmem:[#allocation4 + $0x28] sm:$0xff]
      %v7522 = vld [vmem:[#allocation4 + $0x30] sm:$0xff]
      %v7523 = vld [vmem:[#allocation4 + $0x38] sm:$0xff]
      %v7524 = vld [vmem:[#allocation4 + $0x40] sm:$0xff]
      %v7525 = vld [vmem:[#allocation4 + $0x48] sm:$0xff]
      %v7526 = vld [vmem:[#allocation4 + $0x50] sm:$0xff]
      %v7527 = vld [vmem:[#allocation4 + $0x58] sm:$0xff]
      %v7528 = vld [vmem:[#allocation4 + $0x60] sm:$0xff]
      %v7529 = vld [vmem:[#allocation4 + $0x68] sm:$0xff]
      %v7530 = vld [vmem:[#allocation4 + $0x70] sm:$0xff]
      %v7531 = vld [vmem:[#allocation4 + $0x78] sm:$0xff]
      %v7532 = vld [vmem:[#allocation4 + $0x80] sm:$0xff]
      %v7533 = vld [vmem:[#allocation4 + $0x88] sm:$0xff]
      %v7534 = vld [vmem:[#allocation4 + $0x90] sm:$0xff]
      %v7535 = vld [vmem:[#allocation4 + $0x98] sm:$0xff]
      %v7536 = vld [vmem:[#allocation4 + $0xa0] sm:$0xff]
      %v7537 = vld [vmem:[#allocation4 + $0xa8] sm:$0xff]
      %v7538 = vld [vmem:[#allocation4 + $0xb0] sm:$0xff]
      %v7539 = vld [vmem:[#allocation4 + $0xb8] sm:$0xff]
      %v7540 = vld [vmem:[#allocation4 + $0xc0] sm:$0xff]
      %v7541 = vld [vmem:[#allocation4 + $0xc8] sm:$0xff]
      %v7542 = vld [vmem:[#allocation4 + $0xd0] sm:$0xff]
      %v7543 = vld [vmem:[#allocation4 + $0xd8] sm:$0xff]
      %v7544 = vld [vmem:[#allocation4 + $0xe0] sm:$0x7]
      %v7545 = vld [vmem:[#allocation4 + $0xe0] sm:$0xf]
      %v7546 = vld [vmem:[#allocation4 + $0x20] sm:$0xf0]
      %v7547 = vld [vmem:[#allocation4 + $0xe0] sm:$0x1f]
      %v7548 = vld [vmem:[#allocation4 + $0x20] sm:$0xe0]
      %v7550 = vshrl.u32 %v7520, 16
      %v7552 = vshll.u32 %v7520, 16
      %v7554 = vrot.slane %v7552, 1
      %v7555 = vor.u32 %v7550, %v7554
      %v7557 = vshll.u32 %v7521, 16
      %v7559 = vrot.slane %v7557, 1
      %v7560 = vsel %vm3284, %v7555, %v7559
      %v7561 = vshrl.u32 %v7521, 16
      %v7563 = vor.u32 %v7561, %v7559
      %v7565 = vshll.u32 %v7522, 16
      %v7567 = vrot.slane %v7565, 1
      %v7568 = vsel %vm3284, %v7563, %v7567
      %v7569 = vshrl.u32 %v7522, 16
      %v7571 = vor.u32 %v7569, %v7567
      %v7573 = vshll.u32 %v7523, 16
      %v7575 = vrot.slane %v7573, 1
      %v7576 = vsel %vm3284, %v7571, %v7575
      %v7577 = vshrl.u32 %v7523, 16
      %v7579 = vor.u32 %v7577, %v7575
      %v7581 = vshll.u32 %v7524, 16
      %v7583 = vrot.slane %v7581, 1
      %v7584 = vsel %vm3284, %v7579, %v7583
      %v7585 = vshrl.u32 %v7524, 16
      %v7587 = vor.u32 %v7585, %v7583
      %v7589 = vshll.u32 %v7525, 16
      %v7591 = vrot.slane %v7589, 1
      %v7592 = vsel %vm3284, %v7587, %v7591
      %v7593 = vshrl.u32 %v7525, 16
      %v7595 = vor.u32 %v7593, %v7591
      %v7597 = vshll.u32 %v7526, 16
      %v7599 = vrot.slane %v7597, 1
      %v7600 = vsel %vm3284, %v7595, %v7599
      %v7601 = vshrl.u32 %v7526, 16
      %v7603 = vor.u32 %v7601, %v7599
      %v7605 = vshll.u32 %v7527, 16
      %v7607 = vrot.slane %v7605, 1
      %v7608 = vsel %vm3284, %v7603, %v7607
      %v7609 = vshrl.u32 %v7527, 16
      %v7611 = vor.u32 %v7609, %v7607
      %v7613 = vshll.u32 %v7528, 16
      %v7615 = vrot.slane %v7613, 1
      %v7616 = vsel %vm3284, %v7611, %v7615
      %v7617 = vshrl.u32 %v7528, 16
      %v7619 = vor.u32 %v7617, %v7615
      %v7621 = vshll.u32 %v7529, 16
      %v7623 = vrot.slane %v7621, 1
      %v7624 = vsel %vm3284, %v7619, %v7623
      %v7625 = vshrl.u32 %v7529, 16
      %v7627 = vor.u32 %v7625, %v7623
      %v7629 = vshll.u32 %v7530, 16
      %v7631 = vrot.slane %v7629, 1
      %v7632 = vsel %vm3284, %v7627, %v7631
      %v7633 = vshrl.u32 %v7530, 16
      %v7635 = vor.u32 %v7633, %v7631
      %v7637 = vshll.u32 %v7531, 16
      %v7639 = vrot.slane %v7637, 1
      %v7640 = vsel %vm3284, %v7635, %v7639
      %v7641 = vshrl.u32 %v7531, 16
      %v7643 = vor.u32 %v7641, %v7639
      %v7645 = vshll.u32 %v7532, 16
      %v7647 = vrot.slane %v7645, 1
      %v7648 = vsel %vm3284, %v7643, %v7647
      %v7649 = vshrl.u32 %v7532, 16
      %v7651 = vor.u32 %v7649, %v7647
      %v7653 = vshll.u32 %v7533, 16
      %v7655 = vrot.slane %v7653, 1
      %v7656 = vsel %vm3284, %v7651, %v7655
      %v7657 = vshrl.u32 %v7533, 16
      %v7659 = vor.u32 %v7657, %v7655
      %v7661 = vshll.u32 %v7534, 16
      %v7663 = vrot.slane %v7661, 1
      %v7664 = vsel %vm3284, %v7659, %v7663
      %v7665 = vshrl.u32 %v7534, 16
      %v7667 = vor.u32 %v7665, %v7663
      %v7669 = vshll.u32 %v7535, 16
      %v7671 = vrot.slane %v7669, 1
      %v7672 = vsel %vm3284, %v7667, %v7671
      %v7673 = vshrl.u32 %v7535, 16
      %v7675 = vor.u32 %v7673, %v7671
      %v7677 = vshll.u32 %v7536, 16
      %v7679 = vrot.slane %v7677, 1
      %v7680 = vsel %vm3284, %v7675, %v7679
      %v7681 = vshrl.u32 %v7536, 16
      %v7683 = vor.u32 %v7681, %v7679
      %v7685 = vshll.u32 %v7537, 16
      %v7687 = vrot.slane %v7685, 1
      %v7688 = vsel %vm3284, %v7683, %v7687
      %v7689 = vshrl.u32 %v7537, 16
      %v7691 = vor.u32 %v7689, %v7687
      %v7693 = vshll.u32 %v7538, 16
      %v7695 = vrot.slane %v7693, 1
      %v7696 = vsel %vm3284, %v7691, %v7695
      %v7697 = vshrl.u32 %v7538, 16
      %v7699 = vor.u32 %v7697, %v7695
      %v7701 = vshll.u32 %v7539, 16
      %v7703 = vrot.slane %v7701, 1
      %v7704 = vsel %vm3284, %v7699, %v7703
      %v7705 = vshrl.u32 %v7539, 16
      %v7707 = vor.u32 %v7705, %v7703
      %v7709 = vshll.u32 %v7540, 16
      %v7711 = vrot.slane %v7709, 1
      %v7712 = vsel %vm3284, %v7707, %v7711
      %v7713 = vshrl.u32 %v7540, 16
      %v7715 = vor.u32 %v7713, %v7711
      %v7717 = vshll.u32 %v7541, 16
      %v7719 = vrot.slane %v7717, 1
      %v7720 = vsel %vm3284, %v7715, %v7719
      %v7721 = vshrl.u32 %v7541, 16
      %v7723 = vor.u32 %v7721, %v7719
      %v7725 = vshll.u32 %v7542, 16
      %v7727 = vrot.slane %v7725, 1
      %v7728 = vsel %vm3284, %v7723, %v7727
      %v7729 = vshrl.u32 %v7542, 16
      %v7731 = vor.u32 %v7729, %v7727
      %v7733 = vshll.u32 %v7543, 16
      %v7735 = vrot.slane %v7733, 1
      %v7736 = vsel %vm3284, %v7731, %v7735
      %v7737 = vshrl.u32 %v7543, 16
      %v7739 = vor.u32 %v7737, %v7735
      %v7741 = vshll.u32 %v7545, 16
      %v7743 = vrot.slane %v7741, 1
      %v7744 = vsel %vm3284, %v7739, %v7743
      %v7745 = vshrl.u32 %v7545, 16
      %v7747 = vor.u32 %v7745, %v7743
      %7748 = vrot.lane.b32.xlu0 %v7560, 4
      %v7749 = vpop.permute.xlu0 %7748
      %7750 = vrot.lane.b32.xlu0 %v7568, 4
      %v7751 = vpop.permute.xlu0 %7750
      %7752 = vrot.lane.b32.xlu0 %v7576, 4
      %v7753 = vpop.permute.xlu0 %7752
      %7754 = vrot.lane.b32.xlu0 %v7584, 4
      %v7755 = vpop.permute.xlu0 %7754
      %7756 = vrot.lane.b32.xlu0 %v7592, 4
      %v7757 = vpop.permute.xlu0 %7756
      %7758 = vrot.lane.b32.xlu0 %v7600, 4
      %v7759 = vpop.permute.xlu0 %7758
      %7760 = vrot.lane.b32.xlu0 %v7608, 4
      %v7761 = vpop.permute.xlu0 %7760
      %7762 = vrot.lane.b32.xlu0 %v7616, 4
      %v7763 = vpop.permute.xlu0 %7762
      %7764 = vrot.lane.b32.xlu0 %v7624, 4
      %v7765 = vpop.permute.xlu0 %7764
      %7766 = vrot.lane.b32.xlu0 %v7632, 4
      %v7767 = vpop.permute.xlu0 %7766
      %7768 = vrot.lane.b32.xlu0 %v7640, 4
      %v7769 = vpop.permute.xlu0 %7768
      %7770 = vrot.lane.b32.xlu0 %v7648, 4
      %v7771 = vpop.permute.xlu0 %7770
      %7772 = vrot.lane.b32.xlu0 %v7656, 4
      %v7773 = vpop.permute.xlu0 %7772
      %7774 = vrot.lane.b32.xlu0 %v7664, 4
      %v7775 = vpop.permute.xlu0 %7774
      %7776 = vrot.lane.b32.xlu0 %v7672, 4
      %v7777 = vpop.permute.xlu0 %7776
      %7778 = vrot.lane.b32.xlu0 %v7680, 4
      %v7779 = vpop.permute.xlu0 %7778
      %7780 = vrot.lane.b32.xlu0 %v7688, 4
      %v7781 = vpop.permute.xlu0 %7780
      %7782 = vrot.lane.b32.xlu0 %v7696, 4
      %v7783 = vpop.permute.xlu0 %7782
      %7784 = vrot.lane.b32.xlu0 %v7704, 4
      %v7785 = vpop.permute.xlu0 %7784
      %7786 = vrot.lane.b32.xlu0 %v7712, 4
      %v7787 = vpop.permute.xlu0 %7786
      %7788 = vrot.lane.b32.xlu0 %v7720, 4
      %v7789 = vpop.permute.xlu0 %7788
      %7790 = vrot.lane.b32.xlu0 %v7728, 4
      %v7791 = vpop.permute.xlu0 %7790
      %7792 = vrot.lane.b32.xlu0 %v7736, 4
      %v7793 = vpop.permute.xlu0 %7792
      %7794 = vrot.lane.b32.xlu0 %v7744, 4
      %v7795 = vpop.permute.xlu0 %7794
      %7796 = vrot.lane.b32.xlu0 %v7747, 4
      %v7797 = vpop.permute.xlu0 %7796
      %v7823 = vrot.slane %v7546, 1
      %v7824 = vrot.slane %v7521, 1
      %v7825 = vsel %vm3559, %v7823, %v7824
      %v7826 = vrot.slane %v7522, 1
      %v7827 = vsel %vm3559, %v7824, %v7826
      %v7828 = vrot.slane %v7523, 1
      %v7829 = vsel %vm3559, %v7826, %v7828
      %v7830 = vrot.slane %v7524, 1
      %v7831 = vsel %vm3559, %v7828, %v7830
      %v7832 = vrot.slane %v7525, 1
      %v7833 = vsel %vm3559, %v7830, %v7832
      %v7834 = vrot.slane %v7526, 1
      %v7835 = vsel %vm3559, %v7832, %v7834
      %v7836 = vrot.slane %v7527, 1
      %v7837 = vsel %vm3559, %v7834, %v7836
      %v7838 = vrot.slane %v7528, 1
      %v7839 = vsel %vm3559, %v7836, %v7838
      %v7840 = vrot.slane %v7529, 1
      %v7841 = vsel %vm3559, %v7838, %v7840
      %v7842 = vrot.slane %v7530, 1
      %v7843 = vsel %vm3559, %v7840, %v7842
      %v7844 = vrot.slane %v7531, 1
      %v7845 = vsel %vm3559, %v7842, %v7844
      %v7846 = vrot.slane %v7532, 1
      %v7847 = vsel %vm3559, %v7844, %v7846
      %v7848 = vrot.slane %v7533, 1
      %v7849 = vsel %vm3559, %v7846, %v7848
      %v7850 = vrot.slane %v7534, 1
      %v7851 = vsel %vm3559, %v7848, %v7850
      %v7852 = vrot.slane %v7535, 1
      %v7853 = vsel %vm3559, %v7850, %v7852
      %v7854 = vrot.slane %v7536, 1
      %v7855 = vsel %vm3559, %v7852, %v7854
      %v7856 = vrot.slane %v7537, 1
      %v7857 = vsel %vm3559, %v7854, %v7856
      %v7858 = vrot.slane %v7538, 1
      %v7859 = vsel %vm3559, %v7856, %v7858
      %v7860 = vrot.slane %v7539, 1
      %v7861 = vsel %vm3559, %v7858, %v7860
      %v7862 = vrot.slane %v7540, 1
      %v7863 = vsel %vm3559, %v7860, %v7862
      %v7864 = vrot.slane %v7541, 1
      %v7865 = vsel %vm3559, %v7862, %v7864
      %v7866 = vrot.slane %v7542, 1
      %v7867 = vsel %vm3559, %v7864, %v7866
      %v7868 = vrot.slane %v7543, 1
      %v7869 = vsel %vm3559, %v7866, %v7868
      %v7870 = vrot.slane %v7545, 1
      %v7871 = vsel %vm3559, %v7868, %v7870
      %7872 = vrot.lane.b32.xlu0 %v7825, 8
      %v7873 = vpop.permute.xlu0 %7872
      %7874 = vrot.lane.b32.xlu0 %v7827, 8
      %v7875 = vpop.permute.xlu0 %7874
      %7876 = vrot.lane.b32.xlu0 %v7829, 8
      %v7877 = vpop.permute.xlu0 %7876
      %7878 = vrot.lane.b32.xlu0 %v7831, 8
      %v7879 = vpop.permute.xlu0 %7878
      %7880 = vrot.lane.b32.xlu0 %v7833, 8
      %v7881 = vpop.permute.xlu0 %7880
      %7882 = vrot.lane.b32.xlu0 %v7835, 8
      %v7883 = vpop.permute.xlu0 %7882
      %7884 = vrot.lane.b32.xlu0 %v7837, 8
      %v7885 = vpop.permute.xlu0 %7884
      %7886 = vrot.lane.b32.xlu0 %v7839, 8
      %v7887 = vpop.permute.xlu0 %7886
      %7888 = vrot.lane.b32.xlu0 %v7841, 8
      %v7889 = vpop.permute.xlu0 %7888
      %7890 = vrot.lane.b32.xlu0 %v7843, 8
      %v7891 = vpop.permute.xlu0 %7890
      %7892 = vrot.lane.b32.xlu0 %v7845, 8
      %v7893 = vpop.permute.xlu0 %7892
      %7894 = vrot.lane.b32.xlu0 %v7847, 8
      %v7895 = vpop.permute.xlu0 %7894
      %7896 = vrot.lane.b32.xlu0 %v7849, 8
      %v7897 = vpop.permute.xlu0 %7896
      %7898 = vrot.lane.b32.xlu0 %v7851, 8
      %v7899 = vpop.permute.xlu0 %7898
      %7900 = vrot.lane.b32.xlu0 %v7853, 8
      %v7901 = vpop.permute.xlu0 %7900
      %7902 = vrot.lane.b32.xlu0 %v7855, 8
      %v7903 = vpop.permute.xlu0 %7902
      %7904 = vrot.lane.b32.xlu0 %v7857, 8
      %v7905 = vpop.permute.xlu0 %7904
      %7906 = vrot.lane.b32.xlu0 %v7859, 8
      %v7907 = vpop.permute.xlu0 %7906
      %7908 = vrot.lane.b32.xlu0 %v7861, 8
      %v7909 = vpop.permute.xlu0 %7908
      %7910 = vrot.lane.b32.xlu0 %v7863, 8
      %v7911 = vpop.permute.xlu0 %7910
      %7912 = vrot.lane.b32.xlu0 %v7865, 8
      %v7913 = vpop.permute.xlu0 %7912
      %7914 = vrot.lane.b32.xlu0 %v7867, 8
      %v7915 = vpop.permute.xlu0 %7914
      %7916 = vrot.lane.b32.xlu0 %v7869, 8
      %v7917 = vpop.permute.xlu0 %7916
      %7918 = vrot.lane.b32.xlu0 %v7871, 8
      %v7919 = vpop.permute.xlu0 %7918
      %7920 = vrot.lane.b32.xlu0 %v7870, 8
      %v7921 = vpop.permute.xlu0 %7920
      %v7923 = vshrl.u32 %v7546, 16
      %v7925 = vrot.slane %v7923, 1
      %v7926 = vshll.u32 %v7546, 16
      %v7928 = vrot.slane %v7926, 2
      %v7929 = vor.u32 %v7925, %v7928
      %v7930 = vrot.slane %v7561, 1
      %v7931 = vrot.slane %v7557, 2
      %v7932 = vor.u32 %v7930, %v7931
      %v7933 = vsel %vm6208, %v7929, %v7932
      %v7934 = vrot.slane %v7569, 1
      %v7935 = vrot.slane %v7565, 2
      %v7936 = vor.u32 %v7934, %v7935
      %v7937 = vsel %vm6208, %v7932, %v7936
      %v7938 = vrot.slane %v7577, 1
      %v7939 = vrot.slane %v7573, 2
      %v7940 = vor.u32 %v7938, %v7939
      %v7941 = vsel %vm6208, %v7936, %v7940
      %v7942 = vrot.slane %v7585, 1
      %v7943 = vrot.slane %v7581, 2
      %v7944 = vor.u32 %v7942, %v7943
      %v7945 = vsel %vm6208, %v7940, %v7944
      %v7946 = vrot.slane %v7593, 1
      %v7947 = vrot.slane %v7589, 2
      %v7948 = vor.u32 %v7946, %v7947
      %v7949 = vsel %vm6208, %v7944, %v7948
      %v7950 = vrot.slane %v7601, 1
      %v7951 = vrot.slane %v7597, 2
      %v7952 = vor.u32 %v7950, %v7951
      %v7953 = vsel %vm6208, %v7948, %v7952
      %v7954 = vrot.slane %v7609, 1
      %v7955 = vrot.slane %v7605, 2
      %v7956 = vor.u32 %v7954, %v7955
      %v7957 = vsel %vm6208, %v7952, %v7956
      %v7958 = vrot.slane %v7617, 1
      %v7959 = vrot.slane %v7613, 2
      %v7960 = vor.u32 %v7958, %v7959
      %v7961 = vsel %vm6208, %v7956, %v7960
      %v7962 = vrot.slane %v7625, 1
      %v7963 = vrot.slane %v7621, 2
      %v7964 = vor.u32 %v7962, %v7963
      %v7965 = vsel %vm6208, %v7960, %v7964
      %v7966 = vrot.slane %v7633, 1
      %v7967 = vrot.slane %v7629, 2
      %v7968 = vor.u32 %v7966, %v7967
      %v7969 = vsel %vm6208, %v7964, %v7968
      %v7970 = vrot.slane %v7641, 1
      %v7971 = vrot.slane %v7637, 2
      %v7972 = vor.u32 %v7970, %v7971
      %v7973 = vsel %vm6208, %v7968, %v7972
      %v7974 = vrot.slane %v7649, 1
      %v7975 = vrot.slane %v7645, 2
      %v7976 = vor.u32 %v7974, %v7975
      %v7977 = vsel %vm6208, %v7972, %v7976
      %v7978 = vrot.slane %v7657, 1
      %v7979 = vrot.slane %v7653, 2
      %v7980 = vor.u32 %v7978, %v7979
      %v7981 = vsel %vm6208, %v7976, %v7980
      %v7982 = vrot.slane %v7665, 1
      %v7983 = vrot.slane %v7661, 2
      %v7984 = vor.u32 %v7982, %v7983
      %v7985 = vsel %vm6208, %v7980, %v7984
      %v7986 = vrot.slane %v7673, 1
      %v7987 = vrot.slane %v7669, 2
      %v7988 = vor.u32 %v7986, %v7987
      %v7989 = vsel %vm6208, %v7984, %v7988
      %v7990 = vrot.slane %v7681, 1
      %v7991 = vrot.slane %v7677, 2
      %v7992 = vor.u32 %v7990, %v7991
      %v7993 = vsel %vm6208, %v7988, %v7992
      %v7994 = vrot.slane %v7689, 1
      %v7995 = vrot.slane %v7685, 2
      %v7996 = vor.u32 %v7994, %v7995
      %v7997 = vsel %vm6208, %v7992, %v7996
      %v7998 = vrot.slane %v7697, 1
      %v7999 = vrot.slane %v7693, 2
      %v8000 = vor.u32 %v7998, %v7999
      %v8001 = vsel %vm6208, %v7996, %v8000
      %v8002 = vrot.slane %v7705, 1
      %v8003 = vrot.slane %v7701, 2
      %v8004 = vor.u32 %v8002, %v8003
      %v8005 = vsel %vm6208, %v8000, %v8004
      %v8006 = vrot.slane %v7713, 1
      %v8007 = vrot.slane %v7709, 2
      %v8008 = vor.u32 %v8006, %v8007
      %v8009 = vsel %vm6208, %v8004, %v8008
      %v8010 = vrot.slane %v7721, 1
      %v8011 = vrot.slane %v7717, 2
      %v8012 = vor.u32 %v8010, %v8011
      %v8013 = vsel %vm6208, %v8008, %v8012
      %v8014 = vrot.slane %v7729, 1
      %v8015 = vrot.slane %v7725, 2
      %v8016 = vor.u32 %v8014, %v8015
      %v8017 = vsel %vm6208, %v8012, %v8016
      %v8018 = vrot.slane %v7737, 1
      %v8019 = vrot.slane %v7733, 2
      %v8020 = vor.u32 %v8018, %v8019
      %v8021 = vsel %vm6208, %v8016, %v8020
      %v8023 = vshrl.u32 %v7547, 16
      %v8025 = vrot.slane %v8023, 1
      %v8026 = vshll.u32 %v7547, 16
      %v8028 = vrot.slane %v8026, 2
      %v8029 = vor.u32 %v8025, %v8028
      %v8030 = vsel %vm6208, %v8020, %v8029
      %8031 = vrot.lane.b32.xlu0 %v7933, 12
      %v8032 = vpop.permute.xlu0 %8031
      %8033 = vrot.lane.b32.xlu0 %v7937, 12
      %v8034 = vpop.permute.xlu0 %8033
      %8035 = vrot.lane.b32.xlu0 %v7941, 12
      %v8036 = vpop.permute.xlu0 %8035
      %8037 = vrot.lane.b32.xlu0 %v7945, 12
      %v8038 = vpop.permute.xlu0 %8037
      %8039 = vrot.lane.b32.xlu0 %v7949, 12
      %v8040 = vpop.permute.xlu0 %8039
      %8041 = vrot.lane.b32.xlu0 %v7953, 12
      %v8042 = vpop.permute.xlu0 %8041
      %8043 = vrot.lane.b32.xlu0 %v7957, 12
      %v8044 = vpop.permute.xlu0 %8043
      %8045 = vrot.lane.b32.xlu0 %v7961, 12
      %v8046 = vpop.permute.xlu0 %8045
      %8047 = vrot.lane.b32.xlu0 %v7965, 12
      %v8048 = vpop.permute.xlu0 %8047
      %8049 = vrot.lane.b32.xlu0 %v7969, 12
      %v8050 = vpop.permute.xlu0 %8049
      %8051 = vrot.lane.b32.xlu0 %v7973, 12
      %v8052 = vpop.permute.xlu0 %8051
      %8053 = vrot.lane.b32.xlu0 %v7977, 12
      %v8054 = vpop.permute.xlu0 %8053
      %8055 = vrot.lane.b32.xlu0 %v7981, 12
      %v8056 = vpop.permute.xlu0 %8055
      %8057 = vrot.lane.b32.xlu0 %v7985, 12
      %v8058 = vpop.permute.xlu0 %8057
      %8059 = vrot.lane.b32.xlu0 %v7989, 12
      %v8060 = vpop.permute.xlu0 %8059
      %8061 = vrot.lane.b32.xlu0 %v7993, 12
      %v8062 = vpop.permute.xlu0 %8061
      %8063 = vrot.lane.b32.xlu0 %v7997, 12
      %v8064 = vpop.permute.xlu0 %8063
      %8065 = vrot.lane.b32.xlu0 %v8001, 12
      %v8066 = vpop.permute.xlu0 %8065
      %8067 = vrot.lane.b32.xlu0 %v8005, 12
      %v8068 = vpop.permute.xlu0 %8067
      %8069 = vrot.lane.b32.xlu0 %v8009, 12
      %v8070 = vpop.permute.xlu0 %8069
      %8071 = vrot.lane.b32.xlu0 %v8013, 12
      %v8072 = vpop.permute.xlu0 %8071
      %8073 = vrot.lane.b32.xlu0 %v8017, 12
      %v8074 = vpop.permute.xlu0 %8073
      %8075 = vrot.lane.b32.xlu0 %v8021, 12
      %v8076 = vpop.permute.xlu0 %8075
      %8077 = vrot.lane.b32.xlu0 %v8030, 12
      %v8078 = vpop.permute.xlu0 %8077
      %8079 = vrot.lane.b32.xlu0 %v8029, 12
      %v8080 = vpop.permute.xlu0 %8079
      %v8083 = vrot.slane %v7548, 2
      %v8084 = vrot.slane %v7521, 2
      %v8085 = vsel %vm6370, %v8083, %v8084
      %v8086 = vrot.slane %v7522, 2
      %v8087 = vsel %vm6370, %v8084, %v8086
      %v8088 = vrot.slane %v7523, 2
      %v8089 = vsel %vm6370, %v8086, %v8088
      %v8090 = vrot.slane %v7524, 2
      %v8091 = vsel %vm6370, %v8088, %v8090
      %v8092 = vrot.slane %v7525, 2
      %v8093 = vsel %vm6370, %v8090, %v8092
      %v8094 = vrot.slane %v7526, 2
      %v8095 = vsel %vm6370, %v8092, %v8094
      %v8096 = vrot.slane %v7527, 2
      %v8097 = vsel %vm6370, %v8094, %v8096
      %v8098 = vrot.slane %v7528, 2
      %v8099 = vsel %vm6370, %v8096, %v8098
      %v8100 = vrot.slane %v7529, 2
      %v8101 = vsel %vm6370, %v8098, %v8100
      %v8102 = vrot.slane %v7530, 2
      %v8103 = vsel %vm6370, %v8100, %v8102
      %v8104 = vrot.slane %v7531, 2
      %v8105 = vsel %vm6370, %v8102, %v8104
      %v8106 = vrot.slane %v7532, 2
      %v8107 = vsel %vm6370, %v8104, %v8106
      %v8108 = vrot.slane %v7533, 2
      %v8109 = vsel %vm6370, %v8106, %v8108
      %v8110 = vrot.slane %v7534, 2
      %v8111 = vsel %vm6370, %v8108, %v8110
      %v8112 = vrot.slane %v7535, 2
      %v8113 = vsel %vm6370, %v8110, %v8112
      %v8114 = vrot.slane %v7536, 2
      %v8115 = vsel %vm6370, %v8112, %v8114
      %v8116 = vrot.slane %v7537, 2
      %v8117 = vsel %vm6370, %v8114, %v8116
      %v8118 = vrot.slane %v7538, 2
      %v8119 = vsel %vm6370, %v8116, %v8118
      %v8120 = vrot.slane %v7539, 2
      %v8121 = vsel %vm6370, %v8118, %v8120
      %v8122 = vrot.slane %v7540, 2
      %v8123 = vsel %vm6370, %v8120, %v8122
      %v8124 = vrot.slane %v7541, 2
      %v8125 = vsel %vm6370, %v8122, %v8124
      %v8126 = vrot.slane %v7542, 2
      %v8127 = vsel %vm6370, %v8124, %v8126
      %v8128 = vrot.slane %v7543, 2
      %v8129 = vsel %vm6370, %v8126, %v8128
      %v8130 = vrot.slane %v7547, 2
      %v8131 = vsel %vm6370, %v8128, %v8130
      %8132 = vrot.lane.b32.xlu0 %v8085, 16
      %v8133 = vpop.permute.xlu0 %8132
      %8134 = vrot.lane.b32.xlu0 %v8087, 16
      %v8135 = vpop.permute.xlu0 %8134
      %8136 = vrot.lane.b32.xlu0 %v8089, 16
      %v8137 = vpop.permute.xlu0 %8136
      %8138 = vrot.lane.b32.xlu0 %v8091, 16
      %v8139 = vpop.permute.xlu0 %8138
      %8140 = vrot.lane.b32.xlu0 %v8093, 16
      %v8141 = vpop.permute.xlu0 %8140
      %8142 = vrot.lane.b32.xlu0 %v8095, 16
      %v8143 = vpop.permute.xlu0 %8142
      %8144 = vrot.lane.b32.xlu0 %v8097, 16
      %v8145 = vpop.permute.xlu0 %8144
      %8146 = vrot.lane.b32.xlu0 %v8099, 16
      %v8147 = vpop.permute.xlu0 %8146
      %8148 = vrot.lane.b32.xlu0 %v8101, 16
      %v8149 = vpop.permute.xlu0 %8148
      %8150 = vrot.lane.b32.xlu0 %v8103, 16
      %v8151 = vpop.permute.xlu0 %8150
      %8152 = vrot.lane.b32.xlu0 %v8105, 16
      %v8153 = vpop.permute.xlu0 %8152
      %8154 = vrot.lane.b32.xlu0 %v8107, 16
      %v8155 = vpop.permute.xlu0 %8154
      %8156 = vrot.lane.b32.xlu0 %v8109, 16
      %v8157 = vpop.permute.xlu0 %8156
      %8158 = vrot.lane.b32.xlu0 %v8111, 16
      %v8159 = vpop.permute.xlu0 %8158
      %8160 = vrot.lane.b32.xlu0 %v8113, 16
      %v8161 = vpop.permute.xlu0 %8160
      %8162 = vrot.lane.b32.xlu0 %v8115, 16
      %v8163 = vpop.permute.xlu0 %8162
      %8164 = vrot.lane.b32.xlu0 %v8117, 16
      %v8165 = vpop.permute.xlu0 %8164
      %8166 = vrot.lane.b32.xlu0 %v8119, 16
      %v8167 = vpop.permute.xlu0 %8166
      %8168 = vrot.lane.b32.xlu0 %v8121, 16
      %v8169 = vpop.permute.xlu0 %8168
      %8170 = vrot.lane.b32.xlu0 %v8123, 16
      %v8171 = vpop.permute.xlu0 %8170
      %8172 = vrot.lane.b32.xlu0 %v8125, 16
      %v8173 = vpop.permute.xlu0 %8172
      %8174 = vrot.lane.b32.xlu0 %v8127, 16
      %v8175 = vpop.permute.xlu0 %8174
      %8176 = vrot.lane.b32.xlu0 %v8129, 16
      %v8177 = vpop.permute.xlu0 %8176
      %8178 = vrot.lane.b32.xlu0 %v8131, 16
      %v8179 = vpop.permute.xlu0 %8178
      %8180 = vrot.lane.b32.xlu0 %v8130, 16
      %v8181 = vpop.permute.xlu0 %8180
      %v8183 = vsel %vm334, %v7520, %v7749
      %v8185 = vsel %vm334, %v7521, %v7751
      %v8187 = vsel %vm334, %v7522, %v7753
      %v8189 = vsel %vm334, %v7523, %v7755
      %v8191 = vsel %vm334, %v7524, %v7757
      %v8193 = vsel %vm334, %v7525, %v7759
      %v8195 = vsel %vm334, %v7526, %v7761
      %v8197 = vsel %vm334, %v7527, %v7763
      %v8199 = vsel %vm334, %v7528, %v7765
      %v8201 = vsel %vm334, %v7529, %v7767
      %v8203 = vsel %vm334, %v7530, %v7769
      %v8205 = vsel %vm334, %v7531, %v7771
      %v8207 = vsel %vm334, %v7532, %v7773
      %v8209 = vsel %vm334, %v7533, %v7775
      %v8211 = vsel %vm334, %v7534, %v7777
      %v8213 = vsel %vm334, %v7535, %v7779
      %v8215 = vsel %vm334, %v7536, %v7781
      %v8217 = vsel %vm334, %v7537, %v7783
      %v8219 = vsel %vm334, %v7538, %v7785
      %v8221 = vsel %vm334, %v7539, %v7787
      %v8223 = vsel %vm334, %v7540, %v7789
      %v8225 = vsel %vm334, %v7541, %v7791
      %v8227 = vsel %vm334, %v7542, %v7793
      %v8229 = vsel %vm334, %v7543, %v7795
      %v8232 = vsel %vm334, %v7544, %v7797
      %v8234 = vsel %vm2923, %v8183, %v7873
      %v8236 = vsel %vm2923, %v8185, %v7875
      %v8238 = vsel %vm2923, %v8187, %v7877
      %v8240 = vsel %vm2923, %v8189, %v7879
      %v8242 = vsel %vm2923, %v8191, %v7881
      %v8244 = vsel %vm2923, %v8193, %v7883
      %v8246 = vsel %vm2923, %v8195, %v7885
      %v8248 = vsel %vm2923, %v8197, %v7887
      %v8250 = vsel %vm2923, %v8199, %v7889
      %v8252 = vsel %vm2923, %v8201, %v7891
      %v8254 = vsel %vm2923, %v8203, %v7893
      %v8256 = vsel %vm2923, %v8205, %v7895
      %v8258 = vsel %vm2923, %v8207, %v7897
      %v8260 = vsel %vm2923, %v8209, %v7899
      %v8262 = vsel %vm2923, %v8211, %v7901
      %v8264 = vsel %vm2923, %v8213, %v7903
      %v8266 = vsel %vm2923, %v8215, %v7905
      %v8268 = vsel %vm2923, %v8217, %v7907
      %v8270 = vsel %vm2923, %v8219, %v7909
      %v8272 = vsel %vm2923, %v8221, %v7911
      %v8274 = vsel %vm2923, %v8223, %v7913
      %v8276 = vsel %vm2923, %v8225, %v7915
      %v8278 = vsel %vm2923, %v8227, %v7917
      %v8280 = vsel %vm2923, %v8229, %v7919
      %v8282 = vsel %vm2923, %v8232, %v7921
      %v8284 = vsel %vm6571, %v8234, %v8032
      %v8286 = vsel %vm6571, %v8236, %v8034
      %v8288 = vsel %vm6571, %v8238, %v8036
      %v8290 = vsel %vm6571, %v8240, %v8038
      %v8292 = vsel %vm6571, %v8242, %v8040
      %v8294 = vsel %vm6571, %v8244, %v8042
      %v8296 = vsel %vm6571, %v8246, %v8044
      %v8298 = vsel %vm6571, %v8248, %v8046
      %v8300 = vsel %vm6571, %v8250, %v8048
      %v8302 = vsel %vm6571, %v8252, %v8050
      %v8304 = vsel %vm6571, %v8254, %v8052
      %v8306 = vsel %vm6571, %v8256, %v8054
      %v8308 = vsel %vm6571, %v8258, %v8056
      %v8310 = vsel %vm6571, %v8260, %v8058
      %v8312 = vsel %vm6571, %v8262, %v8060
      %v8314 = vsel %vm6571, %v8264, %v8062
      %v8316 = vsel %vm6571, %v8266, %v8064
      %v8318 = vsel %vm6571, %v8268, %v8066
      %v8320 = vsel %vm6571, %v8270, %v8068
      %v8322 = vsel %vm6571, %v8272, %v8070
      %v8324 = vsel %vm6571, %v8274, %v8072
      %v8326 = vsel %vm6571, %v8276, %v8074
      %v8328 = vsel %vm6571, %v8278, %v8076
      %v8330 = vsel %vm6571, %v8280, %v8078
      %v8332 = vsel %vm6571, %v8282, %v8080
      %v8334 = vsel %vm3710, %v8284, %v8133
      %v8336 = vsel %vm3710, %v8286, %v8135
      %v8338 = vsel %vm3710, %v8288, %v8137
      %v8340 = vsel %vm3710, %v8290, %v8139
      %v8342 = vsel %vm3710, %v8292, %v8141
      %v8344 = vsel %vm3710, %v8294, %v8143
      %v8346 = vsel %vm3710, %v8296, %v8145
      %v8348 = vsel %vm3710, %v8298, %v8147
      %v8350 = vsel %vm3710, %v8300, %v8149
      %v8352 = vsel %vm3710, %v8302, %v8151
      %v8354 = vsel %vm3710, %v8304, %v8153
      %v8356 = vsel %vm3710, %v8306, %v8155
      %v8358 = vsel %vm3710, %v8308, %v8157
      %v8360 = vsel %vm3710, %v8310, %v8159
      %v8362 = vsel %vm3710, %v8312, %v8161
      %v8364 = vsel %vm3710, %v8314, %v8163
      %v8366 = vsel %vm3710, %v8316, %v8165
      %v8368 = vsel %vm3710, %v8318, %v8167
      %v8370 = vsel %vm3710, %v8320, %v8169
      %v8372 = vsel %vm3710, %v8322, %v8171
      %v8374 = vsel %vm3710, %v8324, %v8173
      %v8376 = vsel %vm3710, %v8326, %v8175
      %v8378 = vsel %vm3710, %v8328, %v8177
      %v8380 = vsel %vm3710, %v8330, %v8179
      %v8382 = vsel %vm3710, %v8332, %v8181
      %s8383 = scalar_lea.vmem %s5, 24
      %v8384 = vld [vmem:[%s8383] sm:$0xf]
      %v8385 = vld [vmem:[%s8383 + $0x4] sm:$0xf]
      %v8386 = vld [vmem:[%s8383 + $0x8] sm:$0x3]
      %v8412 = vrot.slane %v8334, 3
      %v8413 = vrot.slane %v8336, 3
      %v8414 = vsel %vm7177, %v8412, %v8413
      %v8415 = vrot.slane %v8338, 3
      %v8416 = vsel %vm7177, %v8413, %v8415
      %v8417 = vrot.slane %v8340, 3
      %v8418 = vsel %vm7177, %v8415, %v8417
      %v8419 = vrot.slane %v8342, 3
      %v8420 = vsel %vm7177, %v8417, %v8419
      %v8421 = vrot.slane %v8344, 3
      %v8422 = vsel %vm7177, %v8419, %v8421
      %v8423 = vrot.slane %v8346, 3
      %v8424 = vsel %vm7177, %v8421, %v8423
      %v8425 = vrot.slane %v8348, 3
      %v8426 = vsel %vm7177, %v8423, %v8425
      %v8427 = vrot.slane %v8350, 3
      %v8428 = vsel %vm7177, %v8425, %v8427
      %v8429 = vrot.slane %v8352, 3
      %v8430 = vsel %vm7177, %v8427, %v8429
      %v8431 = vrot.slane %v8354, 3
      %v8432 = vsel %vm7177, %v8429, %v8431
      %v8433 = vrot.slane %v8356, 3
      %v8434 = vsel %vm7177, %v8431, %v8433
      %v8435 = vrot.slane %v8358, 3
      %v8436 = vsel %vm7177, %v8433, %v8435
      %v8437 = vrot.slane %v8360, 3
      %v8438 = vsel %vm7177, %v8435, %v8437
      %v8439 = vrot.slane %v8362, 3
      %v8440 = vsel %vm7177, %v8437, %v8439
      %v8441 = vrot.slane %v8364, 3
      %v8442 = vsel %vm7177, %v8439, %v8441
      %v8443 = vrot.slane %v8366, 3
      %v8444 = vsel %vm7177, %v8441, %v8443
      %v8445 = vrot.slane %v8368, 3
      %v8446 = vsel %vm7177, %v8443, %v8445
      %v8447 = vrot.slane %v8370, 3
      %v8448 = vsel %vm7177, %v8445, %v8447
      %v8449 = vrot.slane %v8372, 3
      %v8450 = vsel %vm7177, %v8447, %v8449
      %v8451 = vrot.slane %v8374, 3
      %v8452 = vsel %vm7177, %v8449, %v8451
      %v8453 = vrot.slane %v8376, 3
      %v8454 = vsel %vm7177, %v8451, %v8453
      %v8455 = vrot.slane %v8378, 3
      %v8456 = vsel %vm7177, %v8453, %v8455
      %v8457 = vrot.slane %v8380, 3
      %v8458 = vsel %vm7177, %v8455, %v8457
      %v8459 = vrot.slane %v8382, 3
      %v8460 = vsel %vm7177, %v8457, %v8459
      %v8464 = vunpack.c.l.b16 %v8384
      %v8465 = vunpack.c.l.b16 %v8385
      %v8466 = vunpack.c.l.b16 %v8386
      %v8467 = vpack.c.b16 %v8465, %v8464
      %v8468 = vpack.c.b16 %v8466, %v8466
      %v8471 = vsel %vm6887, %v8414, 0
      %v8474 = vsel %vm6887, %v8416, 0
      %v8477 = vsel %vm6887, %v8418, 0
      %v8480 = vsel %vm6887, %v8420, 0
      %v8483 = vsel %vm6887, %v8422, 0
      %v8486 = vsel %vm6887, %v8424, 0
      %v8489 = vsel %vm6887, %v8426, 0
      %v8492 = vsel %vm6887, %v8428, 0
      %v8495 = vsel %vm6887, %v8430, 0
      %v8498 = vsel %vm6887, %v8432, 0
      %v8501 = vsel %vm6887, %v8434, 0
      %v8504 = vsel %vm6887, %v8436, 0
      %v8507 = vsel %vm6887, %v8438, 0
      %v8510 = vsel %vm6887, %v8440, 0
      %v8513 = vsel %vm6887, %v8442, 0
      %v8516 = vsel %vm6887, %v8444, 0
      %v8519 = vsel %vm6887, %v8446, 0
      %v8522 = vsel %vm6887, %v8448, 0
      %v8525 = vsel %vm6887, %v8450, 0
      %v8528 = vsel %vm6887, %v8452, 0
      %v8531 = vsel %vm6887, %v8454, 0
      %v8534 = vsel %vm6887, %v8456, 0
      %v8537 = vsel %vm6887, %v8458, 0
      %v8540 = vsel %vm6887, %v8460, 0
      %v8543 = vsel %vm1632, %v8468, 0
      %8545 = vmatprep.subr.bf16.mxu0 0
      %8546 = vmatpush1.bf16.msra.mxu0 %v8467
      %8547 = vmatprep.subr.bf16.mxu0 0
      %8548 = vmatpush1.bf16.msra.mxu0 %v8543
      %8549 = vmatprep.subr.bf16.mxu0 0
      %8550 = vmatpush1.bf16.msra.mxu0 0
      %8551 = vmatprep.subr.bf16.mxu0 0
      %8552 = vmatpush1.bf16.msra.mxu0 0
      %8553 = vmatprep.subr.bf16.mxu0 0
      %8554 = vmatpush1.bf16.msra.mxu0 0
      %8555 = vmatprep.subr.bf16.mxu0 0
      %8556 = vmatpush1.bf16.msra.mxu0 0
      %8557 = vmatprep.subr.bf16.mxu0 0
      %8558 = vmatpush1.bf16.msra.mxu0 0
      %8559 = vmatprep.subr.bf16.mxu0 0
      %8560 = vmatpush1.bf16.msra.mxu0 0
      %8561 = vmatprep.subr.bf16.mxu0 0
      %8562 = vmatpush1.bf16.msra.mxu0 0
      %8563 = vmatprep.subr.bf16.mxu0 0
      %8564 = vmatpush1.bf16.msra.mxu0 0
      %8565 = vmatprep.subr.bf16.mxu0 0
      %8566 = vmatpush1.bf16.msra.mxu0 0
      %8567 = vmatprep.subr.bf16.mxu0 0
      %8568 = vmatpush1.bf16.msra.mxu0 0
      %8569 = vmatprep.subr.bf16.mxu0 0
      %8570 = vmatpush1.bf16.msra.mxu0 0
      %8571 = vmatprep.subr.bf16.mxu0 0
      %8572 = vmatpush1.bf16.msra.mxu0 0
      %8573 = vmatprep.subr.bf16.mxu0 0
      %8574 = vmatpush1.bf16.msra.mxu0 0
      %8575 = vmatprep.subr.bf16.mxu0 0
      %8576 = vmatpush1.bf16.msra.mxu0 0
      %8577 = vmatprep.mubr.bf16.mxu0 0
      %8578 = vmatmul.mubr.bf16.gmra.mrb[0].mxu0 %v8471
      %v8579 = vpop.f32.mrb[0].mxu0
      %v8580 = vadd.f32 0.0, %v8579
      %v8581 = vpop.f32.mrb[0].mxu0
      %v8582 = vpop.f32.mrb[0].mxu0
      %v8583 = vadd.f32 0.0, %v8582
      %v8584 = vpop.f32.mrb[0].mxu0
      %8585 = vmatprep.mubr.bf16.mxu0 0
      %8586 = vmatmul.mubr.bf16.gmra.mrb[0].mxu0 %v8474
      %v8587 = vpop.f32.mrb[0].mxu0
      %v8588 = vpop.f32.mrb[0].mxu0
      %v8589 = vpop.f32.mrb[0].mxu0
      %v8590 = vadd.f32 0.0, %v8589
      %v8591 = vpop.f32.mrb[0].mxu0
      %8592 = vmatprep.mubr.bf16.mxu0 0
      %8593 = vmatmul.mubr.bf16.gmra.mrb[0].mxu0 %v8477
      %v8594 = vpop.f32.mrb[0].mxu0
      %v8595 = vadd.f32 0.0, %v8594
      %v8596 = vpop.f32.mrb[0].mxu0
      %v8597 = vpop.f32.mrb[0].mxu0
      %v8598 = vpop.f32.mrb[0].mxu0
      %8599 = vmatprep.mubr.bf16.mxu0 0
      %8600 = vmatmul.mubr.bf16.gmra.mrb[0].mxu0 %v8480
      %v8601 = vpop.f32.mrb[0].mxu0
      %v8602 = vadd.f32 0.0, %v8601
      %v8603 = vpop.f32.mrb[0].mxu0
      %v8604 = vpop.f32.mrb[0].mxu0
      %v8605 = vadd.f32 0.0, %v8604
      %v8606 = vpop.f32.mrb[0].mxu0
      %8607 = vmatprep.mubr.bf16.mxu0 0
      %8608 = vmatmul.mubr.bf16.gmra.mrb[0].mxu0 %v8483
      %v8609 = vpop.f32.mrb[0].mxu0
      %v8610 = vpop.f32.mrb[0].mxu0
      %v8611 = vpop.f32.mrb[0].mxu0
      %v8612 = vadd.f32 0.0, %v8611
      %v8613 = vpop.f32.mrb[0].mxu0
      %8614 = vmatprep.mubr.bf16.mxu0 0
      %8615 = vmatmul.mubr.bf16.gmra.mrb[0].mxu0 %v8486
      %v8616 = vpop.f32.mrb[0].mxu0
      %v8617 = vadd.f32 0.0, %v8616
      %v8618 = vpop.f32.mrb[0].mxu0
      %v8619 = vpop.f32.mrb[0].mxu0
      %v8620 = vpop.f32.mrb[0].mxu0
      %8621 = vmatprep.mubr.bf16.mxu0 0
      %8622 = vmatmul.mubr.bf16.gmra.mrb[0].mxu0 %v8489
      %v8623 = vpop.f32.mrb[0].mxu0
      %v8624 = vadd.f32 0.0, %v8623
      %v8625 = vpop.f32.mrb[0].mxu0
      %v8626 = vpop.f32.mrb[0].mxu0
      %v8627 = vadd.f32 0.0, %v8626
      %v8628 = vpop.f32.mrb[0].mxu0
      %8629 = vmatprep.mubr.bf16.mxu0 0
      %8630 = vmatmul.mubr.bf16.gmra.mrb[0].mxu0 %v8492
      %v8631 = vpop.f32.mrb[0].mxu0
      %v8632 = vpop.f32.mrb[0].mxu0
      %v8633 = vpop.f32.mrb[0].mxu0
      %v8634 = vadd.f32 0.0, %v8633
      %v8635 = vpop.f32.mrb[0].mxu0
      %8636 = vmatprep.mubr.bf16.mxu0 0
      %8637 = vmatmul.mubr.bf16.gmra.mrb[0].mxu0 %v8495
      %v8638 = vpop.f32.mrb[0].mxu0
      %v8639 = vadd.f32 0.0, %v8638
      %v8640 = vpop.f32.mrb[0].mxu0
      %v8641 = vpop.f32.mrb[0].mxu0
      %v8642 = vpop.f32.mrb[0].mxu0
      %8643 = vmatprep.mubr.bf16.mxu0 0
      %8644 = vmatmul.mubr.bf16.gmra.mrb[0].mxu0 %v8498
      %v8645 = vpop.f32.mrb[0].mxu0
      %v8646 = vadd.f32 0.0, %v8645
      %v8647 = vpop.f32.mrb[0].mxu0
      %v8648 = vpop.f32.mrb[0].mxu0
      %v8649 = vadd.f32 0.0, %v8648
      %v8650 = vpop.f32.mrb[0].mxu0
      %8651 = vmatprep.mubr.bf16.mxu0 0
      %8652 = vmatmul.mubr.bf16.gmra.mrb[0].mxu0 %v8501
      %v8653 = vpop.f32.mrb[0].mxu0
      %v8654 = vpop.f32.mrb[0].mxu0
      %v8655 = vpop.f32.mrb[0].mxu0
      %v8656 = vadd.f32 0.0, %v8655
      %v8657 = vpop.f32.mrb[0].mxu0
      %8658 = vmatprep.mubr.bf16.mxu0 0
      %8659 = vmatmul.mubr.bf16.gmra.mrb[0].mxu0 %v8504
      %v8660 = vpop.f32.mrb[0].mxu0
      %v8661 = vadd.f32 0.0, %v8660
      %v8662 = vpop.f32.mrb[0].mxu0
      %v8663 = vpop.f32.mrb[0].mxu0
      %v8664 = vpop.f32.mrb[0].mxu0
      %8665 = vmatprep.mubr.bf16.mxu0 0
      %8666 = vmatmul.mubr.bf16.gmra.mrb[0].mxu0 %v8507
      %v8667 = vpop.f32.mrb[0].mxu0
      %v8668 = vadd.f32 0.0, %v8667
      %v8669 = vpop.f32.mrb[0].mxu0
      %v8670 = vpop.f32.mrb[0].mxu0
      %v8671 = vadd.f32 0.0, %v8670
      %v8672 = vpop.f32.mrb[0].mxu0
      %8673 = vmatprep.mubr.bf16.mxu0 0
      %8674 = vmatmul.mubr.bf16.gmra.mrb[0].mxu0 %v8510
      %v8675 = vpop.f32.mrb[0].mxu0
      %v8676 = vpop.f32.mrb[0].mxu0
      %v8677 = vpop.f32.mrb[0].mxu0
      %v8678 = vadd.f32 0.0, %v8677
      %v8679 = vpop.f32.mrb[0].mxu0
      %8680 = vmatprep.mubr.bf16.mxu0 0
      %8681 = vmatmul.mubr.bf16.gmra.mrb[0].mxu0 %v8513
      %v8682 = vpop.f32.mrb[0].mxu0
      %v8683 = vadd.f32 0.0, %v8682
      %v8684 = vpop.f32.mrb[0].mxu0
      %v8685 = vpop.f32.mrb[0].mxu0
      %v8686 = vpop.f32.mrb[0].mxu0
      %8687 = vmatprep.mubr.bf16.mxu0 0
      %8688 = vmatmul.mubr.bf16.gmra.mrb[0].mxu0 %v8516
      %v8689 = vpop.f32.mrb[0].mxu0
      %v8690 = vadd.f32 0.0, %v8689
      %v8691 = vpop.f32.mrb[0].mxu0
      %v8692 = vpop.f32.mrb[0].mxu0
      %v8693 = vadd.f32 0.0, %v8692
      %v8694 = vpop.f32.mrb[0].mxu0
      %8695 = vmatprep.mubr.bf16.mxu0 0
      %8696 = vmatmul.mubr.bf16.gmra.mrb[0].mxu0 %v8519
      %v8697 = vpop.f32.mrb[0].mxu0
      %v8698 = vpop.f32.mrb[0].mxu0
      %v8699 = vpop.f32.mrb[0].mxu0
      %v8700 = vadd.f32 0.0, %v8699
      %v8701 = vpop.f32.mrb[0].mxu0
      %8702 = vmatprep.mubr.bf16.mxu0 0
      %8703 = vmatmul.mubr.bf16.gmra.mrb[0].mxu0 %v8522
      %v8704 = vpop.f32.mrb[0].mxu0
      %v8705 = vadd.f32 0.0, %v8704
      %v8706 = vpop.f32.mrb[0].mxu0
      %v8707 = vpop.f32.mrb[0].mxu0
      %v8708 = vpop.f32.mrb[0].mxu0
      %8709 = vmatprep.mubr.bf16.mxu0 0
      %8710 = vmatmul.mubr.bf16.gmra.mrb[0].mxu0 %v8525
      %v8711 = vpop.f32.mrb[0].mxu0
      %v8712 = vadd.f32 0.0, %v8711
      %v8713 = vpop.f32.mrb[0].mxu0
      %v8714 = vpop.f32.mrb[0].mxu0
      %v8715 = vadd.f32 0.0, %v8714
      %v8716 = vpop.f32.mrb[0].mxu0
      %8717 = vmatprep.mubr.bf16.mxu0 0
      %8718 = vmatmul.mubr.bf16.gmra.mrb[0].mxu0 %v8528
      %v8719 = vpop.f32.mrb[0].mxu0
      %v8720 = vpop.f32.mrb[0].mxu0
      %v8721 = vpop.f32.mrb[0].mxu0
      %v8722 = vadd.f32 0.0, %v8721
      %v8723 = vpop.f32.mrb[0].mxu0
      %8724 = vmatprep.mubr.bf16.mxu0 0
      %8725 = vmatmul.mubr.bf16.gmra.mrb[0].mxu0 %v8531
      %v8726 = vpop.f32.mrb[0].mxu0
      %v8727 = vadd.f32 0.0, %v8726
      %v8728 = vpop.f32.mrb[0].mxu0
      %v8729 = vpop.f32.mrb[0].mxu0
      %v8730 = vpop.f32.mrb[0].mxu0
      %8731 = vmatprep.mubr.bf16.mxu0 0
      %8732 = vmatmul.mubr.bf16.gmra.mrb[0].mxu0 %v8534
      %v8733 = vpop.f32.mrb[0].mxu0
      %v8734 = vadd.f32 0.0, %v8733
      %v8735 = vpop.f32.mrb[0].mxu0
      %v8736 = vpop.f32.mrb[0].mxu0
      %v8737 = vadd.f32 0.0, %v8736
      %v8738 = vpop.f32.mrb[0].mxu0
      %8739 = vmatprep.mubr.bf16.mxu0 0
      %8740 = vmatmul.mubr.bf16.gmra.mrb[0].mxu0 %v8537
      %v8741 = vpop.f32.mrb[0].mxu0
      %v8742 = vpop.f32.mrb[0].mxu0
      %v8743 = vpop.f32.mrb[0].mxu0
      %v8744 = vadd.f32 0.0, %v8743
      %v8745 = vpop.f32.mrb[0].mxu0
      %8746 = vmatprep.mubr.bf16.mxu0 0
      %8747 = vmatmul.mubr.bf16.gmra.mrb[0].mxu0 %v8540
      %v8748 = vpop.f32.mrb[0].mxu0
      %v8749 = vadd.f32 0.0, %v8748
      %v8750 = vpop.f32.mrb[0].mxu0
      %v8751 = vpop.f32.mrb[0].mxu0
      %v8752 = vpop.f32.mrb[0].mxu0
      %8753 = vdwg.mxu0
      %v8754 = vadd.f32 %v7346, %v8580
      %v8755 = vadd.f32 %v7349, %v8583
      %v8756 = vadd.f32 %v7356, %v8590
      %v8757 = vadd.f32 %v7361, %v8595
      %v8758 = vadd.f32 %v7368, %v8602
      %v8759 = vadd.f32 %v7371, %v8605
      %v8760 = vadd.f32 %v7378, %v8612
      %v8761 = vadd.f32 %v7383, %v8617
      %v8762 = vadd.f32 %v7390, %v8624
      %v8763 = vadd.f32 %v7393, %v8627
      %v8764 = vadd.f32 %v7400, %v8634
      %v8765 = vadd.f32 %v7405, %v8639
      %v8766 = vadd.f32 %v7412, %v8646
      %v8767 = vadd.f32 %v7415, %v8649
      %v8768 = vadd.f32 %v7422, %v8656
      %v8769 = vadd.f32 %v7427, %v8661
      %v8770 = vadd.f32 %v7434, %v8668
      %v8771 = vadd.f32 %v7437, %v8671
      %v8772 = vadd.f32 %v7444, %v8678
      %v8773 = vadd.f32 %v7449, %v8683
      %v8774 = vadd.f32 %v7456, %v8690
      %v8775 = vadd.f32 %v7459, %v8693
      %v8776 = vadd.f32 %v7466, %v8700
      %v8777 = vadd.f32 %v7471, %v8705
      %v8778 = vadd.f32 %v7478, %v8712
      %v8779 = vadd.f32 %v7481, %v8715
      %v8780 = vadd.f32 %v7488, %v8722
      %v8781 = vadd.f32 %v7493, %v8727
      %v8782 = vadd.f32 %v7500, %v8734
      %v8783 = vadd.f32 %v7503, %v8737
      %v8784 = vadd.f32 %v7510, %v8744
      %v8785 = vadd.f32 %v7515, %v8749
      %v8786 = vld [vmem:[#allocation4 + $0x28] sm:$0x80]
      %v8787 = vld [vmem:[#allocation4 + $0x30] sm:$0xff]
      %v8788 = vld [vmem:[#allocation4 + $0x38] sm:$0xff]
      %v8789 = vld [vmem:[#allocation4 + $0x40] sm:$0xff]
      %v8790 = vld [vmem:[#allocation4 + $0x48] sm:$0xff]
      %v8791 = vld [vmem:[#allocation4 + $0x50] sm:$0xff]
      %v8792 = vld [vmem:[#allocation4 + $0x58] sm:$0xff]
      %v8793 = vld [vmem:[#allocation4 + $0x60] sm:$0xff]
      %v8794 = vld [vmem:[#allocation4 + $0x68] sm:$0xff]
      %v8795 = vld [vmem:[#allocation4 + $0x70] sm:$0xff]
      %v8796 = vld [vmem:[#allocation4 + $0x78] sm:$0xff]
      %v8797 = vld [vmem:[#allocation4 + $0x80] sm:$0xff]
      %v8798 = vld [vmem:[#allocation4 + $0x88] sm:$0xff]
      %v8799 = vld [vmem:[#allocation4 + $0x90] sm:$0xff]
      %v8800 = vld [vmem:[#allocation4 + $0x98] sm:$0xff]
      %v8801 = vld [vmem:[#allocation4 + $0xa0] sm:$0xff]
      %v8802 = vld [vmem:[#allocation4 + $0xa8] sm:$0xff]
      %v8803 = vld [vmem:[#allocation4 + $0xb0] sm:$0xff]
      %v8804 = vld [vmem:[#allocation4 + $0xb8] sm:$0xff]
      %v8805 = vld [vmem:[#allocation4 + $0xc0] sm:$0xff]
      %v8806 = vld [vmem:[#allocation4 + $0xc8] sm:$0xff]
      %v8807 = vld [vmem:[#allocation4 + $0xd0] sm:$0xff]
      %v8808 = vld [vmem:[#allocation4 + $0xd8] sm:$0xff]
      %v8809 = vld [vmem:[#allocation4 + $0xe0] sm:$0xff]
      %v8810 = vld [vmem:[#allocation4 + $0xe8] sm:$0x7f]
      %v8811 = vld [vmem:[#allocation4 + $0xe8] sm:$0xff]
      %v8812 = vld [vmem:[#allocation4 + $0xf0] sm:$0x1]
      %v8813 = vld [vmem:[#allocation4 + $0x30] sm:$0xfe]
      %v8815 = vshrl.u32 %v8786, 16
      %v8818 = vshll.u32 %v8787, 16
      %v8820 = vrot.slane %v8818, 1
      %v8821 = vsel %vm3284, %v8815, %v8820
      %v8822 = vshrl.u32 %v8787, 16
      %v8824 = vor.u32 %v8822, %v8820
      %v8826 = vshll.u32 %v8788, 16
      %v8828 = vrot.slane %v8826, 1
      %v8829 = vsel %vm3284, %v8824, %v8828
      %v8830 = vshrl.u32 %v8788, 16
      %v8832 = vor.u32 %v8830, %v8828
      %v8834 = vshll.u32 %v8789, 16
      %v8836 = vrot.slane %v8834, 1
      %v8837 = vsel %vm3284, %v8832, %v8836
      %v8838 = vshrl.u32 %v8789, 16
      %v8840 = vor.u32 %v8838, %v8836
      %v8842 = vshll.u32 %v8790, 16
      %v8844 = vrot.slane %v8842, 1
      %v8845 = vsel %vm3284, %v8840, %v8844
      %v8846 = vshrl.u32 %v8790, 16
      %v8848 = vor.u32 %v8846, %v8844
      %v8850 = vshll.u32 %v8791, 16
      %v8852 = vrot.slane %v8850, 1
      %v8853 = vsel %vm3284, %v8848, %v8852
      %v8854 = vshrl.u32 %v8791, 16
      %v8856 = vor.u32 %v8854, %v8852
      %v8858 = vshll.u32 %v8792, 16
      %v8860 = vrot.slane %v8858, 1
      %v8861 = vsel %vm3284, %v8856, %v8860
      %v8862 = vshrl.u32 %v8792, 16
      %v8864 = vor.u32 %v8862, %v8860
      %v8866 = vshll.u32 %v8793, 16
      %v8868 = vrot.slane %v8866, 1
      %v8869 = vsel %vm3284, %v8864, %v8868
      %v8870 = vshrl.u32 %v8793, 16
      %v8872 = vor.u32 %v8870, %v8868
      %v8874 = vshll.u32 %v8794, 16
      %v8876 = vrot.slane %v8874, 1
      %v8877 = vsel %vm3284, %v8872, %v8876
      %v8878 = vshrl.u32 %v8794, 16
      %v8880 = vor.u32 %v8878, %v8876
      %v8882 = vshll.u32 %v8795, 16
      %v8884 = vrot.slane %v8882, 1
      %v8885 = vsel %vm3284, %v8880, %v8884
      %v8886 = vshrl.u32 %v8795, 16
      %v8888 = vor.u32 %v8886, %v8884
      %v8890 = vshll.u32 %v8796, 16
      %v8892 = vrot.slane %v8890, 1
      %v8893 = vsel %vm3284, %v8888, %v8892
      %v8894 = vshrl.u32 %v8796, 16
      %v8896 = vor.u32 %v8894, %v8892
      %v8898 = vshll.u32 %v8797, 16
      %v8900 = vrot.slane %v8898, 1
      %v8901 = vsel %vm3284, %v8896, %v8900
      %v8902 = vshrl.u32 %v8797, 16
      %v8904 = vor.u32 %v8902, %v8900
      %v8906 = vshll.u32 %v8798, 16
      %v8908 = vrot.slane %v8906, 1
      %v8909 = vsel %vm3284, %v8904, %v8908
      %v8910 = vshrl.u32 %v8798, 16
      %v8912 = vor.u32 %v8910, %v8908
      %v8914 = vshll.u32 %v8799, 16
      %v8916 = vrot.slane %v8914, 1
      %v8917 = vsel %vm3284, %v8912, %v8916
      %v8918 = vshrl.u32 %v8799, 16
      %v8920 = vor.u32 %v8918, %v8916
      %v8922 = vshll.u32 %v8800, 16
      %v8924 = vrot.slane %v8922, 1
      %v8925 = vsel %vm3284, %v8920, %v8924
      %v8926 = vshrl.u32 %v8800, 16
      %v8928 = vor.u32 %v8926, %v8924
      %v8930 = vshll.u32 %v8801, 16
      %v8932 = vrot.slane %v8930, 1
      %v8933 = vsel %vm3284, %v8928, %v8932
      %v8934 = vshrl.u32 %v8801, 16
      %v8936 = vor.u32 %v8934, %v8932
      %v8938 = vshll.u32 %v8802, 16
      %v8940 = vrot.slane %v8938, 1
      %v8941 = vsel %vm3284, %v8936, %v8940
      %v8942 = vshrl.u32 %v8802, 16
      %v8944 = vor.u32 %v8942, %v8940
      %v8946 = vshll.u32 %v8803, 16
      %v8948 = vrot.slane %v8946, 1
      %v8949 = vsel %vm3284, %v8944, %v8948
      %v8950 = vshrl.u32 %v8803, 16
      %v8952 = vor.u32 %v8950, %v8948
      %v8954 = vshll.u32 %v8804, 16
      %v8956 = vrot.slane %v8954, 1
      %v8957 = vsel %vm3284, %v8952, %v8956
      %v8958 = vshrl.u32 %v8804, 16
      %v8960 = vor.u32 %v8958, %v8956
      %v8962 = vshll.u32 %v8805, 16
      %v8964 = vrot.slane %v8962, 1
      %v8965 = vsel %vm3284, %v8960, %v8964
      %v8966 = vshrl.u32 %v8805, 16
      %v8968 = vor.u32 %v8966, %v8964
      %v8970 = vshll.u32 %v8806, 16
      %v8972 = vrot.slane %v8970, 1
      %v8973 = vsel %vm3284, %v8968, %v8972
      %v8974 = vshrl.u32 %v8806, 16
      %v8976 = vor.u32 %v8974, %v8972
      %v8978 = vshll.u32 %v8807, 16
      %v8980 = vrot.slane %v8978, 1
      %v8981 = vsel %vm3284, %v8976, %v8980
      %v8982 = vshrl.u32 %v8807, 16
      %v8984 = vor.u32 %v8982, %v8980
      %v8986 = vshll.u32 %v8808, 16
      %v8988 = vrot.slane %v8986, 1
      %v8989 = vsel %vm3284, %v8984, %v8988
      %v8990 = vshrl.u32 %v8808, 16
      %v8992 = vor.u32 %v8990, %v8988
      %v8994 = vshll.u32 %v8809, 16
      %v8996 = vrot.slane %v8994, 1
      %v8997 = vsel %vm3284, %v8992, %v8996
      %v8998 = vshrl.u32 %v8809, 16
      %v9000 = vor.u32 %v8998, %v8996
      %v9002 = vshll.u32 %v8811, 16
      %v9004 = vrot.slane %v9002, 1
      %v9005 = vsel %vm3284, %v9000, %v9004
      %v9006 = vshrl.u32 %v8811, 16
      %v9008 = vor.u32 %v9006, %v9004
      %9009 = vrot.lane.b32.xlu0 %v8821, 4
      %v9010 = vpop.permute.xlu0 %9009
      %9011 = vrot.lane.b32.xlu0 %v8829, 4
      %v9012 = vpop.permute.xlu0 %9011
      %9013 = vrot.lane.b32.xlu0 %v8837, 4
      %v9014 = vpop.permute.xlu0 %9013
      %9015 = vrot.lane.b32.xlu0 %v8845, 4
      %v9016 = vpop.permute.xlu0 %9015
      %9017 = vrot.lane.b32.xlu0 %v8853, 4
      %v9018 = vpop.permute.xlu0 %9017
      %9019 = vrot.lane.b32.xlu0 %v8861, 4
      %v9020 = vpop.permute.xlu0 %9019
      %9021 = vrot.lane.b32.xlu0 %v8869, 4
      %v9022 = vpop.permute.xlu0 %9021
      %9023 = vrot.lane.b32.xlu0 %v8877, 4
      %v9024 = vpop.permute.xlu0 %9023
      %9025 = vrot.lane.b32.xlu0 %v8885, 4
      %v9026 = vpop.permute.xlu0 %9025
      %9027 = vrot.lane.b32.xlu0 %v8893, 4
      %v9028 = vpop.permute.xlu0 %9027
      %9029 = vrot.lane.b32.xlu0 %v8901, 4
      %v9030 = vpop.permute.xlu0 %9029
      %9031 = vrot.lane.b32.xlu0 %v8909, 4
      %v9032 = vpop.permute.xlu0 %9031
      %9033 = vrot.lane.b32.xlu0 %v8917, 4
      %v9034 = vpop.permute.xlu0 %9033
      %9035 = vrot.lane.b32.xlu0 %v8925, 4
      %v9036 = vpop.permute.xlu0 %9035
      %9037 = vrot.lane.b32.xlu0 %v8933, 4
      %v9038 = vpop.permute.xlu0 %9037
      %9039 = vrot.lane.b32.xlu0 %v8941, 4
      %v9040 = vpop.permute.xlu0 %9039
      %9041 = vrot.lane.b32.xlu0 %v8949, 4
      %v9042 = vpop.permute.xlu0 %9041
      %9043 = vrot.lane.b32.xlu0 %v8957, 4
      %v9044 = vpop.permute.xlu0 %9043
      %9045 = vrot.lane.b32.xlu0 %v8965, 4
      %v9046 = vpop.permute.xlu0 %9045
      %9047 = vrot.lane.b32.xlu0 %v8973, 4
      %v9048 = vpop.permute.xlu0 %9047
      %9049 = vrot.lane.b32.xlu0 %v8981, 4
      %v9050 = vpop.permute.xlu0 %9049
      %9051 = vrot.lane.b32.xlu0 %v8989, 4
      %v9052 = vpop.permute.xlu0 %9051
      %9053 = vrot.lane.b32.xlu0 %v8997, 4
      %v9054 = vpop.permute.xlu0 %9053
      %9055 = vrot.lane.b32.xlu0 %v9005, 4
      %v9056 = vpop.permute.xlu0 %9055
      %9057 = vrot.lane.b32.xlu0 %v9008, 4
      %v9058 = vpop.permute.xlu0 %9057
      %v9083 = vrot.slane %v8787, 1
      %v9084 = vrot.slane %v8788, 1
      %v9085 = vsel %vm3559, %v9083, %v9084
      %v9086 = vrot.slane %v8789, 1
      %v9087 = vsel %vm3559, %v9084, %v9086
      %v9088 = vrot.slane %v8790, 1
      %v9089 = vsel %vm3559, %v9086, %v9088
      %v9090 = vrot.slane %v8791, 1
      %v9091 = vsel %vm3559, %v9088, %v9090
      %v9092 = vrot.slane %v8792, 1
      %v9093 = vsel %vm3559, %v9090, %v9092
      %v9094 = vrot.slane %v8793, 1
      %v9095 = vsel %vm3559, %v9092, %v9094
      %v9096 = vrot.slane %v8794, 1
      %v9097 = vsel %vm3559, %v9094, %v9096
      %v9098 = vrot.slane %v8795, 1
      %v9099 = vsel %vm3559, %v9096, %v9098
      %v9100 = vrot.slane %v8796, 1
      %v9101 = vsel %vm3559, %v9098, %v9100
      %v9102 = vrot.slane %v8797, 1
      %v9103 = vsel %vm3559, %v9100, %v9102
      %v9104 = vrot.slane %v8798, 1
      %v9105 = vsel %vm3559, %v9102, %v9104
      %v9106 = vrot.slane %v8799, 1
      %v9107 = vsel %vm3559, %v9104, %v9106
      %v9108 = vrot.slane %v8800, 1
      %v9109 = vsel %vm3559, %v9106, %v9108
      %v9110 = vrot.slane %v8801, 1
      %v9111 = vsel %vm3559, %v9108, %v9110
      %v9112 = vrot.slane %v8802, 1
      %v9113 = vsel %vm3559, %v9110, %v9112
      %v9114 = vrot.slane %v8803, 1
      %v9115 = vsel %vm3559, %v9112, %v9114
      %v9116 = vrot.slane %v8804, 1
      %v9117 = vsel %vm3559, %v9114, %v9116
      %v9118 = vrot.slane %v8805, 1
      %v9119 = vsel %vm3559, %v9116, %v9118
      %v9120 = vrot.slane %v8806, 1
      %v9121 = vsel %vm3559, %v9118, %v9120
      %v9122 = vrot.slane %v8807, 1
      %v9123 = vsel %vm3559, %v9120, %v9122
      %v9124 = vrot.slane %v8808, 1
      %v9125 = vsel %vm3559, %v9122, %v9124
      %v9126 = vrot.slane %v8809, 1
      %v9127 = vsel %vm3559, %v9124, %v9126
      %v9128 = vrot.slane %v8811, 1
      %v9129 = vsel %vm3559, %v9126, %v9128
      %9130 = vrot.lane.b32.xlu0 %v9083, 8
      %v9131 = vpop.permute.xlu0 %9130
      %9132 = vrot.lane.b32.xlu0 %v9085, 8
      %v9133 = vpop.permute.xlu0 %9132
      %9134 = vrot.lane.b32.xlu0 %v9087, 8
      %v9135 = vpop.permute.xlu0 %9134
      %9136 = vrot.lane.b32.xlu0 %v9089, 8
      %v9137 = vpop.permute.xlu0 %9136
      %9138 = vrot.lane.b32.xlu0 %v9091, 8
      %v9139 = vpop.permute.xlu0 %9138
      %9140 = vrot.lane.b32.xlu0 %v9093, 8
      %v9141 = vpop.permute.xlu0 %9140
      %9142 = vrot.lane.b32.xlu0 %v9095, 8
      %v9143 = vpop.permute.xlu0 %9142
      %9144 = vrot.lane.b32.xlu0 %v9097, 8
      %v9145 = vpop.permute.xlu0 %9144
      %9146 = vrot.lane.b32.xlu0 %v9099, 8
      %v9147 = vpop.permute.xlu0 %9146
      %9148 = vrot.lane.b32.xlu0 %v9101, 8
      %v9149 = vpop.permute.xlu0 %9148
      %9150 = vrot.lane.b32.xlu0 %v9103, 8
      %v9151 = vpop.permute.xlu0 %9150
      %9152 = vrot.lane.b32.xlu0 %v9105, 8
      %v9153 = vpop.permute.xlu0 %9152
      %9154 = vrot.lane.b32.xlu0 %v9107, 8
      %v9155 = vpop.permute.xlu0 %9154
      %9156 = vrot.lane.b32.xlu0 %v9109, 8
      %v9157 = vpop.permute.xlu0 %9156
      %9158 = vrot.lane.b32.xlu0 %v9111, 8
      %v9159 = vpop.permute.xlu0 %9158
      %9160 = vrot.lane.b32.xlu0 %v9113, 8
      %v9161 = vpop.permute.xlu0 %9160
      %9162 = vrot.lane.b32.xlu0 %v9115, 8
      %v9163 = vpop.permute.xlu0 %9162
      %9164 = vrot.lane.b32.xlu0 %v9117, 8
      %v9165 = vpop.permute.xlu0 %9164
      %9166 = vrot.lane.b32.xlu0 %v9119, 8
      %v9167 = vpop.permute.xlu0 %9166
      %9168 = vrot.lane.b32.xlu0 %v9121, 8
      %v9169 = vpop.permute.xlu0 %9168
      %9170 = vrot.lane.b32.xlu0 %v9123, 8
      %v9171 = vpop.permute.xlu0 %9170
      %9172 = vrot.lane.b32.xlu0 %v9125, 8
      %v9173 = vpop.permute.xlu0 %9172
      %9174 = vrot.lane.b32.xlu0 %v9127, 8
      %v9175 = vpop.permute.xlu0 %9174
      %9176 = vrot.lane.b32.xlu0 %v9129, 8
      %v9177 = vpop.permute.xlu0 %9176
      %9178 = vrot.lane.b32.xlu0 %v9128, 8
      %v9179 = vpop.permute.xlu0 %9178
      %v9180 = vrot.slane %v8822, 1
      %v9181 = vrot.slane %v8818, 2
      %v9182 = vor.u32 %v9180, %v9181
      %v9183 = vrot.slane %v8830, 1
      %v9184 = vrot.slane %v8826, 2
      %v9185 = vor.u32 %v9183, %v9184
      %v9186 = vsel %vm6208, %v9182, %v9185
      %v9187 = vrot.slane %v8838, 1
      %v9188 = vrot.slane %v8834, 2
      %v9189 = vor.u32 %v9187, %v9188
      %v9190 = vsel %vm6208, %v9185, %v9189
      %v9191 = vrot.slane %v8846, 1
      %v9192 = vrot.slane %v8842, 2
      %v9193 = vor.u32 %v9191, %v9192
      %v9194 = vsel %vm6208, %v9189, %v9193
      %v9195 = vrot.slane %v8854, 1
      %v9196 = vrot.slane %v8850, 2
      %v9197 = vor.u32 %v9195, %v9196
      %v9198 = vsel %vm6208, %v9193, %v9197
      %v9199 = vrot.slane %v8862, 1
      %v9200 = vrot.slane %v8858, 2
      %v9201 = vor.u32 %v9199, %v9200
      %v9202 = vsel %vm6208, %v9197, %v9201
      %v9203 = vrot.slane %v8870, 1
      %v9204 = vrot.slane %v8866, 2
      %v9205 = vor.u32 %v9203, %v9204
      %v9206 = vsel %vm6208, %v9201, %v9205
      %v9207 = vrot.slane %v8878, 1
      %v9208 = vrot.slane %v8874, 2
      %v9209 = vor.u32 %v9207, %v9208
      %v9210 = vsel %vm6208, %v9205, %v9209
      %v9211 = vrot.slane %v8886, 1
      %v9212 = vrot.slane %v8882, 2
      %v9213 = vor.u32 %v9211, %v9212
      %v9214 = vsel %vm6208, %v9209, %v9213
      %v9215 = vrot.slane %v8894, 1
      %v9216 = vrot.slane %v8890, 2
      %v9217 = vor.u32 %v9215, %v9216
      %v9218 = vsel %vm6208, %v9213, %v9217
      %v9219 = vrot.slane %v8902, 1
      %v9220 = vrot.slane %v8898, 2
      %v9221 = vor.u32 %v9219, %v9220
      %v9222 = vsel %vm6208, %v9217, %v9221
      %v9223 = vrot.slane %v8910, 1
      %v9224 = vrot.slane %v8906, 2
      %v9225 = vor.u32 %v9223, %v9224
      %v9226 = vsel %vm6208, %v9221, %v9225
      %v9227 = vrot.slane %v8918, 1
      %v9228 = vrot.slane %v8914, 2
      %v9229 = vor.u32 %v9227, %v9228
      %v9230 = vsel %vm6208, %v9225, %v9229
      %v9231 = vrot.slane %v8926, 1
      %v9232 = vrot.slane %v8922, 2
      %v9233 = vor.u32 %v9231, %v9232
      %v9234 = vsel %vm6208, %v9229, %v9233
      %v9235 = vrot.slane %v8934, 1
      %v9236 = vrot.slane %v8930, 2
      %v9237 = vor.u32 %v9235, %v9236
      %v9238 = vsel %vm6208, %v9233, %v9237
      %v9239 = vrot.slane %v8942, 1
      %v9240 = vrot.slane %v8938, 2
      %v9241 = vor.u32 %v9239, %v9240
      %v9242 = vsel %vm6208, %v9237, %v9241
      %v9243 = vrot.slane %v8950, 1
      %v9244 = vrot.slane %v8946, 2
      %v9245 = vor.u32 %v9243, %v9244
      %v9246 = vsel %vm6208, %v9241, %v9245
      %v9247 = vrot.slane %v8958, 1
      %v9248 = vrot.slane %v8954, 2
      %v9249 = vor.u32 %v9247, %v9248
      %v9250 = vsel %vm6208, %v9245, %v9249
      %v9251 = vrot.slane %v8966, 1
      %v9252 = vrot.slane %v8962, 2
      %v9253 = vor.u32 %v9251, %v9252
      %v9254 = vsel %vm6208, %v9249, %v9253
      %v9255 = vrot.slane %v8974, 1
      %v9256 = vrot.slane %v8970, 2
      %v9257 = vor.u32 %v9255, %v9256
      %v9258 = vsel %vm6208, %v9253, %v9257
      %v9259 = vrot.slane %v8982, 1
      %v9260 = vrot.slane %v8978, 2
      %v9261 = vor.u32 %v9259, %v9260
      %v9262 = vsel %vm6208, %v9257, %v9261
      %v9263 = vrot.slane %v8990, 1
      %v9264 = vrot.slane %v8986, 2
      %v9265 = vor.u32 %v9263, %v9264
      %v9266 = vsel %vm6208, %v9261, %v9265
      %v9267 = vrot.slane %v8998, 1
      %v9268 = vrot.slane %v8994, 2
      %v9269 = vor.u32 %v9267, %v9268
      %v9270 = vsel %vm6208, %v9265, %v9269
      %v9271 = vrot.slane %v9006, 1
      %v9272 = vrot.slane %v9002, 2
      %v9273 = vor.u32 %v9271, %v9272
      %v9274 = vsel %vm6208, %v9269, %v9273
      %v9276 = vshll.u32 %v8812, 16
      %v9278 = vrot.slane %v9276, 2
      %v9279 = vsel %vm6208, %v9273, %v9278
      %9280 = vrot.lane.b32.xlu0 %v9182, 12
      %v9281 = vpop.permute.xlu0 %9280
      %9282 = vrot.lane.b32.xlu0 %v9186, 12
      %v9283 = vpop.permute.xlu0 %9282
      %9284 = vrot.lane.b32.xlu0 %v9190, 12
      %v9285 = vpop.permute.xlu0 %9284
      %9286 = vrot.lane.b32.xlu0 %v9194, 12
      %v9287 = vpop.permute.xlu0 %9286
      %9288 = vrot.lane.b32.xlu0 %v9198, 12
      %v9289 = vpop.permute.xlu0 %9288
      %9290 = vrot.lane.b32.xlu0 %v9202, 12
      %v9291 = vpop.permute.xlu0 %9290
      %9292 = vrot.lane.b32.xlu0 %v9206, 12
      %v9293 = vpop.permute.xlu0 %9292
      %9294 = vrot.lane.b32.xlu0 %v9210, 12
      %v9295 = vpop.permute.xlu0 %9294
      %9296 = vrot.lane.b32.xlu0 %v9214, 12
      %v9297 = vpop.permute.xlu0 %9296
      %9298 = vrot.lane.b32.xlu0 %v9218, 12
      %v9299 = vpop.permute.xlu0 %9298
      %9300 = vrot.lane.b32.xlu0 %v9222, 12
      %v9301 = vpop.permute.xlu0 %9300
      %9302 = vrot.lane.b32.xlu0 %v9226, 12
      %v9303 = vpop.permute.xlu0 %9302
      %9304 = vrot.lane.b32.xlu0 %v9230, 12
      %v9305 = vpop.permute.xlu0 %9304
      %9306 = vrot.lane.b32.xlu0 %v9234, 12
      %v9307 = vpop.permute.xlu0 %9306
      %9308 = vrot.lane.b32.xlu0 %v9238, 12
      %v9309 = vpop.permute.xlu0 %9308
      %9310 = vrot.lane.b32.xlu0 %v9242, 12
      %v9311 = vpop.permute.xlu0 %9310
      %9312 = vrot.lane.b32.xlu0 %v9246, 12
      %v9313 = vpop.permute.xlu0 %9312
      %9314 = vrot.lane.b32.xlu0 %v9250, 12
      %v9315 = vpop.permute.xlu0 %9314
      %9316 = vrot.lane.b32.xlu0 %v9254, 12
      %v9317 = vpop.permute.xlu0 %9316
      %9318 = vrot.lane.b32.xlu0 %v9258, 12
      %v9319 = vpop.permute.xlu0 %9318
      %9320 = vrot.lane.b32.xlu0 %v9262, 12
      %v9321 = vpop.permute.xlu0 %9320
      %9322 = vrot.lane.b32.xlu0 %v9266, 12
      %v9323 = vpop.permute.xlu0 %9322
      %9324 = vrot.lane.b32.xlu0 %v9270, 12
      %v9325 = vpop.permute.xlu0 %9324
      %9326 = vrot.lane.b32.xlu0 %v9274, 12
      %v9327 = vpop.permute.xlu0 %9326
      %9328 = vrot.lane.b32.xlu0 %v9279, 12
      %v9329 = vpop.permute.xlu0 %9328
      %v9332 = vrot.slane %v8813, 2
      %v9333 = vrot.slane %v8788, 2
      %v9334 = vsel %vm6370, %v9332, %v9333
      %v9335 = vrot.slane %v8789, 2
      %v9336 = vsel %vm6370, %v9333, %v9335
      %v9337 = vrot.slane %v8790, 2
      %v9338 = vsel %vm6370, %v9335, %v9337
      %v9339 = vrot.slane %v8791, 2
      %v9340 = vsel %vm6370, %v9337, %v9339
      %v9341 = vrot.slane %v8792, 2
      %v9342 = vsel %vm6370, %v9339, %v9341
      %v9343 = vrot.slane %v8793, 2
      %v9344 = vsel %vm6370, %v9341, %v9343
      %v9345 = vrot.slane %v8794, 2
      %v9346 = vsel %vm6370, %v9343, %v9345
      %v9347 = vrot.slane %v8795, 2
      %v9348 = vsel %vm6370, %v9345, %v9347
      %v9349 = vrot.slane %v8796, 2
      %v9350 = vsel %vm6370, %v9347, %v9349
      %v9351 = vrot.slane %v8797, 2
      %v9352 = vsel %vm6370, %v9349, %v9351
      %v9353 = vrot.slane %v8798, 2
      %v9354 = vsel %vm6370, %v9351, %v9353
      %v9355 = vrot.slane %v8799, 2
      %v9356 = vsel %vm6370, %v9353, %v9355
      %v9357 = vrot.slane %v8800, 2
      %v9358 = vsel %vm6370, %v9355, %v9357
      %v9359 = vrot.slane %v8801, 2
      %v9360 = vsel %vm6370, %v9357, %v9359
      %v9361 = vrot.slane %v8802, 2
      %v9362 = vsel %vm6370, %v9359, %v9361
      %v9363 = vrot.slane %v8803, 2
      %v9364 = vsel %vm6370, %v9361, %v9363
      %v9365 = vrot.slane %v8804, 2
      %v9366 = vsel %vm6370, %v9363, %v9365
      %v9367 = vrot.slane %v8805, 2
      %v9368 = vsel %vm6370, %v9365, %v9367
      %v9369 = vrot.slane %v8806, 2
      %v9370 = vsel %vm6370, %v9367, %v9369
      %v9371 = vrot.slane %v8807, 2
      %v9372 = vsel %vm6370, %v9369, %v9371
      %v9373 = vrot.slane %v8808, 2
      %v9374 = vsel %vm6370, %v9371, %v9373
      %v9375 = vrot.slane %v8809, 2
      %v9376 = vsel %vm6370, %v9373, %v9375
      %v9377 = vrot.slane %v8811, 2
      %v9378 = vsel %vm6370, %v9375, %v9377
      %v9379 = vrot.slane %v8812, 2
      %v9380 = vsel %vm6370, %v9377, %v9379
      %9381 = vrot.lane.b32.xlu0 %v9332, 16
      %v9382 = vpop.permute.xlu0 %9381
      %9383 = vrot.lane.b32.xlu0 %v9334, 16
      %v9384 = vpop.permute.xlu0 %9383
      %9385 = vrot.lane.b32.xlu0 %v9336, 16
      %v9386 = vpop.permute.xlu0 %9385
      %9387 = vrot.lane.b32.xlu0 %v9338, 16
      %v9388 = vpop.permute.xlu0 %9387
      %9389 = vrot.lane.b32.xlu0 %v9340, 16
      %v9390 = vpop.permute.xlu0 %9389
      %9391 = vrot.lane.b32.xlu0 %v9342, 16
      %v9392 = vpop.permute.xlu0 %9391
      %9393 = vrot.lane.b32.xlu0 %v9344, 16
      %v9394 = vpop.permute.xlu0 %9393
      %9395 = vrot.lane.b32.xlu0 %v9346, 16
      %v9396 = vpop.permute.xlu0 %9395
      %9397 = vrot.lane.b32.xlu0 %v9348, 16
      %v9398 = vpop.permute.xlu0 %9397
      %9399 = vrot.lane.b32.xlu0 %v9350, 16
      %v9400 = vpop.permute.xlu0 %9399
      %9401 = vrot.lane.b32.xlu0 %v9352, 16
      %v9402 = vpop.permute.xlu0 %9401
      %9403 = vrot.lane.b32.xlu0 %v9354, 16
      %v9404 = vpop.permute.xlu0 %9403
      %9405 = vrot.lane.b32.xlu0 %v9356, 16
      %v9406 = vpop.permute.xlu0 %9405
      %9407 = vrot.lane.b32.xlu0 %v9358, 16
      %v9408 = vpop.permute.xlu0 %9407
      %9409 = vrot.lane.b32.xlu0 %v9360, 16
      %v9410 = vpop.permute.xlu0 %9409
      %9411 = vrot.lane.b32.xlu0 %v9362, 16
      %v9412 = vpop.permute.xlu0 %9411
      %9413 = vrot.lane.b32.xlu0 %v9364, 16
      %v9414 = vpop.permute.xlu0 %9413
      %9415 = vrot.lane.b32.xlu0 %v9366, 16
      %v9416 = vpop.permute.xlu0 %9415
      %9417 = vrot.lane.b32.xlu0 %v9368, 16
      %v9418 = vpop.permute.xlu0 %9417
      %9419 = vrot.lane.b32.xlu0 %v9370, 16
      %v9420 = vpop.permute.xlu0 %9419
      %9421 = vrot.lane.b32.xlu0 %v9372, 16
      %v9422 = vpop.permute.xlu0 %9421
      %9423 = vrot.lane.b32.xlu0 %v9374, 16
      %v9424 = vpop.permute.xlu0 %9423
      %9425 = vrot.lane.b32.xlu0 %v9376, 16
      %v9426 = vpop.permute.xlu0 %9425
      %9427 = vrot.lane.b32.xlu0 %v9378, 16
      %v9428 = vpop.permute.xlu0 %9427
      %9429 = vrot.lane.b32.xlu0 %v9380, 16
      %v9430 = vpop.permute.xlu0 %9429
      %v9432 = vsel %vm334, %v8786, %v9010
      %v9434 = vsel %vm334, %v8787, %v9012
      %v9436 = vsel %vm334, %v8788, %v9014
      %v9438 = vsel %vm334, %v8789, %v9016
      %v9440 = vsel %vm334, %v8790, %v9018
      %v9442 = vsel %vm334, %v8791, %v9020
      %v9444 = vsel %vm334, %v8792, %v9022
      %v9446 = vsel %vm334, %v8793, %v9024
      %v9448 = vsel %vm334, %v8794, %v9026
      %v9450 = vsel %vm334, %v8795, %v9028
      %v9452 = vsel %vm334, %v8796, %v9030
      %v9454 = vsel %vm334, %v8797, %v9032
      %v9456 = vsel %vm334, %v8798, %v9034
      %v9458 = vsel %vm334, %v8799, %v9036
      %v9460 = vsel %vm334, %v8800, %v9038
      %v9462 = vsel %vm334, %v8801, %v9040
      %v9464 = vsel %vm334, %v8802, %v9042
      %v9466 = vsel %vm334, %v8803, %v9044
      %v9468 = vsel %vm334, %v8804, %v9046
      %v9470 = vsel %vm334, %v8805, %v9048
      %v9472 = vsel %vm334, %v8806, %v9050
      %v9474 = vsel %vm334, %v8807, %v9052
      %v9476 = vsel %vm334, %v8808, %v9054
      %v9478 = vsel %vm334, %v8809, %v9056
      %v9481 = vsel %vm334, %v8810, %v9058
      %v9483 = vsel %vm2923, %v9432, %v9131
      %v9485 = vsel %vm2923, %v9434, %v9133
      %v9487 = vsel %vm2923, %v9436, %v9135
      %v9489 = vsel %vm2923, %v9438, %v9137
      %v9491 = vsel %vm2923, %v9440, %v9139
      %v9493 = vsel %vm2923, %v9442, %v9141
      %v9495 = vsel %vm2923, %v9444, %v9143
      %v9497 = vsel %vm2923, %v9446, %v9145
      %v9499 = vsel %vm2923, %v9448, %v9147
      %v9501 = vsel %vm2923, %v9450, %v9149
      %v9503 = vsel %vm2923, %v9452, %v9151
      %v9505 = vsel %vm2923, %v9454, %v9153
      %v9507 = vsel %vm2923, %v9456, %v9155
      %v9509 = vsel %vm2923, %v9458, %v9157
      %v9511 = vsel %vm2923, %v9460, %v9159
      %v9513 = vsel %vm2923, %v9462, %v9161
      %v9515 = vsel %vm2923, %v9464, %v9163
      %v9517 = vsel %vm2923, %v9466, %v9165
      %v9519 = vsel %vm2923, %v9468, %v9167
      %v9521 = vsel %vm2923, %v9470, %v9169
      %v9523 = vsel %vm2923, %v9472, %v9171
      %v9525 = vsel %vm2923, %v9474, %v9173
      %v9527 = vsel %vm2923, %v9476, %v9175
      %v9529 = vsel %vm2923, %v9478, %v9177
      %v9531 = vsel %vm2923, %v9481, %v9179
      %v9533 = vsel %vm6571, %v9483, %v9281
      %v9535 = vsel %vm6571, %v9485, %v9283
      %v9537 = vsel %vm6571, %v9487, %v9285
      %v9539 = vsel %vm6571, %v9489, %v9287
      %v9541 = vsel %vm6571, %v9491, %v9289
      %v9543 = vsel %vm6571, %v9493, %v9291
      %v9545 = vsel %vm6571, %v9495, %v9293
      %v9547 = vsel %vm6571, %v9497, %v9295
      %v9549 = vsel %vm6571, %v9499, %v9297
      %v9551 = vsel %vm6571, %v9501, %v9299
      %v9553 = vsel %vm6571, %v9503, %v9301
      %v9555 = vsel %vm6571, %v9505, %v9303
      %v9557 = vsel %vm6571, %v9507, %v9305
      %v9559 = vsel %vm6571, %v9509, %v9307
      %v9561 = vsel %vm6571, %v9511, %v9309
      %v9563 = vsel %vm6571, %v9513, %v9311
      %v9565 = vsel %vm6571, %v9515, %v9313
      %v9567 = vsel %vm6571, %v9517, %v9315
      %v9569 = vsel %vm6571, %v9519, %v9317
      %v9571 = vsel %vm6571, %v9521, %v9319
      %v9573 = vsel %vm6571, %v9523, %v9321
      %v9575 = vsel %vm6571, %v9525, %v9323
      %v9577 = vsel %vm6571, %v9527, %v9325
      %v9579 = vsel %vm6571, %v9529, %v9327
      %v9581 = vsel %vm6571, %v9531, %v9329
      %v9583 = vsel %vm3710, %v9533, %v9382
      %v9585 = vsel %vm3710, %v9535, %v9384
      %v9587 = vsel %vm3710, %v9537, %v9386
      %v9589 = vsel %vm3710, %v9539, %v9388
      %v9591 = vsel %vm3710, %v9541, %v9390
      %v9593 = vsel %vm3710, %v9543, %v9392
      %v9595 = vsel %vm3710, %v9545, %v9394
      %v9597 = vsel %vm3710, %v9547, %v9396
      %v9599 = vsel %vm3710, %v9549, %v9398
      %v9601 = vsel %vm3710, %v9551, %v9400
      %v9603 = vsel %vm3710, %v9553, %v9402
      %v9605 = vsel %vm3710, %v9555, %v9404
      %v9607 = vsel %vm3710, %v9557, %v9406
      %v9609 = vsel %vm3710, %v9559, %v9408
      %v9611 = vsel %vm3710, %v9561, %v9410
      %v9613 = vsel %vm3710, %v9563, %v9412
      %v9615 = vsel %vm3710, %v9565, %v9414
      %v9617 = vsel %vm3710, %v9567, %v9416
      %v9619 = vsel %vm3710, %v9569, %v9418
      %v9621 = vsel %vm3710, %v9571, %v9420
      %v9623 = vsel %vm3710, %v9573, %v9422
      %v9625 = vsel %vm3710, %v9575, %v9424
      %v9627 = vsel %vm3710, %v9577, %v9426
      %v9629 = vsel %vm3710, %v9579, %v9428
      %v9631 = vsel %vm3710, %v9581, %v9430
      %s9632 = scalar_lea.vmem %s5, 36
      %v9633 = vld [vmem:[%s9632] sm:$0xf]
      %v9634 = vld [vmem:[%s9632 + $0x4] sm:$0xf]
      %v9635 = vld [vmem:[%s9632 + $0x8] sm:$0x3]
      %v9661 = vrot.slane %v9583, 7
      %v9662 = vrot.slane %v9585, 7
      %v9663 = vsel %vm6828, %v9661, %v9662
      %v9664 = vrot.slane %v9587, 7
      %v9665 = vsel %vm6828, %v9662, %v9664
      %v9666 = vrot.slane %v9589, 7
      %v9667 = vsel %vm6828, %v9664, %v9666
      %v9668 = vrot.slane %v9591, 7
      %v9669 = vsel %vm6828, %v9666, %v9668
      %v9670 = vrot.slane %v9593, 7
      %v9671 = vsel %vm6828, %v9668, %v9670
      %v9672 = vrot.slane %v9595, 7
      %v9673 = vsel %vm6828, %v9670, %v9672
      %v9674 = vrot.slane %v9597, 7
      %v9675 = vsel %vm6828, %v9672, %v9674
      %v9676 = vrot.slane %v9599, 7
      %v9677 = vsel %vm6828, %v9674, %v9676
      %v9678 = vrot.slane %v9601, 7
      %v9679 = vsel %vm6828, %v9676, %v9678
      %v9680 = vrot.slane %v9603, 7
      %v9681 = vsel %vm6828, %v9678, %v9680
      %v9682 = vrot.slane %v9605, 7
      %v9683 = vsel %vm6828, %v9680, %v9682
      %v9684 = vrot.slane %v9607, 7
      %v9685 = vsel %vm6828, %v9682, %v9684
      %v9686 = vrot.slane %v9609, 7
      %v9687 = vsel %vm6828, %v9684, %v9686
      %v9688 = vrot.slane %v9611, 7
      %v9689 = vsel %vm6828, %v9686, %v9688
      %v9690 = vrot.slane %v9613, 7
      %v9691 = vsel %vm6828, %v9688, %v9690
      %v9692 = vrot.slane %v9615, 7
      %v9693 = vsel %vm6828, %v9690, %v9692
      %v9694 = vrot.slane %v9617, 7
      %v9695 = vsel %vm6828, %v9692, %v9694
      %v9696 = vrot.slane %v9619, 7
      %v9697 = vsel %vm6828, %v9694, %v9696
      %v9698 = vrot.slane %v9621, 7
      %v9699 = vsel %vm6828, %v9696, %v9698
      %v9700 = vrot.slane %v9623, 7
      %v9701 = vsel %vm6828, %v9698, %v9700
      %v9702 = vrot.slane %v9625, 7
      %v9703 = vsel %vm6828, %v9700, %v9702
      %v9704 = vrot.slane %v9627, 7
      %v9705 = vsel %vm6828, %v9702, %v9704
      %v9706 = vrot.slane %v9629, 7
      %v9707 = vsel %vm6828, %v9704, %v9706
      %v9708 = vrot.slane %v9631, 7
      %v9709 = vsel %vm6828, %v9706, %v9708
      %v9713 = vunpack.c.l.b16 %v9633
      %v9714 = vunpack.c.l.b16 %v9634
      %v9715 = vunpack.c.l.b16 %v9635
      %v9716 = vpack.c.b16 %v9714, %v9713
      %v9717 = vpack.c.b16 %v9715, %v9715
      %v9720 = vsel %vm6887, %v9663, 0
      %v9723 = vsel %vm6887, %v9665, 0
      %v9726 = vsel %vm6887, %v9667, 0
      %v9729 = vsel %vm6887, %v9669, 0
      %v9732 = vsel %vm6887, %v9671, 0
      %v9735 = vsel %vm6887, %v9673, 0
      %v9738 = vsel %vm6887, %v9675, 0
      %v9741 = vsel %vm6887, %v9677, 0
      %v9744 = vsel %vm6887, %v9679, 0
      %v9747 = vsel %vm6887, %v9681, 0
      %v9750 = vsel %vm6887, %v9683, 0
      %v9753 = vsel %vm6887, %v9685, 0
      %v9756 = vsel %vm6887, %v9687, 0
      %v9759 = vsel %vm6887, %v9689, 0
      %v9762 = vsel %vm6887, %v9691, 0
      %v9765 = vsel %vm6887, %v9693, 0
      %v9768 = vsel %vm6887, %v9695, 0
      %v9771 = vsel %vm6887, %v9697, 0
      %v9774 = vsel %vm6887, %v9699, 0
      %v9777 = vsel %vm6887, %v9701, 0
      %v9780 = vsel %vm6887, %v9703, 0
      %v9783 = vsel %vm6887, %v9705, 0
      %v9786 = vsel %vm6887, %v9707, 0
      %v9789 = vsel %vm6887, %v9709, 0
      %v9792 = vsel %vm1632, %v9717, 0
      %9794 = vmatprep.subr.bf16.mxu0 0
      %9795 = vmatpush1.bf16.msra.mxu0 %v9716
      %9796 = vmatprep.subr.bf16.mxu0 0
      %9797 = vmatpush1.bf16.msra.mxu0 %v9792
      %9798 = vmatprep.subr.bf16.mxu0 0
      %9799 = vmatpush1.bf16.msra.mxu0 0
      %9800 = vmatprep.subr.bf16.mxu0 0
      %9801 = vmatpush1.bf16.msra.mxu0 0
      %9802 = vmatprep.subr.bf16.mxu0 0
      %9803 = vmatpush1.bf16.msra.mxu0 0
      %9804 = vmatprep.subr.bf16.mxu0 0
      %9805 = vmatpush1.bf16.msra.mxu0 0
      %9806 = vmatprep.subr.bf16.mxu0 0
      %9807 = vmatpush1.bf16.msra.mxu0 0
      %9808 = vmatprep.subr.bf16.mxu0 0
      %9809 = vmatpush1.bf16.msra.mxu0 0
      %9810 = vmatprep.subr.bf16.mxu0 0
      %9811 = vmatpush1.bf16.msra.mxu0 0
      %9812 = vmatprep.subr.bf16.mxu0 0
      %9813 = vmatpush1.bf16.msra.mxu0 0
      %9814 = vmatprep.subr.bf16.mxu0 0
      %9815 = vmatpush1.bf16.msra.mxu0 0
      %9816 = vmatprep.subr.bf16.mxu0 0
      %9817 = vmatpush1.bf16.msra.mxu0 0
      %9818 = vmatprep.subr.bf16.mxu0 0
      %9819 = vmatpush1.bf16.msra.mxu0 0
      %9820 = vmatprep.subr.bf16.mxu0 0
      %9821 = vmatpush1.bf16.msra.mxu0 0
      %9822 = vmatprep.subr.bf16.mxu0 0
      %9823 = vmatpush1.bf16.msra.mxu0 0
      %9824 = vmatprep.subr.bf16.mxu0 0
      %9825 = vmatpush1.bf16.msra.mxu0 0
      %9826 = vmatprep.mubr.bf16.mxu0 0
      %9827 = vmatmul.mubr.bf16.gmra.mrb[0].mxu0 %v9720
      %v9828 = vpop.f32.mrb[0].mxu0
      %v9829 = vadd.f32 0.0, %v9828
      %v9830 = vpop.f32.mrb[0].mxu0
      %v9831 = vpop.f32.mrb[0].mxu0
      %v9832 = vadd.f32 0.0, %v9831
      %v9833 = vpop.f32.mrb[0].mxu0
      %9834 = vmatprep.mubr.bf16.mxu0 0
      %9835 = vmatmul.mubr.bf16.gmra.mrb[0].mxu0 %v9723
      %v9836 = vpop.f32.mrb[0].mxu0
      %v9837 = vpop.f32.mrb[0].mxu0
      %v9838 = vpop.f32.mrb[0].mxu0
      %v9839 = vadd.f32 0.0, %v9838
      %v9840 = vpop.f32.mrb[0].mxu0
      %9841 = vmatprep.mubr.bf16.mxu0 0
      %9842 = vmatmul.mubr.bf16.gmra.mrb[0].mxu0 %v9726
      %v9843 = vpop.f32.mrb[0].mxu0
      %v9844 = vadd.f32 0.0, %v9843
      %v9845 = vpop.f32.mrb[0].mxu0
      %v9846 = vpop.f32.mrb[0].mxu0
      %v9847 = vpop.f32.mrb[0].mxu0
      %9848 = vmatprep.mubr.bf16.mxu0 0
      %9849 = vmatmul.mubr.bf16.gmra.mrb[0].mxu0 %v9729
      %v9850 = vpop.f32.mrb[0].mxu0
      %v9851 = vadd.f32 0.0, %v9850
      %v9852 = vpop.f32.mrb[0].mxu0
      %v9853 = vpop.f32.mrb[0].mxu0
      %v9854 = vadd.f32 0.0, %v9853
      %v9855 = vpop.f32.mrb[0].mxu0
      %9856 = vmatprep.mubr.bf16.mxu0 0
      %9857 = vmatmul.mubr.bf16.gmra.mrb[0].mxu0 %v9732
      %v9858 = vpop.f32.mrb[0].mxu0
      %v9859 = vpop.f32.mrb[0].mxu0
      %v9860 = vpop.f32.mrb[0].mxu0
      %v9861 = vadd.f32 0.0, %v9860
      %v9862 = vpop.f32.mrb[0].mxu0
      %9863 = vmatprep.mubr.bf16.mxu0 0
      %9864 = vmatmul.mubr.bf16.gmra.mrb[0].mxu0 %v9735
      %v9865 = vpop.f32.mrb[0].mxu0
      %v9866 = vadd.f32 0.0, %v9865
      %v9867 = vpop.f32.mrb[0].mxu0
      %v9868 = vpop.f32.mrb[0].mxu0
      %v9869 = vpop.f32.mrb[0].mxu0
      %9870 = vmatprep.mubr.bf16.mxu0 0
      %9871 = vmatmul.mubr.bf16.gmra.mrb[0].mxu0 %v9738
      %v9872 = vpop.f32.mrb[0].mxu0
      %v9873 = vadd.f32 0.0, %v9872
      %v9874 = vpop.f32.mrb[0].mxu0
      %v9875 = vpop.f32.mrb[0].mxu0
      %v9876 = vadd.f32 0.0, %v9875
      %v9877 = vpop.f32.mrb[0].mxu0
      %9878 = vmatprep.mubr.bf16.mxu0 0
      %9879 = vmatmul.mubr.bf16.gmra.mrb[0].mxu0 %v9741
      %v9880 = vpop.f32.mrb[0].mxu0
      %v9881 = vpop.f32.mrb[0].mxu0
      %v9882 = vpop.f32.mrb[0].mxu0
      %v9883 = vadd.f32 0.0, %v9882
      %v9884 = vpop.f32.mrb[0].mxu0
      %9885 = vmatprep.mubr.bf16.mxu0 0
      %9886 = vmatmul.mubr.bf16.gmra.mrb[0].mxu0 %v9744
      %v9887 = vpop.f32.mrb[0].mxu0
      %v9888 = vadd.f32 0.0, %v9887
      %v9889 = vpop.f32.mrb[0].mxu0
      %v9890 = vpop.f32.mrb[0].mxu0
      %v9891 = vpop.f32.mrb[0].mxu0
      %9892 = vmatprep.mubr.bf16.mxu0 0
      %9893 = vmatmul.mubr.bf16.gmra.mrb[0].mxu0 %v9747
      %v9894 = vpop.f32.mrb[0].mxu0
      %v9895 = vadd.f32 0.0, %v9894
      %v9896 = vpop.f32.mrb[0].mxu0
      %v9897 = vpop.f32.mrb[0].mxu0
      %v9898 = vadd.f32 0.0, %v9897
      %v9899 = vpop.f32.mrb[0].mxu0
      %9900 = vmatprep.mubr.bf16.mxu0 0
      %9901 = vmatmul.mubr.bf16.gmra.mrb[0].mxu0 %v9750
      %v9902 = vpop.f32.mrb[0].mxu0
      %v9903 = vpop.f32.mrb[0].mxu0
      %v9904 = vpop.f32.mrb[0].mxu0
      %v9905 = vadd.f32 0.0, %v9904
      %v9906 = vpop.f32.mrb[0].mxu0
      %9907 = vmatprep.mubr.bf16.mxu0 0
      %9908 = vmatmul.mubr.bf16.gmra.mrb[0].mxu0 %v9753
      %v9909 = vpop.f32.mrb[0].mxu0
      %v9910 = vadd.f32 0.0, %v9909
      %v9911 = vpop.f32.mrb[0].mxu0
      %v9912 = vpop.f32.mrb[0].mxu0
      %v9913 = vpop.f32.mrb[0].mxu0
      %9914 = vmatprep.mubr.bf16.mxu0 0
      %9915 = vmatmul.mubr.bf16.gmra.mrb[0].mxu0 %v9756
      %v9916 = vpop.f32.mrb[0].mxu0
      %v9917 = vadd.f32 0.0, %v9916
      %v9918 = vpop.f32.mrb[0].mxu0
      %v9919 = vpop.f32.mrb[0].mxu0
      %v9920 = vadd.f32 0.0, %v9919
      %v9921 = vpop.f32.mrb[0].mxu0
      %9922 = vmatprep.mubr.bf16.mxu0 0
      %9923 = vmatmul.mubr.bf16.gmra.mrb[0].mxu0 %v9759
      %v9924 = vpop.f32.mrb[0].mxu0
      %v9925 = vpop.f32.mrb[0].mxu0
      %v9926 = vpop.f32.mrb[0].mxu0
      %v9927 = vadd.f32 0.0, %v9926
      %v9928 = vpop.f32.mrb[0].mxu0
      %9929 = vmatprep.mubr.bf16.mxu0 0
      %9930 = vmatmul.mubr.bf16.gmra.mrb[0].mxu0 %v9762
      %v9931 = vpop.f32.mrb[0].mxu0
      %v9932 = vadd.f32 0.0, %v9931
      %v9933 = vpop.f32.mrb[0].mxu0
      %v9934 = vpop.f32.mrb[0].mxu0
      %v9935 = vpop.f32.mrb[0].mxu0
      %9936 = vmatprep.mubr.bf16.mxu0 0
      %9937 = vmatmul.mubr.bf16.gmra.mrb[0].mxu0 %v9765
      %v9938 = vpop.f32.mrb[0].mxu0
      %v9939 = vadd.f32 0.0, %v9938
      %v9940 = vpop.f32.mrb[0].mxu0
      %v9941 = vpop.f32.mrb[0].mxu0
      %v9942 = vadd.f32 0.0, %v9941
      %v9943 = vpop.f32.mrb[0].mxu0
      %9944 = vmatprep.mubr.bf16.mxu0 0
      %9945 = vmatmul.mubr.bf16.gmra.mrb[0].mxu0 %v9768
      %v9946 = vpop.f32.mrb[0].mxu0
      %v9947 = vpop.f32.mrb[0].mxu0
      %v9948 = vpop.f32.mrb[0].mxu0
      %v9949 = vadd.f32 0.0, %v9948
      %v9950 = vpop.f32.mrb[0].mxu0
      %9951 = vmatprep.mubr.bf16.mxu0 0
      %9952 = vmatmul.mubr.bf16.gmra.mrb[0].mxu0 %v9771
      %v9953 = vpop.f32.mrb[0].mxu0
      %v9954 = vadd.f32 0.0, %v9953
      %v9955 = vpop.f32.mrb[0].mxu0
      %v9956 = vpop.f32.mrb[0].mxu0
      %v9957 = vpop.f32.mrb[0].mxu0
      %9958 = vmatprep.mubr.bf16.mxu0 0
      %9959 = vmatmul.mubr.bf16.gmra.mrb[0].mxu0 %v9774
      %v9960 = vpop.f32.mrb[0].mxu0
      %v9961 = vadd.f32 0.0, %v9960
      %v9962 = vpop.f32.mrb[0].mxu0
      %v9963 = vpop.f32.mrb[0].mxu0
      %v9964 = vadd.f32 0.0, %v9963
      %v9965 = vpop.f32.mrb[0].mxu0
      %9966 = vmatprep.mubr.bf16.mxu0 0
      %9967 = vmatmul.mubr.bf16.gmra.mrb[0].mxu0 %v9777
      %v9968 = vpop.f32.mrb[0].mxu0
      %v9969 = vpop.f32.mrb[0].mxu0
      %v9970 = vpop.f32.mrb[0].mxu0
      %v9971 = vadd.f32 0.0, %v9970
      %v9972 = vpop.f32.mrb[0].mxu0
      %9973 = vmatprep.mubr.bf16.mxu0 0
      %9974 = vmatmul.mubr.bf16.gmra.mrb[0].mxu0 %v9780
      %v9975 = vpop.f32.mrb[0].mxu0
      %v9976 = vadd.f32 0.0, %v9975
      %v9977 = vpop.f32.mrb[0].mxu0
      %v9978 = vpop.f32.mrb[0].mxu0
      %v9979 = vpop.f32.mrb[0].mxu0
      %9980 = vmatprep.mubr.bf16.mxu0 0
      %9981 = vmatmul.mubr.bf16.gmra.mrb[0].mxu0 %v9783
      %v9982 = vpop.f32.mrb[0].mxu0
      %v9983 = vadd.f32 0.0, %v9982
      %v9984 = vpop.f32.mrb[0].mxu0
      %v9985 = vpop.f32.mrb[0].mxu0
      %v9986 = vadd.f32 0.0, %v9985
      %v9987 = vpop.f32.mrb[0].mxu0
      %9988 = vmatprep.mubr.bf16.mxu0 0
      %9989 = vmatmul.mubr.bf16.gmra.mrb[0].mxu0 %v9786
      %v9990 = vpop.f32.mrb[0].mxu0
      %v9991 = vpop.f32.mrb[0].mxu0
      %v9992 = vpop.f32.mrb[0].mxu0
      %v9993 = vadd.f32 0.0, %v9992
      %v9994 = vpop.f32.mrb[0].mxu0
      %9995 = vmatprep.mubr.bf16.mxu0 0
      %9996 = vmatmul.mubr.bf16.gmra.mrb[0].mxu0 %v9789
      %v9997 = vpop.f32.mrb[0].mxu0
      %v9998 = vadd.f32 0.0, %v9997
      %v9999 = vpop.f32.mrb[0].mxu0
      %v10000 = vpop.f32.mrb[0].mxu0
      %v10001 = vpop.f32.mrb[0].mxu0
      %10002 = vdwg.mxu0
      %v10003 = vadd.f32 %v8754, %v9829
      %v10004 = vadd.f32 %v8755, %v9832
      %v10005 = vadd.f32 %v8756, %v9839
      %v10006 = vadd.f32 %v8757, %v9844
      %v10007 = vadd.f32 %v8758, %v9851
      %v10008 = vadd.f32 %v8759, %v9854
      %v10009 = vadd.f32 %v8760, %v9861
      %v10010 = vadd.f32 %v8761, %v9866
      %v10011 = vadd.f32 %v8762, %v9873
      %v10012 = vadd.f32 %v8763, %v9876
      %v10013 = vadd.f32 %v8764, %v9883
      %v10014 = vadd.f32 %v8765, %v9888
      %v10015 = vadd.f32 %v8766, %v9895
      %v10016 = vadd.f32 %v8767, %v9898
      %v10017 = vadd.f32 %v8768, %v9905
      %v10018 = vadd.f32 %v8769, %v9910
      %v10019 = vadd.f32 %v8770, %v9917
      %v10020 = vadd.f32 %v8771, %v9920
      %v10021 = vadd.f32 %v8772, %v9927
      %v10022 = vadd.f32 %v8773, %v9932
      %v10023 = vadd.f32 %v8774, %v9939
      %v10024 = vadd.f32 %v8775, %v9942
      %v10025 = vadd.f32 %v8776, %v9949
      %v10026 = vadd.f32 %v8777, %v9954
      %v10027 = vadd.f32 %v8778, %v9961
      %v10028 = vadd.f32 %v8779, %v9964
      %v10029 = vadd.f32 %v8780, %v9971
      %v10030 = vadd.f32 %v8781, %v9976
      %v10031 = vadd.f32 %v8782, %v9983
      %v10032 = vadd.f32 %v8783, %v9986
      %v10033 = vadd.f32 %v8784, %v9993
      %v10034 = vadd.f32 %v8785, %v9998
      %v10035 = vld [vmem:[#allocation4 + $0x38] sm:$0xf8]
      %v10036 = vld [vmem:[#allocation4 + $0x40] sm:$0xff]
      %v10037 = vld [vmem:[#allocation4 + $0x48] sm:$0xff]
      %v10038 = vld [vmem:[#allocation4 + $0x50] sm:$0xff]
      %v10039 = vld [vmem:[#allocation4 + $0x58] sm:$0xff]
      %v10040 = vld [vmem:[#allocation4 + $0x60] sm:$0xff]
      %v10041 = vld [vmem:[#allocation4 + $0x68] sm:$0xff]
      %v10042 = vld [vmem:[#allocation4 + $0x70] sm:$0xff]
      %v10043 = vld [vmem:[#allocation4 + $0x78] sm:$0xff]
      %v10044 = vld [vmem:[#allocation4 + $0x80] sm:$0xff]
      %v10045 = vld [vmem:[#allocation4 + $0x88] sm:$0xff]
      %v10046 = vld [vmem:[#allocation4 + $0x90] sm:$0xff]
      %v10047 = vld [vmem:[#allocation4 + $0x98] sm:$0xff]
      %v10048 = vld [vmem:[#allocation4 + $0xa0] sm:$0xff]
      %v10049 = vld [vmem:[#allocation4 + $0xa8] sm:$0xff]
      %v10050 = vld [vmem:[#allocation4 + $0xb0] sm:$0xff]
      %v10051 = vld [vmem:[#allocation4 + $0xb8] sm:$0xff]
      %v10052 = vld [vmem:[#allocation4 + $0xc0] sm:$0xff]
      %v10053 = vld [vmem:[#allocation4 + $0xc8] sm:$0xff]
      %v10054 = vld [vmem:[#allocation4 + $0xd0] sm:$0xff]
      %v10055 = vld [vmem:[#allocation4 + $0xd8] sm:$0xff]
      %v10056 = vld [vmem:[#allocation4 + $0xe0] sm:$0xff]
      %v10057 = vld [vmem:[#allocation4 + $0xe8] sm:$0xff]
      %v10058 = vld [vmem:[#allocation4 + $0xf0] sm:$0xff]
      %v10059 = vld [vmem:[#allocation4 + $0xf8] sm:$0x7]
      %v10060 = vld [vmem:[#allocation4 + $0xf8] sm:$0xf]
      %v10061 = vld [vmem:[#allocation4 + $0x38] sm:$0xf0]
      %v10062 = vld [vmem:[#allocation4 + $0xf8] sm:$0x1f]
      %v10063 = vld [vmem:[#allocation4 + $0x38] sm:$0xe0]
      %v10065 = vshrl.u32 %v10035, 16
      %v10067 = vshll.u32 %v10035, 16
      %v10069 = vrot.slane %v10067, 1
      %v10070 = vor.u32 %v10065, %v10069
      %v10072 = vshll.u32 %v10036, 16
      %v10074 = vrot.slane %v10072, 1
      %v10075 = vsel %vm3284, %v10070, %v10074
      %v10076 = vshrl.u32 %v10036, 16
      %v10078 = vor.u32 %v10076, %v10074
      %v10080 = vshll.u32 %v10037, 16
      %v10082 = vrot.slane %v10080, 1
      %v10083 = vsel %vm3284, %v10078, %v10082
      %v10084 = vshrl.u32 %v10037, 16
      %v10086 = vor.u32 %v10084, %v10082
      %v10088 = vshll.u32 %v10038, 16
      %v10090 = vrot.slane %v10088, 1
      %v10091 = vsel %vm3284, %v10086, %v10090
      %v10092 = vshrl.u32 %v10038, 16
      %v10094 = vor.u32 %v10092, %v10090
      %v10096 = vshll.u32 %v10039, 16
      %v10098 = vrot.slane %v10096, 1
      %v10099 = vsel %vm3284, %v10094, %v10098
      %v10100 = vshrl.u32 %v10039, 16
      %v10102 = vor.u32 %v10100, %v10098
      %v10104 = vshll.u32 %v10040, 16
      %v10106 = vrot.slane %v10104, 1
      %v10107 = vsel %vm3284, %v10102, %v10106
      %v10108 = vshrl.u32 %v10040, 16
      %v10110 = vor.u32 %v10108, %v10106
      %v10112 = vshll.u32 %v10041, 16
      %v10114 = vrot.slane %v10112, 1
      %v10115 = vsel %vm3284, %v10110, %v10114
      %v10116 = vshrl.u32 %v10041, 16
      %v10118 = vor.u32 %v10116, %v10114
      %v10120 = vshll.u32 %v10042, 16
      %v10122 = vrot.slane %v10120, 1
      %v10123 = vsel %vm3284, %v10118, %v10122
      %v10124 = vshrl.u32 %v10042, 16
      %v10126 = vor.u32 %v10124, %v10122
      %v10128 = vshll.u32 %v10043, 16
      %v10130 = vrot.slane %v10128, 1
      %v10131 = vsel %vm3284, %v10126, %v10130
      %v10132 = vshrl.u32 %v10043, 16
      %v10134 = vor.u32 %v10132, %v10130
      %v10136 = vshll.u32 %v10044, 16
      %v10138 = vrot.slane %v10136, 1
      %v10139 = vsel %vm3284, %v10134, %v10138
      %v10140 = vshrl.u32 %v10044, 16
      %v10142 = vor.u32 %v10140, %v10138
      %v10144 = vshll.u32 %v10045, 16
      %v10146 = vrot.slane %v10144, 1
      %v10147 = vsel %vm3284, %v10142, %v10146
      %v10148 = vshrl.u32 %v10045, 16
      %v10150 = vor.u32 %v10148, %v10146
      %v10152 = vshll.u32 %v10046, 16
      %v10154 = vrot.slane %v10152, 1
      %v10155 = vsel %vm3284, %v10150, %v10154
      %v10156 = vshrl.u32 %v10046, 16
      %v10158 = vor.u32 %v10156, %v10154
      %v10160 = vshll.u32 %v10047, 16
      %v10162 = vrot.slane %v10160, 1
      %v10163 = vsel %vm3284, %v10158, %v10162
      %v10164 = vshrl.u32 %v10047, 16
      %v10166 = vor.u32 %v10164, %v10162
      %v10168 = vshll.u32 %v10048, 16
      %v10170 = vrot.slane %v10168, 1
      %v10171 = vsel %vm3284, %v10166, %v10170
      %v10172 = vshrl.u32 %v10048, 16
      %v10174 = vor.u32 %v10172, %v10170
      %v10176 = vshll.u32 %v10049, 16
      %v10178 = vrot.slane %v10176, 1
      %v10179 = vsel %vm3284, %v10174, %v10178
      %v10180 = vshrl.u32 %v10049, 16
      %v10182 = vor.u32 %v10180, %v10178
      %v10184 = vshll.u32 %v10050, 16
      %v10186 = vrot.slane %v10184, 1
      %v10187 = vsel %vm3284, %v10182, %v10186
      %v10188 = vshrl.u32 %v10050, 16
      %v10190 = vor.u32 %v10188, %v10186
      %v10192 = vshll.u32 %v10051, 16
      %v10194 = vrot.slane %v10192, 1
      %v10195 = vsel %vm3284, %v10190, %v10194
      %v10196 = vshrl.u32 %v10051, 16
      %v10198 = vor.u32 %v10196, %v10194
      %v10200 = vshll.u32 %v10052, 16
      %v10202 = vrot.slane %v10200, 1
      %v10203 = vsel %vm3284, %v10198, %v10202
      %v10204 = vshrl.u32 %v10052, 16
      %v10206 = vor.u32 %v10204, %v10202
      %v10208 = vshll.u32 %v10053, 16
      %v10210 = vrot.slane %v10208, 1
      %v10211 = vsel %vm3284, %v10206, %v10210
      %v10212 = vshrl.u32 %v10053, 16
      %v10214 = vor.u32 %v10212, %v10210
      %v10216 = vshll.u32 %v10054, 16
      %v10218 = vrot.slane %v10216, 1
      %v10219 = vsel %vm3284, %v10214, %v10218
      %v10220 = vshrl.u32 %v10054, 16
      %v10222 = vor.u32 %v10220, %v10218
      %v10224 = vshll.u32 %v10055, 16
      %v10226 = vrot.slane %v10224, 1
      %v10227 = vsel %vm3284, %v10222, %v10226
      %v10228 = vshrl.u32 %v10055, 16
      %v10230 = vor.u32 %v10228, %v10226
      %v10232 = vshll.u32 %v10056, 16
      %v10234 = vrot.slane %v10232, 1
      %v10235 = vsel %vm3284, %v10230, %v10234
      %v10236 = vshrl.u32 %v10056, 16
      %v10238 = vor.u32 %v10236, %v10234
      %v10240 = vshll.u32 %v10057, 16
      %v10242 = vrot.slane %v10240, 1
      %v10243 = vsel %vm3284, %v10238, %v10242
      %v10244 = vshrl.u32 %v10057, 16
      %v10246 = vor.u32 %v10244, %v10242
      %v10248 = vshll.u32 %v10058, 16
      %v10250 = vrot.slane %v10248, 1
      %v10251 = vsel %vm3284, %v10246, %v10250
      %v10252 = vshrl.u32 %v10058, 16
      %v10254 = vor.u32 %v10252, %v10250
      %v10256 = vshll.u32 %v10060, 16
      %v10258 = vrot.slane %v10256, 1
      %v10259 = vsel %vm3284, %v10254, %v10258
      %v10260 = vshrl.u32 %v10060, 16
      %v10262 = vor.u32 %v10260, %v10258
      %10263 = vrot.lane.b32.xlu0 %v10075, 4
      %v10264 = vpop.permute.xlu0 %10263
      %10265 = vrot.lane.b32.xlu0 %v10083, 4
      %v10266 = vpop.permute.xlu0 %10265
      %10267 = vrot.lane.b32.xlu0 %v10091, 4
      %v10268 = vpop.permute.xlu0 %10267
      %10269 = vrot.lane.b32.xlu0 %v10099, 4
      %v10270 = vpop.permute.xlu0 %10269
      %10271 = vrot.lane.b32.xlu0 %v10107, 4
      %v10272 = vpop.permute.xlu0 %10271
      %10273 = vrot.lane.b32.xlu0 %v10115, 4
      %v10274 = vpop.permute.xlu0 %10273
      %10275 = vrot.lane.b32.xlu0 %v10123, 4
      %v10276 = vpop.permute.xlu0 %10275
      %10277 = vrot.lane.b32.xlu0 %v10131, 4
      %v10278 = vpop.permute.xlu0 %10277
      %10279 = vrot.lane.b32.xlu0 %v10139, 4
      %v10280 = vpop.permute.xlu0 %10279
      %10281 = vrot.lane.b32.xlu0 %v10147, 4
      %v10282 = vpop.permute.xlu0 %10281
      %10283 = vrot.lane.b32.xlu0 %v10155, 4
      %v10284 = vpop.permute.xlu0 %10283
      %10285 = vrot.lane.b32.xlu0 %v10163, 4
      %v10286 = vpop.permute.xlu0 %10285
      %10287 = vrot.lane.b32.xlu0 %v10171, 4
      %v10288 = vpop.permute.xlu0 %10287
      %10289 = vrot.lane.b32.xlu0 %v10179, 4
      %v10290 = vpop.permute.xlu0 %10289
      %10291 = vrot.lane.b32.xlu0 %v10187, 4
      %v10292 = vpop.permute.xlu0 %10291
      %10293 = vrot.lane.b32.xlu0 %v10195, 4
      %v10294 = vpop.permute.xlu0 %10293
      %10295 = vrot.lane.b32.xlu0 %v10203, 4
      %v10296 = vpop.permute.xlu0 %10295
      %10297 = vrot.lane.b32.xlu0 %v10211, 4
      %v10298 = vpop.permute.xlu0 %10297
      %10299 = vrot.lane.b32.xlu0 %v10219, 4
      %v10300 = vpop.permute.xlu0 %10299
      %10301 = vrot.lane.b32.xlu0 %v10227, 4
      %v10302 = vpop.permute.xlu0 %10301
      %10303 = vrot.lane.b32.xlu0 %v10235, 4
      %v10304 = vpop.permute.xlu0 %10303
      %10305 = vrot.lane.b32.xlu0 %v10243, 4
      %v10306 = vpop.permute.xlu0 %10305
      %10307 = vrot.lane.b32.xlu0 %v10251, 4
      %v10308 = vpop.permute.xlu0 %10307
      %10309 = vrot.lane.b32.xlu0 %v10259, 4
      %v10310 = vpop.permute.xlu0 %10309
      %10311 = vrot.lane.b32.xlu0 %v10262, 4
      %v10312 = vpop.permute.xlu0 %10311
      %v10338 = vrot.slane %v10061, 1
      %v10339 = vrot.slane %v10036, 1
      %v10340 = vsel %vm3559, %v10338, %v10339
      %v10341 = vrot.slane %v10037, 1
      %v10342 = vsel %vm3559, %v10339, %v10341
      %v10343 = vrot.slane %v10038, 1
      %v10344 = vsel %vm3559, %v10341, %v10343
      %v10345 = vrot.slane %v10039, 1
      %v10346 = vsel %vm3559, %v10343, %v10345
      %v10347 = vrot.slane %v10040, 1
      %v10348 = vsel %vm3559, %v10345, %v10347
      %v10349 = vrot.slane %v10041, 1
      %v10350 = vsel %vm3559, %v10347, %v10349
      %v10351 = vrot.slane %v10042, 1
      %v10352 = vsel %vm3559, %v10349, %v10351
      %v10353 = vrot.slane %v10043, 1
      %v10354 = vsel %vm3559, %v10351, %v10353
      %v10355 = vrot.slane %v10044, 1
      %v10356 = vsel %vm3559, %v10353, %v10355
      %v10357 = vrot.slane %v10045, 1
      %v10358 = vsel %vm3559, %v10355, %v10357
      %v10359 = vrot.slane %v10046, 1
      %v10360 = vsel %vm3559, %v10357, %v10359
      %v10361 = vrot.slane %v10047, 1
      %v10362 = vsel %vm3559, %v10359, %v10361
      %v10363 = vrot.slane %v10048, 1
      %v10364 = vsel %vm3559, %v10361, %v10363
      %v10365 = vrot.slane %v10049, 1
      %v10366 = vsel %vm3559, %v10363, %v10365
      %v10367 = vrot.slane %v10050, 1
      %v10368 = vsel %vm3559, %v10365, %v10367
      %v10369 = vrot.slane %v10051, 1
      %v10370 = vsel %vm3559, %v10367, %v10369
      %v10371 = vrot.slane %v10052, 1
      %v10372 = vsel %vm3559, %v10369, %v10371
      %v10373 = vrot.slane %v10053, 1
      %v10374 = vsel %vm3559, %v10371, %v10373
      %v10375 = vrot.slane %v10054, 1
      %v10376 = vsel %vm3559, %v10373, %v10375
      %v10377 = vrot.slane %v10055, 1
      %v10378 = vsel %vm3559, %v10375, %v10377
      %v10379 = vrot.slane %v10056, 1
      %v10380 = vsel %vm3559, %v10377, %v10379
      %v10381 = vrot.slane %v10057, 1
      %v10382 = vsel %vm3559, %v10379, %v10381
      %v10383 = vrot.slane %v10058, 1
      %v10384 = vsel %vm3559, %v10381, %v10383
      %v10385 = vrot.slane %v10060, 1
      %v10386 = vsel %vm3559, %v10383, %v10385
      %10387 = vrot.lane.b32.xlu0 %v10340, 8
      %v10388 = vpop.permute.xlu0 %10387
      %10389 = vrot.lane.b32.xlu0 %v10342, 8
      %v10390 = vpop.permute.xlu0 %10389
      %10391 = vrot.lane.b32.xlu0 %v10344, 8
      %v10392 = vpop.permute.xlu0 %10391
      %10393 = vrot.lane.b32.xlu0 %v10346, 8
      %v10394 = vpop.permute.xlu0 %10393
      %10395 = vrot.lane.b32.xlu0 %v10348, 8
      %v10396 = vpop.permute.xlu0 %10395
      %10397 = vrot.lane.b32.xlu0 %v10350, 8
      %v10398 = vpop.permute.xlu0 %10397
      %10399 = vrot.lane.b32.xlu0 %v10352, 8
      %v10400 = vpop.permute.xlu0 %10399
      %10401 = vrot.lane.b32.xlu0 %v10354, 8
      %v10402 = vpop.permute.xlu0 %10401
      %10403 = vrot.lane.b32.xlu0 %v10356, 8
      %v10404 = vpop.permute.xlu0 %10403
      %10405 = vrot.lane.b32.xlu0 %v10358, 8
      %v10406 = vpop.permute.xlu0 %10405
      %10407 = vrot.lane.b32.xlu0 %v10360, 8
      %v10408 = vpop.permute.xlu0 %10407
      %10409 = vrot.lane.b32.xlu0 %v10362, 8
      %v10410 = vpop.permute.xlu0 %10409
      %10411 = vrot.lane.b32.xlu0 %v10364, 8
      %v10412 = vpop.permute.xlu0 %10411
      %10413 = vrot.lane.b32.xlu0 %v10366, 8
      %v10414 = vpop.permute.xlu0 %10413
      %10415 = vrot.lane.b32.xlu0 %v10368, 8
      %v10416 = vpop.permute.xlu0 %10415
      %10417 = vrot.lane.b32.xlu0 %v10370, 8
      %v10418 = vpop.permute.xlu0 %10417
      %10419 = vrot.lane.b32.xlu0 %v10372, 8
      %v10420 = vpop.permute.xlu0 %10419
      %10421 = vrot.lane.b32.xlu0 %v10374, 8
      %v10422 = vpop.permute.xlu0 %10421
      %10423 = vrot.lane.b32.xlu0 %v10376, 8
      %v10424 = vpop.permute.xlu0 %10423
      %10425 = vrot.lane.b32.xlu0 %v10378, 8
      %v10426 = vpop.permute.xlu0 %10425
      %10427 = vrot.lane.b32.xlu0 %v10380, 8
      %v10428 = vpop.permute.xlu0 %10427
      %10429 = vrot.lane.b32.xlu0 %v10382, 8
      %v10430 = vpop.permute.xlu0 %10429
      %10431 = vrot.lane.b32.xlu0 %v10384, 8
      %v10432 = vpop.permute.xlu0 %10431
      %10433 = vrot.lane.b32.xlu0 %v10386, 8
      %v10434 = vpop.permute.xlu0 %10433
      %10435 = vrot.lane.b32.xlu0 %v10385, 8
      %v10436 = vpop.permute.xlu0 %10435
      %v10438 = vshrl.u32 %v10061, 16
      %v10440 = vrot.slane %v10438, 1
      %v10441 = vshll.u32 %v10061, 16
      %v10443 = vrot.slane %v10441, 2
      %v10444 = vor.u32 %v10440, %v10443
      %v10445 = vrot.slane %v10076, 1
      %v10446 = vrot.slane %v10072, 2
      %v10447 = vor.u32 %v10445, %v10446
      %v10448 = vsel %vm6208, %v10444, %v10447
      %v10449 = vrot.slane %v10084, 1
      %v10450 = vrot.slane %v10080, 2
      %v10451 = vor.u32 %v10449, %v10450
      %v10452 = vsel %vm6208, %v10447, %v10451
      %v10453 = vrot.slane %v10092, 1
      %v10454 = vrot.slane %v10088, 2
      %v10455 = vor.u32 %v10453, %v10454
      %v10456 = vsel %vm6208, %v10451, %v10455
      %v10457 = vrot.slane %v10100, 1
      %v10458 = vrot.slane %v10096, 2
      %v10459 = vor.u32 %v10457, %v10458
      %v10460 = vsel %vm6208, %v10455, %v10459
      %v10461 = vrot.slane %v10108, 1
      %v10462 = vrot.slane %v10104, 2
      %v10463 = vor.u32 %v10461, %v10462
      %v10464 = vsel %vm6208, %v10459, %v10463
      %v10465 = vrot.slane %v10116, 1
      %v10466 = vrot.slane %v10112, 2
      %v10467 = vor.u32 %v10465, %v10466
      %v10468 = vsel %vm6208, %v10463, %v10467
      %v10469 = vrot.slane %v10124, 1
      %v10470 = vrot.slane %v10120, 2
      %v10471 = vor.u32 %v10469, %v10470
      %v10472 = vsel %vm6208, %v10467, %v10471
      %v10473 = vrot.slane %v10132, 1
      %v10474 = vrot.slane %v10128, 2
      %v10475 = vor.u32 %v10473, %v10474
      %v10476 = vsel %vm6208, %v10471, %v10475
      %v10477 = vrot.slane %v10140, 1
      %v10478 = vrot.slane %v10136, 2
      %v10479 = vor.u32 %v10477, %v10478
      %v10480 = vsel %vm6208, %v10475, %v10479
      %v10481 = vrot.slane %v10148, 1
      %v10482 = vrot.slane %v10144, 2
      %v10483 = vor.u32 %v10481, %v10482
      %v10484 = vsel %vm6208, %v10479, %v10483
      %v10485 = vrot.slane %v10156, 1
      %v10486 = vrot.slane %v10152, 2
      %v10487 = vor.u32 %v10485, %v10486
      %v10488 = vsel %vm6208, %v10483, %v10487
      %v10489 = vrot.slane %v10164, 1
      %v10490 = vrot.slane %v10160, 2
      %v10491 = vor.u32 %v10489, %v10490
      %v10492 = vsel %vm6208, %v10487, %v10491
      %v10493 = vrot.slane %v10172, 1
      %v10494 = vrot.slane %v10168, 2
      %v10495 = vor.u32 %v10493, %v10494
      %v10496 = vsel %vm6208, %v10491, %v10495
      %v10497 = vrot.slane %v10180, 1
      %v10498 = vrot.slane %v10176, 2
      %v10499 = vor.u32 %v10497, %v10498
      %v10500 = vsel %vm6208, %v10495, %v10499
      %v10501 = vrot.slane %v10188, 1
      %v10502 = vrot.slane %v10184, 2
      %v10503 = vor.u32 %v10501, %v10502
      %v10504 = vsel %vm6208, %v10499, %v10503
      %v10505 = vrot.slane %v10196, 1
      %v10506 = vrot.slane %v10192, 2
      %v10507 = vor.u32 %v10505, %v10506
      %v10508 = vsel %vm6208, %v10503, %v10507
      %v10509 = vrot.slane %v10204, 1
      %v10510 = vrot.slane %v10200, 2
      %v10511 = vor.u32 %v10509, %v10510
      %v10512 = vsel %vm6208, %v10507, %v10511
      %v10513 = vrot.slane %v10212, 1
      %v10514 = vrot.slane %v10208, 2
      %v10515 = vor.u32 %v10513, %v10514
      %v10516 = vsel %vm6208, %v10511, %v10515
      %v10517 = vrot.slane %v10220, 1
      %v10518 = vrot.slane %v10216, 2
      %v10519 = vor.u32 %v10517, %v10518
      %v10520 = vsel %vm6208, %v10515, %v10519
      %v10521 = vrot.slane %v10228, 1
      %v10522 = vrot.slane %v10224, 2
      %v10523 = vor.u32 %v10521, %v10522
      %v10524 = vsel %vm6208, %v10519, %v10523
      %v10525 = vrot.slane %v10236, 1
      %v10526 = vrot.slane %v10232, 2
      %v10527 = vor.u32 %v10525, %v10526
      %v10528 = vsel %vm6208, %v10523, %v10527
      %v10529 = vrot.slane %v10244, 1
      %v10530 = vrot.slane %v10240, 2
      %v10531 = vor.u32 %v10529, %v10530
      %v10532 = vsel %vm6208, %v10527, %v10531
      %v10533 = vrot.slane %v10252, 1
      %v10534 = vrot.slane %v10248, 2
      %v10535 = vor.u32 %v10533, %v10534
      %v10536 = vsel %vm6208, %v10531, %v10535
      %v10538 = vshrl.u32 %v10062, 16
      %v10540 = vrot.slane %v10538, 1
      %v10541 = vshll.u32 %v10062, 16
      %v10543 = vrot.slane %v10541, 2
      %v10544 = vor.u32 %v10540, %v10543
      %v10545 = vsel %vm6208, %v10535, %v10544
      %10546 = vrot.lane.b32.xlu0 %v10448, 12
      %v10547 = vpop.permute.xlu0 %10546
      %10548 = vrot.lane.b32.xlu0 %v10452, 12
      %v10549 = vpop.permute.xlu0 %10548
      %10550 = vrot.lane.b32.xlu0 %v10456, 12
      %v10551 = vpop.permute.xlu0 %10550
      %10552 = vrot.lane.b32.xlu0 %v10460, 12
      %v10553 = vpop.permute.xlu0 %10552
      %10554 = vrot.lane.b32.xlu0 %v10464, 12
      %v10555 = vpop.permute.xlu0 %10554
      %10556 = vrot.lane.b32.xlu0 %v10468, 12
      %v10557 = vpop.permute.xlu0 %10556
      %10558 = vrot.lane.b32.xlu0 %v10472, 12
      %v10559 = vpop.permute.xlu0 %10558
      %10560 = vrot.lane.b32.xlu0 %v10476, 12
      %v10561 = vpop.permute.xlu0 %10560
      %10562 = vrot.lane.b32.xlu0 %v10480, 12
      %v10563 = vpop.permute.xlu0 %10562
      %10564 = vrot.lane.b32.xlu0 %v10484, 12
      %v10565 = vpop.permute.xlu0 %10564
      %10566 = vrot.lane.b32.xlu0 %v10488, 12
      %v10567 = vpop.permute.xlu0 %10566
      %10568 = vrot.lane.b32.xlu0 %v10492, 12
      %v10569 = vpop.permute.xlu0 %10568
      %10570 = vrot.lane.b32.xlu0 %v10496, 12
      %v10571 = vpop.permute.xlu0 %10570
      %10572 = vrot.lane.b32.xlu0 %v10500, 12
      %v10573 = vpop.permute.xlu0 %10572
      %10574 = vrot.lane.b32.xlu0 %v10504, 12
      %v10575 = vpop.permute.xlu0 %10574
      %10576 = vrot.lane.b32.xlu0 %v10508, 12
      %v10577 = vpop.permute.xlu0 %10576
      %10578 = vrot.lane.b32.xlu0 %v10512, 12
      %v10579 = vpop.permute.xlu0 %10578
      %10580 = vrot.lane.b32.xlu0 %v10516, 12
      %v10581 = vpop.permute.xlu0 %10580
      %10582 = vrot.lane.b32.xlu0 %v10520, 12
      %v10583 = vpop.permute.xlu0 %10582
      %10584 = vrot.lane.b32.xlu0 %v10524, 12
      %v10585 = vpop.permute.xlu0 %10584
      %10586 = vrot.lane.b32.xlu0 %v10528, 12
      %v10587 = vpop.permute.xlu0 %10586
      %10588 = vrot.lane.b32.xlu0 %v10532, 12
      %v10589 = vpop.permute.xlu0 %10588
      %10590 = vrot.lane.b32.xlu0 %v10536, 12
      %v10591 = vpop.permute.xlu0 %10590
      %10592 = vrot.lane.b32.xlu0 %v10545, 12
      %v10593 = vpop.permute.xlu0 %10592
      %10594 = vrot.lane.b32.xlu0 %v10544, 12
      %v10595 = vpop.permute.xlu0 %10594
      %v10598 = vrot.slane %v10063, 2
      %v10599 = vrot.slane %v10036, 2
      %v10600 = vsel %vm6370, %v10598, %v10599
      %v10601 = vrot.slane %v10037, 2
      %v10602 = vsel %vm6370, %v10599, %v10601
      %v10603 = vrot.slane %v10038, 2
      %v10604 = vsel %vm6370, %v10601, %v10603
      %v10605 = vrot.slane %v10039, 2
      %v10606 = vsel %vm6370, %v10603, %v10605
      %v10607 = vrot.slane %v10040, 2
      %v10608 = vsel %vm6370, %v10605, %v10607
      %v10609 = vrot.slane %v10041, 2
      %v10610 = vsel %vm6370, %v10607, %v10609
      %v10611 = vrot.slane %v10042, 2
      %v10612 = vsel %vm6370, %v10609, %v10611
      %v10613 = vrot.slane %v10043, 2
      %v10614 = vsel %vm6370, %v10611, %v10613
      %v10615 = vrot.slane %v10044, 2
      %v10616 = vsel %vm6370, %v10613, %v10615
      %v10617 = vrot.slane %v10045, 2
      %v10618 = vsel %vm6370, %v10615, %v10617
      %v10619 = vrot.slane %v10046, 2
      %v10620 = vsel %vm6370, %v10617, %v10619
      %v10621 = vrot.slane %v10047, 2
      %v10622 = vsel %vm6370, %v10619, %v10621
      %v10623 = vrot.slane %v10048, 2
      %v10624 = vsel %vm6370, %v10621, %v10623
      %v10625 = vrot.slane %v10049, 2
      %v10626 = vsel %vm6370, %v10623, %v10625
      %v10627 = vrot.slane %v10050, 2
      %v10628 = vsel %vm6370, %v10625, %v10627
      %v10629 = vrot.slane %v10051, 2
      %v10630 = vsel %vm6370, %v10627, %v10629
      %v10631 = vrot.slane %v10052, 2
      %v10632 = vsel %vm6370, %v10629, %v10631
      %v10633 = vrot.slane %v10053, 2
      %v10634 = vsel %vm6370, %v10631, %v10633
      %v10635 = vrot.slane %v10054, 2
      %v10636 = vsel %vm6370, %v10633, %v10635
      %v10637 = vrot.slane %v10055, 2
      %v10638 = vsel %vm6370, %v10635, %v10637
      %v10639 = vrot.slane %v10056, 2
      %v10640 = vsel %vm6370, %v10637, %v10639
      %v10641 = vrot.slane %v10057, 2
      %v10642 = vsel %vm6370, %v10639, %v10641
      %v10643 = vrot.slane %v10058, 2
      %v10644 = vsel %vm6370, %v10641, %v10643
      %v10645 = vrot.slane %v10062, 2
      %v10646 = vsel %vm6370, %v10643, %v10645
      %10647 = vrot.lane.b32.xlu0 %v10600, 16
      %v10648 = vpop.permute.xlu0 %10647
      %10649 = vrot.lane.b32.xlu0 %v10602, 16
      %v10650 = vpop.permute.xlu0 %10649
      %10651 = vrot.lane.b32.xlu0 %v10604, 16
      %v10652 = vpop.permute.xlu0 %10651
      %10653 = vrot.lane.b32.xlu0 %v10606, 16
      %v10654 = vpop.permute.xlu0 %10653
      %10655 = vrot.lane.b32.xlu0 %v10608, 16
      %v10656 = vpop.permute.xlu0 %10655
      %10657 = vrot.lane.b32.xlu0 %v10610, 16
      %v10658 = vpop.permute.xlu0 %10657
      %10659 = vrot.lane.b32.xlu0 %v10612, 16
      %v10660 = vpop.permute.xlu0 %10659
      %10661 = vrot.lane.b32.xlu0 %v10614, 16
      %v10662 = vpop.permute.xlu0 %10661
      %10663 = vrot.lane.b32.xlu0 %v10616, 16
      %v10664 = vpop.permute.xlu0 %10663
      %10665 = vrot.lane.b32.xlu0 %v10618, 16
      %v10666 = vpop.permute.xlu0 %10665
      %10667 = vrot.lane.b32.xlu0 %v10620, 16
      %v10668 = vpop.permute.xlu0 %10667
      %10669 = vrot.lane.b32.xlu0 %v10622, 16
      %v10670 = vpop.permute.xlu0 %10669
      %10671 = vrot.lane.b32.xlu0 %v10624, 16
      %v10672 = vpop.permute.xlu0 %10671
      %10673 = vrot.lane.b32.xlu0 %v10626, 16
      %v10674 = vpop.permute.xlu0 %10673
      %10675 = vrot.lane.b32.xlu0 %v10628, 16
      %v10676 = vpop.permute.xlu0 %10675
      %10677 = vrot.lane.b32.xlu0 %v10630, 16
      %v10678 = vpop.permute.xlu0 %10677
      %10679 = vrot.lane.b32.xlu0 %v10632, 16
      %v10680 = vpop.permute.xlu0 %10679
      %10681 = vrot.lane.b32.xlu0 %v10634, 16
      %v10682 = vpop.permute.xlu0 %10681
      %10683 = vrot.lane.b32.xlu0 %v10636, 16
      %v10684 = vpop.permute.xlu0 %10683
      %10685 = vrot.lane.b32.xlu0 %v10638, 16
      %v10686 = vpop.permute.xlu0 %10685
      %10687 = vrot.lane.b32.xlu0 %v10640, 16
      %v10688 = vpop.permute.xlu0 %10687
      %10689 = vrot.lane.b32.xlu0 %v10642, 16
      %v10690 = vpop.permute.xlu0 %10689
      %10691 = vrot.lane.b32.xlu0 %v10644, 16
      %v10692 = vpop.permute.xlu0 %10691
      %10693 = vrot.lane.b32.xlu0 %v10646, 16
      %v10694 = vpop.permute.xlu0 %10693
      %10695 = vrot.lane.b32.xlu0 %v10645, 16
      %v10696 = vpop.permute.xlu0 %10695
      %v10698 = vsel %vm334, %v10035, %v10264
      %v10700 = vsel %vm334, %v10036, %v10266
      %v10702 = vsel %vm334, %v10037, %v10268
      %v10704 = vsel %vm334, %v10038, %v10270
      %v10706 = vsel %vm334, %v10039, %v10272
      %v10708 = vsel %vm334, %v10040, %v10274
      %v10710 = vsel %vm334, %v10041, %v10276
      %v10712 = vsel %vm334, %v10042, %v10278
      %v10714 = vsel %vm334, %v10043, %v10280
      %v10716 = vsel %vm334, %v10044, %v10282
      %v10718 = vsel %vm334, %v10045, %v10284
      %v10720 = vsel %vm334, %v10046, %v10286
      %v10722 = vsel %vm334, %v10047, %v10288
      %v10724 = vsel %vm334, %v10048, %v10290
      %v10726 = vsel %vm334, %v10049, %v10292
      %v10728 = vsel %vm334, %v10050, %v10294
      %v10730 = vsel %vm334, %v10051, %v10296
      %v10732 = vsel %vm334, %v10052, %v10298
      %v10734 = vsel %vm334, %v10053, %v10300
      %v10736 = vsel %vm334, %v10054, %v10302
      %v10738 = vsel %vm334, %v10055, %v10304
      %v10740 = vsel %vm334, %v10056, %v10306
      %v10742 = vsel %vm334, %v10057, %v10308
      %v10744 = vsel %vm334, %v10058, %v10310
      %v10747 = vsel %vm334, %v10059, %v10312
      %v10749 = vsel %vm2923, %v10698, %v10388
      %v10751 = vsel %vm2923, %v10700, %v10390
      %v10753 = vsel %vm2923, %v10702, %v10392
      %v10755 = vsel %vm2923, %v10704, %v10394
      %v10757 = vsel %vm2923, %v10706, %v10396
      %v10759 = vsel %vm2923, %v10708, %v10398
      %v10761 = vsel %vm2923, %v10710, %v10400
      %v10763 = vsel %vm2923, %v10712, %v10402
      %v10765 = vsel %vm2923, %v10714, %v10404
      %v10767 = vsel %vm2923, %v10716, %v10406
      %v10769 = vsel %vm2923, %v10718, %v10408
      %v10771 = vsel %vm2923, %v10720, %v10410
      %v10773 = vsel %vm2923, %v10722, %v10412
      %v10775 = vsel %vm2923, %v10724, %v10414
      %v10777 = vsel %vm2923, %v10726, %v10416
      %v10779 = vsel %vm2923, %v10728, %v10418
      %v10781 = vsel %vm2923, %v10730, %v10420
      %v10783 = vsel %vm2923, %v10732, %v10422
      %v10785 = vsel %vm2923, %v10734, %v10424
      %v10787 = vsel %vm2923, %v10736, %v10426
      %v10789 = vsel %vm2923, %v10738, %v10428
      %v10791 = vsel %vm2923, %v10740, %v10430
      %v10793 = vsel %vm2923, %v10742, %v10432
      %v10795 = vsel %vm2923, %v10744, %v10434
      %v10797 = vsel %vm2923, %v10747, %v10436
      %v10799 = vsel %vm6571, %v10749, %v10547
      %v10801 = vsel %vm6571, %v10751, %v10549
      %v10803 = vsel %vm6571, %v10753, %v10551
      %v10805 = vsel %vm6571, %v10755, %v10553
      %v10807 = vsel %vm6571, %v10757, %v10555
      %v10809 = vsel %vm6571, %v10759, %v10557
      %v10811 = vsel %vm6571, %v10761, %v10559
      %v10813 = vsel %vm6571, %v10763, %v10561
      %v10815 = vsel %vm6571, %v10765, %v10563
      %v10817 = vsel %vm6571, %v10767, %v10565
      %v10819 = vsel %vm6571, %v10769, %v10567
      %v10821 = vsel %vm6571, %v10771, %v10569
      %v10823 = vsel %vm6571, %v10773, %v10571
      %v10825 = vsel %vm6571, %v10775, %v10573
      %v10827 = vsel %vm6571, %v10777, %v10575
      %v10829 = vsel %vm6571, %v10779, %v10577
      %v10831 = vsel %vm6571, %v10781, %v10579
      %v10833 = vsel %vm6571, %v10783, %v10581
      %v10835 = vsel %vm6571, %v10785, %v10583
      %v10837 = vsel %vm6571, %v10787, %v10585
      %v10839 = vsel %vm6571, %v10789, %v10587
      %v10841 = vsel %vm6571, %v10791, %v10589
      %v10843 = vsel %vm6571, %v10793, %v10591
      %v10845 = vsel %vm6571, %v10795, %v10593
      %v10847 = vsel %vm6571, %v10797, %v10595
      %v10849 = vsel %vm3710, %v10799, %v10648
      %v10851 = vsel %vm3710, %v10801, %v10650
      %v10853 = vsel %vm3710, %v10803, %v10652
      %v10855 = vsel %vm3710, %v10805, %v10654
      %v10857 = vsel %vm3710, %v10807, %v10656
      %v10859 = vsel %vm3710, %v10809, %v10658
      %v10861 = vsel %vm3710, %v10811, %v10660
      %v10863 = vsel %vm3710, %v10813, %v10662
      %v10865 = vsel %vm3710, %v10815, %v10664
      %v10867 = vsel %vm3710, %v10817, %v10666
      %v10869 = vsel %vm3710, %v10819, %v10668
      %v10871 = vsel %vm3710, %v10821, %v10670
      %v10873 = vsel %vm3710, %v10823, %v10672
      %v10875 = vsel %vm3710, %v10825, %v10674
      %v10877 = vsel %vm3710, %v10827, %v10676
      %v10879 = vsel %vm3710, %v10829, %v10678
      %v10881 = vsel %vm3710, %v10831, %v10680
      %v10883 = vsel %vm3710, %v10833, %v10682
      %v10885 = vsel %vm3710, %v10835, %v10684
      %v10887 = vsel %vm3710, %v10837, %v10686
      %v10889 = vsel %vm3710, %v10839, %v10688
      %v10891 = vsel %vm3710, %v10841, %v10690
      %v10893 = vsel %vm3710, %v10843, %v10692
      %v10895 = vsel %vm3710, %v10845, %v10694
      %v10897 = vsel %vm3710, %v10847, %v10696
      %s10898 = scalar_lea.vmem %s5, 48
      %v10899 = vld [vmem:[%s10898] sm:$0xf]
      %v10900 = vld [vmem:[%s10898 + $0x4] sm:$0xf]
      %v10901 = vld [vmem:[%s10898 + $0x8] sm:$0x3]
      %v10927 = vrot.slane %v10849, 3
      %v10928 = vrot.slane %v10851, 3
      %v10929 = vsel %vm7177, %v10927, %v10928
      %v10930 = vrot.slane %v10853, 3
      %v10931 = vsel %vm7177, %v10928, %v10930
      %v10932 = vrot.slane %v10855, 3
      %v10933 = vsel %vm7177, %v10930, %v10932
      %v10934 = vrot.slane %v10857, 3
      %v10935 = vsel %vm7177, %v10932, %v10934
      %v10936 = vrot.slane %v10859, 3
      %v10937 = vsel %vm7177, %v10934, %v10936
      %v10938 = vrot.slane %v10861, 3
      %v10939 = vsel %vm7177, %v10936, %v10938
      %v10940 = vrot.slane %v10863, 3
      %v10941 = vsel %vm7177, %v10938, %v10940
      %v10942 = vrot.slane %v10865, 3
      %v10943 = vsel %vm7177, %v10940, %v10942
      %v10944 = vrot.slane %v10867, 3
      %v10945 = vsel %vm7177, %v10942, %v10944
      %v10946 = vrot.slane %v10869, 3
      %v10947 = vsel %vm7177, %v10944, %v10946
      %v10948 = vrot.slane %v10871, 3
      %v10949 = vsel %vm7177, %v10946, %v10948
      %v10950 = vrot.slane %v10873, 3
      %v10951 = vsel %vm7177, %v10948, %v10950
      %v10952 = vrot.slane %v10875, 3
      %v10953 = vsel %vm7177, %v10950, %v10952
      %v10954 = vrot.slane %v10877, 3
      %v10955 = vsel %vm7177, %v10952, %v10954
      %v10956 = vrot.slane %v10879, 3
      %v10957 = vsel %vm7177, %v10954, %v10956
      %v10958 = vrot.slane %v10881, 3
      %v10959 = vsel %vm7177, %v10956, %v10958
      %v10960 = vrot.slane %v10883, 3
      %v10961 = vsel %vm7177, %v10958, %v10960
      %v10962 = vrot.slane %v10885, 3
      %v10963 = vsel %vm7177, %v10960, %v10962
      %v10964 = vrot.slane %v10887, 3
      %v10965 = vsel %vm7177, %v10962, %v10964
      %v10966 = vrot.slane %v10889, 3
      %v10967 = vsel %vm7177, %v10964, %v10966
      %v10968 = vrot.slane %v10891, 3
      %v10969 = vsel %vm7177, %v10966, %v10968
      %v10970 = vrot.slane %v10893, 3
      %v10971 = vsel %vm7177, %v10968, %v10970
      %v10972 = vrot.slane %v10895, 3
      %v10973 = vsel %vm7177, %v10970, %v10972
      %v10974 = vrot.slane %v10897, 3
      %v10975 = vsel %vm7177, %v10972, %v10974
      %v10979 = vunpack.c.l.b16 %v10899
      %v10980 = vunpack.c.l.b16 %v10900
      %v10981 = vunpack.c.l.b16 %v10901
      %v10982 = vpack.c.b16 %v10980, %v10979
      %v10983 = vpack.c.b16 %v10981, %v10981
      %v10986 = vsel %vm6887, %v10929, 0
      %v10989 = vsel %vm6887, %v10931, 0
      %v10992 = vsel %vm6887, %v10933, 0
      %v10995 = vsel %vm6887, %v10935, 0
      %v10998 = vsel %vm6887, %v10937, 0
      %v11001 = vsel %vm6887, %v10939, 0
      %v11004 = vsel %vm6887, %v10941, 0
      %v11007 = vsel %vm6887, %v10943, 0
      %v11010 = vsel %vm6887, %v10945, 0
      %v11013 = vsel %vm6887, %v10947, 0
      %v11016 = vsel %vm6887, %v10949, 0
      %v11019 = vsel %vm6887, %v10951, 0
      %v11022 = vsel %vm6887, %v10953, 0
      %v11025 = vsel %vm6887, %v10955, 0
      %v11028 = vsel %vm6887, %v10957, 0
      %v11031 = vsel %vm6887, %v10959, 0
      %v11034 = vsel %vm6887, %v10961, 0
      %v11037 = vsel %vm6887, %v10963, 0
      %v11040 = vsel %vm6887, %v10965, 0
      %v11043 = vsel %vm6887, %v10967, 0
      %v11046 = vsel %vm6887, %v10969, 0
      %v11049 = vsel %vm6887, %v10971, 0
      %v11052 = vsel %vm6887, %v10973, 0
      %v11055 = vsel %vm6887, %v10975, 0
      %v11058 = vsel %vm1632, %v10983, 0
      %11060 = vmatprep.subr.bf16.mxu0 0
      %11061 = vmatpush1.bf16.msra.mxu0 %v10982
      %11062 = vmatprep.subr.bf16.mxu0 0
      %11063 = vmatpush1.bf16.msra.mxu0 %v11058
      %11064 = vmatprep.subr.bf16.mxu0 0
      %11065 = vmatpush1.bf16.msra.mxu0 0
      %11066 = vmatprep.subr.bf16.mxu0 0
      %11067 = vmatpush1.bf16.msra.mxu0 0
      %11068 = vmatprep.subr.bf16.mxu0 0
      %11069 = vmatpush1.bf16.msra.mxu0 0
      %11070 = vmatprep.subr.bf16.mxu0 0
      %11071 = vmatpush1.bf16.msra.mxu0 0
      %11072 = vmatprep.subr.bf16.mxu0 0
      %11073 = vmatpush1.bf16.msra.mxu0 0
      %11074 = vmatprep.subr.bf16.mxu0 0
      %11075 = vmatpush1.bf16.msra.mxu0 0
      %11076 = vmatprep.subr.bf16.mxu0 0
      %11077 = vmatpush1.bf16.msra.mxu0 0
      %11078 = vmatprep.subr.bf16.mxu0 0
      %11079 = vmatpush1.bf16.msra.mxu0 0
      %11080 = vmatprep.subr.bf16.mxu0 0
      %11081 = vmatpush1.bf16.msra.mxu0 0
      %11082 = vmatprep.subr.bf16.mxu0 0
      %11083 = vmatpush1.bf16.msra.mxu0 0
      %11084 = vmatprep.subr.bf16.mxu0 0
      %11085 = vmatpush1.bf16.msra.mxu0 0
      %11086 = vmatprep.subr.bf16.mxu0 0
      %11087 = vmatpush1.bf16.msra.mxu0 0
      %11088 = vmatprep.subr.bf16.mxu0 0
      %11089 = vmatpush1.bf16.msra.mxu0 0
      %11090 = vmatprep.subr.bf16.mxu0 0
      %11091 = vmatpush1.bf16.msra.mxu0 0
      %11092 = vmatprep.mubr.bf16.mxu0 0
      %11093 = vmatmul.mubr.bf16.gmra.mrb[0].mxu0 %v10986
      %v11094 = vpop.f32.mrb[0].mxu0
      %v11095 = vadd.f32 0.0, %v11094
      %v11096 = vpop.f32.mrb[0].mxu0
      %v11097 = vpop.f32.mrb[0].mxu0
      %v11098 = vadd.f32 0.0, %v11097
      %v11099 = vpop.f32.mrb[0].mxu0
      %11100 = vmatprep.mubr.bf16.mxu0 0
      %11101 = vmatmul.mubr.bf16.gmra.mrb[0].mxu0 %v10989
      %v11102 = vpop.f32.mrb[0].mxu0
      %v11103 = vpop.f32.mrb[0].mxu0
      %v11104 = vpop.f32.mrb[0].mxu0
      %v11105 = vadd.f32 0.0, %v11104
      %v11106 = vpop.f32.mrb[0].mxu0
      %11107 = vmatprep.mubr.bf16.mxu0 0
      %11108 = vmatmul.mubr.bf16.gmra.mrb[0].mxu0 %v10992
      %v11109 = vpop.f32.mrb[0].mxu0
      %v11110 = vadd.f32 0.0, %v11109
      %v11111 = vpop.f32.mrb[0].mxu0
      %v11112 = vpop.f32.mrb[0].mxu0
      %v11113 = vpop.f32.mrb[0].mxu0
      %11114 = vmatprep.mubr.bf16.mxu0 0
      %11115 = vmatmul.mubr.bf16.gmra.mrb[0].mxu0 %v10995
      %v11116 = vpop.f32.mrb[0].mxu0
      %v11117 = vadd.f32 0.0, %v11116
      %v11118 = vpop.f32.mrb[0].mxu0
      %v11119 = vpop.f32.mrb[0].mxu0
      %v11120 = vadd.f32 0.0, %v11119
      %v11121 = vpop.f32.mrb[0].mxu0
      %11122 = vmatprep.mubr.bf16.mxu0 0
      %11123 = vmatmul.mubr.bf16.gmra.mrb[0].mxu0 %v10998
      %v11124 = vpop.f32.mrb[0].mxu0
      %v11125 = vpop.f32.mrb[0].mxu0
      %v11126 = vpop.f32.mrb[0].mxu0
      %v11127 = vadd.f32 0.0, %v11126
      %v11128 = vpop.f32.mrb[0].mxu0
      %11129 = vmatprep.mubr.bf16.mxu0 0
      %11130 = vmatmul.mubr.bf16.gmra.mrb[0].mxu0 %v11001
      %v11131 = vpop.f32.mrb[0].mxu0
      %v11132 = vadd.f32 0.0, %v11131
      %v11133 = vpop.f32.mrb[0].mxu0
      %v11134 = vpop.f32.mrb[0].mxu0
      %v11135 = vpop.f32.mrb[0].mxu0
      %11136 = vmatprep.mubr.bf16.mxu0 0
      %11137 = vmatmul.mubr.bf16.gmra.mrb[0].mxu0 %v11004
      %v11138 = vpop.f32.mrb[0].mxu0
      %v11139 = vadd.f32 0.0, %v11138
      %v11140 = vpop.f32.mrb[0].mxu0
      %v11141 = vpop.f32.mrb[0].mxu0
      %v11142 = vadd.f32 0.0, %v11141
      %v11143 = vpop.f32.mrb[0].mxu0
      %11144 = vmatprep.mubr.bf16.mxu0 0
      %11145 = vmatmul.mubr.bf16.gmra.mrb[0].mxu0 %v11007
      %v11146 = vpop.f32.mrb[0].mxu0
      %v11147 = vpop.f32.mrb[0].mxu0
      %v11148 = vpop.f32.mrb[0].mxu0
      %v11149 = vadd.f32 0.0, %v11148
      %v11150 = vpop.f32.mrb[0].mxu0
      %11151 = vmatprep.mubr.bf16.mxu0 0
      %11152 = vmatmul.mubr.bf16.gmra.mrb[0].mxu0 %v11010
      %v11153 = vpop.f32.mrb[0].mxu0
      %v11154 = vadd.f32 0.0, %v11153
      %v11155 = vpop.f32.mrb[0].mxu0
      %v11156 = vpop.f32.mrb[0].mxu0
      %v11157 = vpop.f32.mrb[0].mxu0
      %11158 = vmatprep.mubr.bf16.mxu0 0
      %11159 = vmatmul.mubr.bf16.gmra.mrb[0].mxu0 %v11013
      %v11160 = vpop.f32.mrb[0].mxu0
      %v11161 = vadd.f32 0.0, %v11160
      %v11162 = vpop.f32.mrb[0].mxu0
      %v11163 = vpop.f32.mrb[0].mxu0
      %v11164 = vadd.f32 0.0, %v11163
      %v11165 = vpop.f32.mrb[0].mxu0
      %11166 = vmatprep.mubr.bf16.mxu0 0
      %11167 = vmatmul.mubr.bf16.gmra.mrb[0].mxu0 %v11016
      %v11168 = vpop.f32.mrb[0].mxu0
      %v11169 = vpop.f32.mrb[0].mxu0
      %v11170 = vpop.f32.mrb[0].mxu0
      %v11171 = vadd.f32 0.0, %v11170
      %v11172 = vpop.f32.mrb[0].mxu0
      %11173 = vmatprep.mubr.bf16.mxu0 0
      %11174 = vmatmul.mubr.bf16.gmra.mrb[0].mxu0 %v11019
      %v11175 = vpop.f32.mrb[0].mxu0
      %v11176 = vadd.f32 0.0, %v11175
      %v11177 = vpop.f32.mrb[0].mxu0
      %v11178 = vpop.f32.mrb[0].mxu0
      %v11179 = vpop.f32.mrb[0].mxu0
      %11180 = vmatprep.mubr.bf16.mxu0 0
      %11181 = vmatmul.mubr.bf16.gmra.mrb[0].mxu0 %v11022
      %v11182 = vpop.f32.mrb[0].mxu0
      %v11183 = vadd.f32 0.0, %v11182
      %v11184 = vpop.f32.mrb[0].mxu0
      %v11185 = vpop.f32.mrb[0].mxu0
      %v11186 = vadd.f32 0.0, %v11185
      %v11187 = vpop.f32.mrb[0].mxu0
      %11188 = vmatprep.mubr.bf16.mxu0 0
      %11189 = vmatmul.mubr.bf16.gmra.mrb[0].mxu0 %v11025
      %v11190 = vpop.f32.mrb[0].mxu0
      %v11191 = vpop.f32.mrb[0].mxu0
      %v11192 = vpop.f32.mrb[0].mxu0
      %v11193 = vadd.f32 0.0, %v11192
      %v11194 = vpop.f32.mrb[0].mxu0
      %11195 = vmatprep.mubr.bf16.mxu0 0
      %11196 = vmatmul.mubr.bf16.gmra.mrb[0].mxu0 %v11028
      %v11197 = vpop.f32.mrb[0].mxu0
      %v11198 = vadd.f32 0.0, %v11197
      %v11199 = vpop.f32.mrb[0].mxu0
      %v11200 = vpop.f32.mrb[0].mxu0
      %v11201 = vpop.f32.mrb[0].mxu0
      %11202 = vmatprep.mubr.bf16.mxu0 0
      %11203 = vmatmul.mubr.bf16.gmra.mrb[0].mxu0 %v11031
      %v11204 = vpop.f32.mrb[0].mxu0
      %v11205 = vadd.f32 0.0, %v11204
      %v11206 = vpop.f32.mrb[0].mxu0
      %v11207 = vpop.f32.mrb[0].mxu0
      %v11208 = vadd.f32 0.0, %v11207
      %v11209 = vpop.f32.mrb[0].mxu0
      %11210 = vmatprep.mubr.bf16.mxu0 0
      %11211 = vmatmul.mubr.bf16.gmra.mrb[0].mxu0 %v11034
      %v11212 = vpop.f32.mrb[0].mxu0
      %v11213 = vpop.f32.mrb[0].mxu0
      %v11214 = vpop.f32.mrb[0].mxu0
      %v11215 = vadd.f32 0.0, %v11214
      %v11216 = vpop.f32.mrb[0].mxu0
      %11217 = vmatprep.mubr.bf16.mxu0 0
      %11218 = vmatmul.mubr.bf16.gmra.mrb[0].mxu0 %v11037
      %v11219 = vpop.f32.mrb[0].mxu0
      %v11220 = vadd.f32 0.0, %v11219
      %v11221 = vpop.f32.mrb[0].mxu0
      %v11222 = vpop.f32.mrb[0].mxu0
      %v11223 = vpop.f32.mrb[0].mxu0
      %11224 = vmatprep.mubr.bf16.mxu0 0
      %11225 = vmatmul.mubr.bf16.gmra.mrb[0].mxu0 %v11040
      %v11226 = vpop.f32.mrb[0].mxu0
      %v11227 = vadd.f32 0.0, %v11226
      %v11228 = vpop.f32.mrb[0].mxu0
      %v11229 = vpop.f32.mrb[0].mxu0
      %v11230 = vadd.f32 0.0, %v11229
      %v11231 = vpop.f32.mrb[0].mxu0
      %11232 = vmatprep.mubr.bf16.mxu0 0
      %11233 = vmatmul.mubr.bf16.gmra.mrb[0].mxu0 %v11043
      %v11234 = vpop.f32.mrb[0].mxu0
      %v11235 = vpop.f32.mrb[0].mxu0
      %v11236 = vpop.f32.mrb[0].mxu0
      %v11237 = vadd.f32 0.0, %v11236
      %v11238 = vpop.f32.mrb[0].mxu0
      %11239 = vmatprep.mubr.bf16.mxu0 0
      %11240 = vmatmul.mubr.bf16.gmra.mrb[0].mxu0 %v11046
      %v11241 = vpop.f32.mrb[0].mxu0
      %v11242 = vadd.f32 0.0, %v11241
      %v11243 = vpop.f32.mrb[0].mxu0
      %v11244 = vpop.f32.mrb[0].mxu0
      %v11245 = vpop.f32.mrb[0].mxu0
      %11246 = vmatprep.mubr.bf16.mxu0 0
      %11247 = vmatmul.mubr.bf16.gmra.mrb[0].mxu0 %v11049
      %v11248 = vpop.f32.mrb[0].mxu0
      %v11249 = vadd.f32 0.0, %v11248
      %v11250 = vpop.f32.mrb[0].mxu0
      %v11251 = vpop.f32.mrb[0].mxu0
      %v11252 = vadd.f32 0.0, %v11251
      %v11253 = vpop.f32.mrb[0].mxu0
      %11254 = vmatprep.mubr.bf16.mxu0 0
      %11255 = vmatmul.mubr.bf16.gmra.mrb[0].mxu0 %v11052
      %v11256 = vpop.f32.mrb[0].mxu0
      %v11257 = vpop.f32.mrb[0].mxu0
      %v11258 = vpop.f32.mrb[0].mxu0
      %v11259 = vadd.f32 0.0, %v11258
      %v11260 = vpop.f32.mrb[0].mxu0
      %11261 = vmatprep.mubr.bf16.mxu0 0
      %11262 = vmatmul.mubr.bf16.gmra.mrb[0].mxu0 %v11055
      %v11263 = vpop.f32.mrb[0].mxu0
      %v11264 = vadd.f32 0.0, %v11263
      %v11265 = vpop.f32.mrb[0].mxu0
      %v11266 = vpop.f32.mrb[0].mxu0
      %v11267 = vpop.f32.mrb[0].mxu0
      %11268 = vdwg.mxu0
      %v11269 = vadd.f32 %v10003, %v11095
      %v11270 = vadd.f32 %v10004, %v11098
      %v11271 = vadd.f32 %v10005, %v11105
      %v11272 = vadd.f32 %v10006, %v11110
      %v11273 = vadd.f32 %v10007, %v11117
      %v11274 = vadd.f32 %v10008, %v11120
      %v11275 = vadd.f32 %v10009, %v11127
      %v11276 = vadd.f32 %v10010, %v11132
      %v11277 = vadd.f32 %v10011, %v11139
      %v11278 = vadd.f32 %v10012, %v11142
      %v11279 = vadd.f32 %v10013, %v11149
      %v11280 = vadd.f32 %v10014, %v11154
      %v11281 = vadd.f32 %v10015, %v11161
      %v11282 = vadd.f32 %v10016, %v11164
      %v11283 = vadd.f32 %v10017, %v11171
      %v11284 = vadd.f32 %v10018, %v11176
      %v11285 = vadd.f32 %v10019, %v11183
      %v11286 = vadd.f32 %v10020, %v11186
      %v11287 = vadd.f32 %v10021, %v11193
      %v11288 = vadd.f32 %v10022, %v11198
      %v11289 = vadd.f32 %v10023, %v11205
      %v11290 = vadd.f32 %v10024, %v11208
      %v11291 = vadd.f32 %v10025, %v11215
      %v11292 = vadd.f32 %v10026, %v11220
      %v11293 = vadd.f32 %v10027, %v11227
      %v11294 = vadd.f32 %v10028, %v11230
      %v11295 = vadd.f32 %v10029, %v11237
      %v11296 = vadd.f32 %v10030, %v11242
      %v11297 = vadd.f32 %v10031, %v11249
      %v11298 = vadd.f32 %v10032, %v11252
      %v11299 = vadd.f32 %v10033, %v11259
      %v11300 = vadd.f32 %v10034, %v11264
      %v11301 = vld [vmem:[%s6] sm:$0x1]
      %v11303 = vlaneseq
      %v11304 = vshrl.u32 %v11303, 7
      %v11305 = vsub.s32 0, %v11304
      %v11306 = vrot.slane %v11301, %v11305
      %v11308 = vadd.f32 %v11269, %v11306
      %v11309 = vadd.f32 %v11270, %v11306
      %v11310 = vadd.f32 %v11271, %v11306
      %v11311 = vadd.f32 %v11272, %v11306
      %v11312 = vadd.f32 %v11273, %v11306
      %v11313 = vadd.f32 %v11274, %v11306
      %v11314 = vadd.f32 %v11275, %v11306
      %v11315 = vadd.f32 %v11276, %v11306
      %v11316 = vadd.f32 %v11277, %v11306
      %v11317 = vadd.f32 %v11278, %v11306
      %v11318 = vadd.f32 %v11279, %v11306
      %v11319 = vadd.f32 %v11280, %v11306
      %v11320 = vadd.f32 %v11281, %v11306
      %v11321 = vadd.f32 %v11282, %v11306
      %v11322 = vadd.f32 %v11283, %v11306
      %v11323 = vadd.f32 %v11284, %v11306
      %v11324 = vadd.f32 %v11285, %v11306
      %v11325 = vadd.f32 %v11286, %v11306
      %v11326 = vadd.f32 %v11287, %v11306
      %v11327 = vadd.f32 %v11288, %v11306
      %v11328 = vadd.f32 %v11289, %v11306
      %v11329 = vadd.f32 %v11290, %v11306
      %v11330 = vadd.f32 %v11291, %v11306
      %v11331 = vadd.f32 %v11292, %v11306
      %v11332 = vadd.f32 %v11293, %v11306
      %v11333 = vadd.f32 %v11294, %v11306
      %v11334 = vadd.f32 %v11295, %v11306
      %v11335 = vadd.f32 %v11296, %v11306
      %v11336 = vadd.f32 %v11297, %v11306
      %v11337 = vadd.f32 %v11298, %v11306
      %v11338 = vadd.f32 %v11299, %v11306
      %v11339 = vadd.f32 %v11300, %v11306
      %v11340 = vmax.f32 %v11308, 0.0
      %v11341 = vmax.f32 %v11309, 0.0
      %v11342 = vmax.f32 %v11310, 0.0
      %v11343 = vmax.f32 %v11311, 0.0
      %v11344 = vmax.f32 %v11312, 0.0
      %v11345 = vmax.f32 %v11313, 0.0
      %v11346 = vmax.f32 %v11314, 0.0
      %v11347 = vmax.f32 %v11315, 0.0
      %v11348 = vmax.f32 %v11316, 0.0
      %v11349 = vmax.f32 %v11317, 0.0
      %v11350 = vmax.f32 %v11318, 0.0
      %v11351 = vmax.f32 %v11319, 0.0
      %v11352 = vmax.f32 %v11320, 0.0
      %v11353 = vmax.f32 %v11321, 0.0
      %v11354 = vmax.f32 %v11322, 0.0
      %v11355 = vmax.f32 %v11323, 0.0
      %v11356 = vmax.f32 %v11324, 0.0
      %v11357 = vmax.f32 %v11325, 0.0
      %v11358 = vmax.f32 %v11326, 0.0
      %v11359 = vmax.f32 %v11327, 0.0
      %v11360 = vmax.f32 %v11328, 0.0
      %v11361 = vmax.f32 %v11329, 0.0
      %v11362 = vmax.f32 %v11330, 0.0
      %v11363 = vmax.f32 %v11331, 0.0
      %v11364 = vmax.f32 %v11332, 0.0
      %v11365 = vmax.f32 %v11333, 0.0
      %v11366 = vmax.f32 %v11334, 0.0
      %v11367 = vmax.f32 %v11335, 0.0
      %v11368 = vmax.f32 %v11336, 0.0
      %v11369 = vmax.f32 %v11337, 0.0
      %v11370 = vmax.f32 %v11338, 0.0
      %v11371 = vmax.f32 %v11339, 0.0
      %11404 = vrot.lane.b32.xlu0 %v5774, 8
      %v11405 = vpop.permute.xlu0 %11404
      %11406 = vrot.lane.b32.xlu0 %v5775, 8
      %v11407 = vpop.permute.xlu0 %11406
      %11408 = vrot.lane.b32.xlu0 %v5776, 8
      %v11409 = vpop.permute.xlu0 %11408
      %11410 = vrot.lane.b32.xlu0 %v5777, 8
      %v11411 = vpop.permute.xlu0 %11410
      %11412 = vrot.lane.b32.xlu0 %v5778, 8
      %v11413 = vpop.permute.xlu0 %11412
      %11414 = vrot.lane.b32.xlu0 %v5779, 8
      %v11415 = vpop.permute.xlu0 %11414
      %11416 = vrot.lane.b32.xlu0 %v5780, 8
      %v11417 = vpop.permute.xlu0 %11416
      %11418 = vrot.lane.b32.xlu0 %v5781, 8
      %v11419 = vpop.permute.xlu0 %11418
      %11420 = vrot.lane.b32.xlu0 %v5782, 8
      %v11421 = vpop.permute.xlu0 %11420
      %11422 = vrot.lane.b32.xlu0 %v5783, 8
      %v11423 = vpop.permute.xlu0 %11422
      %11424 = vrot.lane.b32.xlu0 %v5784, 8
      %v11425 = vpop.permute.xlu0 %11424
      %11426 = vrot.lane.b32.xlu0 %v5785, 8
      %v11427 = vpop.permute.xlu0 %11426
      %11428 = vrot.lane.b32.xlu0 %v5786, 8
      %v11429 = vpop.permute.xlu0 %11428
      %11430 = vrot.lane.b32.xlu0 %v5787, 8
      %v11431 = vpop.permute.xlu0 %11430
      %11432 = vrot.lane.b32.xlu0 %v5788, 8
      %v11433 = vpop.permute.xlu0 %11432
      %11434 = vrot.lane.b32.xlu0 %v5789, 8
      %v11435 = vpop.permute.xlu0 %11434
      %11436 = vrot.lane.b32.xlu0 %v5790, 8
      %v11437 = vpop.permute.xlu0 %11436
      %11438 = vrot.lane.b32.xlu0 %v5791, 8
      %v11439 = vpop.permute.xlu0 %11438
      %11440 = vrot.lane.b32.xlu0 %v5792, 8
      %v11441 = vpop.permute.xlu0 %11440
      %11442 = vrot.lane.b32.xlu0 %v5793, 8
      %v11443 = vpop.permute.xlu0 %11442
      %11444 = vrot.lane.b32.xlu0 %v5794, 8
      %v11445 = vpop.permute.xlu0 %11444
      %11446 = vrot.lane.b32.xlu0 %v5795, 8
      %v11447 = vpop.permute.xlu0 %11446
      %11448 = vrot.lane.b32.xlu0 %v5796, 8
      %v11449 = vpop.permute.xlu0 %11448
      %11450 = vrot.lane.b32.xlu0 %v5797, 8
      %v11451 = vpop.permute.xlu0 %11450
      %11452 = vrot.lane.b32.xlu0 %v5798, 8
      %v11453 = vpop.permute.xlu0 %11452
      %11454 = vrot.lane.b32.xlu0 %v5799, 8
      %v11455 = vpop.permute.xlu0 %11454
      %11456 = vrot.lane.b32.xlu0 %v5800, 8
      %v11457 = vpop.permute.xlu0 %11456
      %11458 = vrot.lane.b32.xlu0 %v5801, 8
      %v11459 = vpop.permute.xlu0 %11458
      %11460 = vrot.lane.b32.xlu0 %v5802, 8
      %v11461 = vpop.permute.xlu0 %11460
      %11462 = vrot.lane.b32.xlu0 %v5803, 8
      %v11463 = vpop.permute.xlu0 %11462
      %11464 = vrot.lane.b32.xlu0 %v5804, 8
      %v11465 = vpop.permute.xlu0 %11464
      %11466 = vrot.lane.b32.xlu0 %v5805, 8
      %v11467 = vpop.permute.xlu0 %11466
      %11532 = vrot.lane.b32.xlu0 %v11340, 24
      %v11533 = vpop.permute.xlu0 %11532
      %11534 = vrot.lane.b32.xlu0 %v11341, 24
      %v11535 = vpop.permute.xlu0 %11534
      %11536 = vrot.lane.b32.xlu0 %v11342, 24
      %v11537 = vpop.permute.xlu0 %11536
      %11538 = vrot.lane.b32.xlu0 %v11343, 24
      %v11539 = vpop.permute.xlu0 %11538
      %11540 = vrot.lane.b32.xlu0 %v11344, 24
      %v11541 = vpop.permute.xlu0 %11540
      %11542 = vrot.lane.b32.xlu0 %v11345, 24
      %v11543 = vpop.permute.xlu0 %11542
      %11544 = vrot.lane.b32.xlu0 %v11346, 24
      %v11545 = vpop.permute.xlu0 %11544
      %11546 = vrot.lane.b32.xlu0 %v11347, 24
      %v11547 = vpop.permute.xlu0 %11546
      %11548 = vrot.lane.b32.xlu0 %v11348, 24
      %v11549 = vpop.permute.xlu0 %11548
      %11550 = vrot.lane.b32.xlu0 %v11349, 24
      %v11551 = vpop.permute.xlu0 %11550
      %11552 = vrot.lane.b32.xlu0 %v11350, 24
      %v11553 = vpop.permute.xlu0 %11552
      %11554 = vrot.lane.b32.xlu0 %v11351, 24
      %v11555 = vpop.permute.xlu0 %11554
      %11556 = vrot.lane.b32.xlu0 %v11352, 24
      %v11557 = vpop.permute.xlu0 %11556
      %11558 = vrot.lane.b32.xlu0 %v11353, 24
      %v11559 = vpop.permute.xlu0 %11558
      %11560 = vrot.lane.b32.xlu0 %v11354, 24
      %v11561 = vpop.permute.xlu0 %11560
      %11562 = vrot.lane.b32.xlu0 %v11355, 24
      %v11563 = vpop.permute.xlu0 %11562
      %11564 = vrot.lane.b32.xlu0 %v11356, 24
      %v11565 = vpop.permute.xlu0 %11564
      %11566 = vrot.lane.b32.xlu0 %v11357, 24
      %v11567 = vpop.permute.xlu0 %11566
      %11568 = vrot.lane.b32.xlu0 %v11358, 24
      %v11569 = vpop.permute.xlu0 %11568
      %11570 = vrot.lane.b32.xlu0 %v11359, 24
      %v11571 = vpop.permute.xlu0 %11570
      %11572 = vrot.lane.b32.xlu0 %v11360, 24
      %v11573 = vpop.permute.xlu0 %11572
      %11574 = vrot.lane.b32.xlu0 %v11361, 24
      %v11575 = vpop.permute.xlu0 %11574
      %11576 = vrot.lane.b32.xlu0 %v11362, 24
      %v11577 = vpop.permute.xlu0 %11576
      %11578 = vrot.lane.b32.xlu0 %v11363, 24
      %v11579 = vpop.permute.xlu0 %11578
      %11580 = vrot.lane.b32.xlu0 %v11364, 24
      %v11581 = vpop.permute.xlu0 %11580
      %11582 = vrot.lane.b32.xlu0 %v11365, 24
      %v11583 = vpop.permute.xlu0 %11582
      %11584 = vrot.lane.b32.xlu0 %v11366, 24
      %v11585 = vpop.permute.xlu0 %11584
      %11586 = vrot.lane.b32.xlu0 %v11367, 24
      %v11587 = vpop.permute.xlu0 %11586
      %11588 = vrot.lane.b32.xlu0 %v11368, 24
      %v11589 = vpop.permute.xlu0 %11588
      %11590 = vrot.lane.b32.xlu0 %v11369, 24
      %v11591 = vpop.permute.xlu0 %11590
      %11592 = vrot.lane.b32.xlu0 %v11370, 24
      %v11593 = vpop.permute.xlu0 %11592
      %11594 = vrot.lane.b32.xlu0 %v11371, 24
      %v11595 = vpop.permute.xlu0 %11594
      %11660 = vrot.lane.b32.xlu0 %v2819, 32
      %v11661 = vpop.permute.xlu0 %11660
      %11662 = vrot.lane.b32.xlu0 %v2820, 32
      %v11663 = vpop.permute.xlu0 %11662
      %11664 = vrot.lane.b32.xlu0 %v2821, 32
      %v11665 = vpop.permute.xlu0 %11664
      %11666 = vrot.lane.b32.xlu0 %v2822, 32
      %v11667 = vpop.permute.xlu0 %11666
      %11668 = vrot.lane.b32.xlu0 %v2823, 32
      %v11669 = vpop.permute.xlu0 %11668
      %11670 = vrot.lane.b32.xlu0 %v2824, 32
      %v11671 = vpop.permute.xlu0 %11670
      %11672 = vrot.lane.b32.xlu0 %v2825, 32
      %v11673 = vpop.permute.xlu0 %11672
      %11674 = vrot.lane.b32.xlu0 %v2826, 32
      %v11675 = vpop.permute.xlu0 %11674
      %11676 = vrot.lane.b32.xlu0 %v2827, 32
      %v11677 = vpop.permute.xlu0 %11676
      %11678 = vrot.lane.b32.xlu0 %v2828, 32
      %v11679 = vpop.permute.xlu0 %11678
      %11680 = vrot.lane.b32.xlu0 %v2829, 32
      %v11681 = vpop.permute.xlu0 %11680
      %11682 = vrot.lane.b32.xlu0 %v2830, 32
      %v11683 = vpop.permute.xlu0 %11682
      %11684 = vrot.lane.b32.xlu0 %v2831, 32
      %v11685 = vpop.permute.xlu0 %11684
      %11686 = vrot.lane.b32.xlu0 %v2832, 32
      %v11687 = vpop.permute.xlu0 %11686
      %11688 = vrot.lane.b32.xlu0 %v2833, 32
      %v11689 = vpop.permute.xlu0 %11688
      %11690 = vrot.lane.b32.xlu0 %v2834, 32
      %v11691 = vpop.permute.xlu0 %11690
      %11692 = vrot.lane.b32.xlu0 %v2835, 32
      %v11693 = vpop.permute.xlu0 %11692
      %11694 = vrot.lane.b32.xlu0 %v2836, 32
      %v11695 = vpop.permute.xlu0 %11694
      %11696 = vrot.lane.b32.xlu0 %v2837, 32
      %v11697 = vpop.permute.xlu0 %11696
      %11698 = vrot.lane.b32.xlu0 %v2838, 32
      %v11699 = vpop.permute.xlu0 %11698
      %11700 = vrot.lane.b32.xlu0 %v2839, 32
      %v11701 = vpop.permute.xlu0 %11700
      %11702 = vrot.lane.b32.xlu0 %v2840, 32
      %v11703 = vpop.permute.xlu0 %11702
      %11704 = vrot.lane.b32.xlu0 %v2841, 32
      %v11705 = vpop.permute.xlu0 %11704
      %11706 = vrot.lane.b32.xlu0 %v2842, 32
      %v11707 = vpop.permute.xlu0 %11706
      %11708 = vrot.lane.b32.xlu0 %v2843, 32
      %v11709 = vpop.permute.xlu0 %11708
      %11710 = vrot.lane.b32.xlu0 %v2844, 32
      %v11711 = vpop.permute.xlu0 %11710
      %11712 = vrot.lane.b32.xlu0 %v2845, 32
      %v11713 = vpop.permute.xlu0 %11712
      %11714 = vrot.lane.b32.xlu0 %v2846, 32
      %v11715 = vpop.permute.xlu0 %11714
      %11716 = vrot.lane.b32.xlu0 %v2847, 32
      %v11717 = vpop.permute.xlu0 %11716
      %11718 = vrot.lane.b32.xlu0 %v2848, 32
      %v11719 = vpop.permute.xlu0 %11718
      %11720 = vrot.lane.b32.xlu0 %v2849, 32
      %v11721 = vpop.permute.xlu0 %11720
      %11722 = vrot.lane.b32.xlu0 %v2850, 32
      %v11723 = vpop.permute.xlu0 %11722
      %v11756 = vsel %vm2923, %v1861, %v11405
      %v11757 = vsel %vm2923, %v1862, %v11407
      %v11758 = vsel %vm2923, %v1864, %v11409
      %v11759 = vsel %vm2923, %v1865, %v11411
      %v11760 = vsel %vm2923, %v1867, %v11413
      %v11761 = vsel %vm2923, %v1868, %v11415
      %v11762 = vsel %vm2923, %v1870, %v11417
      %v11763 = vsel %vm2923, %v1871, %v11419
      %v11764 = vsel %vm2923, %v1873, %v11421
      %v11765 = vsel %vm2923, %v1874, %v11423
      %v11766 = vsel %vm2923, %v1876, %v11425
      %v11767 = vsel %vm2923, %v1877, %v11427
      %v11768 = vsel %vm2923, %v1879, %v11429
      %v11769 = vsel %vm2923, %v1880, %v11431
      %v11770 = vsel %vm2923, %v1882, %v11433
      %v11771 = vsel %vm2923, %v1883, %v11435
      %v11772 = vsel %vm2923, %v1885, %v11437
      %v11773 = vsel %vm2923, %v1886, %v11439
      %v11774 = vsel %vm2923, %v1888, %v11441
      %v11775 = vsel %vm2923, %v1889, %v11443
      %v11776 = vsel %vm2923, %v1891, %v11445
      %v11777 = vsel %vm2923, %v1892, %v11447
      %v11778 = vsel %vm2923, %v1894, %v11449
      %v11779 = vsel %vm2923, %v1895, %v11451
      %v11780 = vsel %vm2923, %v1897, %v11453
      %v11781 = vsel %vm2923, %v1898, %v11455
      %v11782 = vsel %vm2923, %v1900, %v11457
      %v11783 = vsel %vm2923, %v1901, %v11459
      %v11784 = vsel %vm2923, %v1903, %v11461
      %v11785 = vsel %vm2923, %v1904, %v11463
      %v11786 = vsel %vm2923, %v1906, %v11465
      %v11787 = vsel %vm2923, %v1907, %v11467
      %v11788 = vsel %vm4011, %v11756, %v11533
      %v11789 = vsel %vm4011, %v11757, %v11535
      %v11790 = vsel %vm4011, %v11758, %v11537
      %v11791 = vsel %vm4011, %v11759, %v11539
      %v11792 = vsel %vm4011, %v11760, %v11541
      %v11793 = vsel %vm4011, %v11761, %v11543
      %v11794 = vsel %vm4011, %v11762, %v11545
      %v11795 = vsel %vm4011, %v11763, %v11547
      %v11796 = vsel %vm4011, %v11764, %v11549
      %v11797 = vsel %vm4011, %v11765, %v11551
      %v11798 = vsel %vm4011, %v11766, %v11553
      %v11799 = vsel %vm4011, %v11767, %v11555
      %v11800 = vsel %vm4011, %v11768, %v11557
      %v11801 = vsel %vm4011, %v11769, %v11559
      %v11802 = vsel %vm4011, %v11770, %v11561
      %v11803 = vsel %vm4011, %v11771, %v11563
      %v11804 = vsel %vm4011, %v11772, %v11565
      %v11805 = vsel %vm4011, %v11773, %v11567
      %v11806 = vsel %vm4011, %v11774, %v11569
      %v11807 = vsel %vm4011, %v11775, %v11571
      %v11808 = vsel %vm4011, %v11776, %v11573
      %v11809 = vsel %vm4011, %v11777, %v11575
      %v11810 = vsel %vm4011, %v11778, %v11577
      %v11811 = vsel %vm4011, %v11779, %v11579
      %v11812 = vsel %vm4011, %v11780, %v11581
      %v11813 = vsel %vm4011, %v11781, %v11583
      %v11814 = vsel %vm4011, %v11782, %v11585
      %v11815 = vsel %vm4011, %v11783, %v11587
      %v11816 = vsel %vm4011, %v11784, %v11589
      %v11817 = vsel %vm4011, %v11785, %v11591
      %v11818 = vsel %vm4011, %v11786, %v11593
      %v11819 = vsel %vm4011, %v11787, %v11595
      %vm11820 = vcmask 261120
      %v11821 = vsel %vm11820, %v11788, %v11661
      %v11822 = vsel %vm11820, %v11789, %v11663
      %v11823 = vsel %vm11820, %v11790, %v11665
      %v11824 = vsel %vm11820, %v11791, %v11667
      %v11825 = vsel %vm11820, %v11792, %v11669
      %v11826 = vsel %vm11820, %v11793, %v11671
      %v11827 = vsel %vm11820, %v11794, %v11673
      %v11828 = vsel %vm11820, %v11795, %v11675
      %v11829 = vsel %vm11820, %v11796, %v11677
      %v11830 = vsel %vm11820, %v11797, %v11679
      %v11831 = vsel %vm11820, %v11798, %v11681
      %v11832 = vsel %vm11820, %v11799, %v11683
      %v11833 = vsel %vm11820, %v11800, %v11685
      %v11834 = vsel %vm11820, %v11801, %v11687
      %v11835 = vsel %vm11820, %v11802, %v11689
      %v11836 = vsel %vm11820, %v11803, %v11691
      %v11837 = vsel %vm11820, %v11804, %v11693
      %v11838 = vsel %vm11820, %v11805, %v11695
      %v11839 = vsel %vm11820, %v11806, %v11697
      %v11840 = vsel %vm11820, %v11807, %v11699
      %v11841 = vsel %vm11820, %v11808, %v11701
      %v11842 = vsel %vm11820, %v11809, %v11703
      %v11843 = vsel %vm11820, %v11810, %v11705
      %v11844 = vsel %vm11820, %v11811, %v11707
      %v11845 = vsel %vm11820, %v11812, %v11709
      %v11846 = vsel %vm11820, %v11813, %v11711
      %v11847 = vsel %vm11820, %v11814, %v11713
      %v11848 = vsel %vm11820, %v11815, %v11715
      %v11849 = vsel %vm11820, %v11816, %v11717
      %v11850 = vsel %vm11820, %v11817, %v11719
      %v11851 = vsel %vm11820, %v11818, %v11721
      %v11852 = vsel %vm11820, %v11819, %v11723
      %vm11853 = vcmask 326656
      %v11854 = vsel %vm11853, %v11821, 0.0
      %v11855 = vsel %vm11853, %v11822, 0.0
      %v11856 = vsel %vm11853, %v11823, 0.0
      %v11857 = vsel %vm11853, %v11824, 0.0
      %v11858 = vsel %vm11853, %v11825, 0.0
      %v11859 = vsel %vm11853, %v11826, 0.0
      %v11860 = vsel %vm11853, %v11827, 0.0
      %v11861 = vsel %vm11853, %v11828, 0.0
      %v11862 = vsel %vm11853, %v11829, 0.0
      %v11863 = vsel %vm11853, %v11830, 0.0
      %v11864 = vsel %vm11853, %v11831, 0.0
      %v11865 = vsel %vm11853, %v11832, 0.0
      %v11866 = vsel %vm11853, %v11833, 0.0
      %v11867 = vsel %vm11853, %v11834, 0.0
      %v11868 = vsel %vm11853, %v11835, 0.0
      %v11869 = vsel %vm11853, %v11836, 0.0
      %v11870 = vsel %vm11853, %v11837, 0.0
      %v11871 = vsel %vm11853, %v11838, 0.0
      %v11872 = vsel %vm11853, %v11839, 0.0
      %v11873 = vsel %vm11853, %v11840, 0.0
      %v11874 = vsel %vm11853, %v11841, 0.0
      %v11875 = vsel %vm11853, %v11842, 0.0
      %v11876 = vsel %vm11853, %v11843, 0.0
      %v11877 = vsel %vm11853, %v11844, 0.0
      %v11878 = vsel %vm11853, %v11845, 0.0
      %v11879 = vsel %vm11853, %v11846, 0.0
      %v11880 = vsel %vm11853, %v11847, 0.0
      %v11881 = vsel %vm11853, %v11848, 0.0
      %v11882 = vsel %vm11853, %v11849, 0.0
      %v11883 = vsel %vm11853, %v11850, 0.0
      %v11884 = vsel %vm11853, %v11851, 0.0
      %v11885 = vsel %vm11853, %v11852, 0.0
      %11886 = vst [vmem:[%s332] sm:$0xff] %v11854
      %11887 = vst [vmem:[%s332 + $0x8] sm:$0xff] %v11855
      %s11888 = scalar_lea.vmem %s332, 16
      %11889 = vst [vmem:[%s11888] sm:$0xff] %v11856
      %11890 = vst [vmem:[%s11888 + $0x8] sm:$0xff] %v11857
      %s11891 = scalar_lea.vmem %s332, 32
      %11892 = vst [vmem:[%s11891] sm:$0xff] %v11858
      %11893 = vst [vmem:[%s11891 + $0x8] sm:$0xff] %v11859
      %s11894 = scalar_lea.vmem %s332, 48
      %11895 = vst [vmem:[%s11894] sm:$0xff] %v11860
      %11896 = vst [vmem:[%s11894 + $0x8] sm:$0xff] %v11861
      %s11897 = scalar_lea.vmem %s332, 64
      %11898 = vst [vmem:[%s11897] sm:$0xff] %v11862
      %11899 = vst [vmem:[%s11897 + $0x8] sm:$0xff] %v11863
      %s11900 = scalar_lea.vmem %s332, 80
      %11901 = vst [vmem:[%s11900] sm:$0xff] %v11864
      %11902 = vst [vmem:[%s11900 + $0x8] sm:$0xff] %v11865
      %s11903 = scalar_lea.vmem %s332, 96
      %11904 = vst [vmem:[%s11903] sm:$0xff] %v11866
      %11905 = vst [vmem:[%s11903 + $0x8] sm:$0xff] %v11867
      %s11906 = scalar_lea.vmem %s332, 112
      %11907 = vst [vmem:[%s11906] sm:$0xff] %v11868
      %11908 = vst [vmem:[%s11906 + $0x8] sm:$0xff] %v11869
      %s11909 = scalar_lea.vmem %s332, 128
      %11910 = vst [vmem:[%s11909] sm:$0xff] %v11870
      %11911 = vst [vmem:[%s11909 + $0x8] sm:$0xff] %v11871
      %s11912 = scalar_lea.vmem %s332, 144
      %11913 = vst [vmem:[%s11912] sm:$0xff] %v11872
      %11914 = vst [vmem:[%s11912 + $0x8] sm:$0xff] %v11873
      %s11915 = scalar_lea.vmem %s332, 160
      %11916 = vst [vmem:[%s11915] sm:$0xff] %v11874
      %11917 = vst [vmem:[%s11915 + $0x8] sm:$0xff] %v11875
      %s11918 = scalar_lea.vmem %s332, 176
      %11919 = vst [vmem:[%s11918] sm:$0xff] %v11876
      %11920 = vst [vmem:[%s11918 + $0x8] sm:$0xff] %v11877
      %s11921 = scalar_lea.vmem %s332, 192
      %11922 = vst [vmem:[%s11921] sm:$0xff] %v11878
      %11923 = vst [vmem:[%s11921 + $0x8] sm:$0xff] %v11879
      %s11924 = scalar_lea.vmem %s332, 208
      %11925 = vst [vmem:[%s11924] sm:$0xff] %v11880
      %11926 = vst [vmem:[%s11924 + $0x8] sm:$0xff] %v11881
      %s11927 = scalar_lea.vmem %s332, 224
      %11928 = vst [vmem:[%s11927] sm:$0xff] %v11882
      %11929 = vst [vmem:[%s11927 + $0x8] sm:$0xff] %v11883
      %s11930 = scalar_lea.vmem %s332, 240
      %11931 = vst [vmem:[%s11930] sm:$0xff] %v11884
      %11932 = vst [vmem:[%s11930 + $0x8] sm:$0xff] %v11885
      %p11933 = scmp.lt.s32.totalorder %s20, 1
      %s11934 = scalar_select %p11933, %s20, 1
      %s11935 = smul.addr %s11934, 32
      %s11936 = smul.addr %s11935, 8
      %s11937 = scalar_lea.vmem %s9, %s11936
      // Predicated region
      $region57: #{inceptionv1_block.1} parent=55 // pred_check
        %p11938 = pneg %p232
      $region58: #{inceptionv1_block.1} parent=55 // pred_check_branch
        %11940 = sbr.rel (%p11938) target = $region60
      $region59: #{inceptionv1_block.1} parent=55 // pred_region
        _
      $region60: #{inceptionv1_block.1} parent=55 // pred_fallthru
        _
    $region56: #{inceptionv1_block.1} parent=5 // pred_fallthru
      _
    %p11941 = scmp.le.s32.totalorder 2, %s15
    // Predicated region
    $region61: #{inceptionv1_block.1} parent=5 // pred_check
      %p11942 = pneg %p11941
    $region62: #{inceptionv1_block.1} parent=5 // pred_check_branch
      %11944 = sbr.rel (%p11942) target = $region64
    $region63: #{inceptionv1_block.1} parent=5 // pred_region
      %s11945 = ssub.s32 %s15, 2
      // Predicated region
      $region65: #{inceptionv1_block.1} parent=63 // pred_check
        %p11946 = pneg %p238
      $region66: #{inceptionv1_block.1} parent=63 // pred_check_branch
        %11948 = sbr.rel (%p11946) target = $region68
      $region67: #{inceptionv1_block.1} parent=63 // pred_region
        %p11949 = scmp.lt.s32.totalorder %s21, 1
        %s11950 = scalar_select %p11949, %s21, 1
        %s11951 = smul.addr %s11950, 32
        %s11952 = smul.addr %s11951, 8
        %s11953 = scalar_lea.vmem %s9, %s11952
      $region68: #{inceptionv1_block.1} parent=63 // pred_fallthru
        _
    $region64: #{inceptionv1_block.1} parent=5 // pred_fallthru
      _
  $region6: #{inceptionv1_block.1} parent=0 // loop_footer
    %s19 = sadd.s32 1, %s15
  $region7: #{inceptionv1_block.1} parent=0 // loop_footer_branch
    %14 = sbr.rel target = $region3
  $region8: #{inceptionv1_block.1} parent=0 // loop_exit
    _

</llo_original>
